<compile_context>
chip_gen: v5e
topology: v5e:2x2
jax: 0.10.0
libtpu: 0.0.40
codegen_flags: <defaults>
</compile_context>

<pallas_src>
import functools
import math

import jax
import jax.numpy as jnp
from jax.experimental import pallas as pl
from jax.experimental.pallas import tpu as pltpu

# ---- small synthetic BERT config (stand-in for bert-base: hidden=768 etc.) ----
VOCAB = 128                  # one lane-width: enables one-hot MXU embedding gather
HIDDEN = 256                 # lane-dense: multiple of 128
NUM_HEADS = 2
HEAD_DIM = HIDDEN // NUM_HEADS   # 128 -> head slices are 128-lane aligned
FFN = 4 * HIDDEN             # 1024
NUM_LAYERS = 2
MAX_POS = 16
NUM_CLASSES = 3
PAD_CLASSES = 128            # fc1 output padded to a lane-dense width
LN_EPS = 1e-12


# --------------------------- in-kernel helpers (f32 math) ----------------------
def _layernorm(x, g, b, eps=LN_EPS):
    mu = jnp.mean(x, axis=-1, keepdims=True)
    var = jnp.mean(jnp.square(x - mu), axis=-1, keepdims=True)
    return (x - mu) * jax.lax.rsqrt(var + eps) * g + b


def _gelu(x):
    # TODO(synk): reference BERT uses exact erf GELU; tanh approximation used here.
    return 0.5 * x * (1.0 + jnp.tanh(0.7978845608028654 * (x + 0.044715 * x * x * x)))


# ----------------------------- fused Pallas kernel ------------------------------
def _bert_fused_kernel(ids_ref, tok_emb_ref, pos_typ_ref, emb_g_ref, emb_b_ref,
                       mask_ref,
                       wqkv_ref, bqkv_ref, wo_ref, bo_ref, ln1g_ref, ln1b_ref,
                       w1_ref, b1_ref, w2_ref, b2_ref, ln2g_ref, ln2b_ref,
                       pool_w_ref, pool_b_ref, fc1_w_ref, fc1_b_ref,
                       logits_ref, *, batch, seq, num_heads, head_dim,
                       num_layers, scale):
    rows = batch * seq
    h_dim = num_heads * head_dim
    vocab = tok_emb_ref.shape[0]

    # --- embeddings: one-hot MXU "gather" + pos/type add + LayerNorm, all in VMEM ---
    ids = ids_ref[...]                                                    # (rows, 1) i32
    vocab_iota = jax.lax.broadcasted_iota(jnp.int32, (rows, vocab), 1)
    onehot = (vocab_iota == ids).astype(jnp.float32)                      # (rows, VOCAB)
    tok = jnp.dot(onehot, tok_emb_ref[...],
                  preferred_element_type=jnp.float32)                     # (rows, H)
    x = _layernorm(tok + pos_typ_ref[...], emb_g_ref[...], emb_b_ref[...])

    mask = mask_ref[...]                                                   # (rows, rows)

    # --- transformer layers, unrolled; weights stacked along leading L axis ---
    for l in range(num_layers):
        # fused QKV projection over all B*S rows (bf16 operands, f32 accumulation)
        qkv = jnp.dot(x.astype(jnp.bfloat16), wqkv_ref[l],
                      preferred_element_type=jnp.float32) + bqkv_ref[l]    # (rows, 3H)
        wo_l = wo_ref[l]                                                   # (H, H) bf16

        attn_out = None
        for h in range(num_heads):
            q = qkv[:, h * head_dim:(h + 1) * head_dim]                    # (rows, Dh)
            k = qkv[:, h_dim + h * head_dim:h_dim + (h + 1) * head_dim]
            v = qkv[:, 2 * h_dim + h * head_dim:2 * h_dim + (h + 1) * head_dim]
            # q @ k^T without materializing a transpose in HBM
            s = jax.lax.dot_general(q, k, (((1,), (1,)), ((), ())),
                                    preferred_element_type=jnp.float32)
            s = s * scale + mask                                           # block-diag mask
            s = s - jnp.max(s, axis=-1, keepdims=True)
            p = jnp.exp(s)
            p = p / jnp.sum(p, axis=-1, keepdims=True)                     # exact softmax
            ctx = jnp.dot(p, v, preferred_element_type=jnp.float32)        # (rows, Dh)
            # per-head accumulation into the output projection (no lane concat)
            contrib = jnp.dot(ctx.astype(jnp.bfloat16),
                              wo_l[h * head_dim:(h + 1) * head_dim, :],
                              preferred_element_type=jnp.float32)
            attn_out = contrib if attn_out is None else attn_out + contrib

        attn_out = attn_out + bo_ref[l]
        x1 = _layernorm(x + attn_out, ln1g_ref[l], ln1b_ref[l])

        # FFN (GELU) + residual + LN2
        ff = jnp.dot(x1.astype(jnp.bfloat16), w1_ref[l],
                     preferred_element_type=jnp.float32) + b1_ref[l]
        ff = _gelu(ff)
        ff = jnp.dot(ff.astype(jnp.bfloat16), w2_ref[l],
                     preferred_element_type=jnp.float32) + b2_ref[l]
        x = _layernorm(x1 + ff, ln2g_ref[l], ln2b_ref[l])

    # --- pooler + dropout(identity, eval) + fc1 head, fused (CLS row per batch elem) ---
    cls = jnp.concatenate([x[b * seq:b * seq + 1, :] for b in range(batch)], axis=0)
    pooled = jnp.tanh(jnp.dot(cls.astype(jnp.bfloat16), pool_w_ref[...],
                              preferred_element_type=jnp.float32) + pool_b_ref[...])
    # TODO(synk): Dropout(p=0.1) is identity in eval mode; no training path implemented.
    logits = jnp.dot(pooled.astype(jnp.bfloat16), fc1_w_ref[...],
                     preferred_element_type=jnp.float32) + fc1_b_ref[...]  # (B, 128)
    logits_ref[...] = logits.astype(logits_ref.dtype)


# ----------------------------- Pallas wrapper -----------------------------------
def _full_spec(shape):
    ndim = len(shape)
    return pl.BlockSpec(tuple(shape), lambda i, _n=ndim: (0,) * _n)


def bert_encoder_fused(ids, pos_typ, mask_add, prep, *, batch, seq):
    kernel = functools.partial(
        _bert_fused_kernel, batch=batch, seq=seq, num_heads=NUM_HEADS,
        head_dim=HEAD_DIM, num_layers=NUM_LAYERS, scale=1.0 / math.sqrt(HEAD_DIM))
    operands = (
        ids, prep["tok_emb"], pos_typ, prep["emb_ln_g"], prep["emb_ln_b"], mask_add,
        prep["wqkv"], prep["bqkv"], prep["wo"], prep["bo"],
        prep["ln1_g"], prep["ln1_b"], prep["w1"], prep["b1"],
        prep["w2"], prep["b2"], prep["ln2_g"], prep["ln2_b"],
        prep["pool_w"], prep["pool_b"], prep["fc1_w_pad"], prep["fc1_b_pad"],
    )
    return pl.pallas_call(
        kernel,
        out_shape=jax.ShapeDtypeStruct((batch, PAD_CLASSES), jnp.float32),
        grid=(1,),
        in_specs=[_full_spec(op.shape) for op in operands],
        out_specs=pl.BlockSpec((batch, PAD_CLASSES), lambda i: (0, 0)),
        compiler_params=pltpu.CompilerParams(dimension_semantics=("arbitrary",)),
    )(*operands)


# --------------------------- parameter initialization --------------------------
def init_params(key):
    def nrm(k, shape, scale=0.02):
        return scale * jax.random.normal(k, shape, dtype=jnp.float32)

    keys = jax.random.split(key, 8 + NUM_LAYERS)
    p = {
        "tok_emb": nrm(keys[0], (VOCAB, HIDDEN)),
        "pos_emb": nrm(keys[1], (MAX_POS, HIDDEN)),
        "typ_emb": nrm(keys[2], (2, HIDDEN)),
        "emb_ln_g": jnp.ones((HIDDEN,), jnp.float32),
        "emb_ln_b": jnp.zeros((HIDDEN,), jnp.float32),
        "pool_w": nrm(keys[3], (HIDDEN, HIDDEN)),
        "pool_b": jnp.zeros((HIDDEN,), jnp.float32),
        "fc1_w": nrm(keys[4], (HIDDEN, NUM_CLASSES)),
        "fc1_b": jnp.zeros((NUM_CLASSES,), jnp.float32),
        "layers": [],
    }
    for l in range(NUM_LAYERS):
        lk = jax.random.split(keys[8 + l], 6)
        p["layers"].append({
            "wq": nrm(lk[0], (HIDDEN, HIDDEN)), "bq": jnp.zeros((HIDDEN,), jnp.float32),
            "wk": nrm(lk[1], (HIDDEN, HIDDEN)), "bk": jnp.zeros((HIDDEN,), jnp.float32),
            "wv": nrm(lk[2], (HIDDEN, HIDDEN)), "bv": jnp.zeros((HIDDEN,), jnp.float32),
            "wo": nrm(lk[3], (HIDDEN, HIDDEN)), "bo": jnp.zeros((HIDDEN,), jnp.float32),
            "w1": nrm(lk[4], (HIDDEN, FFN)),    "b1": jnp.zeros((FFN,), jnp.float32),
            "w2": nrm(lk[5], (FFN, HIDDEN)),    "b2": jnp.zeros((HIDDEN,), jnp.float32),
            "ln1_g": jnp.ones((HIDDEN,), jnp.float32), "ln1_b": jnp.zeros((HIDDEN,), jnp.float32),
            "ln2_g": jnp.ones((HIDDEN,), jnp.float32), "ln2_b": jnp.zeros((HIDDEN,), jnp.float32),
        })
    return p


def prepare_params(p):
    """One-time inference prep (backbone is frozen): fuse Q/K/V weights, stack all
    layer weights along a leading L axis, cast matmul weights to bf16, fold
    pos+token_type embeddings, pad fc1 to a lane-dense width."""
    H = HIDDEN

    def stack(fn):
        return jnp.stack([fn(l) for l in p["layers"]], axis=0)

    # TODO(synk): pos_typ folds token_type_emb[0] only (assumes token_type_ids == 0).
    prep = {
        "tok_emb": p["tok_emb"],                                        # (VOCAB, H) f32
        "pos_typ": p["pos_emb"] + p["typ_emb"][0][None, :],             # (MAX_POS, H)
        "emb_ln_g": p["emb_ln_g"].reshape(1, H),
        "emb_ln_b": p["emb_ln_b"].reshape(1, H),
        "wqkv": stack(lambda l: jnp.concatenate([l["wq"], l["wk"], l["wv"]], axis=1)
                      ).astype(jnp.bfloat16),                           # (L, H, 3H)
        "bqkv": stack(lambda l: jnp.concatenate([l["bq"], l["bk"], l["bv"]]).reshape(1, 3 * H)),
        "wo": stack(lambda l: l["wo"]).astype(jnp.bfloat16),            # (L, H, H)
        "bo": stack(lambda l: l["bo"].reshape(1, H)),
        "ln1_g": stack(lambda l: l["ln1_g"].reshape(1, H)),
        "ln1_b": stack(lambda l: l["ln1_b"].reshape(1, H)),
        "w1": stack(lambda l: l["w1"]).astype(jnp.bfloat16),            # (L, H, FFN)
        "b1": stack(lambda l: l["b1"].reshape(1, FFN)),
        "w2": stack(lambda l: l["w2"]).astype(jnp.bfloat16),            # (L, FFN, H)
        "b2": stack(lambda l: l["b2"].reshape(1, H)),
        "ln2_g": stack(lambda l: l["ln2_g"].reshape(1, H)),
        "ln2_b": stack(lambda l: l["ln2_b"].reshape(1, H)),
        "pool_w": p["pool_w"].astype(jnp.bfloat16),
        "pool_b": p["pool_b"].reshape(1, H),
        "fc1_w_pad": jnp.zeros((H, PAD_CLASSES), jnp.float32)
                        .at[:, :NUM_CLASSES].set(p["fc1_w"]).astype(jnp.bfloat16),
        "fc1_b_pad": jnp.zeros((1, PAD_CLASSES), jnp.float32)
                        .at[0, :NUM_CLASSES].set(p["fc1_b"]),
    }
    return prep


# ------------------------------- forward pass ----------------------------------
def bert_network_forward(prep, input_ids, attention_mask):
    B, S = input_ids.shape
    rows = B * S

    # tiny JAX-side layout glue (everything heavy happens inside the fused kernel)
    ids = input_ids.reshape(rows, 1).astype(jnp.int32)
    pos_typ = jnp.tile(prep["pos_typ"][:S], (B, 1))                     # (B*S, H)

    # block-diagonal additive mask: row (b, i) attends only to keys of batch b
    # that are not padded.
    same_batch = (jnp.arange(rows)[:, None] // S) == (jnp.arange(rows)[None, :] // S)
    key_ok = attention_mask.reshape(rows).astype(bool)
    mask_add = jnp.where(same_batch & key_ok[None, :], 0.0, -1e9).astype(jnp.float32)

    logits_pad = bert_encoder_fused(ids, pos_typ, mask_add, prep, batch=B, seq=S)
    return logits_pad[:, :NUM_CLASSES]                                  # (B, 3)


# ----------------------------------- main ---------------------------------------
if __name__ == "__main__":
    B, S = 2, 8
    key = jax.random.PRNGKey(0)
    k_param, k_ids = jax.random.split(key)

    params = init_params(k_param)
    prep = prepare_params(params)

    input_ids = jax.random.randint(k_ids, (B, S), 0, VOCAB, dtype=jnp.int32)
    # batch 0 fully valid; batch 1 has last 2 tokens padded
    attention_mask = (jnp.arange(S)[None, :] < jnp.array([[S], [S - 2]])).astype(jnp.int32)

    logits = jax.jit(bert_network_forward)(prep, input_ids, attention_mask)
    logits = jax.block_until_ready(logits)
    assert logits.shape == (B, NUM_CLASSES)
    assert bool(jnp.all(jnp.isfinite(logits)))
    print("KERNEL_OK")
</pallas_src>

<mosaic_0001>
module attributes {stable_mosaic.version = 11 : i64} {
  func.func @_bert_fused_kernel(%arg0: i32, %arg1: memref<16x1xi32, #tpu.memory_space<vmem>>, %arg2: memref<128x256xf32, #tpu.memory_space<vmem>>, %arg3: memref<16x256xf32, #tpu.memory_space<vmem>>, %arg4: memref<1x256xf32, #tpu.memory_space<vmem>>, %arg5: memref<1x256xf32, #tpu.memory_space<vmem>>, %arg6: memref<16x16xf32, #tpu.memory_space<vmem>>, %arg7: memref<2x256x768xbf16, #tpu.memory_space<vmem>>, %arg8: memref<2x1x768xf32, #tpu.memory_space<vmem>>, %arg9: memref<2x256x256xbf16, #tpu.memory_space<vmem>>, %arg10: memref<2x1x256xf32, #tpu.memory_space<vmem>>, %arg11: memref<2x1x256xf32, #tpu.memory_space<vmem>>, %arg12: memref<2x1x256xf32, #tpu.memory_space<vmem>>, %arg13: memref<2x256x1024xbf16, #tpu.memory_space<vmem>>, %arg14: memref<2x1x1024xf32, #tpu.memory_space<vmem>>, %arg15: memref<2x1024x256xbf16, #tpu.memory_space<vmem>>, %arg16: memref<2x1x256xf32, #tpu.memory_space<vmem>>, %arg17: memref<2x1x256xf32, #tpu.memory_space<vmem>>, %arg18: memref<2x1x256xf32, #tpu.memory_space<vmem>>, %arg19: memref<256x256xbf16, #tpu.memory_space<vmem>>, %arg20: memref<1x256xf32, #tpu.memory_space<vmem>>, %arg21: memref<256x128xbf16, #tpu.memory_space<vmem>>, %arg22: memref<1x128xf32, #tpu.memory_space<vmem>>, %arg23: memref<2x128xf32, #tpu.memory_space<vmem>>) attributes {dimension_semantics = [#tpu.dimension_semantics<arbitrary>], iteration_bounds = array<i64: 1>, scalar_prefetch = 0 : i64, scratch_operands = 0 : i64, tpu.core_type = #tpu.core_type<tc>, window_params = [{pipeline_mode = #tpu.pipeline_mode<synchronous>, transform_indices = @transform_0, window_bounds = array<i64: 16, 1>}, {pipeline_mode = #tpu.pipeline_mode<synchronous>, transform_indices = @transform_1, window_bounds = array<i64: 128, 256>}, {pipeline_mode = #tpu.pipeline_mode<synchronous>, transform_indices = @transform_2, window_bounds = array<i64: 16, 256>}, {pipeline_mode = #tpu.pipeline_mode<synchronous>, transform_indices = @transform_3, window_bounds = array<i64: 1, 256>}, {pipeline_mode = #tpu.pipeline_mode<synchronous>, transform_indices = @transform_4, window_bounds = array<i64: 1, 256>}, {pipeline_mode = #tpu.pipeline_mode<synchronous>, transform_indices = @transform_5, window_bounds = array<i64: 16, 16>}, {pipeline_mode = #tpu.pipeline_mode<synchronous>, transform_indices = @transform_6, window_bounds = array<i64: 2, 256, 768>}, {pipeline_mode = #tpu.pipeline_mode<synchronous>, transform_indices = @transform_7, window_bounds = array<i64: 2, 1, 768>}, {pipeline_mode = #tpu.pipeline_mode<synchronous>, transform_indices = @transform_8, window_bounds = array<i64: 2, 256, 256>}, {pipeline_mode = #tpu.pipeline_mode<synchronous>, transform_indices = @transform_9, window_bounds = array<i64: 2, 1, 256>}, {pipeline_mode = #tpu.pipeline_mode<synchronous>, transform_indices = @transform_10, window_bounds = array<i64: 2, 1, 256>}, {pipeline_mode = #tpu.pipeline_mode<synchronous>, transform_indices = @transform_11, window_bounds = array<i64: 2, 1, 256>}, {pipeline_mode = #tpu.pipeline_mode<synchronous>, transform_indices = @transform_12, window_bounds = array<i64: 2, 256, 1024>}, {pipeline_mode = #tpu.pipeline_mode<synchronous>, transform_indices = @transform_13, window_bounds = array<i64: 2, 1, 1024>}, {pipeline_mode = #tpu.pipeline_mode<synchronous>, transform_indices = @transform_14, window_bounds = array<i64: 2, 1024, 256>}, {pipeline_mode = #tpu.pipeline_mode<synchronous>, transform_indices = @transform_15, window_bounds = array<i64: 2, 1, 256>}, {pipeline_mode = #tpu.pipeline_mode<synchronous>, transform_indices = @transform_16, window_bounds = array<i64: 2, 1, 256>}, {pipeline_mode = #tpu.pipeline_mode<synchronous>, transform_indices = @transform_17, window_bounds = array<i64: 2, 1, 256>}, {pipeline_mode = #tpu.pipeline_mode<synchronous>, transform_indices = @transform_18, window_bounds = array<i64: 256, 256>}, {pipeline_mode = #tpu.pipeline_mode<synchronous>, transform_indices = @transform_19, window_bounds = array<i64: 1, 256>}, {pipeline_mode = #tpu.pipeline_mode<synchronous>, transform_indices = @transform_20, window_bounds = array<i64: 256, 128>}, {pipeline_mode = #tpu.pipeline_mode<synchronous>, transform_indices = @transform_21, window_bounds = array<i64: 1, 128>}, {pipeline_mode = #tpu.pipeline_mode<synchronous>, transform_indices = @transform_22, window_bounds = array<i64: 2, 128>}]} {
    %c0 = arith.constant 0 : index
    %c0_0 = arith.constant 0 : index
    %0 = vector.load %arg1[%c0, %c0_0] : memref<16x1xi32, #tpu.memory_space<vmem>>, vector<16x1xi32>
    %1 = tpu.iota {dimensions = array<i32: 1>} : vector<16x128xi32>
    %2 = vector.broadcast %0 : vector<16x1xi32> to vector<16x128xi32>
    %3 = arith.cmpi eq, %1, %2 : vector<16x128xi32>
    %4 = arith.extui %3 : vector<16x128xi1> to vector<16x128xi32>
    %5 = arith.sitofp %4 : vector<16x128xi32> to vector<16x128xf32>
    %c0_1 = arith.constant 0 : index
    %c0_2 = arith.constant 0 : index
    %6 = vector.load %arg2[%c0_1, %c0_2] : memref<128x256xf32, #tpu.memory_space<vmem>>, vector<128x256xf32>
    %cst = arith.constant dense<0.000000e+00> : vector<16x256xf32>
    %7 = tpu.matmul %5, %6, %cst {dimension_numbers = #tpu.dot_dimension_numbers<[1], [0], [0], [1], [0, 0, 1, 1], [], []>} : vector<16x128xf32>, vector<128x256xf32>, vector<16x256xf32> -> vector<16x256xf32>
    %c0_3 = arith.constant 0 : index
    %c0_4 = arith.constant 0 : index
    %8 = vector.load %arg3[%c0_3, %c0_4] : memref<16x256xf32, #tpu.memory_space<vmem>>, vector<16x256xf32>
    %9 = arith.addf %7, %8 : vector<16x256xf32>
    %c0_5 = arith.constant 0 : index
    %c0_6 = arith.constant 0 : index
    %10 = vector.load %arg4[%c0_5, %c0_6] : memref<1x256xf32, #tpu.memory_space<vmem>>, vector<1x256xf32>
    %c0_7 = arith.constant 0 : index
    %c0_8 = arith.constant 0 : index
    %11 = vector.load %arg5[%c0_7, %c0_8] : memref<1x256xf32, #tpu.memory_space<vmem>>, vector<1x256xf32>
    %cst_9 = arith.constant dense<0.000000e+00> : vector<16xf32>
    %12 = vector.multi_reduction <add>, %9, %cst_9 [1] : vector<16x256xf32> to vector<16xf32>
    %13 = vector.shape_cast %12 : vector<16xf32> to vector<16x1xf32>
    %cst_10 = arith.constant 2.560000e+02 : f32
    %14 = vector.broadcast %cst_10 : f32 to vector<16x1xf32>
    %15 = arith.divf %13, %14 : vector<16x1xf32>
    %16 = vector.broadcast %15 : vector<16x1xf32> to vector<16x256xf32>
    %17 = arith.subf %9, %16 : vector<16x256xf32>
    %18 = arith.mulf %17, %17 : vector<16x256xf32>
    %cst_11 = arith.constant dense<0.000000e+00> : vector<16xf32>
    %19 = vector.multi_reduction <add>, %18, %cst_11 [1] : vector<16x256xf32> to vector<16xf32>
    %20 = vector.shape_cast %19 : vector<16xf32> to vector<16x1xf32>
    %cst_12 = arith.constant 2.560000e+02 : f32
    %21 = vector.broadcast %cst_12 : f32 to vector<16x1xf32>
    %22 = arith.divf %20, %21 : vector<16x1xf32>
    %23 = vector.broadcast %15 : vector<16x1xf32> to vector<16x256xf32>
    %24 = arith.subf %9, %23 : vector<16x256xf32>
    %cst_13 = arith.constant 9.99999996E-13 : f32
    %25 = vector.broadcast %cst_13 : f32 to vector<16x1xf32>
    %26 = arith.addf %22, %25 : vector<16x1xf32>
    %27 = math.rsqrt %26 : vector<16x1xf32>
    %28 = vector.broadcast %27 : vector<16x1xf32> to vector<16x256xf32>
    %29 = arith.mulf %24, %28 : vector<16x256xf32>
    %30 = vector.broadcast %10 : vector<1x256xf32> to vector<16x256xf32>
    %31 = arith.mulf %29, %30 : vector<16x256xf32>
    %32 = vector.broadcast %11 : vector<1x256xf32> to vector<16x256xf32>
    %33 = arith.addf %31, %32 : vector<16x256xf32>
    %c0_14 = arith.constant 0 : index
    %c0_15 = arith.constant 0 : index
    %34 = vector.load %arg6[%c0_14, %c0_15] : memref<16x16xf32, #tpu.memory_space<vmem>>, vector<16x16xf32>
    %35 = arith.truncf %33 : vector<16x256xf32> to vector<16x256xbf16>
    %c0_16 = arith.constant 0 : index
    %c0_17 = arith.constant 0 : index
    %c0_18 = arith.constant 0 : index
    %36 = vector.load %arg7[%c0_16, %c0_17, %c0_18] : memref<2x256x768xbf16, #tpu.memory_space<vmem>>, vector<1x256x768xbf16>
    %37 = vector.shape_cast %36 : vector<1x256x768xbf16> to vector<256x768xbf16>
    %cst_19 = arith.constant dense<0.000000e+00> : vector<16x768xf32>
    %38 = tpu.matmul %35, %37, %cst_19 {dimension_numbers = #tpu.dot_dimension_numbers<[1], [0], [0], [1], [0, 0, 1, 1], [], []>} : vector<16x256xbf16>, vector<256x768xbf16>, vector<16x768xf32> -> vector<16x768xf32>
    %c0_20 = arith.constant 0 : index
    %c0_21 = arith.constant 0 : index
    %c0_22 = arith.constant 0 : index
    %39 = vector.load %arg8[%c0_20, %c0_21, %c0_22] : memref<2x1x768xf32, #tpu.memory_space<vmem>>, vector<1x1x768xf32>
    %40 = vector.shape_cast %39 : vector<1x1x768xf32> to vector<1x768xf32>
    %41 = vector.broadcast %40 : vector<1x768xf32> to vector<16x768xf32>
    %42 = arith.addf %38, %41 : vector<16x768xf32>
    %c0_23 = arith.constant 0 : index
    %c0_24 = arith.constant 0 : index
    %c0_25 = arith.constant 0 : index
    %43 = vector.load %arg9[%c0_23, %c0_24, %c0_25] : memref<2x256x256xbf16, #tpu.memory_space<vmem>>, vector<1x256x256xbf16>
    %44 = vector.shape_cast %43 : vector<1x256x256xbf16> to vector<256x256xbf16>
    %45 = vector.extract_strided_slice %42 {offsets = [0, 0], sizes = [16, 128], strides = [1, 1]} : vector<16x768xf32> to vector<16x128xf32>
    %46 = vector.extract_strided_slice %42 {offsets = [0, 256], sizes = [16, 128], strides = [1, 1]} : vector<16x768xf32> to vector<16x128xf32>
    %47 = vector.extract_strided_slice %42 {offsets = [0, 512], sizes = [16, 128], strides = [1, 1]} : vector<16x768xf32> to vector<16x128xf32>
    %cst_26 = arith.constant dense<0.000000e+00> : vector<16x16xf32>
    %48 = tpu.matmul %45, %46, %cst_26 {dimension_numbers = #tpu.dot_dimension_numbers<[1], [1], [0], [0], [0, 0, 1, 0], [], []>} : vector<16x128xf32>, vector<16x128xf32>, vector<16x16xf32> -> vector<16x16xf32>
    %cst_27 = arith.constant 0.0883883461 : f32
    %49 = vector.broadcast %cst_27 : f32 to vector<16x16xf32>
    %50 = arith.mulf %48, %49 : vector<16x16xf32>
    %51 = arith.addf %50, %34 : vector<16x16xf32>
    %cst_28 = arith.constant dense<0xFF800000> : vector<16xf32>
    %52 = vector.multi_reduction <maximumf>, %51, %cst_28 [1] : vector<16x16xf32> to vector<16xf32>
    %53 = vector.shape_cast %52 : vector<16xf32> to vector<16x1xf32>
    %54 = vector.broadcast %53 : vector<16x1xf32> to vector<16x16xf32>
    %55 = arith.subf %51, %54 : vector<16x16xf32>
    %56 = math.exp %55 : vector<16x16xf32>
    %cst_29 = arith.constant dense<0.000000e+00> : vector<16xf32>
    %57 = vector.multi_reduction <add>, %56, %cst_29 [1] : vector<16x16xf32> to vector<16xf32>
    %58 = vector.shape_cast %57 : vector<16xf32> to vector<16x1xf32>
    %59 = vector.broadcast %58 : vector<16x1xf32> to vector<16x16xf32>
    %60 = arith.divf %56, %59 : vector<16x16xf32>
    %cst_30 = arith.constant dense<0.000000e+00> : vector<16x128xf32>
    %61 = tpu.matmul %60, %47, %cst_30 {dimension_numbers = #tpu.dot_dimension_numbers<[1], [0], [0], [1], [0, 0, 1, 1], [], []>} : vector<16x16xf32>, vector<16x128xf32>, vector<16x128xf32> -> vector<16x128xf32>
    %62 = arith.truncf %61 : vector<16x128xf32> to vector<16x128xbf16>
    %63 = vector.extract_strided_slice %44 {offsets = [0, 0], sizes = [128, 256], strides = [1, 1]} : vector<256x256xbf16> to vector<128x256xbf16>
    %cst_31 = arith.constant dense<0.000000e+00> : vector<16x256xf32>
    %64 = tpu.matmul %62, %63, %cst_31 {dimension_numbers = #tpu.dot_dimension_numbers<[1], [0], [0], [1], [0, 0, 1, 1], [], []>} : vector<16x128xbf16>, vector<128x256xbf16>, vector<16x256xf32> -> vector<16x256xf32>
    %65 = vector.extract_strided_slice %42 {offsets = [0, 128], sizes = [16, 128], strides = [1, 1]} : vector<16x768xf32> to vector<16x128xf32>
    %66 = vector.extract_strided_slice %42 {offsets = [0, 384], sizes = [16, 128], strides = [1, 1]} : vector<16x768xf32> to vector<16x128xf32>
    %67 = vector.extract_strided_slice %42 {offsets = [0, 640], sizes = [16, 128], strides = [1, 1]} : vector<16x768xf32> to vector<16x128xf32>
    %cst_32 = arith.constant dense<0.000000e+00> : vector<16x16xf32>
    %68 = tpu.matmul %65, %66, %cst_32 {dimension_numbers = #tpu.dot_dimension_numbers<[1], [1], [0], [0], [0, 0, 1, 0], [], []>} : vector<16x128xf32>, vector<16x128xf32>, vector<16x16xf32> -> vector<16x16xf32>
    %cst_33 = arith.constant 0.0883883461 : f32
    %69 = vector.broadcast %cst_33 : f32 to vector<16x16xf32>
    %70 = arith.mulf %68, %69 : vector<16x16xf32>
    %71 = arith.addf %70, %34 : vector<16x16xf32>
    %cst_34 = arith.constant dense<0xFF800000> : vector<16xf32>
    %72 = vector.multi_reduction <maximumf>, %71, %cst_34 [1] : vector<16x16xf32> to vector<16xf32>
    %73 = vector.shape_cast %72 : vector<16xf32> to vector<16x1xf32>
    %74 = vector.broadcast %73 : vector<16x1xf32> to vector<16x16xf32>
    %75 = arith.subf %71, %74 : vector<16x16xf32>
    %76 = math.exp %75 : vector<16x16xf32>
    %cst_35 = arith.constant dense<0.000000e+00> : vector<16xf32>
    %77 = vector.multi_reduction <add>, %76, %cst_35 [1] : vector<16x16xf32> to vector<16xf32>
    %78 = vector.shape_cast %77 : vector<16xf32> to vector<16x1xf32>
    %79 = vector.broadcast %78 : vector<16x1xf32> to vector<16x16xf32>
    %80 = arith.divf %76, %79 : vector<16x16xf32>
    %cst_36 = arith.constant dense<0.000000e+00> : vector<16x128xf32>
    %81 = tpu.matmul %80, %67, %cst_36 {dimension_numbers = #tpu.dot_dimension_numbers<[1], [0], [0], [1], [0, 0, 1, 1], [], []>} : vector<16x16xf32>, vector<16x128xf32>, vector<16x128xf32> -> vector<16x128xf32>
    %82 = arith.truncf %81 : vector<16x128xf32> to vector<16x128xbf16>
    %83 = vector.extract_strided_slice %44 {offsets = [128, 0], sizes = [128, 256], strides = [1, 1]} : vector<256x256xbf16> to vector<128x256xbf16>
    %cst_37 = arith.constant dense<0.000000e+00> : vector<16x256xf32>
    %84 = tpu.matmul %82, %83, %cst_37 {dimension_numbers = #tpu.dot_dimension_numbers<[1], [0], [0], [1], [0, 0, 1, 1], [], []>} : vector<16x128xbf16>, vector<128x256xbf16>, vector<16x256xf32> -> vector<16x256xf32>
    %85 = arith.addf %64, %84 : vector<16x256xf32>
    %c0_38 = arith.constant 0 : index
    %c0_39 = arith.constant 0 : index
    %c0_40 = arith.constant 0 : index
    %86 = vector.load %arg10[%c0_38, %c0_39, %c0_40] : memref<2x1x256xf32, #tpu.memory_space<vmem>>, vector<1x1x256xf32>
    %87 = vector.shape_cast %86 : vector<1x1x256xf32> to vector<1x256xf32>
    %88 = vector.broadcast %87 : vector<1x256xf32> to vector<16x256xf32>
    %89 = arith.addf %85, %88 : vector<16x256xf32>
    %90 = arith.addf %33, %89 : vector<16x256xf32>
    %c0_41 = arith.constant 0 : index
    %c0_42 = arith.constant 0 : index
    %c0_43 = arith.constant 0 : index
    %91 = vector.load %arg11[%c0_41, %c0_42, %c0_43] : memref<2x1x256xf32, #tpu.memory_space<vmem>>, vector<1x1x256xf32>
    %92 = vector.shape_cast %91 : vector<1x1x256xf32> to vector<1x256xf32>
    %c0_44 = arith.constant 0 : index
    %c0_45 = arith.constant 0 : index
    %c0_46 = arith.constant 0 : index
    %93 = vector.load %arg12[%c0_44, %c0_45, %c0_46] : memref<2x1x256xf32, #tpu.memory_space<vmem>>, vector<1x1x256xf32>
    %94 = vector.shape_cast %93 : vector<1x1x256xf32> to vector<1x256xf32>
    %cst_47 = arith.constant dense<0.000000e+00> : vector<16xf32>
    %95 = vector.multi_reduction <add>, %90, %cst_47 [1] : vector<16x256xf32> to vector<16xf32>
    %96 = vector.shape_cast %95 : vector<16xf32> to vector<16x1xf32>
    %cst_48 = arith.constant 2.560000e+02 : f32
    %97 = vector.broadcast %cst_48 : f32 to vector<16x1xf32>
    %98 = arith.divf %96, %97 : vector<16x1xf32>
    %99 = vector.broadcast %98 : vector<16x1xf32> to vector<16x256xf32>
    %100 = arith.subf %90, %99 : vector<16x256xf32>
    %101 = arith.mulf %100, %100 : vector<16x256xf32>
    %cst_49 = arith.constant dense<0.000000e+00> : vector<16xf32>
    %102 = vector.multi_reduction <add>, %101, %cst_49 [1] : vector<16x256xf32> to vector<16xf32>
    %103 = vector.shape_cast %102 : vector<16xf32> to vector<16x1xf32>
    %cst_50 = arith.constant 2.560000e+02 : f32
    %104 = vector.broadcast %cst_50 : f32 to vector<16x1xf32>
    %105 = arith.divf %103, %104 : vector<16x1xf32>
    %106 = vector.broadcast %98 : vector<16x1xf32> to vector<16x256xf32>
    %107 = arith.subf %90, %106 : vector<16x256xf32>
    %cst_51 = arith.constant 9.99999996E-13 : f32
    %108 = vector.broadcast %cst_51 : f32 to vector<16x1xf32>
    %109 = arith.addf %105, %108 : vector<16x1xf32>
    %110 = math.rsqrt %109 : vector<16x1xf32>
    %111 = vector.broadcast %110 : vector<16x1xf32> to vector<16x256xf32>
    %112 = arith.mulf %107, %111 : vector<16x256xf32>
    %113 = vector.broadcast %92 : vector<1x256xf32> to vector<16x256xf32>
    %114 = arith.mulf %112, %113 : vector<16x256xf32>
    %115 = vector.broadcast %94 : vector<1x256xf32> to vector<16x256xf32>
    %116 = arith.addf %114, %115 : vector<16x256xf32>
    %117 = arith.truncf %116 : vector<16x256xf32> to vector<16x256xbf16>
    %c0_52 = arith.constant 0 : index
    %c0_53 = arith.constant 0 : index
    %c0_54 = arith.constant 0 : index
    %118 = vector.load %arg13[%c0_52, %c0_53, %c0_54] : memref<2x256x1024xbf16, #tpu.memory_space<vmem>>, vector<1x256x1024xbf16>
    %119 = vector.shape_cast %118 : vector<1x256x1024xbf16> to vector<256x1024xbf16>
    %cst_55 = arith.constant dense<0.000000e+00> : vector<16x1024xf32>
    %120 = tpu.matmul %117, %119, %cst_55 {dimension_numbers = #tpu.dot_dimension_numbers<[1], [0], [0], [1], [0, 0, 1, 1], [], []>} : vector<16x256xbf16>, vector<256x1024xbf16>, vector<16x1024xf32> -> vector<16x1024xf32>
    %c0_56 = arith.constant 0 : index
    %c0_57 = arith.constant 0 : index
    %c0_58 = arith.constant 0 : index
    %121 = vector.load %arg14[%c0_56, %c0_57, %c0_58] : memref<2x1x1024xf32, #tpu.memory_space<vmem>>, vector<1x1x1024xf32>
    %122 = vector.shape_cast %121 : vector<1x1x1024xf32> to vector<1x1024xf32>
    %123 = vector.broadcast %122 : vector<1x1024xf32> to vector<16x1024xf32>
    %124 = arith.addf %120, %123 : vector<16x1024xf32>
    %cst_59 = arith.constant 5.000000e-01 : f32
    %125 = vector.broadcast %cst_59 : f32 to vector<16x1024xf32>
    %126 = arith.mulf %125, %124 : vector<16x1024xf32>
    %cst_60 = arith.constant 4.471500e-02 : f32
    %127 = vector.broadcast %cst_60 : f32 to vector<16x1024xf32>
    %128 = arith.mulf %127, %124 : vector<16x1024xf32>
    %129 = arith.mulf %128, %124 : vector<16x1024xf32>
    %130 = arith.mulf %129, %124 : vector<16x1024xf32>
    %131 = arith.addf %124, %130 : vector<16x1024xf32>
    %cst_61 = arith.constant 0.797884583 : f32
    %132 = vector.broadcast %cst_61 : f32 to vector<16x1024xf32>
    %133 = arith.mulf %132, %131 : vector<16x1024xf32>
    %134 = math.tanh %133 : vector<16x1024xf32>
    %cst_62 = arith.constant 1.000000e+00 : f32
    %135 = vector.broadcast %cst_62 : f32 to vector<16x1024xf32>
    %136 = arith.addf %135, %134 : vector<16x1024xf32>
    %137 = arith.mulf %126, %136 : vector<16x1024xf32>
    %138 = arith.truncf %137 : vector<16x1024xf32> to vector<16x1024xbf16>
    %c0_63 = arith.constant 0 : index
    %c0_64 = arith.constant 0 : index
    %c0_65 = arith.constant 0 : index
    %139 = vector.load %arg15[%c0_63, %c0_64, %c0_65] : memref<2x1024x256xbf16, #tpu.memory_space<vmem>>, vector<1x1024x256xbf16>
    %140 = vector.shape_cast %139 : vector<1x1024x256xbf16> to vector<1024x256xbf16>
    %cst_66 = arith.constant dense<0.000000e+00> : vector<16x256xf32>
    %141 = tpu.matmul %138, %140, %cst_66 {dimension_numbers = #tpu.dot_dimension_numbers<[1], [0], [0], [1], [0, 0, 1, 1], [], []>} : vector<16x1024xbf16>, vector<1024x256xbf16>, vector<16x256xf32> -> vector<16x256xf32>
    %c0_67 = arith.constant 0 : index
    %c0_68 = arith.constant 0 : index
    %c0_69 = arith.constant 0 : index
    %142 = vector.load %arg16[%c0_67, %c0_68, %c0_69] : memref<2x1x256xf32, #tpu.memory_space<vmem>>, vector<1x1x256xf32>
    %143 = vector.shape_cast %142 : vector<1x1x256xf32> to vector<1x256xf32>
    %144 = vector.broadcast %143 : vector<1x256xf32> to vector<16x256xf32>
    %145 = arith.addf %141, %144 : vector<16x256xf32>
    %146 = arith.addf %116, %145 : vector<16x256xf32>
    %c0_70 = arith.constant 0 : index
    %c0_71 = arith.constant 0 : index
    %c0_72 = arith.constant 0 : index
    %147 = vector.load %arg17[%c0_70, %c0_71, %c0_72] : memref<2x1x256xf32, #tpu.memory_space<vmem>>, vector<1x1x256xf32>
    %148 = vector.shape_cast %147 : vector<1x1x256xf32> to vector<1x256xf32>
    %c0_73 = arith.constant 0 : index
    %c0_74 = arith.constant 0 : index
    %c0_75 = arith.constant 0 : index
    %149 = vector.load %arg18[%c0_73, %c0_74, %c0_75] : memref<2x1x256xf32, #tpu.memory_space<vmem>>, vector<1x1x256xf32>
    %150 = vector.shape_cast %149 : vector<1x1x256xf32> to vector<1x256xf32>
    %cst_76 = arith.constant dense<0.000000e+00> : vector<16xf32>
    %151 = vector.multi_reduction <add>, %146, %cst_76 [1] : vector<16x256xf32> to vector<16xf32>
    %152 = vector.shape_cast %151 : vector<16xf32> to vector<16x1xf32>
    %cst_77 = arith.constant 2.560000e+02 : f32
    %153 = vector.broadcast %cst_77 : f32 to vector<16x1xf32>
    %154 = arith.divf %152, %153 : vector<16x1xf32>
    %155 = vector.broadcast %154 : vector<16x1xf32> to vector<16x256xf32>
    %156 = arith.subf %146, %155 : vector<16x256xf32>
    %157 = arith.mulf %156, %156 : vector<16x256xf32>
    %cst_78 = arith.constant dense<0.000000e+00> : vector<16xf32>
    %158 = vector.multi_reduction <add>, %157, %cst_78 [1] : vector<16x256xf32> to vector<16xf32>
    %159 = vector.shape_cast %158 : vector<16xf32> to vector<16x1xf32>
    %cst_79 = arith.constant 2.560000e+02 : f32
    %160 = vector.broadcast %cst_79 : f32 to vector<16x1xf32>
    %161 = arith.divf %159, %160 : vector<16x1xf32>
    %162 = vector.broadcast %154 : vector<16x1xf32> to vector<16x256xf32>
    %163 = arith.subf %146, %162 : vector<16x256xf32>
    %cst_80 = arith.constant 9.99999996E-13 : f32
    %164 = vector.broadcast %cst_80 : f32 to vector<16x1xf32>
    %165 = arith.addf %161, %164 : vector<16x1xf32>
    %166 = math.rsqrt %165 : vector<16x1xf32>
    %167 = vector.broadcast %166 : vector<16x1xf32> to vector<16x256xf32>
    %168 = arith.mulf %163, %167 : vector<16x256xf32>
    %169 = vector.broadcast %148 : vector<1x256xf32> to vector<16x256xf32>
    %170 = arith.mulf %168, %169 : vector<16x256xf32>
    %171 = vector.broadcast %150 : vector<1x256xf32> to vector<16x256xf32>
    %172 = arith.addf %170, %171 : vector<16x256xf32>
    %173 = arith.truncf %172 : vector<16x256xf32> to vector<16x256xbf16>
    %c1 = arith.constant 1 : index
    %c0_81 = arith.constant 0 : index
    %c0_82 = arith.constant 0 : index
    %174 = vector.load %arg7[%c1, %c0_81, %c0_82] : memref<2x256x768xbf16, #tpu.memory_space<vmem>>, vector<1x256x768xbf16>
    %175 = vector.shape_cast %174 : vector<1x256x768xbf16> to vector<256x768xbf16>
    %cst_83 = arith.constant dense<0.000000e+00> : vector<16x768xf32>
    %176 = tpu.matmul %173, %175, %cst_83 {dimension_numbers = #tpu.dot_dimension_numbers<[1], [0], [0], [1], [0, 0, 1, 1], [], []>} : vector<16x256xbf16>, vector<256x768xbf16>, vector<16x768xf32> -> vector<16x768xf32>
    %c1_84 = arith.constant 1 : index
    %c0_85 = arith.constant 0 : index
    %c0_86 = arith.constant 0 : index
    %177 = vector.load %arg8[%c1_84, %c0_85, %c0_86] : memref<2x1x768xf32, #tpu.memory_space<vmem>>, vector<1x1x768xf32>
    %178 = vector.shape_cast %177 : vector<1x1x768xf32> to vector<1x768xf32>
    %179 = vector.broadcast %178 : vector<1x768xf32> to vector<16x768xf32>
    %180 = arith.addf %176, %179 : vector<16x768xf32>
    %c1_87 = arith.constant 1 : index
    %c0_88 = arith.constant 0 : index
    %c0_89 = arith.constant 0 : index
    %181 = vector.load %arg9[%c1_87, %c0_88, %c0_89] : memref<2x256x256xbf16, #tpu.memory_space<vmem>>, vector<1x256x256xbf16>
    %182 = vector.shape_cast %181 : vector<1x256x256xbf16> to vector<256x256xbf16>
    %183 = vector.extract_strided_slice %180 {offsets = [0, 0], sizes = [16, 128], strides = [1, 1]} : vector<16x768xf32> to vector<16x128xf32>
    %184 = vector.extract_strided_slice %180 {offsets = [0, 256], sizes = [16, 128], strides = [1, 1]} : vector<16x768xf32> to vector<16x128xf32>
    %185 = vector.extract_strided_slice %180 {offsets = [0, 512], sizes = [16, 128], strides = [1, 1]} : vector<16x768xf32> to vector<16x128xf32>
    %cst_90 = arith.constant dense<0.000000e+00> : vector<16x16xf32>
    %186 = tpu.matmul %183, %184, %cst_90 {dimension_numbers = #tpu.dot_dimension_numbers<[1], [1], [0], [0], [0, 0, 1, 0], [], []>} : vector<16x128xf32>, vector<16x128xf32>, vector<16x16xf32> -> vector<16x16xf32>
    %cst_91 = arith.constant 0.0883883461 : f32
    %187 = vector.broadcast %cst_91 : f32 to vector<16x16xf32>
    %188 = arith.mulf %186, %187 : vector<16x16xf32>
    %189 = arith.addf %188, %34 : vector<16x16xf32>
    %cst_92 = arith.constant dense<0xFF800000> : vector<16xf32>
    %190 = vector.multi_reduction <maximumf>, %189, %cst_92 [1] : vector<16x16xf32> to vector<16xf32>
    %191 = vector.shape_cast %190 : vector<16xf32> to vector<16x1xf32>
    %192 = vector.broadcast %191 : vector<16x1xf32> to vector<16x16xf32>
    %193 = arith.subf %189, %192 : vector<16x16xf32>
    %194 = math.exp %193 : vector<16x16xf32>
    %cst_93 = arith.constant dense<0.000000e+00> : vector<16xf32>
    %195 = vector.multi_reduction <add>, %194, %cst_93 [1] : vector<16x16xf32> to vector<16xf32>
    %196 = vector.shape_cast %195 : vector<16xf32> to vector<16x1xf32>
    %197 = vector.broadcast %196 : vector<16x1xf32> to vector<16x16xf32>
    %198 = arith.divf %194, %197 : vector<16x16xf32>
    %cst_94 = arith.constant dense<0.000000e+00> : vector<16x128xf32>
    %199 = tpu.matmul %198, %185, %cst_94 {dimension_numbers = #tpu.dot_dimension_numbers<[1], [0], [0], [1], [0, 0, 1, 1], [], []>} : vector<16x16xf32>, vector<16x128xf32>, vector<16x128xf32> -> vector<16x128xf32>
    %200 = arith.truncf %199 : vector<16x128xf32> to vector<16x128xbf16>
    %201 = vector.extract_strided_slice %182 {offsets = [0, 0], sizes = [128, 256], strides = [1, 1]} : vector<256x256xbf16> to vector<128x256xbf16>
    %cst_95 = arith.constant dense<0.000000e+00> : vector<16x256xf32>
    %202 = tpu.matmul %200, %201, %cst_95 {dimension_numbers = #tpu.dot_dimension_numbers<[1], [0], [0], [1], [0, 0, 1, 1], [], []>} : vector<16x128xbf16>, vector<128x256xbf16>, vector<16x256xf32> -> vector<16x256xf32>
    %203 = vector.extract_strided_slice %180 {offsets = [0, 128], sizes = [16, 128], strides = [1, 1]} : vector<16x768xf32> to vector<16x128xf32>
    %204 = vector.extract_strided_slice %180 {offsets = [0, 384], sizes = [16, 128], strides = [1, 1]} : vector<16x768xf32> to vector<16x128xf32>
    %205 = vector.extract_strided_slice %180 {offsets = [0, 640], sizes = [16, 128], strides = [1, 1]} : vector<16x768xf32> to vector<16x128xf32>
    %cst_96 = arith.constant dense<0.000000e+00> : vector<16x16xf32>
    %206 = tpu.matmul %203, %204, %cst_96 {dimension_numbers = #tpu.dot_dimension_numbers<[1], [1], [0], [0], [0, 0, 1, 0], [], []>} : vector<16x128xf32>, vector<16x128xf32>, vector<16x16xf32> -> vector<16x16xf32>
    %cst_97 = arith.constant 0.0883883461 : f32
    %207 = vector.broadcast %cst_97 : f32 to vector<16x16xf32>
    %208 = arith.mulf %206, %207 : vector<16x16xf32>
    %209 = arith.addf %208, %34 : vector<16x16xf32>
    %cst_98 = arith.constant dense<0xFF800000> : vector<16xf32>
    %210 = vector.multi_reduction <maximumf>, %209, %cst_98 [1] : vector<16x16xf32> to vector<16xf32>
    %211 = vector.shape_cast %210 : vector<16xf32> to vector<16x1xf32>
    %212 = vector.broadcast %211 : vector<16x1xf32> to vector<16x16xf32>
    %213 = arith.subf %209, %212 : vector<16x16xf32>
    %214 = math.exp %213 : vector<16x16xf32>
    %cst_99 = arith.constant dense<0.000000e+00> : vector<16xf32>
    %215 = vector.multi_reduction <add>, %214, %cst_99 [1] : vector<16x16xf32> to vector<16xf32>
    %216 = vector.shape_cast %215 : vector<16xf32> to vector<16x1xf32>
    %217 = vector.broadcast %216 : vector<16x1xf32> to vector<16x16xf32>
    %218 = arith.divf %214, %217 : vector<16x16xf32>
    %cst_100 = arith.constant dense<0.000000e+00> : vector<16x128xf32>
    %219 = tpu.matmul %218, %205, %cst_100 {dimension_numbers = #tpu.dot_dimension_numbers<[1], [0], [0], [1], [0, 0, 1, 1], [], []>} : vector<16x16xf32>, vector<16x128xf32>, vector<16x128xf32> -> vector<16x128xf32>
    %220 = arith.truncf %219 : vector<16x128xf32> to vector<16x128xbf16>
    %221 = vector.extract_strided_slice %182 {offsets = [128, 0], sizes = [128, 256], strides = [1, 1]} : vector<256x256xbf16> to vector<128x256xbf16>
    %cst_101 = arith.constant dense<0.000000e+00> : vector<16x256xf32>
    %222 = tpu.matmul %220, %221, %cst_101 {dimension_numbers = #tpu.dot_dimension_numbers<[1], [0], [0], [1], [0, 0, 1, 1], [], []>} : vector<16x128xbf16>, vector<128x256xbf16>, vector<16x256xf32> -> vector<16x256xf32>
    %223 = arith.addf %202, %222 : vector<16x256xf32>
    %c1_102 = arith.constant 1 : index
    %c0_103 = arith.constant 0 : index
    %c0_104 = arith.constant 0 : index
    %224 = vector.load %arg10[%c1_102, %c0_103, %c0_104] : memref<2x1x256xf32, #tpu.memory_space<vmem>>, vector<1x1x256xf32>
    %225 = vector.shape_cast %224 : vector<1x1x256xf32> to vector<1x256xf32>
    %226 = vector.broadcast %225 : vector<1x256xf32> to vector<16x256xf32>
    %227 = arith.addf %223, %226 : vector<16x256xf32>
    %228 = arith.addf %172, %227 : vector<16x256xf32>
    %c1_105 = arith.constant 1 : index
    %c0_106 = arith.constant 0 : index
    %c0_107 = arith.constant 0 : index
    %229 = vector.load %arg11[%c1_105, %c0_106, %c0_107] : memref<2x1x256xf32, #tpu.memory_space<vmem>>, vector<1x1x256xf32>
    %230 = vector.shape_cast %229 : vector<1x1x256xf32> to vector<1x256xf32>
    %c1_108 = arith.constant 1 : index
    %c0_109 = arith.constant 0 : index
    %c0_110 = arith.constant 0 : index
    %231 = vector.load %arg12[%c1_108, %c0_109, %c0_110] : memref<2x1x256xf32, #tpu.memory_space<vmem>>, vector<1x1x256xf32>
    %232 = vector.shape_cast %231 : vector<1x1x256xf32> to vector<1x256xf32>
    %cst_111 = arith.constant dense<0.000000e+00> : vector<16xf32>
    %233 = vector.multi_reduction <add>, %228, %cst_111 [1] : vector<16x256xf32> to vector<16xf32>
    %234 = vector.shape_cast %233 : vector<16xf32> to vector<16x1xf32>
    %cst_112 = arith.constant 2.560000e+02 : f32
    %235 = vector.broadcast %cst_112 : f32 to vector<16x1xf32>
    %236 = arith.divf %234, %235 : vector<16x1xf32>
    %237 = vector.broadcast %236 : vector<16x1xf32> to vector<16x256xf32>
    %238 = arith.subf %228, %237 : vector<16x256xf32>
    %239 = arith.mulf %238, %238 : vector<16x256xf32>
    %cst_113 = arith.constant dense<0.000000e+00> : vector<16xf32>
    %240 = vector.multi_reduction <add>, %239, %cst_113 [1] : vector<16x256xf32> to vector<16xf32>
    %241 = vector.shape_cast %240 : vector<16xf32> to vector<16x1xf32>
    %cst_114 = arith.constant 2.560000e+02 : f32
    %242 = vector.broadcast %cst_114 : f32 to vector<16x1xf32>
    %243 = arith.divf %241, %242 : vector<16x1xf32>
    %244 = vector.broadcast %236 : vector<16x1xf32> to vector<16x256xf32>
    %245 = arith.subf %228, %244 : vector<16x256xf32>
    %cst_115 = arith.constant 9.99999996E-13 : f32
    %246 = vector.broadcast %cst_115 : f32 to vector<16x1xf32>
    %247 = arith.addf %243, %246 : vector<16x1xf32>
    %248 = math.rsqrt %247 : vector<16x1xf32>
    %249 = vector.broadcast %248 : vector<16x1xf32> to vector<16x256xf32>
    %250 = arith.mulf %245, %249 : vector<16x256xf32>
    %251 = vector.broadcast %230 : vector<1x256xf32> to vector<16x256xf32>
    %252 = arith.mulf %250, %251 : vector<16x256xf32>
    %253 = vector.broadcast %232 : vector<1x256xf32> to vector<16x256xf32>
    %254 = arith.addf %252, %253 : vector<16x256xf32>
    %255 = arith.truncf %254 : vector<16x256xf32> to vector<16x256xbf16>
    %c1_116 = arith.constant 1 : index
    %c0_117 = arith.constant 0 : index
    %c0_118 = arith.constant 0 : index
    %256 = vector.load %arg13[%c1_116, %c0_117, %c0_118] : memref<2x256x1024xbf16, #tpu.memory_space<vmem>>, vector<1x256x1024xbf16>
    %257 = vector.shape_cast %256 : vector<1x256x1024xbf16> to vector<256x1024xbf16>
    %cst_119 = arith.constant dense<0.000000e+00> : vector<16x1024xf32>
    %258 = tpu.matmul %255, %257, %cst_119 {dimension_numbers = #tpu.dot_dimension_numbers<[1], [0], [0], [1], [0, 0, 1, 1], [], []>} : vector<16x256xbf16>, vector<256x1024xbf16>, vector<16x1024xf32> -> vector<16x1024xf32>
    %c1_120 = arith.constant 1 : index
    %c0_121 = arith.constant 0 : index
    %c0_122 = arith.constant 0 : index
    %259 = vector.load %arg14[%c1_120, %c0_121, %c0_122] : memref<2x1x1024xf32, #tpu.memory_space<vmem>>, vector<1x1x1024xf32>
    %260 = vector.shape_cast %259 : vector<1x1x1024xf32> to vector<1x1024xf32>
    %261 = vector.broadcast %260 : vector<1x1024xf32> to vector<16x1024xf32>
    %262 = arith.addf %258, %261 : vector<16x1024xf32>
    %cst_123 = arith.constant 5.000000e-01 : f32
    %263 = vector.broadcast %cst_123 : f32 to vector<16x1024xf32>
    %264 = arith.mulf %263, %262 : vector<16x1024xf32>
    %cst_124 = arith.constant 4.471500e-02 : f32
    %265 = vector.broadcast %cst_124 : f32 to vector<16x1024xf32>
    %266 = arith.mulf %265, %262 : vector<16x1024xf32>
    %267 = arith.mulf %266, %262 : vector<16x1024xf32>
    %268 = arith.mulf %267, %262 : vector<16x1024xf32>
    %269 = arith.addf %262, %268 : vector<16x1024xf32>
    %cst_125 = arith.constant 0.797884583 : f32
    %270 = vector.broadcast %cst_125 : f32 to vector<16x1024xf32>
    %271 = arith.mulf %270, %269 : vector<16x1024xf32>
    %272 = math.tanh %271 : vector<16x1024xf32>
    %cst_126 = arith.constant 1.000000e+00 : f32
    %273 = vector.broadcast %cst_126 : f32 to vector<16x1024xf32>
    %274 = arith.addf %273, %272 : vector<16x1024xf32>
    %275 = arith.mulf %264, %274 : vector<16x1024xf32>
    %276 = arith.truncf %275 : vector<16x1024xf32> to vector<16x1024xbf16>
    %c1_127 = arith.constant 1 : index
    %c0_128 = arith.constant 0 : index
    %c0_129 = arith.constant 0 : index
    %277 = vector.load %arg15[%c1_127, %c0_128, %c0_129] : memref<2x1024x256xbf16, #tpu.memory_space<vmem>>, vector<1x1024x256xbf16>
    %278 = vector.shape_cast %277 : vector<1x1024x256xbf16> to vector<1024x256xbf16>
    %cst_130 = arith.constant dense<0.000000e+00> : vector<16x256xf32>
    %279 = tpu.matmul %276, %278, %cst_130 {dimension_numbers = #tpu.dot_dimension_numbers<[1], [0], [0], [1], [0, 0, 1, 1], [], []>} : vector<16x1024xbf16>, vector<1024x256xbf16>, vector<16x256xf32> -> vector<16x256xf32>
    %c1_131 = arith.constant 1 : index
    %c0_132 = arith.constant 0 : index
    %c0_133 = arith.constant 0 : index
    %280 = vector.load %arg16[%c1_131, %c0_132, %c0_133] : memref<2x1x256xf32, #tpu.memory_space<vmem>>, vector<1x1x256xf32>
    %281 = vector.shape_cast %280 : vector<1x1x256xf32> to vector<1x256xf32>
    %282 = vector.broadcast %281 : vector<1x256xf32> to vector<16x256xf32>
    %283 = arith.addf %279, %282 : vector<16x256xf32>
    %284 = arith.addf %254, %283 : vector<16x256xf32>
    %c1_134 = arith.constant 1 : index
    %c0_135 = arith.constant 0 : index
    %c0_136 = arith.constant 0 : index
    %285 = vector.load %arg17[%c1_134, %c0_135, %c0_136] : memref<2x1x256xf32, #tpu.memory_space<vmem>>, vector<1x1x256xf32>
    %286 = vector.shape_cast %285 : vector<1x1x256xf32> to vector<1x256xf32>
    %c1_137 = arith.constant 1 : index
    %c0_138 = arith.constant 0 : index
    %c0_139 = arith.constant 0 : index
    %287 = vector.load %arg18[%c1_137, %c0_138, %c0_139] : memref<2x1x256xf32, #tpu.memory_space<vmem>>, vector<1x1x256xf32>
    %288 = vector.shape_cast %287 : vector<1x1x256xf32> to vector<1x256xf32>
    %cst_140 = arith.constant dense<0.000000e+00> : vector<16xf32>
    %289 = vector.multi_reduction <add>, %284, %cst_140 [1] : vector<16x256xf32> to vector<16xf32>
    %290 = vector.shape_cast %289 : vector<16xf32> to vector<16x1xf32>
    %cst_141 = arith.constant 2.560000e+02 : f32
    %291 = vector.broadcast %cst_141 : f32 to vector<16x1xf32>
    %292 = arith.divf %290, %291 : vector<16x1xf32>
    %293 = vector.broadcast %292 : vector<16x1xf32> to vector<16x256xf32>
    %294 = arith.subf %284, %293 : vector<16x256xf32>
    %295 = arith.mulf %294, %294 : vector<16x256xf32>
    %cst_142 = arith.constant dense<0.000000e+00> : vector<16xf32>
    %296 = vector.multi_reduction <add>, %295, %cst_142 [1] : vector<16x256xf32> to vector<16xf32>
    %297 = vector.shape_cast %296 : vector<16xf32> to vector<16x1xf32>
    %cst_143 = arith.constant 2.560000e+02 : f32
    %298 = vector.broadcast %cst_143 : f32 to vector<16x1xf32>
    %299 = arith.divf %297, %298 : vector<16x1xf32>
    %300 = vector.broadcast %292 : vector<16x1xf32> to vector<16x256xf32>
    %301 = arith.subf %284, %300 : vector<16x256xf32>
    %cst_144 = arith.constant 9.99999996E-13 : f32
    %302 = vector.broadcast %cst_144 : f32 to vector<16x1xf32>
    %303 = arith.addf %299, %302 : vector<16x1xf32>
    %304 = math.rsqrt %303 : vector<16x1xf32>
    %305 = vector.broadcast %304 : vector<16x1xf32> to vector<16x256xf32>
    %306 = arith.mulf %301, %305 : vector<16x256xf32>
    %307 = vector.broadcast %286 : vector<1x256xf32> to vector<16x256xf32>
    %308 = arith.mulf %306, %307 : vector<16x256xf32>
    %309 = vector.broadcast %288 : vector<1x256xf32> to vector<16x256xf32>
    %310 = arith.addf %308, %309 : vector<16x256xf32>
    %311 = vector.extract_strided_slice %310 {offsets = [0, 0], sizes = [1, 256], strides = [1, 1]} : vector<16x256xf32> to vector<1x256xf32>
    %312 = vector.extract_strided_slice %310 {offsets = [8, 0], sizes = [1, 256], strides = [1, 1]} : vector<16x256xf32> to vector<1x256xf32>
    %313 = tpu.concatenate %311, %312 in 0 : vector<1x256xf32>, vector<1x256xf32> -> vector<2x256xf32>
    %314 = arith.truncf %313 : vector<2x256xf32> to vector<2x256xbf16>
    %c0_145 = arith.constant 0 : index
    %c0_146 = arith.constant 0 : index
    %315 = vector.load %arg19[%c0_145, %c0_146] : memref<256x256xbf16, #tpu.memory_space<vmem>>, vector<256x256xbf16>
    %cst_147 = arith.constant dense<0.000000e+00> : vector<2x256xf32>
    %316 = tpu.matmul %314, %315, %cst_147 {dimension_numbers = #tpu.dot_dimension_numbers<[1], [0], [0], [1], [0, 0, 1, 1], [], []>} : vector<2x256xbf16>, vector<256x256xbf16>, vector<2x256xf32> -> vector<2x256xf32>
    %c0_148 = arith.constant 0 : index
    %c0_149 = arith.constant 0 : index
    %317 = vector.load %arg20[%c0_148, %c0_149] : memref<1x256xf32, #tpu.memory_space<vmem>>, vector<1x256xf32>
    %318 = vector.broadcast %317 : vector<1x256xf32> to vector<2x256xf32>
    %319 = arith.addf %316, %318 : vector<2x256xf32>
    %320 = math.tanh %319 : vector<2x256xf32>
    %321 = arith.truncf %320 : vector<2x256xf32> to vector<2x256xbf16>
    %c0_150 = arith.constant 0 : index
    %c0_151 = arith.constant 0 : index
    %322 = vector.load %arg21[%c0_150, %c0_151] : memref<256x128xbf16, #tpu.memory_space<vmem>>, vector<256x128xbf16>
    %cst_152 = arith.constant dense<0.000000e+00> : vector<2x128xf32>
    %323 = tpu.matmul %321, %322, %cst_152 {dimension_numbers = #tpu.dot_dimension_numbers<[1], [0], [0], [1], [0, 0, 1, 1], [], []>} : vector<2x256xbf16>, vector<256x128xbf16>, vector<2x128xf32> -> vector<2x128xf32>
    %c0_153 = arith.constant 0 : index
    %c0_154 = arith.constant 0 : index
    %324 = vector.load %arg22[%c0_153, %c0_154] : memref<1x128xf32, #tpu.memory_space<vmem>>, vector<1x128xf32>
    %325 = vector.broadcast %324 : vector<1x128xf32> to vector<2x128xf32>
    %326 = arith.addf %323, %325 : vector<2x128xf32>
    %c0_155 = arith.constant 0 : index
    %c0_156 = arith.constant 0 : index
    %327 = vector.load %arg23[%c0_155, %c0_156] : memref<2x128xf32, #tpu.memory_space<vmem>>, vector<2x128xf32>
    tpu.vector_store %arg23[%c0_155, %c0_156], %326 {strides = array<i32>} : memref<2x128xf32, #tpu.memory_space<vmem>>, vector<2x128xf32>,
    return
  }
  func.func @transform_0(%arg0: i32) -> (i32, i32) {
    %c0_i32 = arith.constant 0 : i32
    %c0_i32_0 = arith.constant 0 : i32
    %c0_i32_1 = arith.constant 0 : i32
    return %c0_i32, %c0_i32_0 : i32, i32
  }
  func.func @transform_1(%arg0: i32) -> (i32, i32) {
    %c0_i32 = arith.constant 0 : i32
    %c0_i32_0 = arith.constant 0 : i32
    %c0_i32_1 = arith.constant 0 : i32
    return %c0_i32, %c0_i32_0 : i32, i32
  }
  func.func @transform_2(%arg0: i32) -> (i32, i32) {
    %c0_i32 = arith.constant 0 : i32
    %c0_i32_0 = arith.constant 0 : i32
    %c0_i32_1 = arith.constant 0 : i32
    return %c0_i32, %c0_i32_0 : i32, i32
  }
  func.func @transform_3(%arg0: i32) -> (i32, i32) {
    %c0_i32 = arith.constant 0 : i32
    %c0_i32_0 = arith.constant 0 : i32
    %c0_i32_1 = arith.constant 0 : i32
    return %c0_i32, %c0_i32_0 : i32, i32
  }
  func.func @transform_4(%arg0: i32) -> (i32, i32) {
    %c0_i32 = arith.constant 0 : i32
    %c0_i32_0 = arith.constant 0 : i32
    %c0_i32_1 = arith.constant 0 : i32
    return %c0_i32, %c0_i32_0 : i32, i32
  }
  func.func @transform_5(%arg0: i32) -> (i32, i32) {
    %c0_i32 = arith.constant 0 : i32
    %c0_i32_0 = arith.constant 0 : i32
    %c0_i32_1 = arith.constant 0 : i32
    return %c0_i32, %c0_i32_0 : i32, i32
  }
  func.func @transform_6(%arg0: i32) -> (i32, i32, i32) {
    %c0_i32 = arith.constant 0 : i32
    %c0_i32_0 = arith.constant 0 : i32
    %c0_i32_1 = arith.constant 0 : i32
    %c0_i32_2 = arith.constant 0 : i32
    return %c0_i32, %c0_i32_0, %c0_i32_1 : i32, i32, i32
  }
  func.func @transform_7(%arg0: i32) -> (i32, i32, i32) {
    %c0_i32 = arith.constant 0 : i32
    %c0_i32_0 = arith.constant 0 : i32
    %c0_i32_1 = arith.constant 0 : i32
    %c0_i32_2 = arith.constant 0 : i32
    return %c0_i32, %c0_i32_0, %c0_i32_1 : i32, i32, i32
  }
  func.func @transform_8(%arg0: i32) -> (i32, i32, i32) {
    %c0_i32 = arith.constant 0 : i32
    %c0_i32_0 = arith.constant 0 : i32
    %c0_i32_1 = arith.constant 0 : i32
    %c0_i32_2 = arith.constant 0 : i32
    return %c0_i32, %c0_i32_0, %c0_i32_1 : i32, i32, i32
  }
  func.func @transform_9(%arg0: i32) -> (i32, i32, i32) {
    %c0_i32 = arith.constant 0 : i32
    %c0_i32_0 = arith.constant 0 : i32
    %c0_i32_1 = arith.constant 0 : i32
    %c0_i32_2 = arith.constant 0 : i32
    return %c0_i32, %c0_i32_0, %c0_i32_1 : i32, i32, i32
  }
  func.func @transform_10(%arg0: i32) -> (i32, i32, i32) {
    %c0_i32 = arith.constant 0 : i32
    %c0_i32_0 = arith.constant 0 : i32
    %c0_i32_1 = arith.constant 0 : i32
    %c0_i32_2 = arith.constant 0 : i32
    return %c0_i32, %c0_i32_0, %c0_i32_1 : i32, i32, i32
  }
  func.func @transform_11(%arg0: i32) -> (i32, i32, i32) {
    %c0_i32 = arith.constant 0 : i32
    %c0_i32_0 = arith.constant 0 : i32
    %c0_i32_1 = arith.constant 0 : i32
    %c0_i32_2 = arith.constant 0 : i32
    return %c0_i32, %c0_i32_0, %c0_i32_1 : i32, i32, i32
  }
  func.func @transform_12(%arg0: i32) -> (i32, i32, i32) {
    %c0_i32 = arith.constant 0 : i32
    %c0_i32_0 = arith.constant 0 : i32
    %c0_i32_1 = arith.constant 0 : i32
    %c0_i32_2 = arith.constant 0 : i32
    return %c0_i32, %c0_i32_0, %c0_i32_1 : i32, i32, i32
  }
  func.func @transform_13(%arg0: i32) -> (i32, i32, i32) {
    %c0_i32 = arith.constant 0 : i32
    %c0_i32_0 = arith.constant 0 : i32
    %c0_i32_1 = arith.constant 0 : i32
    %c0_i32_2 = arith.constant 0 : i32
    return %c0_i32, %c0_i32_0, %c0_i32_1 : i32, i32, i32
  }
  func.func @transform_14(%arg0: i32) -> (i32, i32, i32) {
    %c0_i32 = arith.constant 0 : i32
    %c0_i32_0 = arith.constant 0 : i32
    %c0_i32_1 = arith.constant 0 : i32
    %c0_i32_2 = arith.constant 0 : i32
    return %c0_i32, %c0_i32_0, %c0_i32_1 : i32, i32, i32
  }
  func.func @transform_15(%arg0: i32) -> (i32, i32, i32) {
    %c0_i32 = arith.constant 0 : i32
    %c0_i32_0 = arith.constant 0 : i32
    %c0_i32_1 = arith.constant 0 : i32
    %c0_i32_2 = arith.constant 0 : i32
    return %c0_i32, %c0_i32_0, %c0_i32_1 : i32, i32, i32
  }
  func.func @transform_16(%arg0: i32) -> (i32, i32, i32) {
    %c0_i32 = arith.constant 0 : i32
    %c0_i32_0 = arith.constant 0 : i32
    %c0_i32_1 = arith.constant 0 : i32
    %c0_i32_2 = arith.constant 0 : i32
    return %c0_i32, %c0_i32_0, %c0_i32_1 : i32, i32, i32
  }
  func.func @transform_17(%arg0: i32) -> (i32, i32, i32) {
    %c0_i32 = arith.constant 0 : i32
    %c0_i32_0 = arith.constant 0 : i32
    %c0_i32_1 = arith.constant 0 : i32
    %c0_i32_2 = arith.constant 0 : i32
    return %c0_i32, %c0_i32_0, %c0_i32_1 : i32, i32, i32
  }
  func.func @transform_18(%arg0: i32) -> (i32, i32) {
    %c0_i32 = arith.constant 0 : i32
    %c0_i32_0 = arith.constant 0 : i32
    %c0_i32_1 = arith.constant 0 : i32
    return %c0_i32, %c0_i32_0 : i32, i32
  }
  func.func @transform_19(%arg0: i32) -> (i32, i32) {
    %c0_i32 = arith.constant 0 : i32
    %c0_i32_0 = arith.constant 0 : i32
    %c0_i32_1 = arith.constant 0 : i32
    return %c0_i32, %c0_i32_0 : i32, i32
  }
  func.func @transform_20(%arg0: i32) -> (i32, i32) {
    %c0_i32 = arith.constant 0 : i32
    %c0_i32_0 = arith.constant 0 : i32
    %c0_i32_1 = arith.constant 0 : i32
    return %c0_i32, %c0_i32_0 : i32, i32
  }
  func.func @transform_21(%arg0: i32) -> (i32, i32) {
    %c0_i32 = arith.constant 0 : i32
    %c0_i32_0 = arith.constant 0 : i32
    %c0_i32_1 = arith.constant 0 : i32
    return %c0_i32, %c0_i32_0 : i32, i32
  }
  func.func @transform_22(%arg0: i32) -> (i32, i32) {
    %c0_i32 = arith.constant 0 : i32
    %c0_i32_0 = arith.constant 0 : i32
    %c0_i32_1 = arith.constant 0 : i32
    return %c0_i32, %c0_i32_0 : i32, i32
  }
}

</mosaic_0001>

<llo_original>
// kernel: bert_network_forward.1
$region0: #{bert_network_forward.1}
  #allocation0 [shape = 'u32[]', space=smem, size = 0x4, offset = 0x4, fixed_abs, tag = 'smem constant byte address 0x4 - core index']
  #allocation1 [shape = 'u32[72,128]{1,0:T(1,128)}', space=vmem, size = 0x9000, scoped, tag = 'internal scratch']
  %s0 = inlined_call_operand.vmem [shape: s32[16,1], index: 0, kind: input, shape index: {}]
  %s1 = inlined_call_operand.hbm [shape: f32[128,256], index: 1, kind: input, shape index: {}]
  %s2 = inlined_call_operand.vmem [shape: f32[16,256], index: 2, kind: input, shape index: {}]
  %s3 = inlined_call_operand.vmem [shape: f32[1,256], index: 3, kind: input, shape index: {}]
  %s4 = inlined_call_operand.vmem [shape: f32[1,256], index: 4, kind: input, shape index: {}]
  %s5 = inlined_call_operand.vmem [shape: f32[16,16], index: 5, kind: input, shape index: {}]
  %s6 = inlined_call_operand.hbm [shape: bf16[2,256,768], index: 6, kind: input, shape index: {}]
  %s7 = inlined_call_operand.vmem [shape: f32[2,1,768], index: 7, kind: input, shape index: {}]
  %s8 = inlined_call_operand.hbm [shape: bf16[2,256,256], index: 8, kind: input, shape index: {}]
  %s9 = inlined_call_operand.vmem [shape: f32[2,1,256], index: 9, kind: input, shape index: {}]
  %s10 = inlined_call_operand.vmem [shape: f32[2,1,256], index: 10, kind: input, shape index: {}]
  %s11 = inlined_call_operand.vmem [shape: f32[2,1,256], index: 11, kind: input, shape index: {}]
  %s12 = inlined_call_operand.hbm [shape: bf16[2,256,1024], index: 12, kind: input, shape index: {}]
  %s13 = inlined_call_operand.vmem [shape: f32[2,1,1024], index: 13, kind: input, shape index: {}]
  %s14 = inlined_call_operand.hbm [shape: bf16[2,1024,256], index: 14, kind: input, shape index: {}]
  %s15 = inlined_call_operand.vmem [shape: f32[2,1,256], index: 15, kind: input, shape index: {}]
  %s16 = inlined_call_operand.vmem [shape: f32[2,1,256], index: 16, kind: input, shape index: {}]
  %s17 = inlined_call_operand.vmem [shape: f32[2,1,256], index: 17, kind: input, shape index: {}]
  %s18 = inlined_call_operand.hbm [shape: bf16[256,256], index: 18, kind: input, shape index: {}]
  %s19 = inlined_call_operand.vmem [shape: f32[1,256], index: 19, kind: input, shape index: {}]
  %s20 = inlined_call_operand.hbm [shape: bf16[256,128], index: 20, kind: input, shape index: {}]
  %s21 = inlined_call_operand.vmem [shape: f32[1,128], index: 21, kind: input, shape index: {}]
  %s22 = inlined_call_operand.hbm [shape: f32[2,128], index: 22, kind: output, shape index: {}]
  %s23 = sld [smem:[#allocation0]]
  $region126: #{bert_network_forward.1} parent=0
    _
  %s25 = ssub.s32 1, %s23
  %s26 = scalar_select 0, %s25, %s23
  $region1: #{bert_network_forward.1} parent=0
    #allocation2 [shape = 'u8[131072]{0}', space=vmem, size = 0x20000, scoped, tag = 'input window, operand 1, single buffered']
    #allocation3 [shape = 's32[1]{0}', space=sflag, size = 0x4, scoped, tag = 'scoped memory for bert_network_forward.1']
    #allocation4 [shape = 's32[1]{0}', space=sflag, size = 0x4, scoped, tag = 'scoped memory for bert_network_forward.1']
    #allocation5 [shape = 'u8[786432]{0}', space=vmem, size = 0xc0000, scoped, tag = 'input window, operand 6, single buffered']
    #allocation6 [shape = 's32[1]{0}', space=sflag, size = 0x4, scoped, tag = 'scoped memory for bert_network_forward.1']
    #allocation7 [shape = 'u8[262144]{0}', space=vmem, size = 0x40000, scoped, tag = 'input window, operand 8, single buffered']
    #allocation8 [shape = 'u8[1048576]{0}', space=vmem, size = 0x100000, scoped, tag = 'input window, operand 12, single buffered']
    #allocation9 [shape = 's32[1]{0}', space=sflag, size = 0x4, scoped, tag = 'scoped memory for bert_network_forward.1']
    #allocation10 [shape = 'u8[1048576]{0}', space=vmem, size = 0x100000, scoped, tag = 'input window, operand 14, single buffered']
    #allocation11 [shape = 'u8[131072]{0}', space=vmem, size = 0x20000, scoped, tag = 'input window, operand 18, single buffered']
    #allocation12 [shape = 's32[1]{0}', space=sflag, size = 0x4, scoped, tag = 'scoped memory for bert_network_forward.1']
    #allocation13 [shape = 'u8[65536]{0}', space=vmem, size = 0x10000, scoped, tag = 'input window, operand 20, single buffered']
    #allocation14 [shape = 'u8[1024]{0}', space=vmem, size = 0x400, scoped, tag = 'output window, operand 0, single buffered']
    %27 = vsyncpa [#allocation3], 0
    %28 = vsyncpa [#allocation6], 0
    %29 = vsyncpa [#allocation9], 0
    %30 = vsyncpa [#allocation12], 0
    %31 = vsyncpa [#allocation4], 0
    // Predicated region
    $region2: #{bert_network_forward.1} parent=1 // pred_check
      _
    $region3: #{bert_network_forward.1} parent=1 // pred_check_branch
      %33 = sbr.rel (0) target = $region5
    $region4: #{bert_network_forward.1} parent=1 // pred_region
      _
    $region5: #{bert_network_forward.1} parent=1 // pred_fallthru
      _
    // Predicated region
    $region6: #{bert_network_forward.1} parent=1 // pred_check
      _
    $region7: #{bert_network_forward.1} parent=1 // pred_check_branch
      %35 = sbr.rel (0) target = $region9
    $region8: #{bert_network_forward.1} parent=1 // pred_region
      %37 = vsyncadd [#allocation3], 0
      %s38 = sshll.u32 %s1, 4
      %s39 = int_to_ptr.hbm [resolvable:$true] %s38
      %s40 = sshll.u32 [#allocation2], 4
      %s41 = int_to_ptr.vmem [resolvable:$true] %s40
      %46 = dma.hbm_to_vmem [thread:$0]  %s39, 4096, %s41, [#allocation3], 256, 256, 16
    $region9: #{bert_network_forward.1} parent=1 // pred_fallthru
      _
    // Predicated region
    $region10: #{bert_network_forward.1} parent=1 // pred_check
      _
    $region11: #{bert_network_forward.1} parent=1 // pred_check_branch
      %48 = sbr.rel (0) target = $region13
    $region12: #{bert_network_forward.1} parent=1 // pred_region
      _
    $region13: #{bert_network_forward.1} parent=1 // pred_fallthru
      _
    // Predicated region
    $region14: #{bert_network_forward.1} parent=1 // pred_check
      _
    $region15: #{bert_network_forward.1} parent=1 // pred_check_branch
      %50 = sbr.rel (0) target = $region17
    $region16: #{bert_network_forward.1} parent=1 // pred_region
      _
    $region17: #{bert_network_forward.1} parent=1 // pred_fallthru
      _
    // Predicated region
    $region18: #{bert_network_forward.1} parent=1 // pred_check
      _
    $region19: #{bert_network_forward.1} parent=1 // pred_check_branch
      %52 = sbr.rel (0) target = $region21
    $region20: #{bert_network_forward.1} parent=1 // pred_region
      _
    $region21: #{bert_network_forward.1} parent=1 // pred_fallthru
      _
    // Predicated region
    $region22: #{bert_network_forward.1} parent=1 // pred_check
      _
    $region23: #{bert_network_forward.1} parent=1 // pred_check_branch
      %54 = sbr.rel (0) target = $region25
    $region24: #{bert_network_forward.1} parent=1 // pred_region
      _
    $region25: #{bert_network_forward.1} parent=1 // pred_fallthru
      _
    // Predicated region
    $region26: #{bert_network_forward.1} parent=1 // pred_check
      _
    $region27: #{bert_network_forward.1} parent=1 // pred_check_branch
      %56 = sbr.rel (0) target = $region29
    $region28: #{bert_network_forward.1} parent=1 // pred_region
      %58 = vsyncadd [#allocation6], 0
      %s59 = sshll.u32 %s6, 4
      %s60 = int_to_ptr.hbm [resolvable:$true] %s59
      %s61 = sshll.u32 [#allocation5], 4
      %s62 = int_to_ptr.vmem [resolvable:$true] %s61
      %67 = dma.hbm_to_vmem [thread:$0]  %s60, 24576, %s62, [#allocation6], 384, 384, 24
    $region29: #{bert_network_forward.1} parent=1 // pred_fallthru
      _
    // Predicated region
    $region30: #{bert_network_forward.1} parent=1 // pred_check
      _
    $region31: #{bert_network_forward.1} parent=1 // pred_check_branch
      %69 = sbr.rel (0) target = $region33
    $region32: #{bert_network_forward.1} parent=1 // pred_region
      _
    $region33: #{bert_network_forward.1} parent=1 // pred_fallthru
      _
    // Predicated region
    $region34: #{bert_network_forward.1} parent=1 // pred_check
      _
    $region35: #{bert_network_forward.1} parent=1 // pred_check_branch
      %71 = sbr.rel (0) target = $region37
    $region36: #{bert_network_forward.1} parent=1 // pred_region
      %73 = vsyncadd [#allocation6], 0
      %s74 = sshll.u32 %s8, 4
      %s75 = int_to_ptr.hbm [resolvable:$true] %s74
      %s76 = sshll.u32 [#allocation7], 4
      %s77 = int_to_ptr.vmem [resolvable:$true] %s76
      %82 = dma.hbm_to_vmem [thread:$0]  %s75, 8192, %s77, [#allocation6], 128, 128, 8
    $region37: #{bert_network_forward.1} parent=1 // pred_fallthru
      _
    // Predicated region
    $region38: #{bert_network_forward.1} parent=1 // pred_check
      _
    $region39: #{bert_network_forward.1} parent=1 // pred_check_branch
      %84 = sbr.rel (0) target = $region41
    $region40: #{bert_network_forward.1} parent=1 // pred_region
      _
    $region41: #{bert_network_forward.1} parent=1 // pred_fallthru
      _
    // Predicated region
    $region42: #{bert_network_forward.1} parent=1 // pred_check
      _
    $region43: #{bert_network_forward.1} parent=1 // pred_check_branch
      %86 = sbr.rel (0) target = $region45
    $region44: #{bert_network_forward.1} parent=1 // pred_region
      _
    $region45: #{bert_network_forward.1} parent=1 // pred_fallthru
      _
    // Predicated region
    $region46: #{bert_network_forward.1} parent=1 // pred_check
      _
    $region47: #{bert_network_forward.1} parent=1 // pred_check_branch
      %88 = sbr.rel (0) target = $region49
    $region48: #{bert_network_forward.1} parent=1 // pred_region
      _
    $region49: #{bert_network_forward.1} parent=1 // pred_fallthru
      _
    // Predicated region
    $region50: #{bert_network_forward.1} parent=1 // pred_check
      _
    $region51: #{bert_network_forward.1} parent=1 // pred_check_branch
      %90 = sbr.rel (0) target = $region53
    $region52: #{bert_network_forward.1} parent=1 // pred_region
      %92 = vsyncadd [#allocation9], 0
      %s93 = sshll.u32 %s12, 4
      %s94 = int_to_ptr.hbm [resolvable:$true] %s93
      %s95 = sshll.u32 [#allocation8], 4
      %s96 = int_to_ptr.vmem [resolvable:$true] %s95
      %101 = dma.hbm_to_vmem [thread:$0]  %s94, 32768, %s96, [#allocation9], 512, 512, 32
    $region53: #{bert_network_forward.1} parent=1 // pred_fallthru
      _
    // Predicated region
    $region54: #{bert_network_forward.1} parent=1 // pred_check
      _
    $region55: #{bert_network_forward.1} parent=1 // pred_check_branch
      %103 = sbr.rel (0) target = $region57
    $region56: #{bert_network_forward.1} parent=1 // pred_region
      _
    $region57: #{bert_network_forward.1} parent=1 // pred_fallthru
      _
    // Predicated region
    $region58: #{bert_network_forward.1} parent=1 // pred_check
      _
    $region59: #{bert_network_forward.1} parent=1 // pred_check_branch
      %105 = sbr.rel (0) target = $region61
    $region60: #{bert_network_forward.1} parent=1 // pred_region
      %107 = vsyncadd [#allocation9], 0
      %s108 = sshll.u32 %s14, 4
      %s109 = int_to_ptr.hbm [resolvable:$true] %s108
      %s110 = sshll.u32 [#allocation10], 4
      %s111 = int_to_ptr.vmem [resolvable:$true] %s110
      %116 = dma.hbm_to_vmem [thread:$0]  %s109, 32768, %s111, [#allocation9], 128, 128, 8
    $region61: #{bert_network_forward.1} parent=1 // pred_fallthru
      _
    // Predicated region
    $region62: #{bert_network_forward.1} parent=1 // pred_check
      _
    $region63: #{bert_network_forward.1} parent=1 // pred_check_branch
      %118 = sbr.rel (0) target = $region65
    $region64: #{bert_network_forward.1} parent=1 // pred_region
      _
    $region65: #{bert_network_forward.1} parent=1 // pred_fallthru
      _
    // Predicated region
    $region66: #{bert_network_forward.1} parent=1 // pred_check
      _
    $region67: #{bert_network_forward.1} parent=1 // pred_check_branch
      %120 = sbr.rel (0) target = $region69
    $region68: #{bert_network_forward.1} parent=1 // pred_region
      _
    $region69: #{bert_network_forward.1} parent=1 // pred_fallthru
      _
    // Predicated region
    $region70: #{bert_network_forward.1} parent=1 // pred_check
      _
    $region71: #{bert_network_forward.1} parent=1 // pred_check_branch
      %122 = sbr.rel (0) target = $region73
    $region72: #{bert_network_forward.1} parent=1 // pred_region
      _
    $region73: #{bert_network_forward.1} parent=1 // pred_fallthru
      _
    // Predicated region
    $region74: #{bert_network_forward.1} parent=1 // pred_check
      _
    $region75: #{bert_network_forward.1} parent=1 // pred_check_branch
      %124 = sbr.rel (0) target = $region77
    $region76: #{bert_network_forward.1} parent=1 // pred_region
      %126 = vsyncadd [#allocation12], 0
      %s127 = sshll.u32 %s18, 4
      %s128 = int_to_ptr.hbm [resolvable:$true] %s127
      %s129 = sshll.u32 [#allocation11], 4
      %s130 = int_to_ptr.vmem [resolvable:$true] %s129
      %135 = dma.hbm_to_vmem [thread:$0]  %s128, 4096, %s130, [#allocation12], 128, 128, 8
    $region77: #{bert_network_forward.1} parent=1 // pred_fallthru
      _
    // Predicated region
    $region78: #{bert_network_forward.1} parent=1 // pred_check
      _
    $region79: #{bert_network_forward.1} parent=1 // pred_check_branch
      %137 = sbr.rel (0) target = $region81
    $region80: #{bert_network_forward.1} parent=1 // pred_region
      _
    $region81: #{bert_network_forward.1} parent=1 // pred_fallthru
      _
    // Predicated region
    $region82: #{bert_network_forward.1} parent=1 // pred_check
      _
    $region83: #{bert_network_forward.1} parent=1 // pred_check_branch
      %139 = sbr.rel (0) target = $region85
    $region84: #{bert_network_forward.1} parent=1 // pred_region
      %141 = vsyncadd [#allocation12], 0
      %s142 = sshll.u32 %s20, 4
      %s143 = int_to_ptr.hbm [resolvable:$true] %s142
      %s144 = sshll.u32 [#allocation13], 4
      %s145 = int_to_ptr.vmem [resolvable:$true] %s144
      %150 = dma.hbm_to_vmem [thread:$0]  %s143, 2048, %s145, [#allocation12], 64, 64, 4
    $region85: #{bert_network_forward.1} parent=1 // pred_fallthru
      _
    // Predicated region
    $region86: #{bert_network_forward.1} parent=1 // pred_check
      _
    $region87: #{bert_network_forward.1} parent=1 // pred_check_branch
      %152 = sbr.rel (0) target = $region89
    $region88: #{bert_network_forward.1} parent=1 // pred_region
      _
    $region89: #{bert_network_forward.1} parent=1 // pred_fallthru
      _
    // Predicated region
    $region90: #{bert_network_forward.1} parent=1 // pred_check
      _
    $region91: #{bert_network_forward.1} parent=1 // pred_check_branch
      %154 = sbr.rel (0) target = $region93
    $region92: #{bert_network_forward.1} parent=1 // pred_region
      %156 = dma.done [#allocation3], 4096
    $region93: #{bert_network_forward.1} parent=1 // pred_fallthru
      _
    // Predicated region
    $region94: #{bert_network_forward.1} parent=1 // pred_check
      _
    $region95: #{bert_network_forward.1} parent=1 // pred_check_branch
      %158 = sbr.rel (0) target = $region97
    $region96: #{bert_network_forward.1} parent=1 // pred_region
      %160 = dma.done [#allocation6], 24576
    $region97: #{bert_network_forward.1} parent=1 // pred_fallthru
      _
    // Predicated region
    $region98: #{bert_network_forward.1} parent=1 // pred_check
      _
    $region99: #{bert_network_forward.1} parent=1 // pred_check_branch
      %162 = sbr.rel (0) target = $region101
    $region100: #{bert_network_forward.1} parent=1 // pred_region
      %164 = dma.done [#allocation6], 8192
    $region101: #{bert_network_forward.1} parent=1 // pred_fallthru
      _
    // Predicated region
    $region102: #{bert_network_forward.1} parent=1 // pred_check
      _
    $region103: #{bert_network_forward.1} parent=1 // pred_check_branch
      %166 = sbr.rel (0) target = $region105
    $region104: #{bert_network_forward.1} parent=1 // pred_region
      %168 = dma.done [#allocation9], 32768
    $region105: #{bert_network_forward.1} parent=1 // pred_fallthru
      _
    // Predicated region
    $region106: #{bert_network_forward.1} parent=1 // pred_check
      _
    $region107: #{bert_network_forward.1} parent=1 // pred_check_branch
      %170 = sbr.rel (0) target = $region109
    $region108: #{bert_network_forward.1} parent=1 // pred_region
      %172 = dma.done [#allocation9], 32768
    $region109: #{bert_network_forward.1} parent=1 // pred_fallthru
      _
    // Predicated region
    $region110: #{bert_network_forward.1} parent=1 // pred_check
      _
    $region111: #{bert_network_forward.1} parent=1 // pred_check_branch
      %174 = sbr.rel (0) target = $region113
    $region112: #{bert_network_forward.1} parent=1 // pred_region
      %176 = dma.done [#allocation12], 4096
    $region113: #{bert_network_forward.1} parent=1 // pred_fallthru
      _
    // Predicated region
    $region114: #{bert_network_forward.1} parent=1 // pred_check
      _
    $region115: #{bert_network_forward.1} parent=1 // pred_check_branch
      %178 = sbr.rel (0) target = $region117
    $region116: #{bert_network_forward.1} parent=1 // pred_region
      %180 = dma.done [#allocation12], 2048
    $region117: #{bert_network_forward.1} parent=1 // pred_fallthru
      _
    %v181 = vld [vmem:[%s0] sm:$0xff]
    %v182 = vld [vmem:[%s0 + $0x8] sm:$0xff]
    %v183 = vlaneseq
    %v184 = vand.u32 %v183, 127
    %185 = vset.pattern.permute.xlu0 0
    %186 = vperm.xlu0 %185, %v181
    %v187 = vpop.permute.xlu0 %186
    %188 = vset.pattern.permute.xlu0 0
    %189 = vperm.xlu0 %188, %v182
    %v190 = vpop.permute.xlu0 %189
    %vm191 = vcmp.eq.s32.totalorder %v184, %v187
    %vm192 = vcmp.eq.s32.totalorder %v184, %v190
    %v193 = vsel %vm191, 1, 0
    %v194 = vsel %vm192, 1, 0
    %v195 = vcvt.s32.f32 %v193
    %v196 = vcvt.s32.f32 %v194
    %v197 = vld [vmem:[#allocation2] sm:$0xff]
    %v198 = vld [vmem:[#allocation2 + $0x8] sm:$0xff]
    %v199 = vld [vmem:[#allocation2 + $0x10] sm:$0xff]
    %v200 = vld [vmem:[#allocation2 + $0x18] sm:$0xff]
    %v201 = vld [vmem:[#allocation2 + $0x20] sm:$0xff]
    %v202 = vld [vmem:[#allocation2 + $0x28] sm:$0xff]
    %v203 = vld [vmem:[#allocation2 + $0x30] sm:$0xff]
    %v204 = vld [vmem:[#allocation2 + $0x38] sm:$0xff]
    %v205 = vld [vmem:[#allocation2 + $0x40] sm:$0xff]
    %v206 = vld [vmem:[#allocation2 + $0x48] sm:$0xff]
    %v207 = vld [vmem:[#allocation2 + $0x50] sm:$0xff]
    %v208 = vld [vmem:[#allocation2 + $0x58] sm:$0xff]
    %v209 = vld [vmem:[#allocation2 + $0x60] sm:$0xff]
    %v210 = vld [vmem:[#allocation2 + $0x68] sm:$0xff]
    %v211 = vld [vmem:[#allocation2 + $0x70] sm:$0xff]
    %v212 = vld [vmem:[#allocation2 + $0x78] sm:$0xff]
    %v213 = vld [vmem:[#allocation2 + $0x80] sm:$0xff]
    %v214 = vld [vmem:[#allocation2 + $0x88] sm:$0xff]
    %v215 = vld [vmem:[#allocation2 + $0x90] sm:$0xff]
    %v216 = vld [vmem:[#allocation2 + $0x98] sm:$0xff]
    %v217 = vld [vmem:[#allocation2 + $0xa0] sm:$0xff]
    %v218 = vld [vmem:[#allocation2 + $0xa8] sm:$0xff]
    %v219 = vld [vmem:[#allocation2 + $0xb0] sm:$0xff]
    %v220 = vld [vmem:[#allocation2 + $0xb8] sm:$0xff]
    %v221 = vld [vmem:[#allocation2 + $0xc0] sm:$0xff]
    %v222 = vld [vmem:[#allocation2 + $0xc8] sm:$0xff]
    %v223 = vld [vmem:[#allocation2 + $0xd0] sm:$0xff]
    %v224 = vld [vmem:[#allocation2 + $0xd8] sm:$0xff]
    %v225 = vld [vmem:[#allocation2 + $0xe0] sm:$0xff]
    %v226 = vld [vmem:[#allocation2 + $0xe8] sm:$0xff]
    %v227 = vld [vmem:[#allocation2 + $0xf0] sm:$0xff]
    %v228 = vld [vmem:[#allocation2 + $0xf8] sm:$0xff]
    %v229 = vld [vmem:[%s2] sm:$0xff]
    %v230 = vld [vmem:[%s2 + $0x8] sm:$0xff]
    %v231 = vld [vmem:[%s2 + $0x10] sm:$0xff]
    %v232 = vld [vmem:[%s2 + $0x18] sm:$0xff]
    %233 = vmatpush.msra.mxu0 %v227
    %234 = vmatpush.msra.mxu0 %v225
    %235 = vmatpush.msra.mxu0 %v223
    %236 = vmatpush.msra.mxu0 %v221
    %237 = vmatpush.msra.mxu0 %v219
    %238 = vmatpush.msra.mxu0 %v217
    %239 = vmatpush.msra.mxu0 %v215
    %240 = vmatpush.msra.mxu0 %v213
    %241 = vmatpush.msra.mxu0 %v211
    %242 = vmatpush.msra.mxu0 %v209
    %243 = vmatpush.msra.mxu0 %v207
    %244 = vmatpush.msra.mxu0 %v205
    %245 = vmatpush.msra.mxu0 %v203
    %246 = vmatpush.msra.mxu0 %v201
    %247 = vmatpush.msra.mxu0 %v199
    %248 = vmatpush.msra.mxu0 %v197
    %249 = vmatmul.f32.gmra.mxu0 %v195
    %v250 = vpop.f32.mrf.mxu0
    %v251 = vadd.f32 %v229, %v250
    %252 = vmatmul.f32.gmra.mxu0 %v196
    %v253 = vpop.f32.mrf.mxu0
    %v254 = vadd.f32 %v231, %v253
    %255 = vdwg.mxu0
    %256 = vmatpush.msra.mxu0 %v228
    %257 = vmatpush.msra.mxu0 %v226
    %258 = vmatpush.msra.mxu0 %v224
    %259 = vmatpush.msra.mxu0 %v222
    %260 = vmatpush.msra.mxu0 %v220
    %261 = vmatpush.msra.mxu0 %v218
    %262 = vmatpush.msra.mxu0 %v216
    %263 = vmatpush.msra.mxu0 %v214
    %264 = vmatpush.msra.mxu0 %v212
    %265 = vmatpush.msra.mxu0 %v210
    %266 = vmatpush.msra.mxu0 %v208
    %267 = vmatpush.msra.mxu0 %v206
    %268 = vmatpush.msra.mxu0 %v204
    %269 = vmatpush.msra.mxu0 %v202
    %270 = vmatpush.msra.mxu0 %v200
    %271 = vmatpush.msra.mxu0 %v198
    %272 = vmatmul.f32.gmra.mxu0 %v195
    %v273 = vpop.f32.mrf.mxu0
    %v274 = vadd.f32 %v230, %v273
    %275 = vmatmul.f32.gmra.mxu0 %v196
    %v276 = vpop.f32.mrf.mxu0
    %v277 = vadd.f32 %v232, %v276
    %278 = vdwg.mxu0
    %v279 = vld [vmem:[%s3] sm:$0x3]
    %v280 = vld [vmem:[%s4] sm:$0x3]
    %v281 = vadd.f32 %v251, %v274
    %282 = vadd.xlane.f32.xlu0 %v281
    %v283 = vpop.xlane.xlu0 %282
    %v284 = vadd.f32 %v254, %v277
    %285 = vadd.xlane.f32.xlu0 %v284
    %v286 = vpop.xlane.xlu0 %285
    %v287 = vrcp.pop 256.0
    %v288 = vmul.f32 256.0, %v287
    %v289 = vsub.f32 1.0, %v288
    %v290 = vmul.f32 %v287, %v289
    %v291 = vadd.f32 %v287, %v290
    %vm292 = vweird.f32 %v287
    %v293 = vsel %vm292, %v287, %v291
    %v294 = vmul.f32 %v283, %v293
    %v295 = vmul.f32 %v286, %v293
    %v296 = vsub.f32 %v251, %v294
    %v297 = vsub.f32 %v274, %v294
    %v298 = vsub.f32 %v254, %v295
    %v299 = vsub.f32 %v277, %v295
    %v300 = vmul.f32 %v296, %v296
    %v301 = vmul.f32 %v297, %v297
    %v302 = vmul.f32 %v298, %v298
    %v303 = vmul.f32 %v299, %v299
    %v304 = vadd.f32 %v300, %v301
    %305 = vadd.xlane.f32.xlu0 %v304
    %v306 = vpop.xlane.xlu0 %305
    %v307 = vadd.f32 %v302, %v303
    %308 = vadd.xlane.f32.xlu0 %v307
    %v309 = vpop.xlane.xlu0 %308
    %v310 = vmul.f32 %v306, %v293
    %v311 = vmul.f32 %v309, %v293
    %v312 = vadd.f32 %v310, 1e-12
    %v313 = vadd.f32 %v311, 1e-12
    %v314 = vrsqrt.pop %v312
    %v315 = vmul.f32 %v314, %v312
    %v316 = vmul.f32 %v315, %v314
    %v317 = vmul.f32 0.5, %v316
    %v318 = vsub.f32 1.5, %v317
    %v319 = vmul.f32 %v314, %v318
    %vm320 = vweird.f32 %v312
    %vm321 = vweird.f32 %v314
    %vm322 = vmor %vm320, %vm321
    %v323 = vsel %vm322, %v314, %v319
    %v324 = vrsqrt.pop %v313
    %v325 = vmul.f32 %v324, %v313
    %v326 = vmul.f32 %v325, %v324
    %v327 = vmul.f32 0.5, %v326
    %v328 = vsub.f32 1.5, %v327
    %v329 = vmul.f32 %v324, %v328
    %vm330 = vweird.f32 %v313
    %vm331 = vweird.f32 %v324
    %vm332 = vmor %vm330, %vm331
    %v333 = vsel %vm332, %v324, %v329
    %v334 = vmul.f32 %v296, %v323
    %v335 = vmul.f32 %v297, %v323
    %v336 = vmul.f32 %v298, %v333
    %v337 = vmul.f32 %v299, %v333
    %v339 = vperm.slane %v279, 0
    %v340 = vperm.slane %v279, 1
    %v343 = vmul.f32 %v334, %v339
    %v344 = vmul.f32 %v335, %v340
    %v345 = vmul.f32 %v336, %v339
    %v346 = vmul.f32 %v337, %v340
    %v348 = vperm.slane %v280, 0
    %v349 = vperm.slane %v280, 1
    %v352 = vadd.f32 %v343, %v348
    %v353 = vadd.f32 %v344, %v349
    %v354 = vadd.f32 %v345, %v348
    %v355 = vadd.f32 %v346, %v349
    %v356 = vld [vmem:[%s5] sm:$0xff]
    %v357 = vld [vmem:[%s5 + $0x8] sm:$0xff]
    %v358 = vpack.c.bf16 %v354, %v352
    %v359 = vpack.c.bf16 %v355, %v353
    %v360 = vld [vmem:[#allocation5] sm:$0xff]
    %v361 = vld [vmem:[#allocation5 + $0x8] sm:$0xff]
    %v362 = vld [vmem:[#allocation5 + $0x10] sm:$0xff]
    %v363 = vld [vmem:[#allocation5 + $0x18] sm:$0xff]
    %v364 = vld [vmem:[#allocation5 + $0x20] sm:$0xff]
    %v365 = vld [vmem:[#allocation5 + $0x28] sm:$0xff]
    %v366 = vld [vmem:[#allocation5 + $0x30] sm:$0xff]
    %v367 = vld [vmem:[#allocation5 + $0x38] sm:$0xff]
    %v368 = vld [vmem:[#allocation5 + $0x40] sm:$0xff]
    %v369 = vld [vmem:[#allocation5 + $0x48] sm:$0xff]
    %v370 = vld [vmem:[#allocation5 + $0x50] sm:$0xff]
    %v371 = vld [vmem:[#allocation5 + $0x58] sm:$0xff]
    %v372 = vld [vmem:[#allocation5 + $0x60] sm:$0xff]
    %v373 = vld [vmem:[#allocation5 + $0x68] sm:$0xff]
    %v374 = vld [vmem:[#allocation5 + $0x70] sm:$0xff]
    %v375 = vld [vmem:[#allocation5 + $0x78] sm:$0xff]
    %v376 = vld [vmem:[#allocation5 + $0x80] sm:$0xff]
    %v377 = vld [vmem:[#allocation5 + $0x88] sm:$0xff]
    %v378 = vld [vmem:[#allocation5 + $0x90] sm:$0xff]
    %v379 = vld [vmem:[#allocation5 + $0x98] sm:$0xff]
    %v380 = vld [vmem:[#allocation5 + $0xa0] sm:$0xff]
    %v381 = vld [vmem:[#allocation5 + $0xa8] sm:$0xff]
    %v382 = vld [vmem:[#allocation5 + $0xb0] sm:$0xff]
    %v383 = vld [vmem:[#allocation5 + $0xb8] sm:$0xff]
    %v384 = vld [vmem:[#allocation5 + $0xc0] sm:$0xff]
    %v385 = vld [vmem:[#allocation5 + $0xc8] sm:$0xff]
    %v386 = vld [vmem:[#allocation5 + $0xd0] sm:$0xff]
    %v387 = vld [vmem:[#allocation5 + $0xd8] sm:$0xff]
    %v388 = vld [vmem:[#allocation5 + $0xe0] sm:$0xff]
    %v389 = vld [vmem:[#allocation5 + $0xe8] sm:$0xff]
    %v390 = vld [vmem:[#allocation5 + $0xf0] sm:$0xff]
    %v391 = vld [vmem:[#allocation5 + $0xf8] sm:$0xff]
    %v392 = vld [vmem:[#allocation5 + $0x100] sm:$0xff]
    %v393 = vld [vmem:[#allocation5 + $0x108] sm:$0xff]
    %v394 = vld [vmem:[#allocation5 + $0x110] sm:$0xff]
    %v395 = vld [vmem:[#allocation5 + $0x118] sm:$0xff]
    %v396 = vld [vmem:[#allocation5 + $0x120] sm:$0xff]
    %v397 = vld [vmem:[#allocation5 + $0x128] sm:$0xff]
    %v398 = vld [vmem:[#allocation5 + $0x130] sm:$0xff]
    %v399 = vld [vmem:[#allocation5 + $0x138] sm:$0xff]
    %v400 = vld [vmem:[#allocation5 + $0x140] sm:$0xff]
    %v401 = vld [vmem:[#allocation5 + $0x148] sm:$0xff]
    %v402 = vld [vmem:[#allocation5 + $0x150] sm:$0xff]
    %v403 = vld [vmem:[#allocation5 + $0x158] sm:$0xff]
    %v404 = vld [vmem:[#allocation5 + $0x160] sm:$0xff]
    %v405 = vld [vmem:[#allocation5 + $0x168] sm:$0xff]
    %v406 = vld [vmem:[#allocation5 + $0x170] sm:$0xff]
    %v407 = vld [vmem:[#allocation5 + $0x178] sm:$0xff]
    %v408 = vld [vmem:[#allocation5 + $0x180] sm:$0xff]
    %v409 = vld [vmem:[#allocation5 + $0x188] sm:$0xff]
    %v410 = vld [vmem:[#allocation5 + $0x190] sm:$0xff]
    %v411 = vld [vmem:[#allocation5 + $0x198] sm:$0xff]
    %v412 = vld [vmem:[#allocation5 + $0x1a0] sm:$0xff]
    %v413 = vld [vmem:[#allocation5 + $0x1a8] sm:$0xff]
    %v414 = vld [vmem:[#allocation5 + $0x1b0] sm:$0xff]
    %v415 = vld [vmem:[#allocation5 + $0x1b8] sm:$0xff]
    %v416 = vld [vmem:[#allocation5 + $0x1c0] sm:$0xff]
    %v417 = vld [vmem:[#allocation5 + $0x1c8] sm:$0xff]
    %v418 = vld [vmem:[#allocation5 + $0x1d0] sm:$0xff]
    %v419 = vld [vmem:[#allocation5 + $0x1d8] sm:$0xff]
    %v420 = vld [vmem:[#allocation5 + $0x1e0] sm:$0xff]
    %v421 = vld [vmem:[#allocation5 + $0x1e8] sm:$0xff]
    %v422 = vld [vmem:[#allocation5 + $0x1f0] sm:$0xff]
    %v423 = vld [vmem:[#allocation5 + $0x1f8] sm:$0xff]
    %v424 = vld [vmem:[#allocation5 + $0x200] sm:$0xff]
    %v425 = vld [vmem:[#allocation5 + $0x208] sm:$0xff]
    %v426 = vld [vmem:[#allocation5 + $0x210] sm:$0xff]
    %v427 = vld [vmem:[#allocation5 + $0x218] sm:$0xff]
    %v428 = vld [vmem:[#allocation5 + $0x220] sm:$0xff]
    %v429 = vld [vmem:[#allocation5 + $0x228] sm:$0xff]
    %v430 = vld [vmem:[#allocation5 + $0x230] sm:$0xff]
    %v431 = vld [vmem:[#allocation5 + $0x238] sm:$0xff]
    %v432 = vld [vmem:[#allocation5 + $0x240] sm:$0xff]
    %v433 = vld [vmem:[#allocation5 + $0x248] sm:$0xff]
    %v434 = vld [vmem:[#allocation5 + $0x250] sm:$0xff]
    %v435 = vld [vmem:[#allocation5 + $0x258] sm:$0xff]
    %v436 = vld [vmem:[#allocation5 + $0x260] sm:$0xff]
    %v437 = vld [vmem:[#allocation5 + $0x268] sm:$0xff]
    %v438 = vld [vmem:[#allocation5 + $0x270] sm:$0xff]
    %v439 = vld [vmem:[#allocation5 + $0x278] sm:$0xff]
    %v440 = vld [vmem:[#allocation5 + $0x280] sm:$0xff]
    %v441 = vld [vmem:[#allocation5 + $0x288] sm:$0xff]
    %v442 = vld [vmem:[#allocation5 + $0x290] sm:$0xff]
    %v443 = vld [vmem:[#allocation5 + $0x298] sm:$0xff]
    %v444 = vld [vmem:[#allocation5 + $0x2a0] sm:$0xff]
    %v445 = vld [vmem:[#allocation5 + $0x2a8] sm:$0xff]
    %v446 = vld [vmem:[#allocation5 + $0x2b0] sm:$0xff]
    %v447 = vld [vmem:[#allocation5 + $0x2b8] sm:$0xff]
    %v448 = vld [vmem:[#allocation5 + $0x2c0] sm:$0xff]
    %v449 = vld [vmem:[#allocation5 + $0x2c8] sm:$0xff]
    %v450 = vld [vmem:[#allocation5 + $0x2d0] sm:$0xff]
    %v451 = vld [vmem:[#allocation5 + $0x2d8] sm:$0xff]
    %v452 = vld [vmem:[#allocation5 + $0x2e0] sm:$0xff]
    %v453 = vld [vmem:[#allocation5 + $0x2e8] sm:$0xff]
    %v454 = vld [vmem:[#allocation5 + $0x2f0] sm:$0xff]
    %v455 = vld [vmem:[#allocation5 + $0x2f8] sm:$0xff]
    %v456 = vld [vmem:[%s7] sm:$0x3f]
    %v458 = vperm.slane %v456, 0
    %v459 = vperm.slane %v456, 1
    %v460 = vperm.slane %v456, 2
    %v461 = vperm.slane %v456, 3
    %v462 = vperm.slane %v456, 4
    %v463 = vperm.slane %v456, 5
    %v566 = vunpack.c.l.b16 %v360
    %v567 = vunpack.c.h.b16 %v360
    %v568 = vunpack.c.l.b16 %v361
    %v569 = vunpack.c.h.b16 %v361
    %v570 = vunpack.c.l.b16 %v362
    %v571 = vunpack.c.h.b16 %v362
    %v572 = vunpack.c.l.b16 %v363
    %v573 = vunpack.c.h.b16 %v363
    %v574 = vunpack.c.l.b16 %v364
    %v575 = vunpack.c.h.b16 %v364
    %v576 = vunpack.c.l.b16 %v365
    %v577 = vunpack.c.h.b16 %v365
    %v578 = vunpack.c.l.b16 %v366
    %v579 = vunpack.c.h.b16 %v366
    %v580 = vunpack.c.l.b16 %v367
    %v581 = vunpack.c.h.b16 %v367
    %v582 = vunpack.c.l.b16 %v368
    %v583 = vunpack.c.h.b16 %v368
    %v584 = vunpack.c.l.b16 %v369
    %v585 = vunpack.c.h.b16 %v369
    %v586 = vunpack.c.l.b16 %v370
    %v587 = vunpack.c.h.b16 %v370
    %v588 = vunpack.c.l.b16 %v371
    %v589 = vunpack.c.h.b16 %v371
    %v590 = vunpack.c.l.b16 %v372
    %v591 = vunpack.c.h.b16 %v372
    %v592 = vunpack.c.l.b16 %v373
    %v593 = vunpack.c.h.b16 %v373
    %v594 = vunpack.c.l.b16 %v374
    %v595 = vunpack.c.h.b16 %v374
    %v596 = vunpack.c.l.b16 %v375
    %v597 = vunpack.c.h.b16 %v375
    %v598 = vunpack.c.l.b16 %v376
    %v599 = vunpack.c.h.b16 %v376
    %v600 = vunpack.c.l.b16 %v377
    %v601 = vunpack.c.h.b16 %v377
    %v602 = vunpack.c.l.b16 %v378
    %v603 = vunpack.c.h.b16 %v378
    %v604 = vunpack.c.l.b16 %v379
    %v605 = vunpack.c.h.b16 %v379
    %v606 = vunpack.c.l.b16 %v380
    %v607 = vunpack.c.h.b16 %v380
    %v608 = vunpack.c.l.b16 %v381
    %v609 = vunpack.c.h.b16 %v381
    %v610 = vunpack.c.l.b16 %v382
    %v611 = vunpack.c.h.b16 %v382
    %v612 = vunpack.c.l.b16 %v383
    %v613 = vunpack.c.h.b16 %v383
    %v614 = vunpack.c.l.b16 %v384
    %v615 = vunpack.c.h.b16 %v384
    %v616 = vunpack.c.l.b16 %v385
    %v617 = vunpack.c.h.b16 %v385
    %v618 = vunpack.c.l.b16 %v386
    %v619 = vunpack.c.h.b16 %v386
    %v620 = vunpack.c.l.b16 %v387
    %v621 = vunpack.c.h.b16 %v387
    %v622 = vunpack.c.l.b16 %v388
    %v623 = vunpack.c.h.b16 %v388
    %v624 = vunpack.c.l.b16 %v389
    %v625 = vunpack.c.h.b16 %v389
    %v626 = vunpack.c.l.b16 %v390
    %v627 = vunpack.c.h.b16 %v390
    %v628 = vunpack.c.l.b16 %v391
    %v629 = vunpack.c.h.b16 %v391
    %v630 = vunpack.c.l.b16 %v392
    %v631 = vunpack.c.h.b16 %v392
    %v632 = vunpack.c.l.b16 %v393
    %v633 = vunpack.c.h.b16 %v393
    %v634 = vunpack.c.l.b16 %v394
    %v635 = vunpack.c.h.b16 %v394
    %v636 = vunpack.c.l.b16 %v395
    %v637 = vunpack.c.h.b16 %v395
    %v638 = vunpack.c.l.b16 %v396
    %v639 = vunpack.c.h.b16 %v396
    %v640 = vunpack.c.l.b16 %v397
    %v641 = vunpack.c.h.b16 %v397
    %v642 = vunpack.c.l.b16 %v398
    %v643 = vunpack.c.h.b16 %v398
    %v644 = vunpack.c.l.b16 %v399
    %v645 = vunpack.c.h.b16 %v399
    %v646 = vunpack.c.l.b16 %v400
    %v647 = vunpack.c.h.b16 %v400
    %v648 = vunpack.c.l.b16 %v401
    %v649 = vunpack.c.h.b16 %v401
    %v650 = vunpack.c.l.b16 %v402
    %v651 = vunpack.c.h.b16 %v402
    %v652 = vunpack.c.l.b16 %v403
    %v653 = vunpack.c.h.b16 %v403
    %v654 = vunpack.c.l.b16 %v404
    %v655 = vunpack.c.h.b16 %v404
    %v656 = vunpack.c.l.b16 %v405
    %v657 = vunpack.c.h.b16 %v405
    %v658 = vunpack.c.l.b16 %v406
    %v659 = vunpack.c.h.b16 %v406
    %v660 = vunpack.c.l.b16 %v407
    %v661 = vunpack.c.h.b16 %v407
    %v662 = vunpack.c.l.b16 %v408
    %v663 = vunpack.c.h.b16 %v408
    %v664 = vunpack.c.l.b16 %v409
    %v665 = vunpack.c.h.b16 %v409
    %v666 = vunpack.c.l.b16 %v410
    %v667 = vunpack.c.h.b16 %v410
    %v668 = vunpack.c.l.b16 %v411
    %v669 = vunpack.c.h.b16 %v411
    %v670 = vunpack.c.l.b16 %v412
    %v671 = vunpack.c.h.b16 %v412
    %v672 = vunpack.c.l.b16 %v413
    %v673 = vunpack.c.h.b16 %v413
    %v674 = vunpack.c.l.b16 %v414
    %v675 = vunpack.c.h.b16 %v414
    %v676 = vunpack.c.l.b16 %v415
    %v677 = vunpack.c.h.b16 %v415
    %v678 = vunpack.c.l.b16 %v416
    %v679 = vunpack.c.h.b16 %v416
    %v680 = vunpack.c.l.b16 %v417
    %v681 = vunpack.c.h.b16 %v417
    %v682 = vunpack.c.l.b16 %v418
    %v683 = vunpack.c.h.b16 %v418
    %v684 = vunpack.c.l.b16 %v419
    %v685 = vunpack.c.h.b16 %v419
    %v686 = vunpack.c.l.b16 %v420
    %v687 = vunpack.c.h.b16 %v420
    %v688 = vunpack.c.l.b16 %v421
    %v689 = vunpack.c.h.b16 %v421
    %v690 = vunpack.c.l.b16 %v422
    %v691 = vunpack.c.h.b16 %v422
    %v692 = vunpack.c.l.b16 %v423
    %v693 = vunpack.c.h.b16 %v423
    %v694 = vunpack.c.l.b16 %v424
    %v695 = vunpack.c.h.b16 %v424
    %v696 = vunpack.c.l.b16 %v425
    %v697 = vunpack.c.h.b16 %v425
    %v698 = vunpack.c.l.b16 %v426
    %v699 = vunpack.c.h.b16 %v426
    %v700 = vunpack.c.l.b16 %v427
    %v701 = vunpack.c.h.b16 %v427
    %v702 = vunpack.c.l.b16 %v428
    %v703 = vunpack.c.h.b16 %v428
    %v704 = vunpack.c.l.b16 %v429
    %v705 = vunpack.c.h.b16 %v429
    %v706 = vunpack.c.l.b16 %v430
    %v707 = vunpack.c.h.b16 %v430
    %v708 = vunpack.c.l.b16 %v431
    %v709 = vunpack.c.h.b16 %v431
    %v710 = vunpack.c.l.b16 %v432
    %v711 = vunpack.c.h.b16 %v432
    %v712 = vunpack.c.l.b16 %v433
    %v713 = vunpack.c.h.b16 %v433
    %v714 = vunpack.c.l.b16 %v434
    %v715 = vunpack.c.h.b16 %v434
    %v716 = vunpack.c.l.b16 %v435
    %v717 = vunpack.c.h.b16 %v435
    %v718 = vunpack.c.l.b16 %v436
    %v719 = vunpack.c.h.b16 %v436
    %v720 = vunpack.c.l.b16 %v437
    %v721 = vunpack.c.h.b16 %v437
    %v722 = vunpack.c.l.b16 %v438
    %v723 = vunpack.c.h.b16 %v438
    %v724 = vunpack.c.l.b16 %v439
    %v725 = vunpack.c.h.b16 %v439
    %v726 = vunpack.c.l.b16 %v440
    %v727 = vunpack.c.h.b16 %v440
    %v728 = vunpack.c.l.b16 %v441
    %v729 = vunpack.c.h.b16 %v441
    %v730 = vunpack.c.l.b16 %v442
    %v731 = vunpack.c.h.b16 %v442
    %v732 = vunpack.c.l.b16 %v443
    %v733 = vunpack.c.h.b16 %v443
    %v734 = vunpack.c.l.b16 %v444
    %v735 = vunpack.c.h.b16 %v444
    %v736 = vunpack.c.l.b16 %v445
    %v737 = vunpack.c.h.b16 %v445
    %v738 = vunpack.c.l.b16 %v446
    %v739 = vunpack.c.h.b16 %v446
    %v740 = vunpack.c.l.b16 %v447
    %v741 = vunpack.c.h.b16 %v447
    %v742 = vunpack.c.l.b16 %v448
    %v743 = vunpack.c.h.b16 %v448
    %v744 = vunpack.c.l.b16 %v449
    %v745 = vunpack.c.h.b16 %v449
    %v746 = vunpack.c.l.b16 %v450
    %v747 = vunpack.c.h.b16 %v450
    %v748 = vunpack.c.l.b16 %v451
    %v749 = vunpack.c.h.b16 %v451
    %v750 = vunpack.c.l.b16 %v452
    %v751 = vunpack.c.h.b16 %v452
    %v752 = vunpack.c.l.b16 %v453
    %v753 = vunpack.c.h.b16 %v453
    %v754 = vunpack.c.l.b16 %v454
    %v755 = vunpack.c.h.b16 %v454
    %v756 = vunpack.c.l.b16 %v455
    %v757 = vunpack.c.h.b16 %v455
    %v758 = vpack.c.b16 %v572, %v566
    %v759 = vpack.c.b16 %v573, %v567
    %v760 = vpack.c.b16 %v574, %v568
    %v761 = vpack.c.b16 %v575, %v569
    %v762 = vpack.c.b16 %v576, %v570
    %v763 = vpack.c.b16 %v577, %v571
    %v764 = vpack.c.b16 %v584, %v578
    %v765 = vpack.c.b16 %v585, %v579
    %v766 = vpack.c.b16 %v586, %v580
    %v767 = vpack.c.b16 %v587, %v581
    %v768 = vpack.c.b16 %v588, %v582
    %v769 = vpack.c.b16 %v589, %v583
    %v770 = vpack.c.b16 %v596, %v590
    %v771 = vpack.c.b16 %v597, %v591
    %v772 = vpack.c.b16 %v598, %v592
    %v773 = vpack.c.b16 %v599, %v593
    %v774 = vpack.c.b16 %v600, %v594
    %v775 = vpack.c.b16 %v601, %v595
    %v776 = vpack.c.b16 %v608, %v602
    %v777 = vpack.c.b16 %v609, %v603
    %v778 = vpack.c.b16 %v610, %v604
    %v779 = vpack.c.b16 %v611, %v605
    %v780 = vpack.c.b16 %v612, %v606
    %v781 = vpack.c.b16 %v613, %v607
    %v782 = vpack.c.b16 %v620, %v614
    %v783 = vpack.c.b16 %v621, %v615
    %v784 = vpack.c.b16 %v622, %v616
    %v785 = vpack.c.b16 %v623, %v617
    %v786 = vpack.c.b16 %v624, %v618
    %v787 = vpack.c.b16 %v625, %v619
    %v788 = vpack.c.b16 %v632, %v626
    %v789 = vpack.c.b16 %v633, %v627
    %v790 = vpack.c.b16 %v634, %v628
    %v791 = vpack.c.b16 %v635, %v629
    %v792 = vpack.c.b16 %v636, %v630
    %v793 = vpack.c.b16 %v637, %v631
    %v794 = vpack.c.b16 %v644, %v638
    %v795 = vpack.c.b16 %v645, %v639
    %v796 = vpack.c.b16 %v646, %v640
    %v797 = vpack.c.b16 %v647, %v641
    %v798 = vpack.c.b16 %v648, %v642
    %v799 = vpack.c.b16 %v649, %v643
    %v800 = vpack.c.b16 %v656, %v650
    %v801 = vpack.c.b16 %v657, %v651
    %v802 = vpack.c.b16 %v658, %v652
    %v803 = vpack.c.b16 %v659, %v653
    %v804 = vpack.c.b16 %v660, %v654
    %v805 = vpack.c.b16 %v661, %v655
    %v806 = vpack.c.b16 %v668, %v662
    %v807 = vpack.c.b16 %v669, %v663
    %v808 = vpack.c.b16 %v670, %v664
    %v809 = vpack.c.b16 %v671, %v665
    %v810 = vpack.c.b16 %v672, %v666
    %v811 = vpack.c.b16 %v673, %v667
    %v812 = vpack.c.b16 %v680, %v674
    %v813 = vpack.c.b16 %v681, %v675
    %v814 = vpack.c.b16 %v682, %v676
    %v815 = vpack.c.b16 %v683, %v677
    %v816 = vpack.c.b16 %v684, %v678
    %v817 = vpack.c.b16 %v685, %v679
    %v818 = vpack.c.b16 %v692, %v686
    %v819 = vpack.c.b16 %v693, %v687
    %v820 = vpack.c.b16 %v694, %v688
    %v821 = vpack.c.b16 %v695, %v689
    %v822 = vpack.c.b16 %v696, %v690
    %v823 = vpack.c.b16 %v697, %v691
    %v824 = vpack.c.b16 %v704, %v698
    %v825 = vpack.c.b16 %v705, %v699
    %v826 = vpack.c.b16 %v706, %v700
    %v827 = vpack.c.b16 %v707, %v701
    %v828 = vpack.c.b16 %v708, %v702
    %v829 = vpack.c.b16 %v709, %v703
    %v830 = vpack.c.b16 %v716, %v710
    %v831 = vpack.c.b16 %v717, %v711
    %v832 = vpack.c.b16 %v718, %v712
    %v833 = vpack.c.b16 %v719, %v713
    %v834 = vpack.c.b16 %v720, %v714
    %v835 = vpack.c.b16 %v721, %v715
    %v836 = vpack.c.b16 %v728, %v722
    %v837 = vpack.c.b16 %v729, %v723
    %v838 = vpack.c.b16 %v730, %v724
    %v839 = vpack.c.b16 %v731, %v725
    %v840 = vpack.c.b16 %v732, %v726
    %v841 = vpack.c.b16 %v733, %v727
    %v842 = vpack.c.b16 %v740, %v734
    %v843 = vpack.c.b16 %v741, %v735
    %v844 = vpack.c.b16 %v742, %v736
    %v845 = vpack.c.b16 %v743, %v737
    %v846 = vpack.c.b16 %v744, %v738
    %v847 = vpack.c.b16 %v745, %v739
    %v848 = vpack.c.b16 %v752, %v746
    %v849 = vpack.c.b16 %v753, %v747
    %v850 = vpack.c.b16 %v754, %v748
    %v851 = vpack.c.b16 %v755, %v749
    %v852 = vpack.c.b16 %v756, %v750
    %v853 = vpack.c.b16 %v757, %v751
    %950 = vmatpush.bf16.msra.mxu0 %v800
    %951 = vmatpush.bf16.msra.mxu0 %v794
    %952 = vmatpush.bf16.msra.mxu0 %v788
    %953 = vmatpush.bf16.msra.mxu0 %v782
    %954 = vmatpush.bf16.msra.mxu0 %v776
    %955 = vmatpush.bf16.msra.mxu0 %v770
    %956 = vmatpush.bf16.msra.mxu0 %v764
    %957 = vmatpush.bf16.msra.mxu0 %v758
    %958 = vmatmul.bf16.gmra.mxu0 %v358
    %v959 = vpop.f32.mrf.mxu0
    %v960 = vadd.f32 %v458, %v959
    %v961 = vpop.f32.mrf.mxu0
    %v962 = vadd.f32 %v458, %v961
    %963 = vdwg.mxu0
    %964 = vmatpush.bf16.msra.mxu0 %v848
    %965 = vmatpush.bf16.msra.mxu0 %v842
    %966 = vmatpush.bf16.msra.mxu0 %v836
    %967 = vmatpush.bf16.msra.mxu0 %v830
    %968 = vmatpush.bf16.msra.mxu0 %v824
    %969 = vmatpush.bf16.msra.mxu0 %v818
    %970 = vmatpush.bf16.msra.mxu0 %v812
    %971 = vmatpush.bf16.msra.mxu0 %v806
    %972 = vmatmul.bf16.gmra.mxu0 %v359
    %v973 = vpop.f32.mrf.mxu0
    %v974 = vadd.f32 %v960, %v973
    %v975 = vpop.f32.mrf.mxu0
    %v976 = vadd.f32 %v962, %v975
    %977 = vdwg.mxu0
    %978 = vmatpush.bf16.msra.mxu0 %v801
    %979 = vmatpush.bf16.msra.mxu0 %v795
    %980 = vmatpush.bf16.msra.mxu0 %v789
    %981 = vmatpush.bf16.msra.mxu0 %v783
    %982 = vmatpush.bf16.msra.mxu0 %v777
    %983 = vmatpush.bf16.msra.mxu0 %v771
    %984 = vmatpush.bf16.msra.mxu0 %v765
    %985 = vmatpush.bf16.msra.mxu0 %v759
    %986 = vmatmul.bf16.gmra.mxu0 %v358
    %v987 = vpop.f32.mrf.mxu0
    %v988 = vadd.f32 %v459, %v987
    %v989 = vpop.f32.mrf.mxu0
    %v990 = vadd.f32 %v459, %v989
    %991 = vdwg.mxu0
    %992 = vmatpush.bf16.msra.mxu0 %v849
    %993 = vmatpush.bf16.msra.mxu0 %v843
    %994 = vmatpush.bf16.msra.mxu0 %v837
    %995 = vmatpush.bf16.msra.mxu0 %v831
    %996 = vmatpush.bf16.msra.mxu0 %v825
    %997 = vmatpush.bf16.msra.mxu0 %v819
    %998 = vmatpush.bf16.msra.mxu0 %v813
    %999 = vmatpush.bf16.msra.mxu0 %v807
    %1000 = vmatmul.bf16.gmra.mxu0 %v359
    %v1001 = vpop.f32.mrf.mxu0
    %v1002 = vadd.f32 %v988, %v1001
    %v1003 = vpop.f32.mrf.mxu0
    %v1004 = vadd.f32 %v990, %v1003
    %1005 = vdwg.mxu0
    %1006 = vmatpush.bf16.msra.mxu0 %v802
    %1007 = vmatpush.bf16.msra.mxu0 %v796
    %1008 = vmatpush.bf16.msra.mxu0 %v790
    %1009 = vmatpush.bf16.msra.mxu0 %v784
    %1010 = vmatpush.bf16.msra.mxu0 %v778
    %1011 = vmatpush.bf16.msra.mxu0 %v772
    %1012 = vmatpush.bf16.msra.mxu0 %v766
    %1013 = vmatpush.bf16.msra.mxu0 %v760
    %1014 = vmatmul.bf16.gmra.mxu0 %v358
    %v1015 = vpop.f32.mrf.mxu0
    %v1016 = vadd.f32 %v460, %v1015
    %v1017 = vpop.f32.mrf.mxu0
    %v1018 = vadd.f32 %v460, %v1017
    %1019 = vdwg.mxu0
    %1020 = vmatpush.bf16.msra.mxu0 %v850
    %1021 = vmatpush.bf16.msra.mxu0 %v844
    %1022 = vmatpush.bf16.msra.mxu0 %v838
    %1023 = vmatpush.bf16.msra.mxu0 %v832
    %1024 = vmatpush.bf16.msra.mxu0 %v826
    %1025 = vmatpush.bf16.msra.mxu0 %v820
    %1026 = vmatpush.bf16.msra.mxu0 %v814
    %1027 = vmatpush.bf16.msra.mxu0 %v808
    %1028 = vmatmul.bf16.gmra.mxu0 %v359
    %v1029 = vpop.f32.mrf.mxu0
    %v1030 = vadd.f32 %v1016, %v1029
    %v1031 = vpop.f32.mrf.mxu0
    %v1032 = vadd.f32 %v1018, %v1031
    %1033 = vdwg.mxu0
    %1034 = vmatpush.bf16.msra.mxu0 %v803
    %1035 = vmatpush.bf16.msra.mxu0 %v797
    %1036 = vmatpush.bf16.msra.mxu0 %v791
    %1037 = vmatpush.bf16.msra.mxu0 %v785
    %1038 = vmatpush.bf16.msra.mxu0 %v779
    %1039 = vmatpush.bf16.msra.mxu0 %v773
    %1040 = vmatpush.bf16.msra.mxu0 %v767
    %1041 = vmatpush.bf16.msra.mxu0 %v761
    %1042 = vmatmul.bf16.gmra.mxu0 %v358
    %v1043 = vpop.f32.mrf.mxu0
    %v1044 = vadd.f32 %v461, %v1043
    %v1045 = vpop.f32.mrf.mxu0
    %v1046 = vadd.f32 %v461, %v1045
    %1047 = vdwg.mxu0
    %1048 = vmatpush.bf16.msra.mxu0 %v851
    %1049 = vmatpush.bf16.msra.mxu0 %v845
    %1050 = vmatpush.bf16.msra.mxu0 %v839
    %1051 = vmatpush.bf16.msra.mxu0 %v833
    %1052 = vmatpush.bf16.msra.mxu0 %v827
    %1053 = vmatpush.bf16.msra.mxu0 %v821
    %1054 = vmatpush.bf16.msra.mxu0 %v815
    %1055 = vmatpush.bf16.msra.mxu0 %v809
    %1056 = vmatmul.bf16.gmra.mxu0 %v359
    %v1057 = vpop.f32.mrf.mxu0
    %v1058 = vadd.f32 %v1044, %v1057
    %v1059 = vpop.f32.mrf.mxu0
    %v1060 = vadd.f32 %v1046, %v1059
    %1061 = vdwg.mxu0
    %1062 = vmatpush.bf16.msra.mxu0 %v804
    %1063 = vmatpush.bf16.msra.mxu0 %v798
    %1064 = vmatpush.bf16.msra.mxu0 %v792
    %1065 = vmatpush.bf16.msra.mxu0 %v786
    %1066 = vmatpush.bf16.msra.mxu0 %v780
    %1067 = vmatpush.bf16.msra.mxu0 %v774
    %1068 = vmatpush.bf16.msra.mxu0 %v768
    %1069 = vmatpush.bf16.msra.mxu0 %v762
    %1070 = vmatmul.bf16.gmra.mxu0 %v358
    %v1071 = vpop.f32.mrf.mxu0
    %v1072 = vadd.f32 %v462, %v1071
    %v1073 = vpop.f32.mrf.mxu0
    %v1074 = vadd.f32 %v462, %v1073
    %1075 = vdwg.mxu0
    %1076 = vmatpush.bf16.msra.mxu0 %v852
    %1077 = vmatpush.bf16.msra.mxu0 %v846
    %1078 = vmatpush.bf16.msra.mxu0 %v840
    %1079 = vmatpush.bf16.msra.mxu0 %v834
    %1080 = vmatpush.bf16.msra.mxu0 %v828
    %1081 = vmatpush.bf16.msra.mxu0 %v822
    %1082 = vmatpush.bf16.msra.mxu0 %v816
    %1083 = vmatpush.bf16.msra.mxu0 %v810
    %1084 = vmatmul.bf16.gmra.mxu0 %v359
    %v1085 = vpop.f32.mrf.mxu0
    %v1086 = vadd.f32 %v1072, %v1085
    %v1087 = vpop.f32.mrf.mxu0
    %v1088 = vadd.f32 %v1074, %v1087
    %1089 = vdwg.mxu0
    %1090 = vmatpush.bf16.msra.mxu0 %v805
    %1091 = vmatpush.bf16.msra.mxu0 %v799
    %1092 = vmatpush.bf16.msra.mxu0 %v793
    %1093 = vmatpush.bf16.msra.mxu0 %v787
    %1094 = vmatpush.bf16.msra.mxu0 %v781
    %1095 = vmatpush.bf16.msra.mxu0 %v775
    %1096 = vmatpush.bf16.msra.mxu0 %v769
    %1097 = vmatpush.bf16.msra.mxu0 %v763
    %1098 = vmatmul.bf16.gmra.mxu0 %v358
    %v1099 = vpop.f32.mrf.mxu0
    %v1100 = vadd.f32 %v463, %v1099
    %v1101 = vpop.f32.mrf.mxu0
    %v1102 = vadd.f32 %v463, %v1101
    %1103 = vdwg.mxu0
    %1104 = vmatpush.bf16.msra.mxu0 %v853
    %1105 = vmatpush.bf16.msra.mxu0 %v847
    %1106 = vmatpush.bf16.msra.mxu0 %v841
    %1107 = vmatpush.bf16.msra.mxu0 %v835
    %1108 = vmatpush.bf16.msra.mxu0 %v829
    %1109 = vmatpush.bf16.msra.mxu0 %v823
    %1110 = vmatpush.bf16.msra.mxu0 %v817
    %1111 = vmatpush.bf16.msra.mxu0 %v811
    %1112 = vmatmul.bf16.gmra.mxu0 %v359
    %v1113 = vpop.f32.mrf.mxu0
    %v1114 = vadd.f32 %v1100, %v1113
    %v1115 = vpop.f32.mrf.mxu0
    %v1116 = vadd.f32 %v1102, %v1115
    %1117 = vdwg.mxu0
    %v1118 = vld [vmem:[#allocation7] sm:$0xff]
    %v1119 = vld [vmem:[#allocation7 + $0x8] sm:$0xff]
    %v1120 = vld [vmem:[#allocation7 + $0x10] sm:$0xff]
    %v1121 = vld [vmem:[#allocation7 + $0x18] sm:$0xff]
    %v1122 = vld [vmem:[#allocation7 + $0x20] sm:$0xff]
    %v1123 = vld [vmem:[#allocation7 + $0x28] sm:$0xff]
    %v1124 = vld [vmem:[#allocation7 + $0x30] sm:$0xff]
    %v1125 = vld [vmem:[#allocation7 + $0x38] sm:$0xff]
    %v1126 = vld [vmem:[#allocation7 + $0x40] sm:$0xff]
    %v1127 = vld [vmem:[#allocation7 + $0x48] sm:$0xff]
    %v1128 = vld [vmem:[#allocation7 + $0x50] sm:$0xff]
    %v1129 = vld [vmem:[#allocation7 + $0x58] sm:$0xff]
    %v1130 = vld [vmem:[#allocation7 + $0x60] sm:$0xff]
    %v1131 = vld [vmem:[#allocation7 + $0x68] sm:$0xff]
    %v1132 = vld [vmem:[#allocation7 + $0x70] sm:$0xff]
    %v1133 = vld [vmem:[#allocation7 + $0x78] sm:$0xff]
    %v1134 = vld [vmem:[#allocation7 + $0x80] sm:$0xff]
    %v1135 = vld [vmem:[#allocation7 + $0x88] sm:$0xff]
    %v1136 = vld [vmem:[#allocation7 + $0x90] sm:$0xff]
    %v1137 = vld [vmem:[#allocation7 + $0x98] sm:$0xff]
    %v1138 = vld [vmem:[#allocation7 + $0xa0] sm:$0xff]
    %v1139 = vld [vmem:[#allocation7 + $0xa8] sm:$0xff]
    %v1140 = vld [vmem:[#allocation7 + $0xb0] sm:$0xff]
    %v1141 = vld [vmem:[#allocation7 + $0xb8] sm:$0xff]
    %v1142 = vld [vmem:[#allocation7 + $0xc0] sm:$0xff]
    %v1143 = vld [vmem:[#allocation7 + $0xc8] sm:$0xff]
    %v1144 = vld [vmem:[#allocation7 + $0xd0] sm:$0xff]
    %v1145 = vld [vmem:[#allocation7 + $0xd8] sm:$0xff]
    %v1146 = vld [vmem:[#allocation7 + $0xe0] sm:$0xff]
    %v1147 = vld [vmem:[#allocation7 + $0xe8] sm:$0xff]
    %v1148 = vld [vmem:[#allocation7 + $0xf0] sm:$0xff]
    %v1149 = vld [vmem:[#allocation7 + $0xf8] sm:$0xff]
    %1150 = vmatpush.xpose.msra.mxu0 0.0
    %1151 = vmatpush.xpose.msra.mxu0 0.0
    %1152 = vmatpush.xpose.msra.mxu0 0.0
    %1153 = vmatpush.xpose.msra.mxu0 0.0
    %1154 = vmatpush.xpose.msra.mxu0 0.0
    %1155 = vmatpush.xpose.msra.mxu0 0.0
    %1156 = vmatpush.xpose.msra.mxu0 0.0
    %1157 = vmatpush.xpose.msra.mxu0 0.0
    %1158 = vmatpush.xpose.msra.mxu0 0.0
    %1159 = vmatpush.xpose.msra.mxu0 0.0
    %1160 = vmatpush.xpose.msra.mxu0 0.0
    %1161 = vmatpush.xpose.msra.mxu0 0.0
    %1162 = vmatpush.xpose.msra.mxu0 0.0
    %1163 = vmatpush.xpose.msra.mxu0 0.0
    %1164 = vmatpush.xpose.msra.mxu0 %v1032
    %1165 = vmatpush.xpose.msra.mxu0 %v1030
    %1166 = vmatmul.f32.gmra.mxu0 %v974
    %v1167 = vpop.f32.mrf.mxu0
    %v1168 = vadd.f32 0.0, %v1167
    %1169 = vmatmul.f32.gmra.mxu0 %v976
    %v1170 = vpop.f32.mrf.mxu0
    %v1171 = vadd.f32 0.0, %v1170
    %1172 = vdwg.mxu0
    %v1173 = vmul.f32 %v1168, 0.088388346
    %v1174 = vmul.f32 %v1171, 0.088388346
    %v1175 = vadd.f32 %v1173, %v356
    %v1176 = vadd.f32 %v1174, %v357
    %vm1177 = vcmask 130048
    %v1178 = vsel %vm1177, %v1175, -inf
    %1179 = vmax.xlane.f32.xlu0 %v1178
    %v1180 = vpop.xlane.xlu0 %1179
    %v1181 = vsel %vm1177, %v1176, -inf
    %1182 = vmax.xlane.f32.xlu0 %v1181
    %v1183 = vpop.xlane.xlu0 %1182
    %v1184 = vsub.f32 %v1175, %v1180
    %v1185 = vsub.f32 %v1176, %v1183
    %v1186 = vmul.f32 %v1184, 1.442695
    %v1187 = vpow.pop %v1186
    %v1188 = vmul.f32 %v1185, 1.442695
    %v1189 = vpow.pop %v1188
    %v1190 = vsel %vm1177, %v1187, 0.0
    %1191 = vadd.xlane.f32.xlu0 %v1190
    %v1192 = vpop.xlane.xlu0 %1191
    %v1193 = vsel %vm1177, %v1189, 0.0
    %1194 = vadd.xlane.f32.xlu0 %v1193
    %v1195 = vpop.xlane.xlu0 %1194
    %v1196 = vrcp.pop %v1192
    %v1197 = vmul.f32 %v1192, %v1196
    %v1198 = vsub.f32 1.0, %v1197
    %v1199 = vmul.f32 %v1196, %v1198
    %v1200 = vadd.f32 %v1196, %v1199
    %vm1201 = vweird.f32 %v1192
    %vm1202 = vweird.f32 %v1196
    %vm1203 = vmor %vm1201, %vm1202
    %v1204 = vsel %vm1203, %v1196, %v1200
    %v1205 = vand.u32 2147483647, %v1192
    %vm1206 = vcmp.eq.f32.partialorder %v1205, 8.507059e+37
    %v1207 = vand.u32 %v1192, 2147483648
    %v1208 = vor.u32 1.1754944e-38, %v1207
    %v1209 = vsel %vm1206, %v1208, %v1204
    %v1210 = vmul.f32 %v1187, %v1209
    %v1211 = vrcp.pop %v1195
    %v1212 = vmul.f32 %v1195, %v1211
    %v1213 = vsub.f32 1.0, %v1212
    %v1214 = vmul.f32 %v1211, %v1213
    %v1215 = vadd.f32 %v1211, %v1214
    %vm1216 = vweird.f32 %v1195
    %vm1217 = vweird.f32 %v1211
    %vm1218 = vmor %vm1216, %vm1217
    %v1219 = vsel %vm1218, %v1211, %v1215
    %v1220 = vand.u32 2147483647, %v1195
    %vm1221 = vcmp.eq.f32.partialorder %v1220, 8.507059e+37
    %v1222 = vand.u32 %v1195, 2147483648
    %v1223 = vor.u32 1.1754944e-38, %v1222
    %v1224 = vsel %vm1221, %v1223, %v1219
    %v1225 = vmul.f32 %v1189, %v1224
    %v1227 = vsel %vm1177, %v1210, 0
    %v1230 = vsel %vm1177, %v1225, 0
    %1232 = vmatpush.msra.mxu0 0.0
    %1233 = vmatpush.msra.mxu0 0.0
    %1234 = vmatpush.msra.mxu0 0.0
    %1235 = vmatpush.msra.mxu0 0.0
    %1236 = vmatpush.msra.mxu0 0.0
    %1237 = vmatpush.msra.mxu0 0.0
    %1238 = vmatpush.msra.mxu0 0.0
    %1239 = vmatpush.msra.mxu0 0.0
    %1240 = vmatpush.msra.mxu0 0.0
    %1241 = vmatpush.msra.mxu0 0.0
    %1242 = vmatpush.msra.mxu0 0.0
    %1243 = vmatpush.msra.mxu0 0.0
    %1244 = vmatpush.msra.mxu0 0.0
    %1245 = vmatpush.msra.mxu0 0.0
    %1246 = vmatpush.msra.mxu0 %v1088
    %1247 = vmatpush.msra.mxu0 %v1086
    %1248 = vmatmul.f32.gmra.mxu0 %v1227
    %v1249 = vpop.f32.mrf.mxu0
    %v1250 = vadd.f32 0.0, %v1249
    %1251 = vmatmul.f32.gmra.mxu0 %v1230
    %v1252 = vpop.f32.mrf.mxu0
    %v1253 = vadd.f32 0.0, %v1252
    %1254 = vdwg.mxu0
    %v1255 = vpack.c.bf16 %v1253, %v1250
    %1256 = vmatpush.xpose.msra.mxu0 0.0
    %1257 = vmatpush.xpose.msra.mxu0 0.0
    %1258 = vmatpush.xpose.msra.mxu0 0.0
    %1259 = vmatpush.xpose.msra.mxu0 0.0
    %1260 = vmatpush.xpose.msra.mxu0 0.0
    %1261 = vmatpush.xpose.msra.mxu0 0.0
    %1262 = vmatpush.xpose.msra.mxu0 0.0
    %1263 = vmatpush.xpose.msra.mxu0 0.0
    %1264 = vmatpush.xpose.msra.mxu0 0.0
    %1265 = vmatpush.xpose.msra.mxu0 0.0
    %1266 = vmatpush.xpose.msra.mxu0 0.0
    %1267 = vmatpush.xpose.msra.mxu0 0.0
    %1268 = vmatpush.xpose.msra.mxu0 0.0
    %1269 = vmatpush.xpose.msra.mxu0 0.0
    %1270 = vmatpush.xpose.msra.mxu0 %v1060
    %1271 = vmatpush.xpose.msra.mxu0 %v1058
    %1272 = vmatmul.f32.gmra.mxu0 %v1002
    %v1273 = vpop.f32.mrf.mxu0
    %v1274 = vadd.f32 0.0, %v1273
    %1275 = vmatmul.f32.gmra.mxu0 %v1004
    %v1276 = vpop.f32.mrf.mxu0
    %v1277 = vadd.f32 0.0, %v1276
    %1278 = vdwg.mxu0
    %v1279 = vmul.f32 %v1274, 0.088388346
    %v1280 = vmul.f32 %v1277, 0.088388346
    %v1281 = vadd.f32 %v1279, %v356
    %v1282 = vadd.f32 %v1280, %v357
    %v1283 = vsel %vm1177, %v1281, -inf
    %1284 = vmax.xlane.f32.xlu0 %v1283
    %v1285 = vpop.xlane.xlu0 %1284
    %v1286 = vsel %vm1177, %v1282, -inf
    %1287 = vmax.xlane.f32.xlu0 %v1286
    %v1288 = vpop.xlane.xlu0 %1287
    %v1289 = vsub.f32 %v1281, %v1285
    %v1290 = vsub.f32 %v1282, %v1288
    %v1291 = vmul.f32 %v1289, 1.442695
    %v1292 = vpow.pop %v1291
    %v1293 = vmul.f32 %v1290, 1.442695
    %v1294 = vpow.pop %v1293
    %v1295 = vsel %vm1177, %v1292, 0.0
    %1296 = vadd.xlane.f32.xlu0 %v1295
    %v1297 = vpop.xlane.xlu0 %1296
    %v1298 = vsel %vm1177, %v1294, 0.0
    %1299 = vadd.xlane.f32.xlu0 %v1298
    %v1300 = vpop.xlane.xlu0 %1299
    %v1301 = vrcp.pop %v1297
    %v1302 = vmul.f32 %v1297, %v1301
    %v1303 = vsub.f32 1.0, %v1302
    %v1304 = vmul.f32 %v1301, %v1303
    %v1305 = vadd.f32 %v1301, %v1304
    %vm1306 = vweird.f32 %v1297
    %vm1307 = vweird.f32 %v1301
    %vm1308 = vmor %vm1306, %vm1307
    %v1309 = vsel %vm1308, %v1301, %v1305
    %v1310 = vand.u32 2147483647, %v1297
    %vm1311 = vcmp.eq.f32.partialorder %v1310, 8.507059e+37
    %v1312 = vand.u32 %v1297, 2147483648
    %v1313 = vor.u32 1.1754944e-38, %v1312
    %v1314 = vsel %vm1311, %v1313, %v1309
    %v1315 = vmul.f32 %v1292, %v1314
    %v1316 = vrcp.pop %v1300
    %v1317 = vmul.f32 %v1300, %v1316
    %v1318 = vsub.f32 1.0, %v1317
    %v1319 = vmul.f32 %v1316, %v1318
    %v1320 = vadd.f32 %v1316, %v1319
    %vm1321 = vweird.f32 %v1300
    %vm1322 = vweird.f32 %v1316
    %vm1323 = vmor %vm1321, %vm1322
    %v1324 = vsel %vm1323, %v1316, %v1320
    %v1325 = vand.u32 2147483647, %v1300
    %vm1326 = vcmp.eq.f32.partialorder %v1325, 8.507059e+37
    %v1327 = vand.u32 %v1300, 2147483648
    %v1328 = vor.u32 1.1754944e-38, %v1327
    %v1329 = vsel %vm1326, %v1328, %v1324
    %v1330 = vmul.f32 %v1294, %v1329
    %v1332 = vsel %vm1177, %v1315, 0
    %v1335 = vsel %vm1177, %v1330, 0
    %1337 = vmatpush.msra.mxu0 0.0
    %1338 = vmatpush.msra.mxu0 0.0
    %1339 = vmatpush.msra.mxu0 0.0
    %1340 = vmatpush.msra.mxu0 0.0
    %1341 = vmatpush.msra.mxu0 0.0
    %1342 = vmatpush.msra.mxu0 0.0
    %1343 = vmatpush.msra.mxu0 0.0
    %1344 = vmatpush.msra.mxu0 0.0
    %1345 = vmatpush.msra.mxu0 0.0
    %1346 = vmatpush.msra.mxu0 0.0
    %1347 = vmatpush.msra.mxu0 0.0
    %1348 = vmatpush.msra.mxu0 0.0
    %1349 = vmatpush.msra.mxu0 0.0
    %1350 = vmatpush.msra.mxu0 0.0
    %1351 = vmatpush.msra.mxu0 %v1116
    %1352 = vmatpush.msra.mxu0 %v1114
    %1353 = vmatmul.f32.gmra.mxu0 %v1332
    %v1354 = vpop.f32.mrf.mxu0
    %v1355 = vadd.f32 0.0, %v1354
    %1356 = vmatmul.f32.gmra.mxu0 %v1335
    %v1357 = vpop.f32.mrf.mxu0
    %v1358 = vadd.f32 0.0, %v1357
    %1359 = vdwg.mxu0
    %v1360 = vpack.c.bf16 %v1358, %v1355
    %v1377 = vunpack.c.l.b16 %v1134
    %v1378 = vunpack.c.h.b16 %v1134
    %v1379 = vunpack.c.l.b16 %v1135
    %v1380 = vunpack.c.h.b16 %v1135
    %v1381 = vunpack.c.l.b16 %v1136
    %v1382 = vunpack.c.h.b16 %v1136
    %v1383 = vunpack.c.l.b16 %v1137
    %v1384 = vunpack.c.h.b16 %v1137
    %v1385 = vunpack.c.l.b16 %v1138
    %v1386 = vunpack.c.h.b16 %v1138
    %v1387 = vunpack.c.l.b16 %v1139
    %v1388 = vunpack.c.h.b16 %v1139
    %v1389 = vunpack.c.l.b16 %v1140
    %v1390 = vunpack.c.h.b16 %v1140
    %v1391 = vunpack.c.l.b16 %v1141
    %v1392 = vunpack.c.h.b16 %v1141
    %v1393 = vunpack.c.l.b16 %v1142
    %v1394 = vunpack.c.h.b16 %v1142
    %v1395 = vunpack.c.l.b16 %v1143
    %v1396 = vunpack.c.h.b16 %v1143
    %v1397 = vunpack.c.l.b16 %v1144
    %v1398 = vunpack.c.h.b16 %v1144
    %v1399 = vunpack.c.l.b16 %v1145
    %v1400 = vunpack.c.h.b16 %v1145
    %v1401 = vunpack.c.l.b16 %v1146
    %v1402 = vunpack.c.h.b16 %v1146
    %v1403 = vunpack.c.l.b16 %v1147
    %v1404 = vunpack.c.h.b16 %v1147
    %v1405 = vunpack.c.l.b16 %v1148
    %v1406 = vunpack.c.h.b16 %v1148
    %v1407 = vunpack.c.l.b16 %v1149
    %v1408 = vunpack.c.h.b16 %v1149
    %v1409 = vpack.c.b16 %v1379, %v1377
    %v1410 = vpack.c.b16 %v1380, %v1378
    %v1411 = vpack.c.b16 %v1383, %v1381
    %v1412 = vpack.c.b16 %v1384, %v1382
    %v1413 = vpack.c.b16 %v1387, %v1385
    %v1414 = vpack.c.b16 %v1388, %v1386
    %v1415 = vpack.c.b16 %v1391, %v1389
    %v1416 = vpack.c.b16 %v1392, %v1390
    %v1417 = vpack.c.b16 %v1395, %v1393
    %v1418 = vpack.c.b16 %v1396, %v1394
    %v1419 = vpack.c.b16 %v1399, %v1397
    %v1420 = vpack.c.b16 %v1400, %v1398
    %v1421 = vpack.c.b16 %v1403, %v1401
    %v1422 = vpack.c.b16 %v1404, %v1402
    %v1423 = vpack.c.b16 %v1407, %v1405
    %v1424 = vpack.c.b16 %v1408, %v1406
    %1441 = vmatpush.bf16.msra.mxu0 %v1423
    %1442 = vmatpush.bf16.msra.mxu0 %v1421
    %1443 = vmatpush.bf16.msra.mxu0 %v1419
    %1444 = vmatpush.bf16.msra.mxu0 %v1417
    %1445 = vmatpush.bf16.msra.mxu0 %v1415
    %1446 = vmatpush.bf16.msra.mxu0 %v1413
    %1447 = vmatpush.bf16.msra.mxu0 %v1411
    %1448 = vmatpush.bf16.msra.mxu0 %v1409
    %1449 = vmatmul.bf16.gmra.mxu0 %v1360
    %v1450 = vpop.f32.mrf.mxu0
    %v1451 = vadd.f32 0.0, %v1450
    %v1452 = vpop.f32.mrf.mxu0
    %v1453 = vadd.f32 0.0, %v1452
    %1454 = vdwg.mxu0
    %1455 = vmatpush.bf16.msra.mxu0 %v1424
    %1456 = vmatpush.bf16.msra.mxu0 %v1422
    %1457 = vmatpush.bf16.msra.mxu0 %v1420
    %1458 = vmatpush.bf16.msra.mxu0 %v1418
    %1459 = vmatpush.bf16.msra.mxu0 %v1416
    %1460 = vmatpush.bf16.msra.mxu0 %v1414
    %1461 = vmatpush.bf16.msra.mxu0 %v1412
    %1462 = vmatpush.bf16.msra.mxu0 %v1410
    %1463 = vmatmul.bf16.gmra.mxu0 %v1360
    %v1464 = vpop.f32.mrf.mxu0
    %v1465 = vadd.f32 0.0, %v1464
    %v1466 = vpop.f32.mrf.mxu0
    %v1467 = vadd.f32 0.0, %v1466
    %1468 = vdwg.mxu0
    %v1485 = vunpack.c.l.b16 %v1118
    %v1486 = vunpack.c.h.b16 %v1118
    %v1487 = vunpack.c.l.b16 %v1119
    %v1488 = vunpack.c.h.b16 %v1119
    %v1489 = vunpack.c.l.b16 %v1120
    %v1490 = vunpack.c.h.b16 %v1120
    %v1491 = vunpack.c.l.b16 %v1121
    %v1492 = vunpack.c.h.b16 %v1121
    %v1493 = vunpack.c.l.b16 %v1122
    %v1494 = vunpack.c.h.b16 %v1122
    %v1495 = vunpack.c.l.b16 %v1123
    %v1496 = vunpack.c.h.b16 %v1123
    %v1497 = vunpack.c.l.b16 %v1124
    %v1498 = vunpack.c.h.b16 %v1124
    %v1499 = vunpack.c.l.b16 %v1125
    %v1500 = vunpack.c.h.b16 %v1125
    %v1501 = vunpack.c.l.b16 %v1126
    %v1502 = vunpack.c.h.b16 %v1126
    %v1503 = vunpack.c.l.b16 %v1127
    %v1504 = vunpack.c.h.b16 %v1127
    %v1505 = vunpack.c.l.b16 %v1128
    %v1506 = vunpack.c.h.b16 %v1128
    %v1507 = vunpack.c.l.b16 %v1129
    %v1508 = vunpack.c.h.b16 %v1129
    %v1509 = vunpack.c.l.b16 %v1130
    %v1510 = vunpack.c.h.b16 %v1130
    %v1511 = vunpack.c.l.b16 %v1131
    %v1512 = vunpack.c.h.b16 %v1131
    %v1513 = vunpack.c.l.b16 %v1132
    %v1514 = vunpack.c.h.b16 %v1132
    %v1515 = vunpack.c.l.b16 %v1133
    %v1516 = vunpack.c.h.b16 %v1133
    %v1517 = vpack.c.b16 %v1487, %v1485
    %v1518 = vpack.c.b16 %v1488, %v1486
    %v1519 = vpack.c.b16 %v1491, %v1489
    %v1520 = vpack.c.b16 %v1492, %v1490
    %v1521 = vpack.c.b16 %v1495, %v1493
    %v1522 = vpack.c.b16 %v1496, %v1494
    %v1523 = vpack.c.b16 %v1499, %v1497
    %v1524 = vpack.c.b16 %v1500, %v1498
    %v1525 = vpack.c.b16 %v1503, %v1501
    %v1526 = vpack.c.b16 %v1504, %v1502
    %v1527 = vpack.c.b16 %v1507, %v1505
    %v1528 = vpack.c.b16 %v1508, %v1506
    %v1529 = vpack.c.b16 %v1511, %v1509
    %v1530 = vpack.c.b16 %v1512, %v1510
    %v1531 = vpack.c.b16 %v1515, %v1513
    %v1532 = vpack.c.b16 %v1516, %v1514
    %1549 = vmatpush.bf16.msra.mxu0 %v1531
    %1550 = vmatpush.bf16.msra.mxu0 %v1529
    %1551 = vmatpush.bf16.msra.mxu0 %v1527
    %1552 = vmatpush.bf16.msra.mxu0 %v1525
    %1553 = vmatpush.bf16.msra.mxu0 %v1523
    %1554 = vmatpush.bf16.msra.mxu0 %v1521
    %1555 = vmatpush.bf16.msra.mxu0 %v1519
    %1556 = vmatpush.bf16.msra.mxu0 %v1517
    %1557 = vmatmul.bf16.gmra.mxu0 %v1255
    %v1558 = vpop.f32.mrf.mxu0
    %v1559 = vadd.f32 %v1451, %v1558
    %v1560 = vpop.f32.mrf.mxu0
    %v1561 = vadd.f32 %v1453, %v1560
    %1562 = vdwg.mxu0
    %1563 = vmatpush.bf16.msra.mxu0 %v1532
    %1564 = vmatpush.bf16.msra.mxu0 %v1530
    %1565 = vmatpush.bf16.msra.mxu0 %v1528
    %1566 = vmatpush.bf16.msra.mxu0 %v1526
    %1567 = vmatpush.bf16.msra.mxu0 %v1524
    %1568 = vmatpush.bf16.msra.mxu0 %v1522
    %1569 = vmatpush.bf16.msra.mxu0 %v1520
    %1570 = vmatpush.bf16.msra.mxu0 %v1518
    %1571 = vmatmul.bf16.gmra.mxu0 %v1255
    %v1572 = vpop.f32.mrf.mxu0
    %v1573 = vadd.f32 %v1465, %v1572
    %v1574 = vpop.f32.mrf.mxu0
    %v1575 = vadd.f32 %v1467, %v1574
    %1576 = vdwg.mxu0
    %v1577 = vld [vmem:[%s9] sm:$0x3]
    %v1579 = vperm.slane %v1577, 0
    %v1580 = vperm.slane %v1577, 1
    %v1583 = vadd.f32 %v1559, %v1579
    %v1584 = vadd.f32 %v1573, %v1580
    %v1585 = vadd.f32 %v1561, %v1579
    %v1586 = vadd.f32 %v1575, %v1580
    %v1587 = vadd.f32 %v352, %v1583
    %v1588 = vadd.f32 %v353, %v1584
    %v1589 = vadd.f32 %v354, %v1585
    %v1590 = vadd.f32 %v355, %v1586
    %v1591 = vld [vmem:[%s10] sm:$0x3]
    %v1592 = vld [vmem:[%s11] sm:$0x3]
    %v1593 = vadd.f32 %v1587, %v1588
    %1594 = vadd.xlane.f32.xlu0 %v1593
    %v1595 = vpop.xlane.xlu0 %1594
    %v1596 = vadd.f32 %v1589, %v1590
    %1597 = vadd.xlane.f32.xlu0 %v1596
    %v1598 = vpop.xlane.xlu0 %1597
    %v1599 = vmul.f32 %v1595, %v293
    %v1600 = vmul.f32 %v1598, %v293
    %v1601 = vsub.f32 %v1587, %v1599
    %v1602 = vsub.f32 %v1588, %v1599
    %v1603 = vsub.f32 %v1589, %v1600
    %v1604 = vsub.f32 %v1590, %v1600
    %v1605 = vmul.f32 %v1601, %v1601
    %v1606 = vmul.f32 %v1602, %v1602
    %v1607 = vmul.f32 %v1603, %v1603
    %v1608 = vmul.f32 %v1604, %v1604
    %v1609 = vadd.f32 %v1605, %v1606
    %1610 = vadd.xlane.f32.xlu0 %v1609
    %v1611 = vpop.xlane.xlu0 %1610
    %v1612 = vadd.f32 %v1607, %v1608
    %1613 = vadd.xlane.f32.xlu0 %v1612
    %v1614 = vpop.xlane.xlu0 %1613
    %v1615 = vmul.f32 %v1611, %v293
    %v1616 = vmul.f32 %v1614, %v293
    %v1617 = vadd.f32 %v1615, 1e-12
    %v1618 = vadd.f32 %v1616, 1e-12
    %v1619 = vrsqrt.pop %v1617
    %v1620 = vmul.f32 %v1619, %v1617
    %v1621 = vmul.f32 %v1620, %v1619
    %v1622 = vmul.f32 0.5, %v1621
    %v1623 = vsub.f32 1.5, %v1622
    %v1624 = vmul.f32 %v1619, %v1623
    %vm1625 = vweird.f32 %v1617
    %vm1626 = vweird.f32 %v1619
    %vm1627 = vmor %vm1625, %vm1626
    %v1628 = vsel %vm1627, %v1619, %v1624
    %v1629 = vrsqrt.pop %v1618
    %v1630 = vmul.f32 %v1629, %v1618
    %v1631 = vmul.f32 %v1630, %v1629
    %v1632 = vmul.f32 0.5, %v1631
    %v1633 = vsub.f32 1.5, %v1632
    %v1634 = vmul.f32 %v1629, %v1633
    %vm1635 = vweird.f32 %v1618
    %vm1636 = vweird.f32 %v1629
    %vm1637 = vmor %vm1635, %vm1636
    %v1638 = vsel %vm1637, %v1629, %v1634
    %v1639 = vmul.f32 %v1601, %v1628
    %v1640 = vmul.f32 %v1602, %v1628
    %v1641 = vmul.f32 %v1603, %v1638
    %v1642 = vmul.f32 %v1604, %v1638
    %v1644 = vperm.slane %v1591, 0
    %v1645 = vperm.slane %v1591, 1
    %v1648 = vmul.f32 %v1639, %v1644
    %v1649 = vmul.f32 %v1640, %v1645
    %v1650 = vmul.f32 %v1641, %v1644
    %v1651 = vmul.f32 %v1642, %v1645
    %v1653 = vperm.slane %v1592, 0
    %v1654 = vperm.slane %v1592, 1
    %v1657 = vadd.f32 %v1648, %v1653
    %v1658 = vadd.f32 %v1649, %v1654
    %v1659 = vadd.f32 %v1650, %v1653
    %v1660 = vadd.f32 %v1651, %v1654
    %v1661 = vpack.c.bf16 %v1659, %v1657
    %v1662 = vpack.c.bf16 %v1660, %v1658
    %v1663 = vld [vmem:[#allocation8] sm:$0xff]
    %v1664 = vld [vmem:[#allocation8 + $0x8] sm:$0xff]
    %v1665 = vld [vmem:[#allocation8 + $0x10] sm:$0xff]
    %v1666 = vld [vmem:[#allocation8 + $0x18] sm:$0xff]
    %v1667 = vld [vmem:[#allocation8 + $0x20] sm:$0xff]
    %v1668 = vld [vmem:[#allocation8 + $0x28] sm:$0xff]
    %v1669 = vld [vmem:[#allocation8 + $0x30] sm:$0xff]
    %v1670 = vld [vmem:[#allocation8 + $0x38] sm:$0xff]
    %v1671 = vld [vmem:[#allocation8 + $0x40] sm:$0xff]
    %v1672 = vld [vmem:[#allocation8 + $0x48] sm:$0xff]
    %v1673 = vld [vmem:[#allocation8 + $0x50] sm:$0xff]
    %v1674 = vld [vmem:[#allocation8 + $0x58] sm:$0xff]
    %v1675 = vld [vmem:[#allocation8 + $0x60] sm:$0xff]
    %v1676 = vld [vmem:[#allocation8 + $0x68] sm:$0xff]
    %v1677 = vld [vmem:[#allocation8 + $0x70] sm:$0xff]
    %v1678 = vld [vmem:[#allocation8 + $0x78] sm:$0xff]
    %v1679 = vld [vmem:[#allocation8 + $0x80] sm:$0xff]
    %v1680 = vld [vmem:[#allocation8 + $0x88] sm:$0xff]
    %v1681 = vld [vmem:[#allocation8 + $0x90] sm:$0xff]
    %v1682 = vld [vmem:[#allocation8 + $0x98] sm:$0xff]
    %v1683 = vld [vmem:[#allocation8 + $0xa0] sm:$0xff]
    %v1684 = vld [vmem:[#allocation8 + $0xa8] sm:$0xff]
    %v1685 = vld [vmem:[#allocation8 + $0xb0] sm:$0xff]
    %v1686 = vld [vmem:[#allocation8 + $0xb8] sm:$0xff]
    %v1687 = vld [vmem:[#allocation8 + $0xc0] sm:$0xff]
    %v1688 = vld [vmem:[#allocation8 + $0xc8] sm:$0xff]
    %v1689 = vld [vmem:[#allocation8 + $0xd0] sm:$0xff]
    %v1690 = vld [vmem:[#allocation8 + $0xd8] sm:$0xff]
    %v1691 = vld [vmem:[#allocation8 + $0xe0] sm:$0xff]
    %v1692 = vld [vmem:[#allocation8 + $0xe8] sm:$0xff]
    %v1693 = vld [vmem:[#allocation8 + $0xf0] sm:$0xff]
    %v1694 = vld [vmem:[#allocation8 + $0xf8] sm:$0xff]
    %v1695 = vld [vmem:[#allocation8 + $0x100] sm:$0xff]
    %v1696 = vld [vmem:[#allocation8 + $0x108] sm:$0xff]
    %v1697 = vld [vmem:[#allocation8 + $0x110] sm:$0xff]
    %v1698 = vld [vmem:[#allocation8 + $0x118] sm:$0xff]
    %v1699 = vld [vmem:[#allocation8 + $0x120] sm:$0xff]
    %v1700 = vld [vmem:[#allocation8 + $0x128] sm:$0xff]
    %v1701 = vld [vmem:[#allocation8 + $0x130] sm:$0xff]
    %v1702 = vld [vmem:[#allocation8 + $0x138] sm:$0xff]
    %v1703 = vld [vmem:[#allocation8 + $0x140] sm:$0xff]
    %v1704 = vld [vmem:[#allocation8 + $0x148] sm:$0xff]
    %v1705 = vld [vmem:[#allocation8 + $0x150] sm:$0xff]
    %v1706 = vld [vmem:[#allocation8 + $0x158] sm:$0xff]
    %v1707 = vld [vmem:[#allocation8 + $0x160] sm:$0xff]
    %v1708 = vld [vmem:[#allocation8 + $0x168] sm:$0xff]
    %v1709 = vld [vmem:[#allocation8 + $0x170] sm:$0xff]
    %v1710 = vld [vmem:[#allocation8 + $0x178] sm:$0xff]
    %v1711 = vld [vmem:[#allocation8 + $0x180] sm:$0xff]
    %v1712 = vld [vmem:[#allocation8 + $0x188] sm:$0xff]
    %v1713 = vld [vmem:[#allocation8 + $0x190] sm:$0xff]
    %v1714 = vld [vmem:[#allocation8 + $0x198] sm:$0xff]
    %v1715 = vld [vmem:[#allocation8 + $0x1a0] sm:$0xff]
    %v1716 = vld [vmem:[#allocation8 + $0x1a8] sm:$0xff]
    %v1717 = vld [vmem:[#allocation8 + $0x1b0] sm:$0xff]
    %v1718 = vld [vmem:[#allocation8 + $0x1b8] sm:$0xff]
    %v1719 = vld [vmem:[#allocation8 + $0x1c0] sm:$0xff]
    %v1720 = vld [vmem:[#allocation8 + $0x1c8] sm:$0xff]
    %v1721 = vld [vmem:[#allocation8 + $0x1d0] sm:$0xff]
    %v1722 = vld [vmem:[#allocation8 + $0x1d8] sm:$0xff]
    %v1723 = vld [vmem:[#allocation8 + $0x1e0] sm:$0xff]
    %v1724 = vld [vmem:[#allocation8 + $0x1e8] sm:$0xff]
    %v1725 = vld [vmem:[#allocation8 + $0x1f0] sm:$0xff]
    %v1726 = vld [vmem:[#allocation8 + $0x1f8] sm:$0xff]
    %v1727 = vld [vmem:[#allocation8 + $0x200] sm:$0xff]
    %v1728 = vld [vmem:[#allocation8 + $0x208] sm:$0xff]
    %v1729 = vld [vmem:[#allocation8 + $0x210] sm:$0xff]
    %v1730 = vld [vmem:[#allocation8 + $0x218] sm:$0xff]
    %v1731 = vld [vmem:[#allocation8 + $0x220] sm:$0xff]
    %v1732 = vld [vmem:[#allocation8 + $0x228] sm:$0xff]
    %v1733 = vld [vmem:[#allocation8 + $0x230] sm:$0xff]
    %v1734 = vld [vmem:[#allocation8 + $0x238] sm:$0xff]
    %v1735 = vld [vmem:[#allocation8 + $0x240] sm:$0xff]
    %v1736 = vld [vmem:[#allocation8 + $0x248] sm:$0xff]
    %v1737 = vld [vmem:[#allocation8 + $0x250] sm:$0xff]
    %v1738 = vld [vmem:[#allocation8 + $0x258] sm:$0xff]
    %v1739 = vld [vmem:[#allocation8 + $0x260] sm:$0xff]
    %v1740 = vld [vmem:[#allocation8 + $0x268] sm:$0xff]
    %v1741 = vld [vmem:[#allocation8 + $0x270] sm:$0xff]
    %v1742 = vld [vmem:[#allocation8 + $0x278] sm:$0xff]
    %v1743 = vld [vmem:[#allocation8 + $0x280] sm:$0xff]
    %v1744 = vld [vmem:[#allocation8 + $0x288] sm:$0xff]
    %v1745 = vld [vmem:[#allocation8 + $0x290] sm:$0xff]
    %v1746 = vld [vmem:[#allocation8 + $0x298] sm:$0xff]
    %v1747 = vld [vmem:[#allocation8 + $0x2a0] sm:$0xff]
    %v1748 = vld [vmem:[#allocation8 + $0x2a8] sm:$0xff]
    %v1749 = vld [vmem:[#allocation8 + $0x2b0] sm:$0xff]
    %v1750 = vld [vmem:[#allocation8 + $0x2b8] sm:$0xff]
    %v1751 = vld [vmem:[#allocation8 + $0x2c0] sm:$0xff]
    %v1752 = vld [vmem:[#allocation8 + $0x2c8] sm:$0xff]
    %v1753 = vld [vmem:[#allocation8 + $0x2d0] sm:$0xff]
    %v1754 = vld [vmem:[#allocation8 + $0x2d8] sm:$0xff]
    %v1755 = vld [vmem:[#allocation8 + $0x2e0] sm:$0xff]
    %v1756 = vld [vmem:[#allocation8 + $0x2e8] sm:$0xff]
    %v1757 = vld [vmem:[#allocation8 + $0x2f0] sm:$0xff]
    %v1758 = vld [vmem:[#allocation8 + $0x2f8] sm:$0xff]
    %v1759 = vld [vmem:[#allocation8 + $0x300] sm:$0xff]
    %v1760 = vld [vmem:[#allocation8 + $0x308] sm:$0xff]
    %v1761 = vld [vmem:[#allocation8 + $0x310] sm:$0xff]
    %v1762 = vld [vmem:[#allocation8 + $0x318] sm:$0xff]
    %v1763 = vld [vmem:[#allocation8 + $0x320] sm:$0xff]
    %v1764 = vld [vmem:[#allocation8 + $0x328] sm:$0xff]
    %v1765 = vld [vmem:[#allocation8 + $0x330] sm:$0xff]
    %v1766 = vld [vmem:[#allocation8 + $0x338] sm:$0xff]
    %v1767 = vld [vmem:[#allocation8 + $0x340] sm:$0xff]
    %v1768 = vld [vmem:[#allocation8 + $0x348] sm:$0xff]
    %v1769 = vld [vmem:[#allocation8 + $0x350] sm:$0xff]
    %v1770 = vld [vmem:[#allocation8 + $0x358] sm:$0xff]
    %v1771 = vld [vmem:[#allocation8 + $0x360] sm:$0xff]
    %v1772 = vld [vmem:[#allocation8 + $0x368] sm:$0xff]
    %v1773 = vld [vmem:[#allocation8 + $0x370] sm:$0xff]
    %v1774 = vld [vmem:[#allocation8 + $0x378] sm:$0xff]
    %v1775 = vld [vmem:[#allocation8 + $0x380] sm:$0xff]
    %v1776 = vld [vmem:[#allocation8 + $0x388] sm:$0xff]
    %v1777 = vld [vmem:[#allocation8 + $0x390] sm:$0xff]
    %v1778 = vld [vmem:[#allocation8 + $0x398] sm:$0xff]
    %v1779 = vld [vmem:[#allocation8 + $0x3a0] sm:$0xff]
    %v1780 = vld [vmem:[#allocation8 + $0x3a8] sm:$0xff]
    %v1781 = vld [vmem:[#allocation8 + $0x3b0] sm:$0xff]
    %v1782 = vld [vmem:[#allocation8 + $0x3b8] sm:$0xff]
    %v1783 = vld [vmem:[#allocation8 + $0x3c0] sm:$0xff]
    %v1784 = vld [vmem:[#allocation8 + $0x3c8] sm:$0xff]
    %v1785 = vld [vmem:[#allocation8 + $0x3d0] sm:$0xff]
    %v1786 = vld [vmem:[#allocation8 + $0x3d8] sm:$0xff]
    %v1787 = vld [vmem:[#allocation8 + $0x3e0] sm:$0xff]
    %v1788 = vld [vmem:[#allocation8 + $0x3e8] sm:$0xff]
    %v1789 = vld [vmem:[#allocation8 + $0x3f0] sm:$0xff]
    %v1790 = vld [vmem:[#allocation8 + $0x3f8] sm:$0xff]
    %v1791 = vld [vmem:[%s13] sm:$0xff]
    %v1793 = vperm.slane %v1791, 0
    %v1794 = vperm.slane %v1791, 1
    %v1795 = vperm.slane %v1791, 2
    %v1796 = vperm.slane %v1791, 3
    %v1797 = vperm.slane %v1791, 4
    %v1798 = vperm.slane %v1791, 5
    %v1799 = vperm.slane %v1791, 6
    %v1800 = vperm.slane %v1791, 7
    %v1937 = vunpack.c.l.b16 %v1663
    %v1938 = vunpack.c.h.b16 %v1663
    %v1939 = vunpack.c.l.b16 %v1664
    %v1940 = vunpack.c.h.b16 %v1664
    %v1941 = vunpack.c.l.b16 %v1665
    %v1942 = vunpack.c.h.b16 %v1665
    %v1943 = vunpack.c.l.b16 %v1666
    %v1944 = vunpack.c.h.b16 %v1666
    %v1945 = vunpack.c.l.b16 %v1667
    %v1946 = vunpack.c.h.b16 %v1667
    %v1947 = vunpack.c.l.b16 %v1668
    %v1948 = vunpack.c.h.b16 %v1668
    %v1949 = vunpack.c.l.b16 %v1669
    %v1950 = vunpack.c.h.b16 %v1669
    %v1951 = vunpack.c.l.b16 %v1670
    %v1952 = vunpack.c.h.b16 %v1670
    %v1953 = vunpack.c.l.b16 %v1671
    %v1954 = vunpack.c.h.b16 %v1671
    %v1955 = vunpack.c.l.b16 %v1672
    %v1956 = vunpack.c.h.b16 %v1672
    %v1957 = vunpack.c.l.b16 %v1673
    %v1958 = vunpack.c.h.b16 %v1673
    %v1959 = vunpack.c.l.b16 %v1674
    %v1960 = vunpack.c.h.b16 %v1674
    %v1961 = vunpack.c.l.b16 %v1675
    %v1962 = vunpack.c.h.b16 %v1675
    %v1963 = vunpack.c.l.b16 %v1676
    %v1964 = vunpack.c.h.b16 %v1676
    %v1965 = vunpack.c.l.b16 %v1677
    %v1966 = vunpack.c.h.b16 %v1677
    %v1967 = vunpack.c.l.b16 %v1678
    %v1968 = vunpack.c.h.b16 %v1678
    %v1969 = vunpack.c.l.b16 %v1679
    %v1970 = vunpack.c.h.b16 %v1679
    %v1971 = vunpack.c.l.b16 %v1680
    %v1972 = vunpack.c.h.b16 %v1680
    %v1973 = vunpack.c.l.b16 %v1681
    %v1974 = vunpack.c.h.b16 %v1681
    %v1975 = vunpack.c.l.b16 %v1682
    %v1976 = vunpack.c.h.b16 %v1682
    %v1977 = vunpack.c.l.b16 %v1683
    %v1978 = vunpack.c.h.b16 %v1683
    %v1979 = vunpack.c.l.b16 %v1684
    %v1980 = vunpack.c.h.b16 %v1684
    %v1981 = vunpack.c.l.b16 %v1685
    %v1982 = vunpack.c.h.b16 %v1685
    %v1983 = vunpack.c.l.b16 %v1686
    %v1984 = vunpack.c.h.b16 %v1686
    %v1985 = vunpack.c.l.b16 %v1687
    %v1986 = vunpack.c.h.b16 %v1687
    %v1987 = vunpack.c.l.b16 %v1688
    %v1988 = vunpack.c.h.b16 %v1688
    %v1989 = vunpack.c.l.b16 %v1689
    %v1990 = vunpack.c.h.b16 %v1689
    %v1991 = vunpack.c.l.b16 %v1690
    %v1992 = vunpack.c.h.b16 %v1690
    %v1993 = vunpack.c.l.b16 %v1691
    %v1994 = vunpack.c.h.b16 %v1691
    %v1995 = vunpack.c.l.b16 %v1692
    %v1996 = vunpack.c.h.b16 %v1692
    %v1997 = vunpack.c.l.b16 %v1693
    %v1998 = vunpack.c.h.b16 %v1693
    %v1999 = vunpack.c.l.b16 %v1694
    %v2000 = vunpack.c.h.b16 %v1694
    %v2001 = vunpack.c.l.b16 %v1695
    %v2002 = vunpack.c.h.b16 %v1695
    %v2003 = vunpack.c.l.b16 %v1696
    %v2004 = vunpack.c.h.b16 %v1696
    %v2005 = vunpack.c.l.b16 %v1697
    %v2006 = vunpack.c.h.b16 %v1697
    %v2007 = vunpack.c.l.b16 %v1698
    %v2008 = vunpack.c.h.b16 %v1698
    %v2009 = vunpack.c.l.b16 %v1699
    %v2010 = vunpack.c.h.b16 %v1699
    %v2011 = vunpack.c.l.b16 %v1700
    %v2012 = vunpack.c.h.b16 %v1700
    %v2013 = vunpack.c.l.b16 %v1701
    %v2014 = vunpack.c.h.b16 %v1701
    %v2015 = vunpack.c.l.b16 %v1702
    %v2016 = vunpack.c.h.b16 %v1702
    %v2017 = vunpack.c.l.b16 %v1703
    %v2018 = vunpack.c.h.b16 %v1703
    %v2019 = vunpack.c.l.b16 %v1704
    %v2020 = vunpack.c.h.b16 %v1704
    %v2021 = vunpack.c.l.b16 %v1705
    %v2022 = vunpack.c.h.b16 %v1705
    %v2023 = vunpack.c.l.b16 %v1706
    %v2024 = vunpack.c.h.b16 %v1706
    %v2025 = vunpack.c.l.b16 %v1707
    %v2026 = vunpack.c.h.b16 %v1707
    %v2027 = vunpack.c.l.b16 %v1708
    %v2028 = vunpack.c.h.b16 %v1708
    %v2029 = vunpack.c.l.b16 %v1709
    %v2030 = vunpack.c.h.b16 %v1709
    %v2031 = vunpack.c.l.b16 %v1710
    %v2032 = vunpack.c.h.b16 %v1710
    %v2033 = vunpack.c.l.b16 %v1711
    %v2034 = vunpack.c.h.b16 %v1711
    %v2035 = vunpack.c.l.b16 %v1712
    %v2036 = vunpack.c.h.b16 %v1712
    %v2037 = vunpack.c.l.b16 %v1713
    %v2038 = vunpack.c.h.b16 %v1713
    %v2039 = vunpack.c.l.b16 %v1714
    %v2040 = vunpack.c.h.b16 %v1714
    %v2041 = vunpack.c.l.b16 %v1715
    %v2042 = vunpack.c.h.b16 %v1715
    %v2043 = vunpack.c.l.b16 %v1716
    %v2044 = vunpack.c.h.b16 %v1716
    %v2045 = vunpack.c.l.b16 %v1717
    %v2046 = vunpack.c.h.b16 %v1717
    %v2047 = vunpack.c.l.b16 %v1718
    %v2048 = vunpack.c.h.b16 %v1718
    %v2049 = vunpack.c.l.b16 %v1719
    %v2050 = vunpack.c.h.b16 %v1719
    %v2051 = vunpack.c.l.b16 %v1720
    %v2052 = vunpack.c.h.b16 %v1720
    %v2053 = vunpack.c.l.b16 %v1721
    %v2054 = vunpack.c.h.b16 %v1721
    %v2055 = vunpack.c.l.b16 %v1722
    %v2056 = vunpack.c.h.b16 %v1722
    %v2057 = vunpack.c.l.b16 %v1723
    %v2058 = vunpack.c.h.b16 %v1723
    %v2059 = vunpack.c.l.b16 %v1724
    %v2060 = vunpack.c.h.b16 %v1724
    %v2061 = vunpack.c.l.b16 %v1725
    %v2062 = vunpack.c.h.b16 %v1725
    %v2063 = vunpack.c.l.b16 %v1726
    %v2064 = vunpack.c.h.b16 %v1726
    %v2065 = vunpack.c.l.b16 %v1727
    %v2066 = vunpack.c.h.b16 %v1727
    %v2067 = vunpack.c.l.b16 %v1728
    %v2068 = vunpack.c.h.b16 %v1728
    %v2069 = vunpack.c.l.b16 %v1729
    %v2070 = vunpack.c.h.b16 %v1729
    %v2071 = vunpack.c.l.b16 %v1730
    %v2072 = vunpack.c.h.b16 %v1730
    %v2073 = vunpack.c.l.b16 %v1731
    %v2074 = vunpack.c.h.b16 %v1731
    %v2075 = vunpack.c.l.b16 %v1732
    %v2076 = vunpack.c.h.b16 %v1732
    %v2077 = vunpack.c.l.b16 %v1733
    %v2078 = vunpack.c.h.b16 %v1733
    %v2079 = vunpack.c.l.b16 %v1734
    %v2080 = vunpack.c.h.b16 %v1734
    %v2081 = vunpack.c.l.b16 %v1735
    %v2082 = vunpack.c.h.b16 %v1735
    %v2083 = vunpack.c.l.b16 %v1736
    %v2084 = vunpack.c.h.b16 %v1736
    %v2085 = vunpack.c.l.b16 %v1737
    %v2086 = vunpack.c.h.b16 %v1737
    %v2087 = vunpack.c.l.b16 %v1738
    %v2088 = vunpack.c.h.b16 %v1738
    %v2089 = vunpack.c.l.b16 %v1739
    %v2090 = vunpack.c.h.b16 %v1739
    %v2091 = vunpack.c.l.b16 %v1740
    %v2092 = vunpack.c.h.b16 %v1740
    %v2093 = vunpack.c.l.b16 %v1741
    %v2094 = vunpack.c.h.b16 %v1741
    %v2095 = vunpack.c.l.b16 %v1742
    %v2096 = vunpack.c.h.b16 %v1742
    %v2097 = vunpack.c.l.b16 %v1743
    %v2098 = vunpack.c.h.b16 %v1743
    %v2099 = vunpack.c.l.b16 %v1744
    %v2100 = vunpack.c.h.b16 %v1744
    %v2101 = vunpack.c.l.b16 %v1745
    %v2102 = vunpack.c.h.b16 %v1745
    %v2103 = vunpack.c.l.b16 %v1746
    %v2104 = vunpack.c.h.b16 %v1746
    %v2105 = vunpack.c.l.b16 %v1747
    %v2106 = vunpack.c.h.b16 %v1747
    %v2107 = vunpack.c.l.b16 %v1748
    %v2108 = vunpack.c.h.b16 %v1748
    %v2109 = vunpack.c.l.b16 %v1749
    %v2110 = vunpack.c.h.b16 %v1749
    %v2111 = vunpack.c.l.b16 %v1750
    %v2112 = vunpack.c.h.b16 %v1750
    %v2113 = vunpack.c.l.b16 %v1751
    %v2114 = vunpack.c.h.b16 %v1751
    %v2115 = vunpack.c.l.b16 %v1752
    %v2116 = vunpack.c.h.b16 %v1752
    %v2117 = vunpack.c.l.b16 %v1753
    %v2118 = vunpack.c.h.b16 %v1753
    %v2119 = vunpack.c.l.b16 %v1754
    %v2120 = vunpack.c.h.b16 %v1754
    %v2121 = vunpack.c.l.b16 %v1755
    %v2122 = vunpack.c.h.b16 %v1755
    %v2123 = vunpack.c.l.b16 %v1756
    %v2124 = vunpack.c.h.b16 %v1756
    %v2125 = vunpack.c.l.b16 %v1757
    %v2126 = vunpack.c.h.b16 %v1757
    %v2127 = vunpack.c.l.b16 %v1758
    %v2128 = vunpack.c.h.b16 %v1758
    %v2129 = vunpack.c.l.b16 %v1759
    %v2130 = vunpack.c.h.b16 %v1759
    %v2131 = vunpack.c.l.b16 %v1760
    %v2132 = vunpack.c.h.b16 %v1760
    %v2133 = vunpack.c.l.b16 %v1761
    %v2134 = vunpack.c.h.b16 %v1761
    %v2135 = vunpack.c.l.b16 %v1762
    %v2136 = vunpack.c.h.b16 %v1762
    %v2137 = vunpack.c.l.b16 %v1763
    %v2138 = vunpack.c.h.b16 %v1763
    %v2139 = vunpack.c.l.b16 %v1764
    %v2140 = vunpack.c.h.b16 %v1764
    %v2141 = vunpack.c.l.b16 %v1765
    %v2142 = vunpack.c.h.b16 %v1765
    %v2143 = vunpack.c.l.b16 %v1766
    %v2144 = vunpack.c.h.b16 %v1766
    %v2145 = vunpack.c.l.b16 %v1767
    %v2146 = vunpack.c.h.b16 %v1767
    %v2147 = vunpack.c.l.b16 %v1768
    %v2148 = vunpack.c.h.b16 %v1768
    %v2149 = vunpack.c.l.b16 %v1769
    %v2150 = vunpack.c.h.b16 %v1769
    %v2151 = vunpack.c.l.b16 %v1770
    %v2152 = vunpack.c.h.b16 %v1770
    %v2153 = vunpack.c.l.b16 %v1771
    %v2154 = vunpack.c.h.b16 %v1771
    %v2155 = vunpack.c.l.b16 %v1772
    %v2156 = vunpack.c.h.b16 %v1772
    %v2157 = vunpack.c.l.b16 %v1773
    %v2158 = vunpack.c.h.b16 %v1773
    %v2159 = vunpack.c.l.b16 %v1774
    %v2160 = vunpack.c.h.b16 %v1774
    %v2161 = vunpack.c.l.b16 %v1775
    %v2162 = vunpack.c.h.b16 %v1775
    %v2163 = vunpack.c.l.b16 %v1776
    %v2164 = vunpack.c.h.b16 %v1776
    %v2165 = vunpack.c.l.b16 %v1777
    %v2166 = vunpack.c.h.b16 %v1777
    %v2167 = vunpack.c.l.b16 %v1778
    %v2168 = vunpack.c.h.b16 %v1778
    %v2169 = vunpack.c.l.b16 %v1779
    %v2170 = vunpack.c.h.b16 %v1779
    %v2171 = vunpack.c.l.b16 %v1780
    %v2172 = vunpack.c.h.b16 %v1780
    %v2173 = vunpack.c.l.b16 %v1781
    %v2174 = vunpack.c.h.b16 %v1781
    %v2175 = vunpack.c.l.b16 %v1782
    %v2176 = vunpack.c.h.b16 %v1782
    %v2177 = vunpack.c.l.b16 %v1783
    %v2178 = vunpack.c.h.b16 %v1783
    %v2179 = vunpack.c.l.b16 %v1784
    %v2180 = vunpack.c.h.b16 %v1784
    %v2181 = vunpack.c.l.b16 %v1785
    %v2182 = vunpack.c.h.b16 %v1785
    %v2183 = vunpack.c.l.b16 %v1786
    %v2184 = vunpack.c.h.b16 %v1786
    %v2185 = vunpack.c.l.b16 %v1787
    %v2186 = vunpack.c.h.b16 %v1787
    %v2187 = vunpack.c.l.b16 %v1788
    %v2188 = vunpack.c.h.b16 %v1788
    %v2189 = vunpack.c.l.b16 %v1789
    %v2190 = vunpack.c.h.b16 %v1789
    %v2191 = vunpack.c.l.b16 %v1790
    %v2192 = vunpack.c.h.b16 %v1790
    %v2193 = vpack.c.b16 %v1945, %v1937
    %v2194 = vpack.c.b16 %v1946, %v1938
    %v2195 = vpack.c.b16 %v1947, %v1939
    %v2196 = vpack.c.b16 %v1948, %v1940
    %v2197 = vpack.c.b16 %v1949, %v1941
    %v2198 = vpack.c.b16 %v1950, %v1942
    %v2199 = vpack.c.b16 %v1951, %v1943
    %v2200 = vpack.c.b16 %v1952, %v1944
    %v2201 = vpack.c.b16 %v1961, %v1953
    %v2202 = vpack.c.b16 %v1962, %v1954
    %v2203 = vpack.c.b16 %v1963, %v1955
    %v2204 = vpack.c.b16 %v1964, %v1956
    %v2205 = vpack.c.b16 %v1965, %v1957
    %v2206 = vpack.c.b16 %v1966, %v1958
    %v2207 = vpack.c.b16 %v1967, %v1959
    %v2208 = vpack.c.b16 %v1968, %v1960
    %v2209 = vpack.c.b16 %v1977, %v1969
    %v2210 = vpack.c.b16 %v1978, %v1970
    %v2211 = vpack.c.b16 %v1979, %v1971
    %v2212 = vpack.c.b16 %v1980, %v1972
    %v2213 = vpack.c.b16 %v1981, %v1973
    %v2214 = vpack.c.b16 %v1982, %v1974
    %v2215 = vpack.c.b16 %v1983, %v1975
    %v2216 = vpack.c.b16 %v1984, %v1976
    %v2217 = vpack.c.b16 %v1993, %v1985
    %v2218 = vpack.c.b16 %v1994, %v1986
    %v2219 = vpack.c.b16 %v1995, %v1987
    %v2220 = vpack.c.b16 %v1996, %v1988
    %v2221 = vpack.c.b16 %v1997, %v1989
    %v2222 = vpack.c.b16 %v1998, %v1990
    %v2223 = vpack.c.b16 %v1999, %v1991
    %v2224 = vpack.c.b16 %v2000, %v1992
    %v2225 = vpack.c.b16 %v2009, %v2001
    %v2226 = vpack.c.b16 %v2010, %v2002
    %v2227 = vpack.c.b16 %v2011, %v2003
    %v2228 = vpack.c.b16 %v2012, %v2004
    %v2229 = vpack.c.b16 %v2013, %v2005
    %v2230 = vpack.c.b16 %v2014, %v2006
    %v2231 = vpack.c.b16 %v2015, %v2007
    %v2232 = vpack.c.b16 %v2016, %v2008
    %v2233 = vpack.c.b16 %v2025, %v2017
    %v2234 = vpack.c.b16 %v2026, %v2018
    %v2235 = vpack.c.b16 %v2027, %v2019
    %v2236 = vpack.c.b16 %v2028, %v2020
    %v2237 = vpack.c.b16 %v2029, %v2021
    %v2238 = vpack.c.b16 %v2030, %v2022
    %v2239 = vpack.c.b16 %v2031, %v2023
    %v2240 = vpack.c.b16 %v2032, %v2024
    %v2241 = vpack.c.b16 %v2041, %v2033
    %v2242 = vpack.c.b16 %v2042, %v2034
    %v2243 = vpack.c.b16 %v2043, %v2035
    %v2244 = vpack.c.b16 %v2044, %v2036
    %v2245 = vpack.c.b16 %v2045, %v2037
    %v2246 = vpack.c.b16 %v2046, %v2038
    %v2247 = vpack.c.b16 %v2047, %v2039
    %v2248 = vpack.c.b16 %v2048, %v2040
    %v2249 = vpack.c.b16 %v2057, %v2049
    %v2250 = vpack.c.b16 %v2058, %v2050
    %v2251 = vpack.c.b16 %v2059, %v2051
    %v2252 = vpack.c.b16 %v2060, %v2052
    %v2253 = vpack.c.b16 %v2061, %v2053
    %v2254 = vpack.c.b16 %v2062, %v2054
    %v2255 = vpack.c.b16 %v2063, %v2055
    %v2256 = vpack.c.b16 %v2064, %v2056
    %v2257 = vpack.c.b16 %v2073, %v2065
    %v2258 = vpack.c.b16 %v2074, %v2066
    %v2259 = vpack.c.b16 %v2075, %v2067
    %v2260 = vpack.c.b16 %v2076, %v2068
    %v2261 = vpack.c.b16 %v2077, %v2069
    %v2262 = vpack.c.b16 %v2078, %v2070
    %v2263 = vpack.c.b16 %v2079, %v2071
    %v2264 = vpack.c.b16 %v2080, %v2072
    %v2265 = vpack.c.b16 %v2089, %v2081
    %v2266 = vpack.c.b16 %v2090, %v2082
    %v2267 = vpack.c.b16 %v2091, %v2083
    %v2268 = vpack.c.b16 %v2092, %v2084
    %v2269 = vpack.c.b16 %v2093, %v2085
    %v2270 = vpack.c.b16 %v2094, %v2086
    %v2271 = vpack.c.b16 %v2095, %v2087
    %v2272 = vpack.c.b16 %v2096, %v2088
    %v2273 = vpack.c.b16 %v2105, %v2097
    %v2274 = vpack.c.b16 %v2106, %v2098
    %v2275 = vpack.c.b16 %v2107, %v2099
    %v2276 = vpack.c.b16 %v2108, %v2100
    %v2277 = vpack.c.b16 %v2109, %v2101
    %v2278 = vpack.c.b16 %v2110, %v2102
    %v2279 = vpack.c.b16 %v2111, %v2103
    %v2280 = vpack.c.b16 %v2112, %v2104
    %v2281 = vpack.c.b16 %v2121, %v2113
    %v2282 = vpack.c.b16 %v2122, %v2114
    %v2283 = vpack.c.b16 %v2123, %v2115
    %v2284 = vpack.c.b16 %v2124, %v2116
    %v2285 = vpack.c.b16 %v2125, %v2117
    %v2286 = vpack.c.b16 %v2126, %v2118
    %v2287 = vpack.c.b16 %v2127, %v2119
    %v2288 = vpack.c.b16 %v2128, %v2120
    %v2289 = vpack.c.b16 %v2137, %v2129
    %v2290 = vpack.c.b16 %v2138, %v2130
    %v2291 = vpack.c.b16 %v2139, %v2131
    %v2292 = vpack.c.b16 %v2140, %v2132
    %v2293 = vpack.c.b16 %v2141, %v2133
    %v2294 = vpack.c.b16 %v2142, %v2134
    %v2295 = vpack.c.b16 %v2143, %v2135
    %v2296 = vpack.c.b16 %v2144, %v2136
    %v2297 = vpack.c.b16 %v2153, %v2145
    %v2298 = vpack.c.b16 %v2154, %v2146
    %v2299 = vpack.c.b16 %v2155, %v2147
    %v2300 = vpack.c.b16 %v2156, %v2148
    %v2301 = vpack.c.b16 %v2157, %v2149
    %v2302 = vpack.c.b16 %v2158, %v2150
    %v2303 = vpack.c.b16 %v2159, %v2151
    %v2304 = vpack.c.b16 %v2160, %v2152
    %v2305 = vpack.c.b16 %v2169, %v2161
    %v2306 = vpack.c.b16 %v2170, %v2162
    %v2307 = vpack.c.b16 %v2171, %v2163
    %v2308 = vpack.c.b16 %v2172, %v2164
    %v2309 = vpack.c.b16 %v2173, %v2165
    %v2310 = vpack.c.b16 %v2174, %v2166
    %v2311 = vpack.c.b16 %v2175, %v2167
    %v2312 = vpack.c.b16 %v2176, %v2168
    %v2313 = vpack.c.b16 %v2185, %v2177
    %v2314 = vpack.c.b16 %v2186, %v2178
    %v2315 = vpack.c.b16 %v2187, %v2179
    %v2316 = vpack.c.b16 %v2188, %v2180
    %v2317 = vpack.c.b16 %v2189, %v2181
    %v2318 = vpack.c.b16 %v2190, %v2182
    %v2319 = vpack.c.b16 %v2191, %v2183
    %v2320 = vpack.c.b16 %v2192, %v2184
    %2449 = vmatpush.bf16.msra.mxu0 %v2249
    %2450 = vmatpush.bf16.msra.mxu0 %v2241
    %2451 = vmatpush.bf16.msra.mxu0 %v2233
    %2452 = vmatpush.bf16.msra.mxu0 %v2225
    %2453 = vmatpush.bf16.msra.mxu0 %v2217
    %2454 = vmatpush.bf16.msra.mxu0 %v2209
    %2455 = vmatpush.bf16.msra.mxu0 %v2201
    %2456 = vmatpush.bf16.msra.mxu0 %v2193
    %2457 = vmatmul.bf16.gmra.mxu0 %v1661
    %v2458 = vpop.f32.mrf.mxu0
    %v2459 = vadd.f32 %v1793, %v2458
    %v2460 = vpop.f32.mrf.mxu0
    %v2461 = vadd.f32 %v1793, %v2460
    %2462 = vdwg.mxu0
    %2463 = vmatpush.bf16.msra.mxu0 %v2313
    %2464 = vmatpush.bf16.msra.mxu0 %v2305
    %2465 = vmatpush.bf16.msra.mxu0 %v2297
    %2466 = vmatpush.bf16.msra.mxu0 %v2289
    %2467 = vmatpush.bf16.msra.mxu0 %v2281
    %2468 = vmatpush.bf16.msra.mxu0 %v2273
    %2469 = vmatpush.bf16.msra.mxu0 %v2265
    %2470 = vmatpush.bf16.msra.mxu0 %v2257
    %2471 = vmatmul.bf16.gmra.mxu0 %v1662
    %v2472 = vpop.f32.mrf.mxu0
    %v2473 = vadd.f32 %v2459, %v2472
    %v2474 = vpop.f32.mrf.mxu0
    %v2475 = vadd.f32 %v2461, %v2474
    %2476 = vdwg.mxu0
    %2477 = vmatpush.bf16.msra.mxu0 %v2250
    %2478 = vmatpush.bf16.msra.mxu0 %v2242
    %2479 = vmatpush.bf16.msra.mxu0 %v2234
    %2480 = vmatpush.bf16.msra.mxu0 %v2226
    %2481 = vmatpush.bf16.msra.mxu0 %v2218
    %2482 = vmatpush.bf16.msra.mxu0 %v2210
    %2483 = vmatpush.bf16.msra.mxu0 %v2202
    %2484 = vmatpush.bf16.msra.mxu0 %v2194
    %2485 = vmatmul.bf16.gmra.mxu0 %v1661
    %v2486 = vpop.f32.mrf.mxu0
    %v2487 = vadd.f32 %v1794, %v2486
    %v2488 = vpop.f32.mrf.mxu0
    %v2489 = vadd.f32 %v1794, %v2488
    %2490 = vdwg.mxu0
    %2491 = vmatpush.bf16.msra.mxu0 %v2314
    %2492 = vmatpush.bf16.msra.mxu0 %v2306
    %2493 = vmatpush.bf16.msra.mxu0 %v2298
    %2494 = vmatpush.bf16.msra.mxu0 %v2290
    %2495 = vmatpush.bf16.msra.mxu0 %v2282
    %2496 = vmatpush.bf16.msra.mxu0 %v2274
    %2497 = vmatpush.bf16.msra.mxu0 %v2266
    %2498 = vmatpush.bf16.msra.mxu0 %v2258
    %2499 = vmatmul.bf16.gmra.mxu0 %v1662
    %v2500 = vpop.f32.mrf.mxu0
    %v2501 = vadd.f32 %v2487, %v2500
    %v2502 = vpop.f32.mrf.mxu0
    %v2503 = vadd.f32 %v2489, %v2502
    %2504 = vdwg.mxu0
    %2505 = vmatpush.bf16.msra.mxu0 %v2251
    %2506 = vmatpush.bf16.msra.mxu0 %v2243
    %2507 = vmatpush.bf16.msra.mxu0 %v2235
    %2508 = vmatpush.bf16.msra.mxu0 %v2227
    %2509 = vmatpush.bf16.msra.mxu0 %v2219
    %2510 = vmatpush.bf16.msra.mxu0 %v2211
    %2511 = vmatpush.bf16.msra.mxu0 %v2203
    %2512 = vmatpush.bf16.msra.mxu0 %v2195
    %2513 = vmatmul.bf16.gmra.mxu0 %v1661
    %v2514 = vpop.f32.mrf.mxu0
    %v2515 = vadd.f32 %v1795, %v2514
    %v2516 = vpop.f32.mrf.mxu0
    %v2517 = vadd.f32 %v1795, %v2516
    %2518 = vdwg.mxu0
    %2519 = vmatpush.bf16.msra.mxu0 %v2315
    %2520 = vmatpush.bf16.msra.mxu0 %v2307
    %2521 = vmatpush.bf16.msra.mxu0 %v2299
    %2522 = vmatpush.bf16.msra.mxu0 %v2291
    %2523 = vmatpush.bf16.msra.mxu0 %v2283
    %2524 = vmatpush.bf16.msra.mxu0 %v2275
    %2525 = vmatpush.bf16.msra.mxu0 %v2267
    %2526 = vmatpush.bf16.msra.mxu0 %v2259
    %2527 = vmatmul.bf16.gmra.mxu0 %v1662
    %v2528 = vpop.f32.mrf.mxu0
    %v2529 = vadd.f32 %v2515, %v2528
    %v2530 = vpop.f32.mrf.mxu0
    %v2531 = vadd.f32 %v2517, %v2530
    %2532 = vdwg.mxu0
    %2533 = vmatpush.bf16.msra.mxu0 %v2252
    %2534 = vmatpush.bf16.msra.mxu0 %v2244
    %2535 = vmatpush.bf16.msra.mxu0 %v2236
    %2536 = vmatpush.bf16.msra.mxu0 %v2228
    %2537 = vmatpush.bf16.msra.mxu0 %v2220
    %2538 = vmatpush.bf16.msra.mxu0 %v2212
    %2539 = vmatpush.bf16.msra.mxu0 %v2204
    %2540 = vmatpush.bf16.msra.mxu0 %v2196
    %2541 = vmatmul.bf16.gmra.mxu0 %v1661
    %v2542 = vpop.f32.mrf.mxu0
    %v2543 = vadd.f32 %v1796, %v2542
    %v2544 = vpop.f32.mrf.mxu0
    %v2545 = vadd.f32 %v1796, %v2544
    %2546 = vdwg.mxu0
    %2547 = vmatpush.bf16.msra.mxu0 %v2316
    %2548 = vmatpush.bf16.msra.mxu0 %v2308
    %2549 = vmatpush.bf16.msra.mxu0 %v2300
    %2550 = vmatpush.bf16.msra.mxu0 %v2292
    %2551 = vmatpush.bf16.msra.mxu0 %v2284
    %2552 = vmatpush.bf16.msra.mxu0 %v2276
    %2553 = vmatpush.bf16.msra.mxu0 %v2268
    %2554 = vmatpush.bf16.msra.mxu0 %v2260
    %2555 = vmatmul.bf16.gmra.mxu0 %v1662
    %v2556 = vpop.f32.mrf.mxu0
    %v2557 = vadd.f32 %v2543, %v2556
    %v2558 = vpop.f32.mrf.mxu0
    %v2559 = vadd.f32 %v2545, %v2558
    %2560 = vdwg.mxu0
    %2561 = vmatpush.bf16.msra.mxu0 %v2253
    %2562 = vmatpush.bf16.msra.mxu0 %v2245
    %2563 = vmatpush.bf16.msra.mxu0 %v2237
    %2564 = vmatpush.bf16.msra.mxu0 %v2229
    %2565 = vmatpush.bf16.msra.mxu0 %v2221
    %2566 = vmatpush.bf16.msra.mxu0 %v2213
    %2567 = vmatpush.bf16.msra.mxu0 %v2205
    %2568 = vmatpush.bf16.msra.mxu0 %v2197
    %2569 = vmatmul.bf16.gmra.mxu0 %v1661
    %v2570 = vpop.f32.mrf.mxu0
    %v2571 = vadd.f32 %v1797, %v2570
    %v2572 = vpop.f32.mrf.mxu0
    %v2573 = vadd.f32 %v1797, %v2572
    %2574 = vdwg.mxu0
    %2575 = vmatpush.bf16.msra.mxu0 %v2317
    %2576 = vmatpush.bf16.msra.mxu0 %v2309
    %2577 = vmatpush.bf16.msra.mxu0 %v2301
    %2578 = vmatpush.bf16.msra.mxu0 %v2293
    %2579 = vmatpush.bf16.msra.mxu0 %v2285
    %2580 = vmatpush.bf16.msra.mxu0 %v2277
    %2581 = vmatpush.bf16.msra.mxu0 %v2269
    %2582 = vmatpush.bf16.msra.mxu0 %v2261
    %2583 = vmatmul.bf16.gmra.mxu0 %v1662
    %v2584 = vpop.f32.mrf.mxu0
    %v2585 = vadd.f32 %v2571, %v2584
    %v2586 = vpop.f32.mrf.mxu0
    %v2587 = vadd.f32 %v2573, %v2586
    %2588 = vdwg.mxu0
    %2589 = vmatpush.bf16.msra.mxu0 %v2254
    %2590 = vmatpush.bf16.msra.mxu0 %v2246
    %2591 = vmatpush.bf16.msra.mxu0 %v2238
    %2592 = vmatpush.bf16.msra.mxu0 %v2230
    %2593 = vmatpush.bf16.msra.mxu0 %v2222
    %2594 = vmatpush.bf16.msra.mxu0 %v2214
    %2595 = vmatpush.bf16.msra.mxu0 %v2206
    %2596 = vmatpush.bf16.msra.mxu0 %v2198
    %2597 = vmatmul.bf16.gmra.mxu0 %v1661
    %v2598 = vpop.f32.mrf.mxu0
    %v2599 = vadd.f32 %v1798, %v2598
    %v2600 = vpop.f32.mrf.mxu0
    %v2601 = vadd.f32 %v1798, %v2600
    %2602 = vdwg.mxu0
    %2603 = vmatpush.bf16.msra.mxu0 %v2318
    %2604 = vmatpush.bf16.msra.mxu0 %v2310
    %2605 = vmatpush.bf16.msra.mxu0 %v2302
    %2606 = vmatpush.bf16.msra.mxu0 %v2294
    %2607 = vmatpush.bf16.msra.mxu0 %v2286
    %2608 = vmatpush.bf16.msra.mxu0 %v2278
    %2609 = vmatpush.bf16.msra.mxu0 %v2270
    %2610 = vmatpush.bf16.msra.mxu0 %v2262
    %2611 = vmatmul.bf16.gmra.mxu0 %v1662
    %v2612 = vpop.f32.mrf.mxu0
    %v2613 = vadd.f32 %v2599, %v2612
    %v2614 = vpop.f32.mrf.mxu0
    %v2615 = vadd.f32 %v2601, %v2614
    %2616 = vdwg.mxu0
    %2617 = vmatpush.bf16.msra.mxu0 %v2255
    %2618 = vmatpush.bf16.msra.mxu0 %v2247
    %2619 = vmatpush.bf16.msra.mxu0 %v2239
    %2620 = vmatpush.bf16.msra.mxu0 %v2231
    %2621 = vmatpush.bf16.msra.mxu0 %v2223
    %2622 = vmatpush.bf16.msra.mxu0 %v2215
    %2623 = vmatpush.bf16.msra.mxu0 %v2207
    %2624 = vmatpush.bf16.msra.mxu0 %v2199
    %2625 = vmatmul.bf16.gmra.mxu0 %v1661
    %v2626 = vpop.f32.mrf.mxu0
    %v2627 = vadd.f32 %v1799, %v2626
    %v2628 = vpop.f32.mrf.mxu0
    %v2629 = vadd.f32 %v1799, %v2628
    %2630 = vdwg.mxu0
    %2631 = vmatpush.bf16.msra.mxu0 %v2319
    %2632 = vmatpush.bf16.msra.mxu0 %v2311
    %2633 = vmatpush.bf16.msra.mxu0 %v2303
    %2634 = vmatpush.bf16.msra.mxu0 %v2295
    %2635 = vmatpush.bf16.msra.mxu0 %v2287
    %2636 = vmatpush.bf16.msra.mxu0 %v2279
    %2637 = vmatpush.bf16.msra.mxu0 %v2271
    %2638 = vmatpush.bf16.msra.mxu0 %v2263
    %2639 = vmatmul.bf16.gmra.mxu0 %v1662
    %v2640 = vpop.f32.mrf.mxu0
    %v2641 = vadd.f32 %v2627, %v2640
    %v2642 = vpop.f32.mrf.mxu0
    %v2643 = vadd.f32 %v2629, %v2642
    %2644 = vdwg.mxu0
    %2645 = vmatpush.bf16.msra.mxu0 %v2256
    %2646 = vmatpush.bf16.msra.mxu0 %v2248
    %2647 = vmatpush.bf16.msra.mxu0 %v2240
    %2648 = vmatpush.bf16.msra.mxu0 %v2232
    %2649 = vmatpush.bf16.msra.mxu0 %v2224
    %2650 = vmatpush.bf16.msra.mxu0 %v2216
    %2651 = vmatpush.bf16.msra.mxu0 %v2208
    %2652 = vmatpush.bf16.msra.mxu0 %v2200
    %2653 = vmatmul.bf16.gmra.mxu0 %v1661
    %v2654 = vpop.f32.mrf.mxu0
    %v2655 = vadd.f32 %v1800, %v2654
    %v2656 = vpop.f32.mrf.mxu0
    %v2657 = vadd.f32 %v1800, %v2656
    %2658 = vdwg.mxu0
    %2659 = vmatpush.bf16.msra.mxu0 %v2320
    %2660 = vmatpush.bf16.msra.mxu0 %v2312
    %2661 = vmatpush.bf16.msra.mxu0 %v2304
    %2662 = vmatpush.bf16.msra.mxu0 %v2296
    %2663 = vmatpush.bf16.msra.mxu0 %v2288
    %2664 = vmatpush.bf16.msra.mxu0 %v2280
    %2665 = vmatpush.bf16.msra.mxu0 %v2272
    %2666 = vmatpush.bf16.msra.mxu0 %v2264
    %2667 = vmatmul.bf16.gmra.mxu0 %v1662
    %v2668 = vpop.f32.mrf.mxu0
    %v2669 = vadd.f32 %v2655, %v2668
    %v2670 = vpop.f32.mrf.mxu0
    %v2671 = vadd.f32 %v2657, %v2670
    %2672 = vdwg.mxu0
    %v2673 = vmul.f32 %v2473, 0.5
    %v2674 = vmul.f32 %v2501, 0.5
    %v2675 = vmul.f32 %v2529, 0.5
    %v2676 = vmul.f32 %v2557, 0.5
    %v2677 = vmul.f32 %v2585, 0.5
    %v2678 = vmul.f32 %v2613, 0.5
    %v2679 = vmul.f32 %v2641, 0.5
    %v2680 = vmul.f32 %v2669, 0.5
    %v2681 = vmul.f32 %v2475, 0.5
    %v2682 = vmul.f32 %v2503, 0.5
    %v2683 = vmul.f32 %v2531, 0.5
    %v2684 = vmul.f32 %v2559, 0.5
    %v2685 = vmul.f32 %v2587, 0.5
    %v2686 = vmul.f32 %v2615, 0.5
    %v2687 = vmul.f32 %v2643, 0.5
    %v2688 = vmul.f32 %v2671, 0.5
    %v2689 = vmul.f32 %v2473, 0.044715
    %v2690 = vmul.f32 %v2501, 0.044715
    %v2691 = vmul.f32 %v2529, 0.044715
    %v2692 = vmul.f32 %v2557, 0.044715
    %v2693 = vmul.f32 %v2585, 0.044715
    %v2694 = vmul.f32 %v2613, 0.044715
    %v2695 = vmul.f32 %v2641, 0.044715
    %v2696 = vmul.f32 %v2669, 0.044715
    %v2697 = vmul.f32 %v2475, 0.044715
    %v2698 = vmul.f32 %v2503, 0.044715
    %v2699 = vmul.f32 %v2531, 0.044715
    %v2700 = vmul.f32 %v2559, 0.044715
    %v2701 = vmul.f32 %v2587, 0.044715
    %v2702 = vmul.f32 %v2615, 0.044715
    %v2703 = vmul.f32 %v2643, 0.044715
    %v2704 = vmul.f32 %v2671, 0.044715
    %v2705 = vmul.f32 %v2689, %v2473
    %v2706 = vmul.f32 %v2690, %v2501
    %v2707 = vmul.f32 %v2691, %v2529
    %v2708 = vmul.f32 %v2692, %v2557
    %v2709 = vmul.f32 %v2693, %v2585
    %v2710 = vmul.f32 %v2694, %v2613
    %v2711 = vmul.f32 %v2695, %v2641
    %v2712 = vmul.f32 %v2696, %v2669
    %v2713 = vmul.f32 %v2697, %v2475
    %v2714 = vmul.f32 %v2698, %v2503
    %v2715 = vmul.f32 %v2699, %v2531
    %v2716 = vmul.f32 %v2700, %v2559
    %v2717 = vmul.f32 %v2701, %v2587
    %v2718 = vmul.f32 %v2702, %v2615
    %v2719 = vmul.f32 %v2703, %v2643
    %v2720 = vmul.f32 %v2704, %v2671
    %v2721 = vmul.f32 %v2705, %v2473
    %v2722 = vmul.f32 %v2706, %v2501
    %v2723 = vmul.f32 %v2707, %v2529
    %v2724 = vmul.f32 %v2708, %v2557
    %v2725 = vmul.f32 %v2709, %v2585
    %v2726 = vmul.f32 %v2710, %v2613
    %v2727 = vmul.f32 %v2711, %v2641
    %v2728 = vmul.f32 %v2712, %v2669
    %v2729 = vmul.f32 %v2713, %v2475
    %v2730 = vmul.f32 %v2714, %v2503
    %v2731 = vmul.f32 %v2715, %v2531
    %v2732 = vmul.f32 %v2716, %v2559
    %v2733 = vmul.f32 %v2717, %v2587
    %v2734 = vmul.f32 %v2718, %v2615
    %v2735 = vmul.f32 %v2719, %v2643
    %v2736 = vmul.f32 %v2720, %v2671
    %v2737 = vadd.f32 %v2473, %v2721
    %v2738 = vadd.f32 %v2501, %v2722
    %v2739 = vadd.f32 %v2529, %v2723
    %v2740 = vadd.f32 %v2557, %v2724
    %v2741 = vadd.f32 %v2585, %v2725
    %v2742 = vadd.f32 %v2613, %v2726
    %v2743 = vadd.f32 %v2641, %v2727
    %v2744 = vadd.f32 %v2669, %v2728
    %v2745 = vadd.f32 %v2475, %v2729
    %v2746 = vadd.f32 %v2503, %v2730
    %v2747 = vadd.f32 %v2531, %v2731
    %v2748 = vadd.f32 %v2559, %v2732
    %v2749 = vadd.f32 %v2587, %v2733
    %v2750 = vadd.f32 %v2615, %v2734
    %v2751 = vadd.f32 %v2643, %v2735
    %v2752 = vadd.f32 %v2671, %v2736
    %v2753 = vmul.f32 %v2737, 0.7978846
    %v2754 = vmul.f32 %v2738, 0.7978846
    %v2755 = vmul.f32 %v2739, 0.7978846
    %v2756 = vmul.f32 %v2740, 0.7978846
    %v2757 = vmul.f32 %v2741, 0.7978846
    %v2758 = vmul.f32 %v2742, 0.7978846
    %v2759 = vmul.f32 %v2743, 0.7978846
    %v2760 = vmul.f32 %v2744, 0.7978846
    %v2761 = vmul.f32 %v2745, 0.7978846
    %v2762 = vmul.f32 %v2746, 0.7978846
    %v2763 = vmul.f32 %v2747, 0.7978846
    %v2764 = vmul.f32 %v2748, 0.7978846
    %v2765 = vmul.f32 %v2749, 0.7978846
    %v2766 = vmul.f32 %v2750, 0.7978846
    %v2767 = vmul.f32 %v2751, 0.7978846
    %v2768 = vmul.f32 %v2752, 0.7978846
    %v2769 = vtanh.pop %v2753
    %v2770 = vtanh.pop %v2754
    %v2771 = vtanh.pop %v2755
    %v2772 = vtanh.pop %v2756
    %v2773 = vtanh.pop %v2757
    %v2774 = vtanh.pop %v2758
    %v2775 = vtanh.pop %v2759
    %v2776 = vtanh.pop %v2760
    %v2777 = vtanh.pop %v2761
    %v2778 = vtanh.pop %v2762
    %v2779 = vtanh.pop %v2763
    %v2780 = vtanh.pop %v2764
    %v2781 = vtanh.pop %v2765
    %v2782 = vtanh.pop %v2766
    %v2783 = vtanh.pop %v2767
    %v2784 = vtanh.pop %v2768
    %v2785 = vadd.f32 %v2769, 1.0
    %v2786 = vadd.f32 %v2770, 1.0
    %v2787 = vadd.f32 %v2771, 1.0
    %v2788 = vadd.f32 %v2772, 1.0
    %v2789 = vadd.f32 %v2773, 1.0
    %v2790 = vadd.f32 %v2774, 1.0
    %v2791 = vadd.f32 %v2775, 1.0
    %v2792 = vadd.f32 %v2776, 1.0
    %v2793 = vadd.f32 %v2777, 1.0
    %v2794 = vadd.f32 %v2778, 1.0
    %v2795 = vadd.f32 %v2779, 1.0
    %v2796 = vadd.f32 %v2780, 1.0
    %v2797 = vadd.f32 %v2781, 1.0
    %v2798 = vadd.f32 %v2782, 1.0
    %v2799 = vadd.f32 %v2783, 1.0
    %v2800 = vadd.f32 %v2784, 1.0
    %v2801 = vmul.f32 %v2673, %v2785
    %v2802 = vmul.f32 %v2674, %v2786
    %v2803 = vmul.f32 %v2675, %v2787
    %v2804 = vmul.f32 %v2676, %v2788
    %v2805 = vmul.f32 %v2677, %v2789
    %v2806 = vmul.f32 %v2678, %v2790
    %v2807 = vmul.f32 %v2679, %v2791
    %v2808 = vmul.f32 %v2680, %v2792
    %v2809 = vmul.f32 %v2681, %v2793
    %v2810 = vmul.f32 %v2682, %v2794
    %v2811 = vmul.f32 %v2683, %v2795
    %v2812 = vmul.f32 %v2684, %v2796
    %v2813 = vmul.f32 %v2685, %v2797
    %v2814 = vmul.f32 %v2686, %v2798
    %v2815 = vmul.f32 %v2687, %v2799
    %v2816 = vmul.f32 %v2688, %v2800
    %v2817 = vpack.c.bf16 %v2809, %v2801
    %v2818 = vpack.c.bf16 %v2810, %v2802
    %v2819 = vpack.c.bf16 %v2811, %v2803
    %v2820 = vpack.c.bf16 %v2812, %v2804
    %v2821 = vpack.c.bf16 %v2813, %v2805
    %v2822 = vpack.c.bf16 %v2814, %v2806
    %v2823 = vpack.c.bf16 %v2815, %v2807
    %v2824 = vpack.c.bf16 %v2816, %v2808
    %v2825 = vld [vmem:[#allocation10] sm:$0xff]
    %v2826 = vld [vmem:[#allocation10 + $0x8] sm:$0xff]
    %v2827 = vld [vmem:[#allocation10 + $0x10] sm:$0xff]
    %v2828 = vld [vmem:[#allocation10 + $0x18] sm:$0xff]
    %v2829 = vld [vmem:[#allocation10 + $0x20] sm:$0xff]
    %v2830 = vld [vmem:[#allocation10 + $0x28] sm:$0xff]
    %v2831 = vld [vmem:[#allocation10 + $0x30] sm:$0xff]
    %v2832 = vld [vmem:[#allocation10 + $0x38] sm:$0xff]
    %v2833 = vld [vmem:[#allocation10 + $0x40] sm:$0xff]
    %v2834 = vld [vmem:[#allocation10 + $0x48] sm:$0xff]
    %v2835 = vld [vmem:[#allocation10 + $0x50] sm:$0xff]
    %v2836 = vld [vmem:[#allocation10 + $0x58] sm:$0xff]
    %v2837 = vld [vmem:[#allocation10 + $0x60] sm:$0xff]
    %v2838 = vld [vmem:[#allocation10 + $0x68] sm:$0xff]
    %v2839 = vld [vmem:[#allocation10 + $0x70] sm:$0xff]
    %v2840 = vld [vmem:[#allocation10 + $0x78] sm:$0xff]
    %v2841 = vld [vmem:[#allocation10 + $0x80] sm:$0xff]
    %v2842 = vld [vmem:[#allocation10 + $0x88] sm:$0xff]
    %v2843 = vld [vmem:[#allocation10 + $0x90] sm:$0xff]
    %v2844 = vld [vmem:[#allocation10 + $0x98] sm:$0xff]
    %v2845 = vld [vmem:[#allocation10 + $0xa0] sm:$0xff]
    %v2846 = vld [vmem:[#allocation10 + $0xa8] sm:$0xff]
    %v2847 = vld [vmem:[#allocation10 + $0xb0] sm:$0xff]
    %v2848 = vld [vmem:[#allocation10 + $0xb8] sm:$0xff]
    %v2849 = vld [vmem:[#allocation10 + $0xc0] sm:$0xff]
    %v2850 = vld [vmem:[#allocation10 + $0xc8] sm:$0xff]
    %v2851 = vld [vmem:[#allocation10 + $0xd0] sm:$0xff]
    %v2852 = vld [vmem:[#allocation10 + $0xd8] sm:$0xff]
    %v2853 = vld [vmem:[#allocation10 + $0xe0] sm:$0xff]
    %v2854 = vld [vmem:[#allocation10 + $0xe8] sm:$0xff]
    %v2855 = vld [vmem:[#allocation10 + $0xf0] sm:$0xff]
    %v2856 = vld [vmem:[#allocation10 + $0xf8] sm:$0xff]
    %v2857 = vld [vmem:[#allocation10 + $0x100] sm:$0xff]
    %v2858 = vld [vmem:[#allocation10 + $0x108] sm:$0xff]
    %v2859 = vld [vmem:[#allocation10 + $0x110] sm:$0xff]
    %v2860 = vld [vmem:[#allocation10 + $0x118] sm:$0xff]
    %v2861 = vld [vmem:[#allocation10 + $0x120] sm:$0xff]
    %v2862 = vld [vmem:[#allocation10 + $0x128] sm:$0xff]
    %v2863 = vld [vmem:[#allocation10 + $0x130] sm:$0xff]
    %v2864 = vld [vmem:[#allocation10 + $0x138] sm:$0xff]
    %v2865 = vld [vmem:[#allocation10 + $0x140] sm:$0xff]
    %v2866 = vld [vmem:[#allocation10 + $0x148] sm:$0xff]
    %v2867 = vld [vmem:[#allocation10 + $0x150] sm:$0xff]
    %v2868 = vld [vmem:[#allocation10 + $0x158] sm:$0xff]
    %v2869 = vld [vmem:[#allocation10 + $0x160] sm:$0xff]
    %v2870 = vld [vmem:[#allocation10 + $0x168] sm:$0xff]
    %v2871 = vld [vmem:[#allocation10 + $0x170] sm:$0xff]
    %v2872 = vld [vmem:[#allocation10 + $0x178] sm:$0xff]
    %v2873 = vld [vmem:[#allocation10 + $0x180] sm:$0xff]
    %v2874 = vld [vmem:[#allocation10 + $0x188] sm:$0xff]
    %v2875 = vld [vmem:[#allocation10 + $0x190] sm:$0xff]
    %v2876 = vld [vmem:[#allocation10 + $0x198] sm:$0xff]
    %v2877 = vld [vmem:[#allocation10 + $0x1a0] sm:$0xff]
    %v2878 = vld [vmem:[#allocation10 + $0x1a8] sm:$0xff]
    %v2879 = vld [vmem:[#allocation10 + $0x1b0] sm:$0xff]
    %v2880 = vld [vmem:[#allocation10 + $0x1b8] sm:$0xff]
    %v2881 = vld [vmem:[#allocation10 + $0x1c0] sm:$0xff]
    %v2882 = vld [vmem:[#allocation10 + $0x1c8] sm:$0xff]
    %v2883 = vld [vmem:[#allocation10 + $0x1d0] sm:$0xff]
    %v2884 = vld [vmem:[#allocation10 + $0x1d8] sm:$0xff]
    %v2885 = vld [vmem:[#allocation10 + $0x1e0] sm:$0xff]
    %v2886 = vld [vmem:[#allocation10 + $0x1e8] sm:$0xff]
    %v2887 = vld [vmem:[#allocation10 + $0x1f0] sm:$0xff]
    %v2888 = vld [vmem:[#allocation10 + $0x1f8] sm:$0xff]
    %v2889 = vld [vmem:[#allocation10 + $0x200] sm:$0xff]
    %v2890 = vld [vmem:[#allocation10 + $0x208] sm:$0xff]
    %v2891 = vld [vmem:[#allocation10 + $0x210] sm:$0xff]
    %v2892 = vld [vmem:[#allocation10 + $0x218] sm:$0xff]
    %v2893 = vld [vmem:[#allocation10 + $0x220] sm:$0xff]
    %v2894 = vld [vmem:[#allocation10 + $0x228] sm:$0xff]
    %v2895 = vld [vmem:[#allocation10 + $0x230] sm:$0xff]
    %v2896 = vld [vmem:[#allocation10 + $0x238] sm:$0xff]
    %v2897 = vld [vmem:[#allocation10 + $0x240] sm:$0xff]
    %v2898 = vld [vmem:[#allocation10 + $0x248] sm:$0xff]
    %v2899 = vld [vmem:[#allocation10 + $0x250] sm:$0xff]
    %v2900 = vld [vmem:[#allocation10 + $0x258] sm:$0xff]
    %v2901 = vld [vmem:[#allocation10 + $0x260] sm:$0xff]
    %v2902 = vld [vmem:[#allocation10 + $0x268] sm:$0xff]
    %v2903 = vld [vmem:[#allocation10 + $0x270] sm:$0xff]
    %v2904 = vld [vmem:[#allocation10 + $0x278] sm:$0xff]
    %v2905 = vld [vmem:[#allocation10 + $0x280] sm:$0xff]
    %v2906 = vld [vmem:[#allocation10 + $0x288] sm:$0xff]
    %v2907 = vld [vmem:[#allocation10 + $0x290] sm:$0xff]
    %v2908 = vld [vmem:[#allocation10 + $0x298] sm:$0xff]
    %v2909 = vld [vmem:[#allocation10 + $0x2a0] sm:$0xff]
    %v2910 = vld [vmem:[#allocation10 + $0x2a8] sm:$0xff]
    %v2911 = vld [vmem:[#allocation10 + $0x2b0] sm:$0xff]
    %v2912 = vld [vmem:[#allocation10 + $0x2b8] sm:$0xff]
    %v2913 = vld [vmem:[#allocation10 + $0x2c0] sm:$0xff]
    %v2914 = vld [vmem:[#allocation10 + $0x2c8] sm:$0xff]
    %v2915 = vld [vmem:[#allocation10 + $0x2d0] sm:$0xff]
    %v2916 = vld [vmem:[#allocation10 + $0x2d8] sm:$0xff]
    %v2917 = vld [vmem:[#allocation10 + $0x2e0] sm:$0xff]
    %v2918 = vld [vmem:[#allocation10 + $0x2e8] sm:$0xff]
    %v2919 = vld [vmem:[#allocation10 + $0x2f0] sm:$0xff]
    %v2920 = vld [vmem:[#allocation10 + $0x2f8] sm:$0xff]
    %v2921 = vld [vmem:[#allocation10 + $0x300] sm:$0xff]
    %v2922 = vld [vmem:[#allocation10 + $0x308] sm:$0xff]
    %v2923 = vld [vmem:[#allocation10 + $0x310] sm:$0xff]
    %v2924 = vld [vmem:[#allocation10 + $0x318] sm:$0xff]
    %v2925 = vld [vmem:[#allocation10 + $0x320] sm:$0xff]
    %v2926 = vld [vmem:[#allocation10 + $0x328] sm:$0xff]
    %v2927 = vld [vmem:[#allocation10 + $0x330] sm:$0xff]
    %v2928 = vld [vmem:[#allocation10 + $0x338] sm:$0xff]
    %v2929 = vld [vmem:[#allocation10 + $0x340] sm:$0xff]
    %v2930 = vld [vmem:[#allocation10 + $0x348] sm:$0xff]
    %v2931 = vld [vmem:[#allocation10 + $0x350] sm:$0xff]
    %v2932 = vld [vmem:[#allocation10 + $0x358] sm:$0xff]
    %v2933 = vld [vmem:[#allocation10 + $0x360] sm:$0xff]
    %v2934 = vld [vmem:[#allocation10 + $0x368] sm:$0xff]
    %v2935 = vld [vmem:[#allocation10 + $0x370] sm:$0xff]
    %v2936 = vld [vmem:[#allocation10 + $0x378] sm:$0xff]
    %v2937 = vld [vmem:[#allocation10 + $0x380] sm:$0xff]
    %v2938 = vld [vmem:[#allocation10 + $0x388] sm:$0xff]
    %v2939 = vld [vmem:[#allocation10 + $0x390] sm:$0xff]
    %v2940 = vld [vmem:[#allocation10 + $0x398] sm:$0xff]
    %v2941 = vld [vmem:[#allocation10 + $0x3a0] sm:$0xff]
    %v2942 = vld [vmem:[#allocation10 + $0x3a8] sm:$0xff]
    %v2943 = vld [vmem:[#allocation10 + $0x3b0] sm:$0xff]
    %v2944 = vld [vmem:[#allocation10 + $0x3b8] sm:$0xff]
    %v2945 = vld [vmem:[#allocation10 + $0x3c0] sm:$0xff]
    %v2946 = vld [vmem:[#allocation10 + $0x3c8] sm:$0xff]
    %v2947 = vld [vmem:[#allocation10 + $0x3d0] sm:$0xff]
    %v2948 = vld [vmem:[#allocation10 + $0x3d8] sm:$0xff]
    %v2949 = vld [vmem:[#allocation10 + $0x3e0] sm:$0xff]
    %v2950 = vld [vmem:[#allocation10 + $0x3e8] sm:$0xff]
    %v2951 = vld [vmem:[#allocation10 + $0x3f0] sm:$0xff]
    %v2952 = vld [vmem:[#allocation10 + $0x3f8] sm:$0xff]
    %v2953 = vld [vmem:[%s15] sm:$0x3]
    %v2955 = vperm.slane %v2953, 0
    %v2956 = vperm.slane %v2953, 1
    %v3087 = vunpack.c.l.b16 %v2825
    %v3088 = vunpack.c.h.b16 %v2825
    %v3089 = vunpack.c.l.b16 %v2826
    %v3090 = vunpack.c.h.b16 %v2826
    %v3091 = vunpack.c.l.b16 %v2827
    %v3092 = vunpack.c.h.b16 %v2827
    %v3093 = vunpack.c.l.b16 %v2828
    %v3094 = vunpack.c.h.b16 %v2828
    %v3095 = vunpack.c.l.b16 %v2829
    %v3096 = vunpack.c.h.b16 %v2829
    %v3097 = vunpack.c.l.b16 %v2830
    %v3098 = vunpack.c.h.b16 %v2830
    %v3099 = vunpack.c.l.b16 %v2831
    %v3100 = vunpack.c.h.b16 %v2831
    %v3101 = vunpack.c.l.b16 %v2832
    %v3102 = vunpack.c.h.b16 %v2832
    %v3103 = vunpack.c.l.b16 %v2833
    %v3104 = vunpack.c.h.b16 %v2833
    %v3105 = vunpack.c.l.b16 %v2834
    %v3106 = vunpack.c.h.b16 %v2834
    %v3107 = vunpack.c.l.b16 %v2835
    %v3108 = vunpack.c.h.b16 %v2835
    %v3109 = vunpack.c.l.b16 %v2836
    %v3110 = vunpack.c.h.b16 %v2836
    %v3111 = vunpack.c.l.b16 %v2837
    %v3112 = vunpack.c.h.b16 %v2837
    %v3113 = vunpack.c.l.b16 %v2838
    %v3114 = vunpack.c.h.b16 %v2838
    %v3115 = vunpack.c.l.b16 %v2839
    %v3116 = vunpack.c.h.b16 %v2839
    %v3117 = vunpack.c.l.b16 %v2840
    %v3118 = vunpack.c.h.b16 %v2840
    %v3119 = vunpack.c.l.b16 %v2841
    %v3120 = vunpack.c.h.b16 %v2841
    %v3121 = vunpack.c.l.b16 %v2842
    %v3122 = vunpack.c.h.b16 %v2842
    %v3123 = vunpack.c.l.b16 %v2843
    %v3124 = vunpack.c.h.b16 %v2843
    %v3125 = vunpack.c.l.b16 %v2844
    %v3126 = vunpack.c.h.b16 %v2844
    %v3127 = vunpack.c.l.b16 %v2845
    %v3128 = vunpack.c.h.b16 %v2845
    %v3129 = vunpack.c.l.b16 %v2846
    %v3130 = vunpack.c.h.b16 %v2846
    %v3131 = vunpack.c.l.b16 %v2847
    %v3132 = vunpack.c.h.b16 %v2847
    %v3133 = vunpack.c.l.b16 %v2848
    %v3134 = vunpack.c.h.b16 %v2848
    %v3135 = vunpack.c.l.b16 %v2849
    %v3136 = vunpack.c.h.b16 %v2849
    %v3137 = vunpack.c.l.b16 %v2850
    %v3138 = vunpack.c.h.b16 %v2850
    %v3139 = vunpack.c.l.b16 %v2851
    %v3140 = vunpack.c.h.b16 %v2851
    %v3141 = vunpack.c.l.b16 %v2852
    %v3142 = vunpack.c.h.b16 %v2852
    %v3143 = vunpack.c.l.b16 %v2853
    %v3144 = vunpack.c.h.b16 %v2853
    %v3145 = vunpack.c.l.b16 %v2854
    %v3146 = vunpack.c.h.b16 %v2854
    %v3147 = vunpack.c.l.b16 %v2855
    %v3148 = vunpack.c.h.b16 %v2855
    %v3149 = vunpack.c.l.b16 %v2856
    %v3150 = vunpack.c.h.b16 %v2856
    %v3151 = vunpack.c.l.b16 %v2857
    %v3152 = vunpack.c.h.b16 %v2857
    %v3153 = vunpack.c.l.b16 %v2858
    %v3154 = vunpack.c.h.b16 %v2858
    %v3155 = vunpack.c.l.b16 %v2859
    %v3156 = vunpack.c.h.b16 %v2859
    %v3157 = vunpack.c.l.b16 %v2860
    %v3158 = vunpack.c.h.b16 %v2860
    %v3159 = vunpack.c.l.b16 %v2861
    %v3160 = vunpack.c.h.b16 %v2861
    %v3161 = vunpack.c.l.b16 %v2862
    %v3162 = vunpack.c.h.b16 %v2862
    %v3163 = vunpack.c.l.b16 %v2863
    %v3164 = vunpack.c.h.b16 %v2863
    %v3165 = vunpack.c.l.b16 %v2864
    %v3166 = vunpack.c.h.b16 %v2864
    %v3167 = vunpack.c.l.b16 %v2865
    %v3168 = vunpack.c.h.b16 %v2865
    %v3169 = vunpack.c.l.b16 %v2866
    %v3170 = vunpack.c.h.b16 %v2866
    %v3171 = vunpack.c.l.b16 %v2867
    %v3172 = vunpack.c.h.b16 %v2867
    %v3173 = vunpack.c.l.b16 %v2868
    %v3174 = vunpack.c.h.b16 %v2868
    %v3175 = vunpack.c.l.b16 %v2869
    %v3176 = vunpack.c.h.b16 %v2869
    %v3177 = vunpack.c.l.b16 %v2870
    %v3178 = vunpack.c.h.b16 %v2870
    %v3179 = vunpack.c.l.b16 %v2871
    %v3180 = vunpack.c.h.b16 %v2871
    %v3181 = vunpack.c.l.b16 %v2872
    %v3182 = vunpack.c.h.b16 %v2872
    %v3183 = vunpack.c.l.b16 %v2873
    %v3184 = vunpack.c.h.b16 %v2873
    %v3185 = vunpack.c.l.b16 %v2874
    %v3186 = vunpack.c.h.b16 %v2874
    %v3187 = vunpack.c.l.b16 %v2875
    %v3188 = vunpack.c.h.b16 %v2875
    %v3189 = vunpack.c.l.b16 %v2876
    %v3190 = vunpack.c.h.b16 %v2876
    %v3191 = vunpack.c.l.b16 %v2877
    %v3192 = vunpack.c.h.b16 %v2877
    %v3193 = vunpack.c.l.b16 %v2878
    %v3194 = vunpack.c.h.b16 %v2878
    %v3195 = vunpack.c.l.b16 %v2879
    %v3196 = vunpack.c.h.b16 %v2879
    %v3197 = vunpack.c.l.b16 %v2880
    %v3198 = vunpack.c.h.b16 %v2880
    %v3199 = vunpack.c.l.b16 %v2881
    %v3200 = vunpack.c.h.b16 %v2881
    %v3201 = vunpack.c.l.b16 %v2882
    %v3202 = vunpack.c.h.b16 %v2882
    %v3203 = vunpack.c.l.b16 %v2883
    %v3204 = vunpack.c.h.b16 %v2883
    %v3205 = vunpack.c.l.b16 %v2884
    %v3206 = vunpack.c.h.b16 %v2884
    %v3207 = vunpack.c.l.b16 %v2885
    %v3208 = vunpack.c.h.b16 %v2885
    %v3209 = vunpack.c.l.b16 %v2886
    %v3210 = vunpack.c.h.b16 %v2886
    %v3211 = vunpack.c.l.b16 %v2887
    %v3212 = vunpack.c.h.b16 %v2887
    %v3213 = vunpack.c.l.b16 %v2888
    %v3214 = vunpack.c.h.b16 %v2888
    %v3215 = vunpack.c.l.b16 %v2889
    %v3216 = vunpack.c.h.b16 %v2889
    %v3217 = vunpack.c.l.b16 %v2890
    %v3218 = vunpack.c.h.b16 %v2890
    %v3219 = vunpack.c.l.b16 %v2891
    %v3220 = vunpack.c.h.b16 %v2891
    %v3221 = vunpack.c.l.b16 %v2892
    %v3222 = vunpack.c.h.b16 %v2892
    %v3223 = vunpack.c.l.b16 %v2893
    %v3224 = vunpack.c.h.b16 %v2893
    %v3225 = vunpack.c.l.b16 %v2894
    %v3226 = vunpack.c.h.b16 %v2894
    %v3227 = vunpack.c.l.b16 %v2895
    %v3228 = vunpack.c.h.b16 %v2895
    %v3229 = vunpack.c.l.b16 %v2896
    %v3230 = vunpack.c.h.b16 %v2896
    %v3231 = vunpack.c.l.b16 %v2897
    %v3232 = vunpack.c.h.b16 %v2897
    %v3233 = vunpack.c.l.b16 %v2898
    %v3234 = vunpack.c.h.b16 %v2898
    %v3235 = vunpack.c.l.b16 %v2899
    %v3236 = vunpack.c.h.b16 %v2899
    %v3237 = vunpack.c.l.b16 %v2900
    %v3238 = vunpack.c.h.b16 %v2900
    %v3239 = vunpack.c.l.b16 %v2901
    %v3240 = vunpack.c.h.b16 %v2901
    %v3241 = vunpack.c.l.b16 %v2902
    %v3242 = vunpack.c.h.b16 %v2902
    %v3243 = vunpack.c.l.b16 %v2903
    %v3244 = vunpack.c.h.b16 %v2903
    %v3245 = vunpack.c.l.b16 %v2904
    %v3246 = vunpack.c.h.b16 %v2904
    %v3247 = vunpack.c.l.b16 %v2905
    %v3248 = vunpack.c.h.b16 %v2905
    %v3249 = vunpack.c.l.b16 %v2906
    %v3250 = vunpack.c.h.b16 %v2906
    %v3251 = vunpack.c.l.b16 %v2907
    %v3252 = vunpack.c.h.b16 %v2907
    %v3253 = vunpack.c.l.b16 %v2908
    %v3254 = vunpack.c.h.b16 %v2908
    %v3255 = vunpack.c.l.b16 %v2909
    %v3256 = vunpack.c.h.b16 %v2909
    %v3257 = vunpack.c.l.b16 %v2910
    %v3258 = vunpack.c.h.b16 %v2910
    %v3259 = vunpack.c.l.b16 %v2911
    %v3260 = vunpack.c.h.b16 %v2911
    %v3261 = vunpack.c.l.b16 %v2912
    %v3262 = vunpack.c.h.b16 %v2912
    %v3263 = vunpack.c.l.b16 %v2913
    %v3264 = vunpack.c.h.b16 %v2913
    %v3265 = vunpack.c.l.b16 %v2914
    %v3266 = vunpack.c.h.b16 %v2914
    %v3267 = vunpack.c.l.b16 %v2915
    %v3268 = vunpack.c.h.b16 %v2915
    %v3269 = vunpack.c.l.b16 %v2916
    %v3270 = vunpack.c.h.b16 %v2916
    %v3271 = vunpack.c.l.b16 %v2917
    %v3272 = vunpack.c.h.b16 %v2917
    %v3273 = vunpack.c.l.b16 %v2918
    %v3274 = vunpack.c.h.b16 %v2918
    %v3275 = vunpack.c.l.b16 %v2919
    %v3276 = vunpack.c.h.b16 %v2919
    %v3277 = vunpack.c.l.b16 %v2920
    %v3278 = vunpack.c.h.b16 %v2920
    %v3279 = vunpack.c.l.b16 %v2921
    %v3280 = vunpack.c.h.b16 %v2921
    %v3281 = vunpack.c.l.b16 %v2922
    %v3282 = vunpack.c.h.b16 %v2922
    %v3283 = vunpack.c.l.b16 %v2923
    %v3284 = vunpack.c.h.b16 %v2923
    %v3285 = vunpack.c.l.b16 %v2924
    %v3286 = vunpack.c.h.b16 %v2924
    %v3287 = vunpack.c.l.b16 %v2925
    %v3288 = vunpack.c.h.b16 %v2925
    %v3289 = vunpack.c.l.b16 %v2926
    %v3290 = vunpack.c.h.b16 %v2926
    %v3291 = vunpack.c.l.b16 %v2927
    %v3292 = vunpack.c.h.b16 %v2927
    %v3293 = vunpack.c.l.b16 %v2928
    %v3294 = vunpack.c.h.b16 %v2928
    %v3295 = vunpack.c.l.b16 %v2929
    %v3296 = vunpack.c.h.b16 %v2929
    %v3297 = vunpack.c.l.b16 %v2930
    %v3298 = vunpack.c.h.b16 %v2930
    %v3299 = vunpack.c.l.b16 %v2931
    %v3300 = vunpack.c.h.b16 %v2931
    %v3301 = vunpack.c.l.b16 %v2932
    %v3302 = vunpack.c.h.b16 %v2932
    %v3303 = vunpack.c.l.b16 %v2933
    %v3304 = vunpack.c.h.b16 %v2933
    %v3305 = vunpack.c.l.b16 %v2934
    %v3306 = vunpack.c.h.b16 %v2934
    %v3307 = vunpack.c.l.b16 %v2935
    %v3308 = vunpack.c.h.b16 %v2935
    %v3309 = vunpack.c.l.b16 %v2936
    %v3310 = vunpack.c.h.b16 %v2936
    %v3311 = vunpack.c.l.b16 %v2937
    %v3312 = vunpack.c.h.b16 %v2937
    %v3313 = vunpack.c.l.b16 %v2938
    %v3314 = vunpack.c.h.b16 %v2938
    %v3315 = vunpack.c.l.b16 %v2939
    %v3316 = vunpack.c.h.b16 %v2939
    %v3317 = vunpack.c.l.b16 %v2940
    %v3318 = vunpack.c.h.b16 %v2940
    %v3319 = vunpack.c.l.b16 %v2941
    %v3320 = vunpack.c.h.b16 %v2941
    %v3321 = vunpack.c.l.b16 %v2942
    %v3322 = vunpack.c.h.b16 %v2942
    %v3323 = vunpack.c.l.b16 %v2943
    %v3324 = vunpack.c.h.b16 %v2943
    %v3325 = vunpack.c.l.b16 %v2944
    %v3326 = vunpack.c.h.b16 %v2944
    %v3327 = vunpack.c.l.b16 %v2945
    %v3328 = vunpack.c.h.b16 %v2945
    %v3329 = vunpack.c.l.b16 %v2946
    %v3330 = vunpack.c.h.b16 %v2946
    %v3331 = vunpack.c.l.b16 %v2947
    %v3332 = vunpack.c.h.b16 %v2947
    %v3333 = vunpack.c.l.b16 %v2948
    %v3334 = vunpack.c.h.b16 %v2948
    %v3335 = vunpack.c.l.b16 %v2949
    %v3336 = vunpack.c.h.b16 %v2949
    %v3337 = vunpack.c.l.b16 %v2950
    %v3338 = vunpack.c.h.b16 %v2950
    %v3339 = vunpack.c.l.b16 %v2951
    %v3340 = vunpack.c.h.b16 %v2951
    %v3341 = vunpack.c.l.b16 %v2952
    %v3342 = vunpack.c.h.b16 %v2952
    %v3343 = vpack.c.b16 %v3089, %v3087
    %v3344 = vpack.c.b16 %v3090, %v3088
    %v3345 = vpack.c.b16 %v3093, %v3091
    %v3346 = vpack.c.b16 %v3094, %v3092
    %v3347 = vpack.c.b16 %v3097, %v3095
    %v3348 = vpack.c.b16 %v3098, %v3096
    %v3349 = vpack.c.b16 %v3101, %v3099
    %v3350 = vpack.c.b16 %v3102, %v3100
    %v3351 = vpack.c.b16 %v3105, %v3103
    %v3352 = vpack.c.b16 %v3106, %v3104
    %v3353 = vpack.c.b16 %v3109, %v3107
    %v3354 = vpack.c.b16 %v3110, %v3108
    %v3355 = vpack.c.b16 %v3113, %v3111
    %v3356 = vpack.c.b16 %v3114, %v3112
    %v3357 = vpack.c.b16 %v3117, %v3115
    %v3358 = vpack.c.b16 %v3118, %v3116
    %v3359 = vpack.c.b16 %v3121, %v3119
    %v3360 = vpack.c.b16 %v3122, %v3120
    %v3361 = vpack.c.b16 %v3125, %v3123
    %v3362 = vpack.c.b16 %v3126, %v3124
    %v3363 = vpack.c.b16 %v3129, %v3127
    %v3364 = vpack.c.b16 %v3130, %v3128
    %v3365 = vpack.c.b16 %v3133, %v3131
    %v3366 = vpack.c.b16 %v3134, %v3132
    %v3367 = vpack.c.b16 %v3137, %v3135
    %v3368 = vpack.c.b16 %v3138, %v3136
    %v3369 = vpack.c.b16 %v3141, %v3139
    %v3370 = vpack.c.b16 %v3142, %v3140
    %v3371 = vpack.c.b16 %v3145, %v3143
    %v3372 = vpack.c.b16 %v3146, %v3144
    %v3373 = vpack.c.b16 %v3149, %v3147
    %v3374 = vpack.c.b16 %v3150, %v3148
    %v3375 = vpack.c.b16 %v3153, %v3151
    %v3376 = vpack.c.b16 %v3154, %v3152
    %v3377 = vpack.c.b16 %v3157, %v3155
    %v3378 = vpack.c.b16 %v3158, %v3156
    %v3379 = vpack.c.b16 %v3161, %v3159
    %v3380 = vpack.c.b16 %v3162, %v3160
    %v3381 = vpack.c.b16 %v3165, %v3163
    %v3382 = vpack.c.b16 %v3166, %v3164
    %v3383 = vpack.c.b16 %v3169, %v3167
    %v3384 = vpack.c.b16 %v3170, %v3168
    %v3385 = vpack.c.b16 %v3173, %v3171
    %v3386 = vpack.c.b16 %v3174, %v3172
    %v3387 = vpack.c.b16 %v3177, %v3175
    %v3388 = vpack.c.b16 %v3178, %v3176
    %v3389 = vpack.c.b16 %v3181, %v3179
    %v3390 = vpack.c.b16 %v3182, %v3180
    %v3391 = vpack.c.b16 %v3185, %v3183
    %v3392 = vpack.c.b16 %v3186, %v3184
    %v3393 = vpack.c.b16 %v3189, %v3187
    %v3394 = vpack.c.b16 %v3190, %v3188
    %v3395 = vpack.c.b16 %v3193, %v3191
    %v3396 = vpack.c.b16 %v3194, %v3192
    %v3397 = vpack.c.b16 %v3197, %v3195
    %v3398 = vpack.c.b16 %v3198, %v3196
    %v3399 = vpack.c.b16 %v3201, %v3199
    %v3400 = vpack.c.b16 %v3202, %v3200
    %v3401 = vpack.c.b16 %v3205, %v3203
    %v3402 = vpack.c.b16 %v3206, %v3204
    %v3403 = vpack.c.b16 %v3209, %v3207
    %v3404 = vpack.c.b16 %v3210, %v3208
    %v3405 = vpack.c.b16 %v3213, %v3211
    %v3406 = vpack.c.b16 %v3214, %v3212
    %v3407 = vpack.c.b16 %v3217, %v3215
    %v3408 = vpack.c.b16 %v3218, %v3216
    %v3409 = vpack.c.b16 %v3221, %v3219
    %v3410 = vpack.c.b16 %v3222, %v3220
    %v3411 = vpack.c.b16 %v3225, %v3223
    %v3412 = vpack.c.b16 %v3226, %v3224
    %v3413 = vpack.c.b16 %v3229, %v3227
    %v3414 = vpack.c.b16 %v3230, %v3228
    %v3415 = vpack.c.b16 %v3233, %v3231
    %v3416 = vpack.c.b16 %v3234, %v3232
    %v3417 = vpack.c.b16 %v3237, %v3235
    %v3418 = vpack.c.b16 %v3238, %v3236
    %v3419 = vpack.c.b16 %v3241, %v3239
    %v3420 = vpack.c.b16 %v3242, %v3240
    %v3421 = vpack.c.b16 %v3245, %v3243
    %v3422 = vpack.c.b16 %v3246, %v3244
    %v3423 = vpack.c.b16 %v3249, %v3247
    %v3424 = vpack.c.b16 %v3250, %v3248
    %v3425 = vpack.c.b16 %v3253, %v3251
    %v3426 = vpack.c.b16 %v3254, %v3252
    %v3427 = vpack.c.b16 %v3257, %v3255
    %v3428 = vpack.c.b16 %v3258, %v3256
    %v3429 = vpack.c.b16 %v3261, %v3259
    %v3430 = vpack.c.b16 %v3262, %v3260
    %v3431 = vpack.c.b16 %v3265, %v3263
    %v3432 = vpack.c.b16 %v3266, %v3264
    %v3433 = vpack.c.b16 %v3269, %v3267
    %v3434 = vpack.c.b16 %v3270, %v3268
    %v3435 = vpack.c.b16 %v3273, %v3271
    %v3436 = vpack.c.b16 %v3274, %v3272
    %v3437 = vpack.c.b16 %v3277, %v3275
    %v3438 = vpack.c.b16 %v3278, %v3276
    %v3439 = vpack.c.b16 %v3281, %v3279
    %v3440 = vpack.c.b16 %v3282, %v3280
    %v3441 = vpack.c.b16 %v3285, %v3283
    %v3442 = vpack.c.b16 %v3286, %v3284
    %v3443 = vpack.c.b16 %v3289, %v3287
    %v3444 = vpack.c.b16 %v3290, %v3288
    %v3445 = vpack.c.b16 %v3293, %v3291
    %v3446 = vpack.c.b16 %v3294, %v3292
    %v3447 = vpack.c.b16 %v3297, %v3295
    %v3448 = vpack.c.b16 %v3298, %v3296
    %v3449 = vpack.c.b16 %v3301, %v3299
    %v3450 = vpack.c.b16 %v3302, %v3300
    %v3451 = vpack.c.b16 %v3305, %v3303
    %v3452 = vpack.c.b16 %v3306, %v3304
    %v3453 = vpack.c.b16 %v3309, %v3307
    %v3454 = vpack.c.b16 %v3310, %v3308
    %v3455 = vpack.c.b16 %v3313, %v3311
    %v3456 = vpack.c.b16 %v3314, %v3312
    %v3457 = vpack.c.b16 %v3317, %v3315
    %v3458 = vpack.c.b16 %v3318, %v3316
    %v3459 = vpack.c.b16 %v3321, %v3319
    %v3460 = vpack.c.b16 %v3322, %v3320
    %v3461 = vpack.c.b16 %v3325, %v3323
    %v3462 = vpack.c.b16 %v3326, %v3324
    %v3463 = vpack.c.b16 %v3329, %v3327
    %v3464 = vpack.c.b16 %v3330, %v3328
    %v3465 = vpack.c.b16 %v3333, %v3331
    %v3466 = vpack.c.b16 %v3334, %v3332
    %v3467 = vpack.c.b16 %v3337, %v3335
    %v3468 = vpack.c.b16 %v3338, %v3336
    %v3469 = vpack.c.b16 %v3341, %v3339
    %v3470 = vpack.c.b16 %v3342, %v3340
    %3599 = vmatpush.bf16.msra.mxu0 %v3357
    %3600 = vmatpush.bf16.msra.mxu0 %v3355
    %3601 = vmatpush.bf16.msra.mxu0 %v3353
    %3602 = vmatpush.bf16.msra.mxu0 %v3351
    %3603 = vmatpush.bf16.msra.mxu0 %v3349
    %3604 = vmatpush.bf16.msra.mxu0 %v3347
    %3605 = vmatpush.bf16.msra.mxu0 %v3345
    %3606 = vmatpush.bf16.msra.mxu0 %v3343
    %3607 = vmatmul.bf16.gmra.mxu0 %v2817
    %v3608 = vpop.f32.mrf.mxu0
    %v3609 = vadd.f32 %v2955, %v3608
    %v3610 = vpop.f32.mrf.mxu0
    %v3611 = vadd.f32 %v2955, %v3610
    %3612 = vdwg.mxu0
    %3613 = vmatpush.bf16.msra.mxu0 %v3373
    %3614 = vmatpush.bf16.msra.mxu0 %v3371
    %3615 = vmatpush.bf16.msra.mxu0 %v3369
    %3616 = vmatpush.bf16.msra.mxu0 %v3367
    %3617 = vmatpush.bf16.msra.mxu0 %v3365
    %3618 = vmatpush.bf16.msra.mxu0 %v3363
    %3619 = vmatpush.bf16.msra.mxu0 %v3361
    %3620 = vmatpush.bf16.msra.mxu0 %v3359
    %3621 = vmatmul.bf16.gmra.mxu0 %v2818
    %v3622 = vpop.f32.mrf.mxu0
    %v3623 = vadd.f32 %v3609, %v3622
    %v3624 = vpop.f32.mrf.mxu0
    %v3625 = vadd.f32 %v3611, %v3624
    %3626 = vdwg.mxu0
    %3627 = vmatpush.bf16.msra.mxu0 %v3389
    %3628 = vmatpush.bf16.msra.mxu0 %v3387
    %3629 = vmatpush.bf16.msra.mxu0 %v3385
    %3630 = vmatpush.bf16.msra.mxu0 %v3383
    %3631 = vmatpush.bf16.msra.mxu0 %v3381
    %3632 = vmatpush.bf16.msra.mxu0 %v3379
    %3633 = vmatpush.bf16.msra.mxu0 %v3377
    %3634 = vmatpush.bf16.msra.mxu0 %v3375
    %3635 = vmatmul.bf16.gmra.mxu0 %v2819
    %v3636 = vpop.f32.mrf.mxu0
    %v3637 = vadd.f32 %v3623, %v3636
    %v3638 = vpop.f32.mrf.mxu0
    %v3639 = vadd.f32 %v3625, %v3638
    %3640 = vdwg.mxu0
    %3641 = vmatpush.bf16.msra.mxu0 %v3405
    %3642 = vmatpush.bf16.msra.mxu0 %v3403
    %3643 = vmatpush.bf16.msra.mxu0 %v3401
    %3644 = vmatpush.bf16.msra.mxu0 %v3399
    %3645 = vmatpush.bf16.msra.mxu0 %v3397
    %3646 = vmatpush.bf16.msra.mxu0 %v3395
    %3647 = vmatpush.bf16.msra.mxu0 %v3393
    %3648 = vmatpush.bf16.msra.mxu0 %v3391
    %3649 = vmatmul.bf16.gmra.mxu0 %v2820
    %v3650 = vpop.f32.mrf.mxu0
    %v3651 = vadd.f32 %v3637, %v3650
    %v3652 = vpop.f32.mrf.mxu0
    %v3653 = vadd.f32 %v3639, %v3652
    %3654 = vdwg.mxu0
    %3655 = vmatpush.bf16.msra.mxu0 %v3421
    %3656 = vmatpush.bf16.msra.mxu0 %v3419
    %3657 = vmatpush.bf16.msra.mxu0 %v3417
    %3658 = vmatpush.bf16.msra.mxu0 %v3415
    %3659 = vmatpush.bf16.msra.mxu0 %v3413
    %3660 = vmatpush.bf16.msra.mxu0 %v3411
    %3661 = vmatpush.bf16.msra.mxu0 %v3409
    %3662 = vmatpush.bf16.msra.mxu0 %v3407
    %3663 = vmatmul.bf16.gmra.mxu0 %v2821
    %v3664 = vpop.f32.mrf.mxu0
    %v3665 = vadd.f32 %v3651, %v3664
    %v3666 = vpop.f32.mrf.mxu0
    %v3667 = vadd.f32 %v3653, %v3666
    %3668 = vdwg.mxu0
    %3669 = vmatpush.bf16.msra.mxu0 %v3437
    %3670 = vmatpush.bf16.msra.mxu0 %v3435
    %3671 = vmatpush.bf16.msra.mxu0 %v3433
    %3672 = vmatpush.bf16.msra.mxu0 %v3431
    %3673 = vmatpush.bf16.msra.mxu0 %v3429
    %3674 = vmatpush.bf16.msra.mxu0 %v3427
    %3675 = vmatpush.bf16.msra.mxu0 %v3425
    %3676 = vmatpush.bf16.msra.mxu0 %v3423
    %3677 = vmatmul.bf16.gmra.mxu0 %v2822
    %v3678 = vpop.f32.mrf.mxu0
    %v3679 = vadd.f32 %v3665, %v3678
    %v3680 = vpop.f32.mrf.mxu0
    %v3681 = vadd.f32 %v3667, %v3680
    %3682 = vdwg.mxu0
    %3683 = vmatpush.bf16.msra.mxu0 %v3453
    %3684 = vmatpush.bf16.msra.mxu0 %v3451
    %3685 = vmatpush.bf16.msra.mxu0 %v3449
    %3686 = vmatpush.bf16.msra.mxu0 %v3447
    %3687 = vmatpush.bf16.msra.mxu0 %v3445
    %3688 = vmatpush.bf16.msra.mxu0 %v3443
    %3689 = vmatpush.bf16.msra.mxu0 %v3441
    %3690 = vmatpush.bf16.msra.mxu0 %v3439
    %3691 = vmatmul.bf16.gmra.mxu0 %v2823
    %v3692 = vpop.f32.mrf.mxu0
    %v3693 = vadd.f32 %v3679, %v3692
    %v3694 = vpop.f32.mrf.mxu0
    %v3695 = vadd.f32 %v3681, %v3694
    %3696 = vdwg.mxu0
    %3697 = vmatpush.bf16.msra.mxu0 %v3469
    %3698 = vmatpush.bf16.msra.mxu0 %v3467
    %3699 = vmatpush.bf16.msra.mxu0 %v3465
    %3700 = vmatpush.bf16.msra.mxu0 %v3463
    %3701 = vmatpush.bf16.msra.mxu0 %v3461
    %3702 = vmatpush.bf16.msra.mxu0 %v3459
    %3703 = vmatpush.bf16.msra.mxu0 %v3457
    %3704 = vmatpush.bf16.msra.mxu0 %v3455
    %3705 = vmatmul.bf16.gmra.mxu0 %v2824
    %v3706 = vpop.f32.mrf.mxu0
    %v3707 = vadd.f32 %v3693, %v3706
    %v3708 = vpop.f32.mrf.mxu0
    %v3709 = vadd.f32 %v3695, %v3708
    %3710 = vdwg.mxu0
    %3711 = vmatpush.bf16.msra.mxu0 %v3358
    %3712 = vmatpush.bf16.msra.mxu0 %v3356
    %3713 = vmatpush.bf16.msra.mxu0 %v3354
    %3714 = vmatpush.bf16.msra.mxu0 %v3352
    %3715 = vmatpush.bf16.msra.mxu0 %v3350
    %3716 = vmatpush.bf16.msra.mxu0 %v3348
    %3717 = vmatpush.bf16.msra.mxu0 %v3346
    %3718 = vmatpush.bf16.msra.mxu0 %v3344
    %3719 = vmatmul.bf16.gmra.mxu0 %v2817
    %v3720 = vpop.f32.mrf.mxu0
    %v3721 = vadd.f32 %v2956, %v3720
    %v3722 = vpop.f32.mrf.mxu0
    %v3723 = vadd.f32 %v2956, %v3722
    %3724 = vdwg.mxu0
    %3725 = vmatpush.bf16.msra.mxu0 %v3374
    %3726 = vmatpush.bf16.msra.mxu0 %v3372
    %3727 = vmatpush.bf16.msra.mxu0 %v3370
    %3728 = vmatpush.bf16.msra.mxu0 %v3368
    %3729 = vmatpush.bf16.msra.mxu0 %v3366
    %3730 = vmatpush.bf16.msra.mxu0 %v3364
    %3731 = vmatpush.bf16.msra.mxu0 %v3362
    %3732 = vmatpush.bf16.msra.mxu0 %v3360
    %3733 = vmatmul.bf16.gmra.mxu0 %v2818
    %v3734 = vpop.f32.mrf.mxu0
    %v3735 = vadd.f32 %v3721, %v3734
    %v3736 = vpop.f32.mrf.mxu0
    %v3737 = vadd.f32 %v3723, %v3736
    %3738 = vdwg.mxu0
    %3739 = vmatpush.bf16.msra.mxu0 %v3390
    %3740 = vmatpush.bf16.msra.mxu0 %v3388
    %3741 = vmatpush.bf16.msra.mxu0 %v3386
    %3742 = vmatpush.bf16.msra.mxu0 %v3384
    %3743 = vmatpush.bf16.msra.mxu0 %v3382
    %3744 = vmatpush.bf16.msra.mxu0 %v3380
    %3745 = vmatpush.bf16.msra.mxu0 %v3378
    %3746 = vmatpush.bf16.msra.mxu0 %v3376
    %3747 = vmatmul.bf16.gmra.mxu0 %v2819
    %v3748 = vpop.f32.mrf.mxu0
    %v3749 = vadd.f32 %v3735, %v3748
    %v3750 = vpop.f32.mrf.mxu0
    %v3751 = vadd.f32 %v3737, %v3750
    %3752 = vdwg.mxu0
    %3753 = vmatpush.bf16.msra.mxu0 %v3406
    %3754 = vmatpush.bf16.msra.mxu0 %v3404
    %3755 = vmatpush.bf16.msra.mxu0 %v3402
    %3756 = vmatpush.bf16.msra.mxu0 %v3400
    %3757 = vmatpush.bf16.msra.mxu0 %v3398
    %3758 = vmatpush.bf16.msra.mxu0 %v3396
    %3759 = vmatpush.bf16.msra.mxu0 %v3394
    %3760 = vmatpush.bf16.msra.mxu0 %v3392
    %3761 = vmatmul.bf16.gmra.mxu0 %v2820
    %v3762 = vpop.f32.mrf.mxu0
    %v3763 = vadd.f32 %v3749, %v3762
    %v3764 = vpop.f32.mrf.mxu0
    %v3765 = vadd.f32 %v3751, %v3764
    %3766 = vdwg.mxu0
    %3767 = vmatpush.bf16.msra.mxu0 %v3422
    %3768 = vmatpush.bf16.msra.mxu0 %v3420
    %3769 = vmatpush.bf16.msra.mxu0 %v3418
    %3770 = vmatpush.bf16.msra.mxu0 %v3416
    %3771 = vmatpush.bf16.msra.mxu0 %v3414
    %3772 = vmatpush.bf16.msra.mxu0 %v3412
    %3773 = vmatpush.bf16.msra.mxu0 %v3410
    %3774 = vmatpush.bf16.msra.mxu0 %v3408
    %3775 = vmatmul.bf16.gmra.mxu0 %v2821
    %v3776 = vpop.f32.mrf.mxu0
    %v3777 = vadd.f32 %v3763, %v3776
    %v3778 = vpop.f32.mrf.mxu0
    %v3779 = vadd.f32 %v3765, %v3778
    %3780 = vdwg.mxu0
    %3781 = vmatpush.bf16.msra.mxu0 %v3438
    %3782 = vmatpush.bf16.msra.mxu0 %v3436
    %3783 = vmatpush.bf16.msra.mxu0 %v3434
    %3784 = vmatpush.bf16.msra.mxu0 %v3432
    %3785 = vmatpush.bf16.msra.mxu0 %v3430
    %3786 = vmatpush.bf16.msra.mxu0 %v3428
    %3787 = vmatpush.bf16.msra.mxu0 %v3426
    %3788 = vmatpush.bf16.msra.mxu0 %v3424
    %3789 = vmatmul.bf16.gmra.mxu0 %v2822
    %v3790 = vpop.f32.mrf.mxu0
    %v3791 = vadd.f32 %v3777, %v3790
    %v3792 = vpop.f32.mrf.mxu0
    %v3793 = vadd.f32 %v3779, %v3792
    %3794 = vdwg.mxu0
    %3795 = vmatpush.bf16.msra.mxu0 %v3454
    %3796 = vmatpush.bf16.msra.mxu0 %v3452
    %3797 = vmatpush.bf16.msra.mxu0 %v3450
    %3798 = vmatpush.bf16.msra.mxu0 %v3448
    %3799 = vmatpush.bf16.msra.mxu0 %v3446
    %3800 = vmatpush.bf16.msra.mxu0 %v3444
    %3801 = vmatpush.bf16.msra.mxu0 %v3442
    %3802 = vmatpush.bf16.msra.mxu0 %v3440
    %3803 = vmatmul.bf16.gmra.mxu0 %v2823
    %v3804 = vpop.f32.mrf.mxu0
    %v3805 = vadd.f32 %v3791, %v3804
    %v3806 = vpop.f32.mrf.mxu0
    %v3807 = vadd.f32 %v3793, %v3806
    %3808 = vdwg.mxu0
    %3809 = vmatpush.bf16.msra.mxu0 %v3470
    %3810 = vmatpush.bf16.msra.mxu0 %v3468
    %3811 = vmatpush.bf16.msra.mxu0 %v3466
    %3812 = vmatpush.bf16.msra.mxu0 %v3464
    %3813 = vmatpush.bf16.msra.mxu0 %v3462
    %3814 = vmatpush.bf16.msra.mxu0 %v3460
    %3815 = vmatpush.bf16.msra.mxu0 %v3458
    %3816 = vmatpush.bf16.msra.mxu0 %v3456
    %3817 = vmatmul.bf16.gmra.mxu0 %v2824
    %v3818 = vpop.f32.mrf.mxu0
    %v3819 = vadd.f32 %v3805, %v3818
    %v3820 = vpop.f32.mrf.mxu0
    %v3821 = vadd.f32 %v3807, %v3820
    %3822 = vdwg.mxu0
    %v3823 = vadd.f32 %v1657, %v3707
    %v3824 = vadd.f32 %v1658, %v3819
    %v3825 = vadd.f32 %v1659, %v3709
    %v3826 = vadd.f32 %v1660, %v3821
    %v3827 = vld [vmem:[%s16] sm:$0x3]
    %v3828 = vld [vmem:[%s17] sm:$0x3]
    %v3829 = vadd.f32 %v3823, %v3824
    %3830 = vadd.xlane.f32.xlu0 %v3829
    %v3831 = vpop.xlane.xlu0 %3830
    %v3832 = vadd.f32 %v3825, %v3826
    %3833 = vadd.xlane.f32.xlu0 %v3832
    %v3834 = vpop.xlane.xlu0 %3833
    %v3835 = vmul.f32 %v3831, %v293
    %v3836 = vmul.f32 %v3834, %v293
    %v3837 = vsub.f32 %v3823, %v3835
    %v3838 = vsub.f32 %v3824, %v3835
    %v3839 = vsub.f32 %v3825, %v3836
    %v3840 = vsub.f32 %v3826, %v3836
    %v3841 = vmul.f32 %v3837, %v3837
    %v3842 = vmul.f32 %v3838, %v3838
    %v3843 = vmul.f32 %v3839, %v3839
    %v3844 = vmul.f32 %v3840, %v3840
    %v3845 = vadd.f32 %v3841, %v3842
    %3846 = vadd.xlane.f32.xlu0 %v3845
    %v3847 = vpop.xlane.xlu0 %3846
    %v3848 = vadd.f32 %v3843, %v3844
    %3849 = vadd.xlane.f32.xlu0 %v3848
    %v3850 = vpop.xlane.xlu0 %3849
    %v3851 = vmul.f32 %v3847, %v293
    %v3852 = vmul.f32 %v3850, %v293
    %v3853 = vadd.f32 %v3851, 1e-12
    %v3854 = vadd.f32 %v3852, 1e-12
    %v3855 = vrsqrt.pop %v3853
    %v3856 = vmul.f32 %v3855, %v3853
    %v3857 = vmul.f32 %v3856, %v3855
    %v3858 = vmul.f32 0.5, %v3857
    %v3859 = vsub.f32 1.5, %v3858
    %v3860 = vmul.f32 %v3855, %v3859
    %vm3861 = vweird.f32 %v3853
    %vm3862 = vweird.f32 %v3855
    %vm3863 = vmor %vm3861, %vm3862
    %v3864 = vsel %vm3863, %v3855, %v3860
    %v3865 = vrsqrt.pop %v3854
    %v3866 = vmul.f32 %v3865, %v3854
    %v3867 = vmul.f32 %v3866, %v3865
    %v3868 = vmul.f32 0.5, %v3867
    %v3869 = vsub.f32 1.5, %v3868
    %v3870 = vmul.f32 %v3865, %v3869
    %vm3871 = vweird.f32 %v3854
    %vm3872 = vweird.f32 %v3865
    %vm3873 = vmor %vm3871, %vm3872
    %v3874 = vsel %vm3873, %v3865, %v3870
    %v3875 = vmul.f32 %v3837, %v3864
    %v3876 = vmul.f32 %v3838, %v3864
    %v3877 = vmul.f32 %v3839, %v3874
    %v3878 = vmul.f32 %v3840, %v3874
    %v3880 = vperm.slane %v3827, 0
    %v3881 = vperm.slane %v3827, 1
    %v3884 = vmul.f32 %v3875, %v3880
    %v3885 = vmul.f32 %v3876, %v3881
    %v3886 = vmul.f32 %v3877, %v3880
    %v3887 = vmul.f32 %v3878, %v3881
    %v3889 = vperm.slane %v3828, 0
    %v3890 = vperm.slane %v3828, 1
    %v3893 = vadd.f32 %v3884, %v3889
    %v3894 = vadd.f32 %v3885, %v3890
    %v3895 = vadd.f32 %v3886, %v3889
    %v3896 = vadd.f32 %v3887, %v3890
    %v3897 = vpack.c.bf16 %v3895, %v3893
    %v3898 = vpack.c.bf16 %v3896, %v3894
    %s3899 = scalar_lea.vmem [#allocation5], 768
    %v3900 = vld [vmem:[%s3899] sm:$0xff]
    %v3901 = vld [vmem:[%s3899 + $0x8] sm:$0xff]
    %v3902 = vld [vmem:[%s3899 + $0x10] sm:$0xff]
    %v3903 = vld [vmem:[%s3899 + $0x18] sm:$0xff]
    %v3904 = vld [vmem:[%s3899 + $0x20] sm:$0xff]
    %v3905 = vld [vmem:[%s3899 + $0x28] sm:$0xff]
    %v3906 = vld [vmem:[%s3899 + $0x30] sm:$0xff]
    %v3907 = vld [vmem:[%s3899 + $0x38] sm:$0xff]
    %v3908 = vld [vmem:[%s3899 + $0x40] sm:$0xff]
    %v3909 = vld [vmem:[%s3899 + $0x48] sm:$0xff]
    %v3910 = vld [vmem:[%s3899 + $0x50] sm:$0xff]
    %v3911 = vld [vmem:[%s3899 + $0x58] sm:$0xff]
    %v3912 = vld [vmem:[%s3899 + $0x60] sm:$0xff]
    %v3913 = vld [vmem:[%s3899 + $0x68] sm:$0xff]
    %v3914 = vld [vmem:[%s3899 + $0x70] sm:$0xff]
    %v3915 = vld [vmem:[%s3899 + $0x78] sm:$0xff]
    %v3916 = vld [vmem:[%s3899 + $0x80] sm:$0xff]
    %v3917 = vld [vmem:[%s3899 + $0x88] sm:$0xff]
    %v3918 = vld [vmem:[%s3899 + $0x90] sm:$0xff]
    %v3919 = vld [vmem:[%s3899 + $0x98] sm:$0xff]
    %v3920 = vld [vmem:[%s3899 + $0xa0] sm:$0xff]
    %v3921 = vld [vmem:[%s3899 + $0xa8] sm:$0xff]
    %v3922 = vld [vmem:[%s3899 + $0xb0] sm:$0xff]
    %v3923 = vld [vmem:[%s3899 + $0xb8] sm:$0xff]
    %v3924 = vld [vmem:[%s3899 + $0xc0] sm:$0xff]
    %v3925 = vld [vmem:[%s3899 + $0xc8] sm:$0xff]
    %v3926 = vld [vmem:[%s3899 + $0xd0] sm:$0xff]
    %v3927 = vld [vmem:[%s3899 + $0xd8] sm:$0xff]
    %v3928 = vld [vmem:[%s3899 + $0xe0] sm:$0xff]
    %v3929 = vld [vmem:[%s3899 + $0xe8] sm:$0xff]
    %v3930 = vld [vmem:[%s3899 + $0xf0] sm:$0xff]
    %v3931 = vld [vmem:[%s3899 + $0xf8] sm:$0xff]
    %v3932 = vld [vmem:[%s3899 + $0x100] sm:$0xff]
    %v3933 = vld [vmem:[%s3899 + $0x108] sm:$0xff]
    %v3934 = vld [vmem:[%s3899 + $0x110] sm:$0xff]
    %v3935 = vld [vmem:[%s3899 + $0x118] sm:$0xff]
    %v3936 = vld [vmem:[%s3899 + $0x120] sm:$0xff]
    %v3937 = vld [vmem:[%s3899 + $0x128] sm:$0xff]
    %v3938 = vld [vmem:[%s3899 + $0x130] sm:$0xff]
    %v3939 = vld [vmem:[%s3899 + $0x138] sm:$0xff]
    %v3940 = vld [vmem:[%s3899 + $0x140] sm:$0xff]
    %v3941 = vld [vmem:[%s3899 + $0x148] sm:$0xff]
    %v3942 = vld [vmem:[%s3899 + $0x150] sm:$0xff]
    %v3943 = vld [vmem:[%s3899 + $0x158] sm:$0xff]
    %v3944 = vld [vmem:[%s3899 + $0x160] sm:$0xff]
    %v3945 = vld [vmem:[%s3899 + $0x168] sm:$0xff]
    %v3946 = vld [vmem:[%s3899 + $0x170] sm:$0xff]
    %v3947 = vld [vmem:[%s3899 + $0x178] sm:$0xff]
    %v3948 = vld [vmem:[%s3899 + $0x180] sm:$0xff]
    %v3949 = vld [vmem:[%s3899 + $0x188] sm:$0xff]
    %v3950 = vld [vmem:[%s3899 + $0x190] sm:$0xff]
    %v3951 = vld [vmem:[%s3899 + $0x198] sm:$0xff]
    %v3952 = vld [vmem:[%s3899 + $0x1a0] sm:$0xff]
    %v3953 = vld [vmem:[%s3899 + $0x1a8] sm:$0xff]
    %v3954 = vld [vmem:[%s3899 + $0x1b0] sm:$0xff]
    %v3955 = vld [vmem:[%s3899 + $0x1b8] sm:$0xff]
    %v3956 = vld [vmem:[%s3899 + $0x1c0] sm:$0xff]
    %v3957 = vld [vmem:[%s3899 + $0x1c8] sm:$0xff]
    %v3958 = vld [vmem:[%s3899 + $0x1d0] sm:$0xff]
    %v3959 = vld [vmem:[%s3899 + $0x1d8] sm:$0xff]
    %v3960 = vld [vmem:[%s3899 + $0x1e0] sm:$0xff]
    %v3961 = vld [vmem:[%s3899 + $0x1e8] sm:$0xff]
    %v3962 = vld [vmem:[%s3899 + $0x1f0] sm:$0xff]
    %v3963 = vld [vmem:[%s3899 + $0x1f8] sm:$0xff]
    %v3964 = vld [vmem:[%s3899 + $0x200] sm:$0xff]
    %v3965 = vld [vmem:[%s3899 + $0x208] sm:$0xff]
    %v3966 = vld [vmem:[%s3899 + $0x210] sm:$0xff]
    %v3967 = vld [vmem:[%s3899 + $0x218] sm:$0xff]
    %v3968 = vld [vmem:[%s3899 + $0x220] sm:$0xff]
    %v3969 = vld [vmem:[%s3899 + $0x228] sm:$0xff]
    %v3970 = vld [vmem:[%s3899 + $0x230] sm:$0xff]
    %v3971 = vld [vmem:[%s3899 + $0x238] sm:$0xff]
    %v3972 = vld [vmem:[%s3899 + $0x240] sm:$0xff]
    %v3973 = vld [vmem:[%s3899 + $0x248] sm:$0xff]
    %v3974 = vld [vmem:[%s3899 + $0x250] sm:$0xff]
    %v3975 = vld [vmem:[%s3899 + $0x258] sm:$0xff]
    %v3976 = vld [vmem:[%s3899 + $0x260] sm:$0xff]
    %v3977 = vld [vmem:[%s3899 + $0x268] sm:$0xff]
    %v3978 = vld [vmem:[%s3899 + $0x270] sm:$0xff]
    %v3979 = vld [vmem:[%s3899 + $0x278] sm:$0xff]
    %v3980 = vld [vmem:[%s3899 + $0x280] sm:$0xff]
    %v3981 = vld [vmem:[%s3899 + $0x288] sm:$0xff]
    %v3982 = vld [vmem:[%s3899 + $0x290] sm:$0xff]
    %v3983 = vld [vmem:[%s3899 + $0x298] sm:$0xff]
    %v3984 = vld [vmem:[%s3899 + $0x2a0] sm:$0xff]
    %v3985 = vld [vmem:[%s3899 + $0x2a8] sm:$0xff]
    %v3986 = vld [vmem:[%s3899 + $0x2b0] sm:$0xff]
    %v3987 = vld [vmem:[%s3899 + $0x2b8] sm:$0xff]
    %v3988 = vld [vmem:[%s3899 + $0x2c0] sm:$0xff]
    %v3989 = vld [vmem:[%s3899 + $0x2c8] sm:$0xff]
    %v3990 = vld [vmem:[%s3899 + $0x2d0] sm:$0xff]
    %v3991 = vld [vmem:[%s3899 + $0x2d8] sm:$0xff]
    %v3992 = vld [vmem:[%s3899 + $0x2e0] sm:$0xff]
    %v3993 = vld [vmem:[%s3899 + $0x2e8] sm:$0xff]
    %v3994 = vld [vmem:[%s3899 + $0x2f0] sm:$0xff]
    %v3995 = vld [vmem:[%s3899 + $0x2f8] sm:$0xff]
    %s3996 = scalar_lea.vmem %s7, 6
    %v3997 = vld [vmem:[%s3996] sm:$0x3f]
    %v3999 = vperm.slane %v3997, 0
    %v4000 = vperm.slane %v3997, 1
    %v4001 = vperm.slane %v3997, 2
    %v4002 = vperm.slane %v3997, 3
    %v4003 = vperm.slane %v3997, 4
    %v4004 = vperm.slane %v3997, 5
    %v4107 = vunpack.c.l.b16 %v3900
    %v4108 = vunpack.c.h.b16 %v3900
    %v4109 = vunpack.c.l.b16 %v3901
    %v4110 = vunpack.c.h.b16 %v3901
    %v4111 = vunpack.c.l.b16 %v3902
    %v4112 = vunpack.c.h.b16 %v3902
    %v4113 = vunpack.c.l.b16 %v3903
    %v4114 = vunpack.c.h.b16 %v3903
    %v4115 = vunpack.c.l.b16 %v3904
    %v4116 = vunpack.c.h.b16 %v3904
    %v4117 = vunpack.c.l.b16 %v3905
    %v4118 = vunpack.c.h.b16 %v3905
    %v4119 = vunpack.c.l.b16 %v3906
    %v4120 = vunpack.c.h.b16 %v3906
    %v4121 = vunpack.c.l.b16 %v3907
    %v4122 = vunpack.c.h.b16 %v3907
    %v4123 = vunpack.c.l.b16 %v3908
    %v4124 = vunpack.c.h.b16 %v3908
    %v4125 = vunpack.c.l.b16 %v3909
    %v4126 = vunpack.c.h.b16 %v3909
    %v4127 = vunpack.c.l.b16 %v3910
    %v4128 = vunpack.c.h.b16 %v3910
    %v4129 = vunpack.c.l.b16 %v3911
    %v4130 = vunpack.c.h.b16 %v3911
    %v4131 = vunpack.c.l.b16 %v3912
    %v4132 = vunpack.c.h.b16 %v3912
    %v4133 = vunpack.c.l.b16 %v3913
    %v4134 = vunpack.c.h.b16 %v3913
    %v4135 = vunpack.c.l.b16 %v3914
    %v4136 = vunpack.c.h.b16 %v3914
    %v4137 = vunpack.c.l.b16 %v3915
    %v4138 = vunpack.c.h.b16 %v3915
    %v4139 = vunpack.c.l.b16 %v3916
    %v4140 = vunpack.c.h.b16 %v3916
    %v4141 = vunpack.c.l.b16 %v3917
    %v4142 = vunpack.c.h.b16 %v3917
    %v4143 = vunpack.c.l.b16 %v3918
    %v4144 = vunpack.c.h.b16 %v3918
    %v4145 = vunpack.c.l.b16 %v3919
    %v4146 = vunpack.c.h.b16 %v3919
    %v4147 = vunpack.c.l.b16 %v3920
    %v4148 = vunpack.c.h.b16 %v3920
    %v4149 = vunpack.c.l.b16 %v3921
    %v4150 = vunpack.c.h.b16 %v3921
    %v4151 = vunpack.c.l.b16 %v3922
    %v4152 = vunpack.c.h.b16 %v3922
    %v4153 = vunpack.c.l.b16 %v3923
    %v4154 = vunpack.c.h.b16 %v3923
    %v4155 = vunpack.c.l.b16 %v3924
    %v4156 = vunpack.c.h.b16 %v3924
    %v4157 = vunpack.c.l.b16 %v3925
    %v4158 = vunpack.c.h.b16 %v3925
    %v4159 = vunpack.c.l.b16 %v3926
    %v4160 = vunpack.c.h.b16 %v3926
    %v4161 = vunpack.c.l.b16 %v3927
    %v4162 = vunpack.c.h.b16 %v3927
    %v4163 = vunpack.c.l.b16 %v3928
    %v4164 = vunpack.c.h.b16 %v3928
    %v4165 = vunpack.c.l.b16 %v3929
    %v4166 = vunpack.c.h.b16 %v3929
    %v4167 = vunpack.c.l.b16 %v3930
    %v4168 = vunpack.c.h.b16 %v3930
    %v4169 = vunpack.c.l.b16 %v3931
    %v4170 = vunpack.c.h.b16 %v3931
    %v4171 = vunpack.c.l.b16 %v3932
    %v4172 = vunpack.c.h.b16 %v3932
    %v4173 = vunpack.c.l.b16 %v3933
    %v4174 = vunpack.c.h.b16 %v3933
    %v4175 = vunpack.c.l.b16 %v3934
    %v4176 = vunpack.c.h.b16 %v3934
    %v4177 = vunpack.c.l.b16 %v3935
    %v4178 = vunpack.c.h.b16 %v3935
    %v4179 = vunpack.c.l.b16 %v3936
    %v4180 = vunpack.c.h.b16 %v3936
    %v4181 = vunpack.c.l.b16 %v3937
    %v4182 = vunpack.c.h.b16 %v3937
    %v4183 = vunpack.c.l.b16 %v3938
    %v4184 = vunpack.c.h.b16 %v3938
    %v4185 = vunpack.c.l.b16 %v3939
    %v4186 = vunpack.c.h.b16 %v3939
    %v4187 = vunpack.c.l.b16 %v3940
    %v4188 = vunpack.c.h.b16 %v3940
    %v4189 = vunpack.c.l.b16 %v3941
    %v4190 = vunpack.c.h.b16 %v3941
    %v4191 = vunpack.c.l.b16 %v3942
    %v4192 = vunpack.c.h.b16 %v3942
    %v4193 = vunpack.c.l.b16 %v3943
    %v4194 = vunpack.c.h.b16 %v3943
    %v4195 = vunpack.c.l.b16 %v3944
    %v4196 = vunpack.c.h.b16 %v3944
    %v4197 = vunpack.c.l.b16 %v3945
    %v4198 = vunpack.c.h.b16 %v3945
    %v4199 = vunpack.c.l.b16 %v3946
    %v4200 = vunpack.c.h.b16 %v3946
    %v4201 = vunpack.c.l.b16 %v3947
    %v4202 = vunpack.c.h.b16 %v3947
    %v4203 = vunpack.c.l.b16 %v3948
    %v4204 = vunpack.c.h.b16 %v3948
    %v4205 = vunpack.c.l.b16 %v3949
    %v4206 = vunpack.c.h.b16 %v3949
    %v4207 = vunpack.c.l.b16 %v3950
    %v4208 = vunpack.c.h.b16 %v3950
    %v4209 = vunpack.c.l.b16 %v3951
    %v4210 = vunpack.c.h.b16 %v3951
    %v4211 = vunpack.c.l.b16 %v3952
    %v4212 = vunpack.c.h.b16 %v3952
    %v4213 = vunpack.c.l.b16 %v3953
    %v4214 = vunpack.c.h.b16 %v3953
    %v4215 = vunpack.c.l.b16 %v3954
    %v4216 = vunpack.c.h.b16 %v3954
    %v4217 = vunpack.c.l.b16 %v3955
    %v4218 = vunpack.c.h.b16 %v3955
    %v4219 = vunpack.c.l.b16 %v3956
    %v4220 = vunpack.c.h.b16 %v3956
    %v4221 = vunpack.c.l.b16 %v3957
    %v4222 = vunpack.c.h.b16 %v3957
    %v4223 = vunpack.c.l.b16 %v3958
    %v4224 = vunpack.c.h.b16 %v3958
    %v4225 = vunpack.c.l.b16 %v3959
    %v4226 = vunpack.c.h.b16 %v3959
    %v4227 = vunpack.c.l.b16 %v3960
    %v4228 = vunpack.c.h.b16 %v3960
    %v4229 = vunpack.c.l.b16 %v3961
    %v4230 = vunpack.c.h.b16 %v3961
    %v4231 = vunpack.c.l.b16 %v3962
    %v4232 = vunpack.c.h.b16 %v3962
    %v4233 = vunpack.c.l.b16 %v3963
    %v4234 = vunpack.c.h.b16 %v3963
    %v4235 = vunpack.c.l.b16 %v3964
    %v4236 = vunpack.c.h.b16 %v3964
    %v4237 = vunpack.c.l.b16 %v3965
    %v4238 = vunpack.c.h.b16 %v3965
    %v4239 = vunpack.c.l.b16 %v3966
    %v4240 = vunpack.c.h.b16 %v3966
    %v4241 = vunpack.c.l.b16 %v3967
    %v4242 = vunpack.c.h.b16 %v3967
    %v4243 = vunpack.c.l.b16 %v3968
    %v4244 = vunpack.c.h.b16 %v3968
    %v4245 = vunpack.c.l.b16 %v3969
    %v4246 = vunpack.c.h.b16 %v3969
    %v4247 = vunpack.c.l.b16 %v3970
    %v4248 = vunpack.c.h.b16 %v3970
    %v4249 = vunpack.c.l.b16 %v3971
    %v4250 = vunpack.c.h.b16 %v3971
    %v4251 = vunpack.c.l.b16 %v3972
    %v4252 = vunpack.c.h.b16 %v3972
    %v4253 = vunpack.c.l.b16 %v3973
    %v4254 = vunpack.c.h.b16 %v3973
    %v4255 = vunpack.c.l.b16 %v3974
    %v4256 = vunpack.c.h.b16 %v3974
    %v4257 = vunpack.c.l.b16 %v3975
    %v4258 = vunpack.c.h.b16 %v3975
    %v4259 = vunpack.c.l.b16 %v3976
    %v4260 = vunpack.c.h.b16 %v3976
    %v4261 = vunpack.c.l.b16 %v3977
    %v4262 = vunpack.c.h.b16 %v3977
    %v4263 = vunpack.c.l.b16 %v3978
    %v4264 = vunpack.c.h.b16 %v3978
    %v4265 = vunpack.c.l.b16 %v3979
    %v4266 = vunpack.c.h.b16 %v3979
    %v4267 = vunpack.c.l.b16 %v3980
    %v4268 = vunpack.c.h.b16 %v3980
    %v4269 = vunpack.c.l.b16 %v3981
    %v4270 = vunpack.c.h.b16 %v3981
    %v4271 = vunpack.c.l.b16 %v3982
    %v4272 = vunpack.c.h.b16 %v3982
    %v4273 = vunpack.c.l.b16 %v3983
    %v4274 = vunpack.c.h.b16 %v3983
    %v4275 = vunpack.c.l.b16 %v3984
    %v4276 = vunpack.c.h.b16 %v3984
    %v4277 = vunpack.c.l.b16 %v3985
    %v4278 = vunpack.c.h.b16 %v3985
    %v4279 = vunpack.c.l.b16 %v3986
    %v4280 = vunpack.c.h.b16 %v3986
    %v4281 = vunpack.c.l.b16 %v3987
    %v4282 = vunpack.c.h.b16 %v3987
    %v4283 = vunpack.c.l.b16 %v3988
    %v4284 = vunpack.c.h.b16 %v3988
    %v4285 = vunpack.c.l.b16 %v3989
    %v4286 = vunpack.c.h.b16 %v3989
    %v4287 = vunpack.c.l.b16 %v3990
    %v4288 = vunpack.c.h.b16 %v3990
    %v4289 = vunpack.c.l.b16 %v3991
    %v4290 = vunpack.c.h.b16 %v3991
    %v4291 = vunpack.c.l.b16 %v3992
    %v4292 = vunpack.c.h.b16 %v3992
    %v4293 = vunpack.c.l.b16 %v3993
    %v4294 = vunpack.c.h.b16 %v3993
    %v4295 = vunpack.c.l.b16 %v3994
    %v4296 = vunpack.c.h.b16 %v3994
    %v4297 = vunpack.c.l.b16 %v3995
    %v4298 = vunpack.c.h.b16 %v3995
    %v4299 = vpack.c.b16 %v4113, %v4107
    %v4300 = vpack.c.b16 %v4114, %v4108
    %v4301 = vpack.c.b16 %v4115, %v4109
    %v4302 = vpack.c.b16 %v4116, %v4110
    %v4303 = vpack.c.b16 %v4117, %v4111
    %v4304 = vpack.c.b16 %v4118, %v4112
    %v4305 = vpack.c.b16 %v4125, %v4119
    %v4306 = vpack.c.b16 %v4126, %v4120
    %v4307 = vpack.c.b16 %v4127, %v4121
    %v4308 = vpack.c.b16 %v4128, %v4122
    %v4309 = vpack.c.b16 %v4129, %v4123
    %v4310 = vpack.c.b16 %v4130, %v4124
    %v4311 = vpack.c.b16 %v4137, %v4131
    %v4312 = vpack.c.b16 %v4138, %v4132
    %v4313 = vpack.c.b16 %v4139, %v4133
    %v4314 = vpack.c.b16 %v4140, %v4134
    %v4315 = vpack.c.b16 %v4141, %v4135
    %v4316 = vpack.c.b16 %v4142, %v4136
    %v4317 = vpack.c.b16 %v4149, %v4143
    %v4318 = vpack.c.b16 %v4150, %v4144
    %v4319 = vpack.c.b16 %v4151, %v4145
    %v4320 = vpack.c.b16 %v4152, %v4146
    %v4321 = vpack.c.b16 %v4153, %v4147
    %v4322 = vpack.c.b16 %v4154, %v4148
    %v4323 = vpack.c.b16 %v4161, %v4155
    %v4324 = vpack.c.b16 %v4162, %v4156
    %v4325 = vpack.c.b16 %v4163, %v4157
    %v4326 = vpack.c.b16 %v4164, %v4158
    %v4327 = vpack.c.b16 %v4165, %v4159
    %v4328 = vpack.c.b16 %v4166, %v4160
    %v4329 = vpack.c.b16 %v4173, %v4167
    %v4330 = vpack.c.b16 %v4174, %v4168
    %v4331 = vpack.c.b16 %v4175, %v4169
    %v4332 = vpack.c.b16 %v4176, %v4170
    %v4333 = vpack.c.b16 %v4177, %v4171
    %v4334 = vpack.c.b16 %v4178, %v4172
    %v4335 = vpack.c.b16 %v4185, %v4179
    %v4336 = vpack.c.b16 %v4186, %v4180
    %v4337 = vpack.c.b16 %v4187, %v4181
    %v4338 = vpack.c.b16 %v4188, %v4182
    %v4339 = vpack.c.b16 %v4189, %v4183
    %v4340 = vpack.c.b16 %v4190, %v4184
    %v4341 = vpack.c.b16 %v4197, %v4191
    %v4342 = vpack.c.b16 %v4198, %v4192
    %v4343 = vpack.c.b16 %v4199, %v4193
    %v4344 = vpack.c.b16 %v4200, %v4194
    %v4345 = vpack.c.b16 %v4201, %v4195
    %v4346 = vpack.c.b16 %v4202, %v4196
    %v4347 = vpack.c.b16 %v4209, %v4203
    %v4348 = vpack.c.b16 %v4210, %v4204
    %v4349 = vpack.c.b16 %v4211, %v4205
    %v4350 = vpack.c.b16 %v4212, %v4206
    %v4351 = vpack.c.b16 %v4213, %v4207
    %v4352 = vpack.c.b16 %v4214, %v4208
    %v4353 = vpack.c.b16 %v4221, %v4215
    %v4354 = vpack.c.b16 %v4222, %v4216
    %v4355 = vpack.c.b16 %v4223, %v4217
    %v4356 = vpack.c.b16 %v4224, %v4218
    %v4357 = vpack.c.b16 %v4225, %v4219
    %v4358 = vpack.c.b16 %v4226, %v4220
    %v4359 = vpack.c.b16 %v4233, %v4227
    %v4360 = vpack.c.b16 %v4234, %v4228
    %v4361 = vpack.c.b16 %v4235, %v4229
    %v4362 = vpack.c.b16 %v4236, %v4230
    %v4363 = vpack.c.b16 %v4237, %v4231
    %v4364 = vpack.c.b16 %v4238, %v4232
    %v4365 = vpack.c.b16 %v4245, %v4239
    %v4366 = vpack.c.b16 %v4246, %v4240
    %v4367 = vpack.c.b16 %v4247, %v4241
    %v4368 = vpack.c.b16 %v4248, %v4242
    %v4369 = vpack.c.b16 %v4249, %v4243
    %v4370 = vpack.c.b16 %v4250, %v4244
    %v4371 = vpack.c.b16 %v4257, %v4251
    %v4372 = vpack.c.b16 %v4258, %v4252
    %v4373 = vpack.c.b16 %v4259, %v4253
    %v4374 = vpack.c.b16 %v4260, %v4254
    %v4375 = vpack.c.b16 %v4261, %v4255
    %v4376 = vpack.c.b16 %v4262, %v4256
    %v4377 = vpack.c.b16 %v4269, %v4263
    %v4378 = vpack.c.b16 %v4270, %v4264
    %v4379 = vpack.c.b16 %v4271, %v4265
    %v4380 = vpack.c.b16 %v4272, %v4266
    %v4381 = vpack.c.b16 %v4273, %v4267
    %v4382 = vpack.c.b16 %v4274, %v4268
    %v4383 = vpack.c.b16 %v4281, %v4275
    %v4384 = vpack.c.b16 %v4282, %v4276
    %v4385 = vpack.c.b16 %v4283, %v4277
    %v4386 = vpack.c.b16 %v4284, %v4278
    %v4387 = vpack.c.b16 %v4285, %v4279
    %v4388 = vpack.c.b16 %v4286, %v4280
    %v4389 = vpack.c.b16 %v4293, %v4287
    %v4390 = vpack.c.b16 %v4294, %v4288
    %v4391 = vpack.c.b16 %v4295, %v4289
    %v4392 = vpack.c.b16 %v4296, %v4290
    %v4393 = vpack.c.b16 %v4297, %v4291
    %v4394 = vpack.c.b16 %v4298, %v4292
    %4491 = vmatpush.bf16.msra.mxu0 %v4341
    %4492 = vmatpush.bf16.msra.mxu0 %v4335
    %4493 = vmatpush.bf16.msra.mxu0 %v4329
    %4494 = vmatpush.bf16.msra.mxu0 %v4323
    %4495 = vmatpush.bf16.msra.mxu0 %v4317
    %4496 = vmatpush.bf16.msra.mxu0 %v4311
    %4497 = vmatpush.bf16.msra.mxu0 %v4305
    %4498 = vmatpush.bf16.msra.mxu0 %v4299
    %4499 = vmatmul.bf16.gmra.mxu0 %v3897
    %v4500 = vpop.f32.mrf.mxu0
    %v4501 = vadd.f32 %v3999, %v4500
    %v4502 = vpop.f32.mrf.mxu0
    %v4503 = vadd.f32 %v3999, %v4502
    %4504 = vdwg.mxu0
    %4505 = vmatpush.bf16.msra.mxu0 %v4389
    %4506 = vmatpush.bf16.msra.mxu0 %v4383
    %4507 = vmatpush.bf16.msra.mxu0 %v4377
    %4508 = vmatpush.bf16.msra.mxu0 %v4371
    %4509 = vmatpush.bf16.msra.mxu0 %v4365
    %4510 = vmatpush.bf16.msra.mxu0 %v4359
    %4511 = vmatpush.bf16.msra.mxu0 %v4353
    %4512 = vmatpush.bf16.msra.mxu0 %v4347
    %4513 = vmatmul.bf16.gmra.mxu0 %v3898
    %v4514 = vpop.f32.mrf.mxu0
    %v4515 = vadd.f32 %v4501, %v4514
    %v4516 = vpop.f32.mrf.mxu0
    %v4517 = vadd.f32 %v4503, %v4516
    %4518 = vdwg.mxu0
    %4519 = vmatpush.bf16.msra.mxu0 %v4342
    %4520 = vmatpush.bf16.msra.mxu0 %v4336
    %4521 = vmatpush.bf16.msra.mxu0 %v4330
    %4522 = vmatpush.bf16.msra.mxu0 %v4324
    %4523 = vmatpush.bf16.msra.mxu0 %v4318
    %4524 = vmatpush.bf16.msra.mxu0 %v4312
    %4525 = vmatpush.bf16.msra.mxu0 %v4306
    %4526 = vmatpush.bf16.msra.mxu0 %v4300
    %4527 = vmatmul.bf16.gmra.mxu0 %v3897
    %v4528 = vpop.f32.mrf.mxu0
    %v4529 = vadd.f32 %v4000, %v4528
    %v4530 = vpop.f32.mrf.mxu0
    %v4531 = vadd.f32 %v4000, %v4530
    %4532 = vdwg.mxu0
    %4533 = vmatpush.bf16.msra.mxu0 %v4390
    %4534 = vmatpush.bf16.msra.mxu0 %v4384
    %4535 = vmatpush.bf16.msra.mxu0 %v4378
    %4536 = vmatpush.bf16.msra.mxu0 %v4372
    %4537 = vmatpush.bf16.msra.mxu0 %v4366
    %4538 = vmatpush.bf16.msra.mxu0 %v4360
    %4539 = vmatpush.bf16.msra.mxu0 %v4354
    %4540 = vmatpush.bf16.msra.mxu0 %v4348
    %4541 = vmatmul.bf16.gmra.mxu0 %v3898
    %v4542 = vpop.f32.mrf.mxu0
    %v4543 = vadd.f32 %v4529, %v4542
    %v4544 = vpop.f32.mrf.mxu0
    %v4545 = vadd.f32 %v4531, %v4544
    %4546 = vdwg.mxu0
    %4547 = vmatpush.bf16.msra.mxu0 %v4343
    %4548 = vmatpush.bf16.msra.mxu0 %v4337
    %4549 = vmatpush.bf16.msra.mxu0 %v4331
    %4550 = vmatpush.bf16.msra.mxu0 %v4325
    %4551 = vmatpush.bf16.msra.mxu0 %v4319
    %4552 = vmatpush.bf16.msra.mxu0 %v4313
    %4553 = vmatpush.bf16.msra.mxu0 %v4307
    %4554 = vmatpush.bf16.msra.mxu0 %v4301
    %4555 = vmatmul.bf16.gmra.mxu0 %v3897
    %v4556 = vpop.f32.mrf.mxu0
    %v4557 = vadd.f32 %v4001, %v4556
    %v4558 = vpop.f32.mrf.mxu0
    %v4559 = vadd.f32 %v4001, %v4558
    %4560 = vdwg.mxu0
    %4561 = vmatpush.bf16.msra.mxu0 %v4391
    %4562 = vmatpush.bf16.msra.mxu0 %v4385
    %4563 = vmatpush.bf16.msra.mxu0 %v4379
    %4564 = vmatpush.bf16.msra.mxu0 %v4373
    %4565 = vmatpush.bf16.msra.mxu0 %v4367
    %4566 = vmatpush.bf16.msra.mxu0 %v4361
    %4567 = vmatpush.bf16.msra.mxu0 %v4355
    %4568 = vmatpush.bf16.msra.mxu0 %v4349
    %4569 = vmatmul.bf16.gmra.mxu0 %v3898
    %v4570 = vpop.f32.mrf.mxu0
    %v4571 = vadd.f32 %v4557, %v4570
    %v4572 = vpop.f32.mrf.mxu0
    %v4573 = vadd.f32 %v4559, %v4572
    %4574 = vdwg.mxu0
    %4575 = vmatpush.bf16.msra.mxu0 %v4344
    %4576 = vmatpush.bf16.msra.mxu0 %v4338
    %4577 = vmatpush.bf16.msra.mxu0 %v4332
    %4578 = vmatpush.bf16.msra.mxu0 %v4326
    %4579 = vmatpush.bf16.msra.mxu0 %v4320
    %4580 = vmatpush.bf16.msra.mxu0 %v4314
    %4581 = vmatpush.bf16.msra.mxu0 %v4308
    %4582 = vmatpush.bf16.msra.mxu0 %v4302
    %4583 = vmatmul.bf16.gmra.mxu0 %v3897
    %v4584 = vpop.f32.mrf.mxu0
    %v4585 = vadd.f32 %v4002, %v4584
    %v4586 = vpop.f32.mrf.mxu0
    %v4587 = vadd.f32 %v4002, %v4586
    %4588 = vdwg.mxu0
    %4589 = vmatpush.bf16.msra.mxu0 %v4392
    %4590 = vmatpush.bf16.msra.mxu0 %v4386
    %4591 = vmatpush.bf16.msra.mxu0 %v4380
    %4592 = vmatpush.bf16.msra.mxu0 %v4374
    %4593 = vmatpush.bf16.msra.mxu0 %v4368
    %4594 = vmatpush.bf16.msra.mxu0 %v4362
    %4595 = vmatpush.bf16.msra.mxu0 %v4356
    %4596 = vmatpush.bf16.msra.mxu0 %v4350
    %4597 = vmatmul.bf16.gmra.mxu0 %v3898
    %v4598 = vpop.f32.mrf.mxu0
    %v4599 = vadd.f32 %v4585, %v4598
    %v4600 = vpop.f32.mrf.mxu0
    %v4601 = vadd.f32 %v4587, %v4600
    %4602 = vdwg.mxu0
    %4603 = vmatpush.bf16.msra.mxu0 %v4345
    %4604 = vmatpush.bf16.msra.mxu0 %v4339
    %4605 = vmatpush.bf16.msra.mxu0 %v4333
    %4606 = vmatpush.bf16.msra.mxu0 %v4327
    %4607 = vmatpush.bf16.msra.mxu0 %v4321
    %4608 = vmatpush.bf16.msra.mxu0 %v4315
    %4609 = vmatpush.bf16.msra.mxu0 %v4309
    %4610 = vmatpush.bf16.msra.mxu0 %v4303
    %4611 = vmatmul.bf16.gmra.mxu0 %v3897
    %v4612 = vpop.f32.mrf.mxu0
    %v4613 = vadd.f32 %v4003, %v4612
    %v4614 = vpop.f32.mrf.mxu0
    %v4615 = vadd.f32 %v4003, %v4614
    %4616 = vdwg.mxu0
    %4617 = vmatpush.bf16.msra.mxu0 %v4393
    %4618 = vmatpush.bf16.msra.mxu0 %v4387
    %4619 = vmatpush.bf16.msra.mxu0 %v4381
    %4620 = vmatpush.bf16.msra.mxu0 %v4375
    %4621 = vmatpush.bf16.msra.mxu0 %v4369
    %4622 = vmatpush.bf16.msra.mxu0 %v4363
    %4623 = vmatpush.bf16.msra.mxu0 %v4357
    %4624 = vmatpush.bf16.msra.mxu0 %v4351
    %4625 = vmatmul.bf16.gmra.mxu0 %v3898
    %v4626 = vpop.f32.mrf.mxu0
    %v4627 = vadd.f32 %v4613, %v4626
    %v4628 = vpop.f32.mrf.mxu0
    %v4629 = vadd.f32 %v4615, %v4628
    %4630 = vdwg.mxu0
    %4631 = vmatpush.bf16.msra.mxu0 %v4346
    %4632 = vmatpush.bf16.msra.mxu0 %v4340
    %4633 = vmatpush.bf16.msra.mxu0 %v4334
    %4634 = vmatpush.bf16.msra.mxu0 %v4328
    %4635 = vmatpush.bf16.msra.mxu0 %v4322
    %4636 = vmatpush.bf16.msra.mxu0 %v4316
    %4637 = vmatpush.bf16.msra.mxu0 %v4310
    %4638 = vmatpush.bf16.msra.mxu0 %v4304
    %4639 = vmatmul.bf16.gmra.mxu0 %v3897
    %v4640 = vpop.f32.mrf.mxu0
    %v4641 = vadd.f32 %v4004, %v4640
    %v4642 = vpop.f32.mrf.mxu0
    %v4643 = vadd.f32 %v4004, %v4642
    %4644 = vdwg.mxu0
    %4645 = vmatpush.bf16.msra.mxu0 %v4394
    %4646 = vmatpush.bf16.msra.mxu0 %v4388
    %4647 = vmatpush.bf16.msra.mxu0 %v4382
    %4648 = vmatpush.bf16.msra.mxu0 %v4376
    %4649 = vmatpush.bf16.msra.mxu0 %v4370
    %4650 = vmatpush.bf16.msra.mxu0 %v4364
    %4651 = vmatpush.bf16.msra.mxu0 %v4358
    %4652 = vmatpush.bf16.msra.mxu0 %v4352
    %4653 = vmatmul.bf16.gmra.mxu0 %v3898
    %v4654 = vpop.f32.mrf.mxu0
    %v4655 = vadd.f32 %v4641, %v4654
    %v4656 = vpop.f32.mrf.mxu0
    %v4657 = vadd.f32 %v4643, %v4656
    %4658 = vdwg.mxu0
    %s4659 = scalar_lea.vmem [#allocation7], 256
    %v4660 = vld [vmem:[%s4659] sm:$0xff]
    %v4661 = vld [vmem:[%s4659 + $0x8] sm:$0xff]
    %v4662 = vld [vmem:[%s4659 + $0x10] sm:$0xff]
    %v4663 = vld [vmem:[%s4659 + $0x18] sm:$0xff]
    %v4664 = vld [vmem:[%s4659 + $0x20] sm:$0xff]
    %v4665 = vld [vmem:[%s4659 + $0x28] sm:$0xff]
    %v4666 = vld [vmem:[%s4659 + $0x30] sm:$0xff]
    %v4667 = vld [vmem:[%s4659 + $0x38] sm:$0xff]
    %v4668 = vld [vmem:[%s4659 + $0x40] sm:$0xff]
    %v4669 = vld [vmem:[%s4659 + $0x48] sm:$0xff]
    %v4670 = vld [vmem:[%s4659 + $0x50] sm:$0xff]
    %v4671 = vld [vmem:[%s4659 + $0x58] sm:$0xff]
    %v4672 = vld [vmem:[%s4659 + $0x60] sm:$0xff]
    %v4673 = vld [vmem:[%s4659 + $0x68] sm:$0xff]
    %v4674 = vld [vmem:[%s4659 + $0x70] sm:$0xff]
    %v4675 = vld [vmem:[%s4659 + $0x78] sm:$0xff]
    %v4676 = vld [vmem:[%s4659 + $0x80] sm:$0xff]
    %v4677 = vld [vmem:[%s4659 + $0x88] sm:$0xff]
    %v4678 = vld [vmem:[%s4659 + $0x90] sm:$0xff]
    %v4679 = vld [vmem:[%s4659 + $0x98] sm:$0xff]
    %v4680 = vld [vmem:[%s4659 + $0xa0] sm:$0xff]
    %v4681 = vld [vmem:[%s4659 + $0xa8] sm:$0xff]
    %v4682 = vld [vmem:[%s4659 + $0xb0] sm:$0xff]
    %v4683 = vld [vmem:[%s4659 + $0xb8] sm:$0xff]
    %v4684 = vld [vmem:[%s4659 + $0xc0] sm:$0xff]
    %v4685 = vld [vmem:[%s4659 + $0xc8] sm:$0xff]
    %v4686 = vld [vmem:[%s4659 + $0xd0] sm:$0xff]
    %v4687 = vld [vmem:[%s4659 + $0xd8] sm:$0xff]
    %v4688 = vld [vmem:[%s4659 + $0xe0] sm:$0xff]
    %v4689 = vld [vmem:[%s4659 + $0xe8] sm:$0xff]
    %v4690 = vld [vmem:[%s4659 + $0xf0] sm:$0xff]
    %v4691 = vld [vmem:[%s4659 + $0xf8] sm:$0xff]
    %4692 = vmatpush.xpose.msra.mxu0 0.0
    %4693 = vmatpush.xpose.msra.mxu0 0.0
    %4694 = vmatpush.xpose.msra.mxu0 0.0
    %4695 = vmatpush.xpose.msra.mxu0 0.0
    %4696 = vmatpush.xpose.msra.mxu0 0.0
    %4697 = vmatpush.xpose.msra.mxu0 0.0
    %4698 = vmatpush.xpose.msra.mxu0 0.0
    %4699 = vmatpush.xpose.msra.mxu0 0.0
    %4700 = vmatpush.xpose.msra.mxu0 0.0
    %4701 = vmatpush.xpose.msra.mxu0 0.0
    %4702 = vmatpush.xpose.msra.mxu0 0.0
    %4703 = vmatpush.xpose.msra.mxu0 0.0
    %4704 = vmatpush.xpose.msra.mxu0 0.0
    %4705 = vmatpush.xpose.msra.mxu0 0.0
    %4706 = vmatpush.xpose.msra.mxu0 %v4573
    %4707 = vmatpush.xpose.msra.mxu0 %v4571
    %4708 = vmatmul.f32.gmra.mxu0 %v4515
    %v4709 = vpop.f32.mrf.mxu0
    %v4710 = vadd.f32 0.0, %v4709
    %4711 = vmatmul.f32.gmra.mxu0 %v4517
    %v4712 = vpop.f32.mrf.mxu0
    %v4713 = vadd.f32 0.0, %v4712
    %4714 = vdwg.mxu0
    %v4715 = vmul.f32 %v4710, 0.088388346
    %v4716 = vmul.f32 %v4713, 0.088388346
    %v4717 = vadd.f32 %v4715, %v356
    %v4718 = vadd.f32 %v4716, %v357
    %v4719 = vsel %vm1177, %v4717, -inf
    %4720 = vmax.xlane.f32.xlu0 %v4719
    %v4721 = vpop.xlane.xlu0 %4720
    %v4722 = vsel %vm1177, %v4718, -inf
    %4723 = vmax.xlane.f32.xlu0 %v4722
    %v4724 = vpop.xlane.xlu0 %4723
    %v4725 = vsub.f32 %v4717, %v4721
    %v4726 = vsub.f32 %v4718, %v4724
    %v4727 = vmul.f32 %v4725, 1.442695
    %v4728 = vpow.pop %v4727
    %v4729 = vmul.f32 %v4726, 1.442695
    %v4730 = vpow.pop %v4729
    %v4731 = vsel %vm1177, %v4728, 0.0
    %4732 = vadd.xlane.f32.xlu0 %v4731
    %v4733 = vpop.xlane.xlu0 %4732
    %v4734 = vsel %vm1177, %v4730, 0.0
    %4735 = vadd.xlane.f32.xlu0 %v4734
    %v4736 = vpop.xlane.xlu0 %4735
    %v4737 = vrcp.pop %v4733
    %v4738 = vmul.f32 %v4733, %v4737
    %v4739 = vsub.f32 1.0, %v4738
    %v4740 = vmul.f32 %v4737, %v4739
    %v4741 = vadd.f32 %v4737, %v4740
    %vm4742 = vweird.f32 %v4733
    %vm4743 = vweird.f32 %v4737
    %vm4744 = vmor %vm4742, %vm4743
    %v4745 = vsel %vm4744, %v4737, %v4741
    %v4746 = vand.u32 2147483647, %v4733
    %vm4747 = vcmp.eq.f32.partialorder %v4746, 8.507059e+37
    %v4748 = vand.u32 %v4733, 2147483648
    %v4749 = vor.u32 1.1754944e-38, %v4748
    %v4750 = vsel %vm4747, %v4749, %v4745
    %v4751 = vmul.f32 %v4728, %v4750
    %v4752 = vrcp.pop %v4736
    %v4753 = vmul.f32 %v4736, %v4752
    %v4754 = vsub.f32 1.0, %v4753
    %v4755 = vmul.f32 %v4752, %v4754
    %v4756 = vadd.f32 %v4752, %v4755
    %vm4757 = vweird.f32 %v4736
    %vm4758 = vweird.f32 %v4752
    %vm4759 = vmor %vm4757, %vm4758
    %v4760 = vsel %vm4759, %v4752, %v4756
    %v4761 = vand.u32 2147483647, %v4736
    %vm4762 = vcmp.eq.f32.partialorder %v4761, 8.507059e+37
    %v4763 = vand.u32 %v4736, 2147483648
    %v4764 = vor.u32 1.1754944e-38, %v4763
    %v4765 = vsel %vm4762, %v4764, %v4760
    %v4766 = vmul.f32 %v4730, %v4765
    %v4768 = vsel %vm1177, %v4751, 0
    %v4771 = vsel %vm1177, %v4766, 0
    %4773 = vmatpush.msra.mxu0 0.0
    %4774 = vmatpush.msra.mxu0 0.0
    %4775 = vmatpush.msra.mxu0 0.0
    %4776 = vmatpush.msra.mxu0 0.0
    %4777 = vmatpush.msra.mxu0 0.0
    %4778 = vmatpush.msra.mxu0 0.0
    %4779 = vmatpush.msra.mxu0 0.0
    %4780 = vmatpush.msra.mxu0 0.0
    %4781 = vmatpush.msra.mxu0 0.0
    %4782 = vmatpush.msra.mxu0 0.0
    %4783 = vmatpush.msra.mxu0 0.0
    %4784 = vmatpush.msra.mxu0 0.0
    %4785 = vmatpush.msra.mxu0 0.0
    %4786 = vmatpush.msra.mxu0 0.0
    %4787 = vmatpush.msra.mxu0 %v4629
    %4788 = vmatpush.msra.mxu0 %v4627
    %4789 = vmatmul.f32.gmra.mxu0 %v4768
    %v4790 = vpop.f32.mrf.mxu0
    %v4791 = vadd.f32 0.0, %v4790
    %4792 = vmatmul.f32.gmra.mxu0 %v4771
    %v4793 = vpop.f32.mrf.mxu0
    %v4794 = vadd.f32 0.0, %v4793
    %4795 = vdwg.mxu0
    %v4796 = vpack.c.bf16 %v4794, %v4791
    %4797 = vmatpush.xpose.msra.mxu0 0.0
    %4798 = vmatpush.xpose.msra.mxu0 0.0
    %4799 = vmatpush.xpose.msra.mxu0 0.0
    %4800 = vmatpush.xpose.msra.mxu0 0.0
    %4801 = vmatpush.xpose.msra.mxu0 0.0
    %4802 = vmatpush.xpose.msra.mxu0 0.0
    %4803 = vmatpush.xpose.msra.mxu0 0.0
    %4804 = vmatpush.xpose.msra.mxu0 0.0
    %4805 = vmatpush.xpose.msra.mxu0 0.0
    %4806 = vmatpush.xpose.msra.mxu0 0.0
    %4807 = vmatpush.xpose.msra.mxu0 0.0
    %4808 = vmatpush.xpose.msra.mxu0 0.0
    %4809 = vmatpush.xpose.msra.mxu0 0.0
    %4810 = vmatpush.xpose.msra.mxu0 0.0
    %4811 = vmatpush.xpose.msra.mxu0 %v4601
    %4812 = vmatpush.xpose.msra.mxu0 %v4599
    %4813 = vmatmul.f32.gmra.mxu0 %v4543
    %v4814 = vpop.f32.mrf.mxu0
    %v4815 = vadd.f32 0.0, %v4814
    %4816 = vmatmul.f32.gmra.mxu0 %v4545
    %v4817 = vpop.f32.mrf.mxu0
    %v4818 = vadd.f32 0.0, %v4817
    %4819 = vdwg.mxu0
    %v4820 = vmul.f32 %v4815, 0.088388346
    %v4821 = vmul.f32 %v4818, 0.088388346
    %v4822 = vadd.f32 %v4820, %v356
    %v4823 = vadd.f32 %v4821, %v357
    %v4824 = vsel %vm1177, %v4822, -inf
    %4825 = vmax.xlane.f32.xlu0 %v4824
    %v4826 = vpop.xlane.xlu0 %4825
    %v4827 = vsel %vm1177, %v4823, -inf
    %4828 = vmax.xlane.f32.xlu0 %v4827
    %v4829 = vpop.xlane.xlu0 %4828
    %v4830 = vsub.f32 %v4822, %v4826
    %v4831 = vsub.f32 %v4823, %v4829
    %v4832 = vmul.f32 %v4830, 1.442695
    %v4833 = vpow.pop %v4832
    %v4834 = vmul.f32 %v4831, 1.442695
    %v4835 = vpow.pop %v4834
    %v4836 = vsel %vm1177, %v4833, 0.0
    %4837 = vadd.xlane.f32.xlu0 %v4836
    %v4838 = vpop.xlane.xlu0 %4837
    %v4839 = vsel %vm1177, %v4835, 0.0
    %4840 = vadd.xlane.f32.xlu0 %v4839
    %v4841 = vpop.xlane.xlu0 %4840
    %v4842 = vrcp.pop %v4838
    %v4843 = vmul.f32 %v4838, %v4842
    %v4844 = vsub.f32 1.0, %v4843
    %v4845 = vmul.f32 %v4842, %v4844
    %v4846 = vadd.f32 %v4842, %v4845
    %vm4847 = vweird.f32 %v4838
    %vm4848 = vweird.f32 %v4842
    %vm4849 = vmor %vm4847, %vm4848
    %v4850 = vsel %vm4849, %v4842, %v4846
    %v4851 = vand.u32 2147483647, %v4838
    %vm4852 = vcmp.eq.f32.partialorder %v4851, 8.507059e+37
    %v4853 = vand.u32 %v4838, 2147483648
    %v4854 = vor.u32 1.1754944e-38, %v4853
    %v4855 = vsel %vm4852, %v4854, %v4850
    %v4856 = vmul.f32 %v4833, %v4855
    %v4857 = vrcp.pop %v4841
    %v4858 = vmul.f32 %v4841, %v4857
    %v4859 = vsub.f32 1.0, %v4858
    %v4860 = vmul.f32 %v4857, %v4859
    %v4861 = vadd.f32 %v4857, %v4860
    %vm4862 = vweird.f32 %v4841
    %vm4863 = vweird.f32 %v4857
    %vm4864 = vmor %vm4862, %vm4863
    %v4865 = vsel %vm4864, %v4857, %v4861
    %v4866 = vand.u32 2147483647, %v4841
    %vm4867 = vcmp.eq.f32.partialorder %v4866, 8.507059e+37
    %v4868 = vand.u32 %v4841, 2147483648
    %v4869 = vor.u32 1.1754944e-38, %v4868
    %v4870 = vsel %vm4867, %v4869, %v4865
    %v4871 = vmul.f32 %v4835, %v4870
    %v4873 = vsel %vm1177, %v4856, 0
    %v4876 = vsel %vm1177, %v4871, 0
    %4878 = vmatpush.msra.mxu0 0.0
    %4879 = vmatpush.msra.mxu0 0.0
    %4880 = vmatpush.msra.mxu0 0.0
    %4881 = vmatpush.msra.mxu0 0.0
    %4882 = vmatpush.msra.mxu0 0.0
    %4883 = vmatpush.msra.mxu0 0.0
    %4884 = vmatpush.msra.mxu0 0.0
    %4885 = vmatpush.msra.mxu0 0.0
    %4886 = vmatpush.msra.mxu0 0.0
    %4887 = vmatpush.msra.mxu0 0.0
    %4888 = vmatpush.msra.mxu0 0.0
    %4889 = vmatpush.msra.mxu0 0.0
    %4890 = vmatpush.msra.mxu0 0.0
    %4891 = vmatpush.msra.mxu0 0.0
    %4892 = vmatpush.msra.mxu0 %v4657
    %4893 = vmatpush.msra.mxu0 %v4655
    %4894 = vmatmul.f32.gmra.mxu0 %v4873
    %v4895 = vpop.f32.mrf.mxu0
    %v4896 = vadd.f32 0.0, %v4895
    %4897 = vmatmul.f32.gmra.mxu0 %v4876
    %v4898 = vpop.f32.mrf.mxu0
    %v4899 = vadd.f32 0.0, %v4898
    %4900 = vdwg.mxu0
    %v4901 = vpack.c.bf16 %v4899, %v4896
    %v4918 = vunpack.c.l.b16 %v4676
    %v4919 = vunpack.c.h.b16 %v4676
    %v4920 = vunpack.c.l.b16 %v4677
    %v4921 = vunpack.c.h.b16 %v4677
    %v4922 = vunpack.c.l.b16 %v4678
    %v4923 = vunpack.c.h.b16 %v4678
    %v4924 = vunpack.c.l.b16 %v4679
    %v4925 = vunpack.c.h.b16 %v4679
    %v4926 = vunpack.c.l.b16 %v4680
    %v4927 = vunpack.c.h.b16 %v4680
    %v4928 = vunpack.c.l.b16 %v4681
    %v4929 = vunpack.c.h.b16 %v4681
    %v4930 = vunpack.c.l.b16 %v4682
    %v4931 = vunpack.c.h.b16 %v4682
    %v4932 = vunpack.c.l.b16 %v4683
    %v4933 = vunpack.c.h.b16 %v4683
    %v4934 = vunpack.c.l.b16 %v4684
    %v4935 = vunpack.c.h.b16 %v4684
    %v4936 = vunpack.c.l.b16 %v4685
    %v4937 = vunpack.c.h.b16 %v4685
    %v4938 = vunpack.c.l.b16 %v4686
    %v4939 = vunpack.c.h.b16 %v4686
    %v4940 = vunpack.c.l.b16 %v4687
    %v4941 = vunpack.c.h.b16 %v4687
    %v4942 = vunpack.c.l.b16 %v4688
    %v4943 = vunpack.c.h.b16 %v4688
    %v4944 = vunpack.c.l.b16 %v4689
    %v4945 = vunpack.c.h.b16 %v4689
    %v4946 = vunpack.c.l.b16 %v4690
    %v4947 = vunpack.c.h.b16 %v4690
    %v4948 = vunpack.c.l.b16 %v4691
    %v4949 = vunpack.c.h.b16 %v4691
    %v4950 = vpack.c.b16 %v4920, %v4918
    %v4951 = vpack.c.b16 %v4921, %v4919
    %v4952 = vpack.c.b16 %v4924, %v4922
    %v4953 = vpack.c.b16 %v4925, %v4923
    %v4954 = vpack.c.b16 %v4928, %v4926
    %v4955 = vpack.c.b16 %v4929, %v4927
    %v4956 = vpack.c.b16 %v4932, %v4930
    %v4957 = vpack.c.b16 %v4933, %v4931
    %v4958 = vpack.c.b16 %v4936, %v4934
    %v4959 = vpack.c.b16 %v4937, %v4935
    %v4960 = vpack.c.b16 %v4940, %v4938
    %v4961 = vpack.c.b16 %v4941, %v4939
    %v4962 = vpack.c.b16 %v4944, %v4942
    %v4963 = vpack.c.b16 %v4945, %v4943
    %v4964 = vpack.c.b16 %v4948, %v4946
    %v4965 = vpack.c.b16 %v4949, %v4947
    %4982 = vmatpush.bf16.msra.mxu0 %v4964
    %4983 = vmatpush.bf16.msra.mxu0 %v4962
    %4984 = vmatpush.bf16.msra.mxu0 %v4960
    %4985 = vmatpush.bf16.msra.mxu0 %v4958
    %4986 = vmatpush.bf16.msra.mxu0 %v4956
    %4987 = vmatpush.bf16.msra.mxu0 %v4954
    %4988 = vmatpush.bf16.msra.mxu0 %v4952
    %4989 = vmatpush.bf16.msra.mxu0 %v4950
    %4990 = vmatmul.bf16.gmra.mxu0 %v4901
    %v4991 = vpop.f32.mrf.mxu0
    %v4992 = vadd.f32 0.0, %v4991
    %v4993 = vpop.f32.mrf.mxu0
    %v4994 = vadd.f32 0.0, %v4993
    %4995 = vdwg.mxu0
    %4996 = vmatpush.bf16.msra.mxu0 %v4965
    %4997 = vmatpush.bf16.msra.mxu0 %v4963
    %4998 = vmatpush.bf16.msra.mxu0 %v4961
    %4999 = vmatpush.bf16.msra.mxu0 %v4959
    %5000 = vmatpush.bf16.msra.mxu0 %v4957
    %5001 = vmatpush.bf16.msra.mxu0 %v4955
    %5002 = vmatpush.bf16.msra.mxu0 %v4953
    %5003 = vmatpush.bf16.msra.mxu0 %v4951
    %5004 = vmatmul.bf16.gmra.mxu0 %v4901
    %v5005 = vpop.f32.mrf.mxu0
    %v5006 = vadd.f32 0.0, %v5005
    %v5007 = vpop.f32.mrf.mxu0
    %v5008 = vadd.f32 0.0, %v5007
    %5009 = vdwg.mxu0
    %v5026 = vunpack.c.l.b16 %v4660
    %v5027 = vunpack.c.h.b16 %v4660
    %v5028 = vunpack.c.l.b16 %v4661
    %v5029 = vunpack.c.h.b16 %v4661
    %v5030 = vunpack.c.l.b16 %v4662
    %v5031 = vunpack.c.h.b16 %v4662
    %v5032 = vunpack.c.l.b16 %v4663
    %v5033 = vunpack.c.h.b16 %v4663
    %v5034 = vunpack.c.l.b16 %v4664
    %v5035 = vunpack.c.h.b16 %v4664
    %v5036 = vunpack.c.l.b16 %v4665
    %v5037 = vunpack.c.h.b16 %v4665
    %v5038 = vunpack.c.l.b16 %v4666
    %v5039 = vunpack.c.h.b16 %v4666
    %v5040 = vunpack.c.l.b16 %v4667
    %v5041 = vunpack.c.h.b16 %v4667
    %v5042 = vunpack.c.l.b16 %v4668
    %v5043 = vunpack.c.h.b16 %v4668
    %v5044 = vunpack.c.l.b16 %v4669
    %v5045 = vunpack.c.h.b16 %v4669
    %v5046 = vunpack.c.l.b16 %v4670
    %v5047 = vunpack.c.h.b16 %v4670
    %v5048 = vunpack.c.l.b16 %v4671
    %v5049 = vunpack.c.h.b16 %v4671
    %v5050 = vunpack.c.l.b16 %v4672
    %v5051 = vunpack.c.h.b16 %v4672
    %v5052 = vunpack.c.l.b16 %v4673
    %v5053 = vunpack.c.h.b16 %v4673
    %v5054 = vunpack.c.l.b16 %v4674
    %v5055 = vunpack.c.h.b16 %v4674
    %v5056 = vunpack.c.l.b16 %v4675
    %v5057 = vunpack.c.h.b16 %v4675
    %v5058 = vpack.c.b16 %v5028, %v5026
    %v5059 = vpack.c.b16 %v5029, %v5027
    %v5060 = vpack.c.b16 %v5032, %v5030
    %v5061 = vpack.c.b16 %v5033, %v5031
    %v5062 = vpack.c.b16 %v5036, %v5034
    %v5063 = vpack.c.b16 %v5037, %v5035
    %v5064 = vpack.c.b16 %v5040, %v5038
    %v5065 = vpack.c.b16 %v5041, %v5039
    %v5066 = vpack.c.b16 %v5044, %v5042
    %v5067 = vpack.c.b16 %v5045, %v5043
    %v5068 = vpack.c.b16 %v5048, %v5046
    %v5069 = vpack.c.b16 %v5049, %v5047
    %v5070 = vpack.c.b16 %v5052, %v5050
    %v5071 = vpack.c.b16 %v5053, %v5051
    %v5072 = vpack.c.b16 %v5056, %v5054
    %v5073 = vpack.c.b16 %v5057, %v5055
    %5090 = vmatpush.bf16.msra.mxu0 %v5072
    %5091 = vmatpush.bf16.msra.mxu0 %v5070
    %5092 = vmatpush.bf16.msra.mxu0 %v5068
    %5093 = vmatpush.bf16.msra.mxu0 %v5066
    %5094 = vmatpush.bf16.msra.mxu0 %v5064
    %5095 = vmatpush.bf16.msra.mxu0 %v5062
    %5096 = vmatpush.bf16.msra.mxu0 %v5060
    %5097 = vmatpush.bf16.msra.mxu0 %v5058
    %5098 = vmatmul.bf16.gmra.mxu0 %v4796
    %v5099 = vpop.f32.mrf.mxu0
    %v5100 = vadd.f32 %v4992, %v5099
    %v5101 = vpop.f32.mrf.mxu0
    %v5102 = vadd.f32 %v4994, %v5101
    %5103 = vdwg.mxu0
    %5104 = vmatpush.bf16.msra.mxu0 %v5073
    %5105 = vmatpush.bf16.msra.mxu0 %v5071
    %5106 = vmatpush.bf16.msra.mxu0 %v5069
    %5107 = vmatpush.bf16.msra.mxu0 %v5067
    %5108 = vmatpush.bf16.msra.mxu0 %v5065
    %5109 = vmatpush.bf16.msra.mxu0 %v5063
    %5110 = vmatpush.bf16.msra.mxu0 %v5061
    %5111 = vmatpush.bf16.msra.mxu0 %v5059
    %5112 = vmatmul.bf16.gmra.mxu0 %v4796
    %v5113 = vpop.f32.mrf.mxu0
    %v5114 = vadd.f32 %v5006, %v5113
    %v5115 = vpop.f32.mrf.mxu0
    %v5116 = vadd.f32 %v5008, %v5115
    %5117 = vdwg.mxu0
    %s5118 = scalar_lea.vmem %s9, 2
    %v5119 = vld [vmem:[%s5118] sm:$0x3]
    %v5121 = vperm.slane %v5119, 0
    %v5122 = vperm.slane %v5119, 1
    %v5125 = vadd.f32 %v5100, %v5121
    %v5126 = vadd.f32 %v5114, %v5122
    %v5127 = vadd.f32 %v5102, %v5121
    %v5128 = vadd.f32 %v5116, %v5122
    %v5129 = vadd.f32 %v3893, %v5125
    %v5130 = vadd.f32 %v3894, %v5126
    %v5131 = vadd.f32 %v3895, %v5127
    %v5132 = vadd.f32 %v3896, %v5128
    %s5133 = scalar_lea.vmem %s10, 2
    %v5134 = vld [vmem:[%s5133] sm:$0x3]
    %s5135 = scalar_lea.vmem %s11, 2
    %v5136 = vld [vmem:[%s5135] sm:$0x3]
    %v5137 = vadd.f32 %v5129, %v5130
    %5138 = vadd.xlane.f32.xlu0 %v5137
    %v5139 = vpop.xlane.xlu0 %5138
    %v5140 = vadd.f32 %v5131, %v5132
    %5141 = vadd.xlane.f32.xlu0 %v5140
    %v5142 = vpop.xlane.xlu0 %5141
    %v5143 = vmul.f32 %v5139, %v293
    %v5144 = vmul.f32 %v5142, %v293
    %v5145 = vsub.f32 %v5129, %v5143
    %v5146 = vsub.f32 %v5130, %v5143
    %v5147 = vsub.f32 %v5131, %v5144
    %v5148 = vsub.f32 %v5132, %v5144
    %v5149 = vmul.f32 %v5145, %v5145
    %v5150 = vmul.f32 %v5146, %v5146
    %v5151 = vmul.f32 %v5147, %v5147
    %v5152 = vmul.f32 %v5148, %v5148
    %v5153 = vadd.f32 %v5149, %v5150
    %5154 = vadd.xlane.f32.xlu0 %v5153
    %v5155 = vpop.xlane.xlu0 %5154
    %v5156 = vadd.f32 %v5151, %v5152
    %5157 = vadd.xlane.f32.xlu0 %v5156
    %v5158 = vpop.xlane.xlu0 %5157
    %v5159 = vmul.f32 %v5155, %v293
    %v5160 = vmul.f32 %v5158, %v293
    %v5161 = vadd.f32 %v5159, 1e-12
    %v5162 = vadd.f32 %v5160, 1e-12
    %v5163 = vrsqrt.pop %v5161
    %v5164 = vmul.f32 %v5163, %v5161
    %v5165 = vmul.f32 %v5164, %v5163
    %v5166 = vmul.f32 0.5, %v5165
    %v5167 = vsub.f32 1.5, %v5166
    %v5168 = vmul.f32 %v5163, %v5167
    %vm5169 = vweird.f32 %v5161
    %vm5170 = vweird.f32 %v5163
    %vm5171 = vmor %vm5169, %vm5170
    %v5172 = vsel %vm5171, %v5163, %v5168
    %v5173 = vrsqrt.pop %v5162
    %v5174 = vmul.f32 %v5173, %v5162
    %v5175 = vmul.f32 %v5174, %v5173
    %v5176 = vmul.f32 0.5, %v5175
    %v5177 = vsub.f32 1.5, %v5176
    %v5178 = vmul.f32 %v5173, %v5177
    %vm5179 = vweird.f32 %v5162
    %vm5180 = vweird.f32 %v5173
    %vm5181 = vmor %vm5179, %vm5180
    %v5182 = vsel %vm5181, %v5173, %v5178
    %v5183 = vmul.f32 %v5145, %v5172
    %v5184 = vmul.f32 %v5146, %v5172
    %v5185 = vmul.f32 %v5147, %v5182
    %v5186 = vmul.f32 %v5148, %v5182
    %v5188 = vperm.slane %v5134, 0
    %v5189 = vperm.slane %v5134, 1
    %v5192 = vmul.f32 %v5183, %v5188
    %v5193 = vmul.f32 %v5184, %v5189
    %v5194 = vmul.f32 %v5185, %v5188
    %v5195 = vmul.f32 %v5186, %v5189
    %v5197 = vperm.slane %v5136, 0
    %v5198 = vperm.slane %v5136, 1
    %v5201 = vadd.f32 %v5192, %v5197
    %v5202 = vadd.f32 %v5193, %v5198
    %v5203 = vadd.f32 %v5194, %v5197
    %v5204 = vadd.f32 %v5195, %v5198
    %v5205 = vpack.c.bf16 %v5203, %v5201
    %v5206 = vpack.c.bf16 %v5204, %v5202
    %s5207 = scalar_lea.vmem [#allocation8], 1024
    %v5208 = vld [vmem:[%s5207] sm:$0xff]
    %v5209 = vld [vmem:[%s5207 + $0x8] sm:$0xff]
    %v5210 = vld [vmem:[%s5207 + $0x10] sm:$0xff]
    %v5211 = vld [vmem:[%s5207 + $0x18] sm:$0xff]
    %v5212 = vld [vmem:[%s5207 + $0x20] sm:$0xff]
    %v5213 = vld [vmem:[%s5207 + $0x28] sm:$0xff]
    %v5214 = vld [vmem:[%s5207 + $0x30] sm:$0xff]
    %v5215 = vld [vmem:[%s5207 + $0x38] sm:$0xff]
    %v5216 = vld [vmem:[%s5207 + $0x40] sm:$0xff]
    %v5217 = vld [vmem:[%s5207 + $0x48] sm:$0xff]
    %v5218 = vld [vmem:[%s5207 + $0x50] sm:$0xff]
    %v5219 = vld [vmem:[%s5207 + $0x58] sm:$0xff]
    %v5220 = vld [vmem:[%s5207 + $0x60] sm:$0xff]
    %v5221 = vld [vmem:[%s5207 + $0x68] sm:$0xff]
    %v5222 = vld [vmem:[%s5207 + $0x70] sm:$0xff]
    %v5223 = vld [vmem:[%s5207 + $0x78] sm:$0xff]
    %v5224 = vld [vmem:[%s5207 + $0x80] sm:$0xff]
    %v5225 = vld [vmem:[%s5207 + $0x88] sm:$0xff]
    %v5226 = vld [vmem:[%s5207 + $0x90] sm:$0xff]
    %v5227 = vld [vmem:[%s5207 + $0x98] sm:$0xff]
    %v5228 = vld [vmem:[%s5207 + $0xa0] sm:$0xff]
    %v5229 = vld [vmem:[%s5207 + $0xa8] sm:$0xff]
    %v5230 = vld [vmem:[%s5207 + $0xb0] sm:$0xff]
    %v5231 = vld [vmem:[%s5207 + $0xb8] sm:$0xff]
    %v5232 = vld [vmem:[%s5207 + $0xc0] sm:$0xff]
    %v5233 = vld [vmem:[%s5207 + $0xc8] sm:$0xff]
    %v5234 = vld [vmem:[%s5207 + $0xd0] sm:$0xff]
    %v5235 = vld [vmem:[%s5207 + $0xd8] sm:$0xff]
    %v5236 = vld [vmem:[%s5207 + $0xe0] sm:$0xff]
    %v5237 = vld [vmem:[%s5207 + $0xe8] sm:$0xff]
    %v5238 = vld [vmem:[%s5207 + $0xf0] sm:$0xff]
    %v5239 = vld [vmem:[%s5207 + $0xf8] sm:$0xff]
    %v5240 = vld [vmem:[%s5207 + $0x100] sm:$0xff]
    %v5241 = vld [vmem:[%s5207 + $0x108] sm:$0xff]
    %v5242 = vld [vmem:[%s5207 + $0x110] sm:$0xff]
    %v5243 = vld [vmem:[%s5207 + $0x118] sm:$0xff]
    %v5244 = vld [vmem:[%s5207 + $0x120] sm:$0xff]
    %v5245 = vld [vmem:[%s5207 + $0x128] sm:$0xff]
    %v5246 = vld [vmem:[%s5207 + $0x130] sm:$0xff]
    %v5247 = vld [vmem:[%s5207 + $0x138] sm:$0xff]
    %v5248 = vld [vmem:[%s5207 + $0x140] sm:$0xff]
    %v5249 = vld [vmem:[%s5207 + $0x148] sm:$0xff]
    %v5250 = vld [vmem:[%s5207 + $0x150] sm:$0xff]
    %v5251 = vld [vmem:[%s5207 + $0x158] sm:$0xff]
    %v5252 = vld [vmem:[%s5207 + $0x160] sm:$0xff]
    %v5253 = vld [vmem:[%s5207 + $0x168] sm:$0xff]
    %v5254 = vld [vmem:[%s5207 + $0x170] sm:$0xff]
    %v5255 = vld [vmem:[%s5207 + $0x178] sm:$0xff]
    %v5256 = vld [vmem:[%s5207 + $0x180] sm:$0xff]
    %v5257 = vld [vmem:[%s5207 + $0x188] sm:$0xff]
    %v5258 = vld [vmem:[%s5207 + $0x190] sm:$0xff]
    %v5259 = vld [vmem:[%s5207 + $0x198] sm:$0xff]
    %v5260 = vld [vmem:[%s5207 + $0x1a0] sm:$0xff]
    %v5261 = vld [vmem:[%s5207 + $0x1a8] sm:$0xff]
    %v5262 = vld [vmem:[%s5207 + $0x1b0] sm:$0xff]
    %v5263 = vld [vmem:[%s5207 + $0x1b8] sm:$0xff]
    %v5264 = vld [vmem:[%s5207 + $0x1c0] sm:$0xff]
    %v5265 = vld [vmem:[%s5207 + $0x1c8] sm:$0xff]
    %v5266 = vld [vmem:[%s5207 + $0x1d0] sm:$0xff]
    %v5267 = vld [vmem:[%s5207 + $0x1d8] sm:$0xff]
    %v5268 = vld [vmem:[%s5207 + $0x1e0] sm:$0xff]
    %v5269 = vld [vmem:[%s5207 + $0x1e8] sm:$0xff]
    %v5270 = vld [vmem:[%s5207 + $0x1f0] sm:$0xff]
    %v5271 = vld [vmem:[%s5207 + $0x1f8] sm:$0xff]
    %v5272 = vld [vmem:[%s5207 + $0x200] sm:$0xff]
    %v5273 = vld [vmem:[%s5207 + $0x208] sm:$0xff]
    %v5274 = vld [vmem:[%s5207 + $0x210] sm:$0xff]
    %v5275 = vld [vmem:[%s5207 + $0x218] sm:$0xff]
    %v5276 = vld [vmem:[%s5207 + $0x220] sm:$0xff]
    %v5277 = vld [vmem:[%s5207 + $0x228] sm:$0xff]
    %v5278 = vld [vmem:[%s5207 + $0x230] sm:$0xff]
    %v5279 = vld [vmem:[%s5207 + $0x238] sm:$0xff]
    %v5280 = vld [vmem:[%s5207 + $0x240] sm:$0xff]
    %v5281 = vld [vmem:[%s5207 + $0x248] sm:$0xff]
    %v5282 = vld [vmem:[%s5207 + $0x250] sm:$0xff]
    %v5283 = vld [vmem:[%s5207 + $0x258] sm:$0xff]
    %v5284 = vld [vmem:[%s5207 + $0x260] sm:$0xff]
    %v5285 = vld [vmem:[%s5207 + $0x268] sm:$0xff]
    %v5286 = vld [vmem:[%s5207 + $0x270] sm:$0xff]
    %v5287 = vld [vmem:[%s5207 + $0x278] sm:$0xff]
    %v5288 = vld [vmem:[%s5207 + $0x280] sm:$0xff]
    %v5289 = vld [vmem:[%s5207 + $0x288] sm:$0xff]
    %v5290 = vld [vmem:[%s5207 + $0x290] sm:$0xff]
    %v5291 = vld [vmem:[%s5207 + $0x298] sm:$0xff]
    %v5292 = vld [vmem:[%s5207 + $0x2a0] sm:$0xff]
    %v5293 = vld [vmem:[%s5207 + $0x2a8] sm:$0xff]
    %v5294 = vld [vmem:[%s5207 + $0x2b0] sm:$0xff]
    %v5295 = vld [vmem:[%s5207 + $0x2b8] sm:$0xff]
    %v5296 = vld [vmem:[%s5207 + $0x2c0] sm:$0xff]
    %v5297 = vld [vmem:[%s5207 + $0x2c8] sm:$0xff]
    %v5298 = vld [vmem:[%s5207 + $0x2d0] sm:$0xff]
    %v5299 = vld [vmem:[%s5207 + $0x2d8] sm:$0xff]
    %v5300 = vld [vmem:[%s5207 + $0x2e0] sm:$0xff]
    %v5301 = vld [vmem:[%s5207 + $0x2e8] sm:$0xff]
    %v5302 = vld [vmem:[%s5207 + $0x2f0] sm:$0xff]
    %v5303 = vld [vmem:[%s5207 + $0x2f8] sm:$0xff]
    %v5304 = vld [vmem:[%s5207 + $0x300] sm:$0xff]
    %v5305 = vld [vmem:[%s5207 + $0x308] sm:$0xff]
    %v5306 = vld [vmem:[%s5207 + $0x310] sm:$0xff]
    %v5307 = vld [vmem:[%s5207 + $0x318] sm:$0xff]
    %v5308 = vld [vmem:[%s5207 + $0x320] sm:$0xff]
    %v5309 = vld [vmem:[%s5207 + $0x328] sm:$0xff]
    %v5310 = vld [vmem:[%s5207 + $0x330] sm:$0xff]
    %v5311 = vld [vmem:[%s5207 + $0x338] sm:$0xff]
    %v5312 = vld [vmem:[%s5207 + $0x340] sm:$0xff]
    %v5313 = vld [vmem:[%s5207 + $0x348] sm:$0xff]
    %v5314 = vld [vmem:[%s5207 + $0x350] sm:$0xff]
    %v5315 = vld [vmem:[%s5207 + $0x358] sm:$0xff]
    %v5316 = vld [vmem:[%s5207 + $0x360] sm:$0xff]
    %v5317 = vld [vmem:[%s5207 + $0x368] sm:$0xff]
    %v5318 = vld [vmem:[%s5207 + $0x370] sm:$0xff]
    %v5319 = vld [vmem:[%s5207 + $0x378] sm:$0xff]
    %v5320 = vld [vmem:[%s5207 + $0x380] sm:$0xff]
    %v5321 = vld [vmem:[%s5207 + $0x388] sm:$0xff]
    %v5322 = vld [vmem:[%s5207 + $0x390] sm:$0xff]
    %v5323 = vld [vmem:[%s5207 + $0x398] sm:$0xff]
    %v5324 = vld [vmem:[%s5207 + $0x3a0] sm:$0xff]
    %v5325 = vld [vmem:[%s5207 + $0x3a8] sm:$0xff]
    %v5326 = vld [vmem:[%s5207 + $0x3b0] sm:$0xff]
    %v5327 = vld [vmem:[%s5207 + $0x3b8] sm:$0xff]
    %v5328 = vld [vmem:[%s5207 + $0x3c0] sm:$0xff]
    %v5329 = vld [vmem:[%s5207 + $0x3c8] sm:$0xff]
    %v5330 = vld [vmem:[%s5207 + $0x3d0] sm:$0xff]
    %v5331 = vld [vmem:[%s5207 + $0x3d8] sm:$0xff]
    %v5332 = vld [vmem:[%s5207 + $0x3e0] sm:$0xff]
    %v5333 = vld [vmem:[%s5207 + $0x3e8] sm:$0xff]
    %v5334 = vld [vmem:[%s5207 + $0x3f0] sm:$0xff]
    %v5335 = vld [vmem:[%s5207 + $0x3f8] sm:$0xff]
    %s5336 = scalar_lea.vmem %s13, 8
    %v5337 = vld [vmem:[%s5336] sm:$0xff]
    %v5339 = vperm.slane %v5337, 0
    %v5340 = vperm.slane %v5337, 1
    %v5341 = vperm.slane %v5337, 2
    %v5342 = vperm.slane %v5337, 3
    %v5343 = vperm.slane %v5337, 4
    %v5344 = vperm.slane %v5337, 5
    %v5345 = vperm.slane %v5337, 6
    %v5346 = vperm.slane %v5337, 7
    %v5483 = vunpack.c.l.b16 %v5208
    %v5484 = vunpack.c.h.b16 %v5208
    %v5485 = vunpack.c.l.b16 %v5209
    %v5486 = vunpack.c.h.b16 %v5209
    %v5487 = vunpack.c.l.b16 %v5210
    %v5488 = vunpack.c.h.b16 %v5210
    %v5489 = vunpack.c.l.b16 %v5211
    %v5490 = vunpack.c.h.b16 %v5211
    %v5491 = vunpack.c.l.b16 %v5212
    %v5492 = vunpack.c.h.b16 %v5212
    %v5493 = vunpack.c.l.b16 %v5213
    %v5494 = vunpack.c.h.b16 %v5213
    %v5495 = vunpack.c.l.b16 %v5214
    %v5496 = vunpack.c.h.b16 %v5214
    %v5497 = vunpack.c.l.b16 %v5215
    %v5498 = vunpack.c.h.b16 %v5215
    %v5499 = vunpack.c.l.b16 %v5216
    %v5500 = vunpack.c.h.b16 %v5216
    %v5501 = vunpack.c.l.b16 %v5217
    %v5502 = vunpack.c.h.b16 %v5217
    %v5503 = vunpack.c.l.b16 %v5218
    %v5504 = vunpack.c.h.b16 %v5218
    %v5505 = vunpack.c.l.b16 %v5219
    %v5506 = vunpack.c.h.b16 %v5219
    %v5507 = vunpack.c.l.b16 %v5220
    %v5508 = vunpack.c.h.b16 %v5220
    %v5509 = vunpack.c.l.b16 %v5221
    %v5510 = vunpack.c.h.b16 %v5221
    %v5511 = vunpack.c.l.b16 %v5222
    %v5512 = vunpack.c.h.b16 %v5222
    %v5513 = vunpack.c.l.b16 %v5223
    %v5514 = vunpack.c.h.b16 %v5223
    %v5515 = vunpack.c.l.b16 %v5224
    %v5516 = vunpack.c.h.b16 %v5224
    %v5517 = vunpack.c.l.b16 %v5225
    %v5518 = vunpack.c.h.b16 %v5225
    %v5519 = vunpack.c.l.b16 %v5226
    %v5520 = vunpack.c.h.b16 %v5226
    %v5521 = vunpack.c.l.b16 %v5227
    %v5522 = vunpack.c.h.b16 %v5227
    %v5523 = vunpack.c.l.b16 %v5228
    %v5524 = vunpack.c.h.b16 %v5228
    %v5525 = vunpack.c.l.b16 %v5229
    %v5526 = vunpack.c.h.b16 %v5229
    %v5527 = vunpack.c.l.b16 %v5230
    %v5528 = vunpack.c.h.b16 %v5230
    %v5529 = vunpack.c.l.b16 %v5231
    %v5530 = vunpack.c.h.b16 %v5231
    %v5531 = vunpack.c.l.b16 %v5232
    %v5532 = vunpack.c.h.b16 %v5232
    %v5533 = vunpack.c.l.b16 %v5233
    %v5534 = vunpack.c.h.b16 %v5233
    %v5535 = vunpack.c.l.b16 %v5234
    %v5536 = vunpack.c.h.b16 %v5234
    %v5537 = vunpack.c.l.b16 %v5235
    %v5538 = vunpack.c.h.b16 %v5235
    %v5539 = vunpack.c.l.b16 %v5236
    %v5540 = vunpack.c.h.b16 %v5236
    %v5541 = vunpack.c.l.b16 %v5237
    %v5542 = vunpack.c.h.b16 %v5237
    %v5543 = vunpack.c.l.b16 %v5238
    %v5544 = vunpack.c.h.b16 %v5238
    %v5545 = vunpack.c.l.b16 %v5239
    %v5546 = vunpack.c.h.b16 %v5239
    %v5547 = vunpack.c.l.b16 %v5240
    %v5548 = vunpack.c.h.b16 %v5240
    %v5549 = vunpack.c.l.b16 %v5241
    %v5550 = vunpack.c.h.b16 %v5241
    %v5551 = vunpack.c.l.b16 %v5242
    %v5552 = vunpack.c.h.b16 %v5242
    %v5553 = vunpack.c.l.b16 %v5243
    %v5554 = vunpack.c.h.b16 %v5243
    %v5555 = vunpack.c.l.b16 %v5244
    %v5556 = vunpack.c.h.b16 %v5244
    %v5557 = vunpack.c.l.b16 %v5245
    %v5558 = vunpack.c.h.b16 %v5245
    %v5559 = vunpack.c.l.b16 %v5246
    %v5560 = vunpack.c.h.b16 %v5246
    %v5561 = vunpack.c.l.b16 %v5247
    %v5562 = vunpack.c.h.b16 %v5247
    %v5563 = vunpack.c.l.b16 %v5248
    %v5564 = vunpack.c.h.b16 %v5248
    %v5565 = vunpack.c.l.b16 %v5249
    %v5566 = vunpack.c.h.b16 %v5249
    %v5567 = vunpack.c.l.b16 %v5250
    %v5568 = vunpack.c.h.b16 %v5250
    %v5569 = vunpack.c.l.b16 %v5251
    %v5570 = vunpack.c.h.b16 %v5251
    %v5571 = vunpack.c.l.b16 %v5252
    %v5572 = vunpack.c.h.b16 %v5252
    %v5573 = vunpack.c.l.b16 %v5253
    %v5574 = vunpack.c.h.b16 %v5253
    %v5575 = vunpack.c.l.b16 %v5254
    %v5576 = vunpack.c.h.b16 %v5254
    %v5577 = vunpack.c.l.b16 %v5255
    %v5578 = vunpack.c.h.b16 %v5255
    %v5579 = vunpack.c.l.b16 %v5256
    %v5580 = vunpack.c.h.b16 %v5256
    %v5581 = vunpack.c.l.b16 %v5257
    %v5582 = vunpack.c.h.b16 %v5257
    %v5583 = vunpack.c.l.b16 %v5258
    %v5584 = vunpack.c.h.b16 %v5258
    %v5585 = vunpack.c.l.b16 %v5259
    %v5586 = vunpack.c.h.b16 %v5259
    %v5587 = vunpack.c.l.b16 %v5260
    %v5588 = vunpack.c.h.b16 %v5260
    %v5589 = vunpack.c.l.b16 %v5261
    %v5590 = vunpack.c.h.b16 %v5261
    %v5591 = vunpack.c.l.b16 %v5262
    %v5592 = vunpack.c.h.b16 %v5262
    %v5593 = vunpack.c.l.b16 %v5263
    %v5594 = vunpack.c.h.b16 %v5263
    %v5595 = vunpack.c.l.b16 %v5264
    %v5596 = vunpack.c.h.b16 %v5264
    %v5597 = vunpack.c.l.b16 %v5265
    %v5598 = vunpack.c.h.b16 %v5265
    %v5599 = vunpack.c.l.b16 %v5266
    %v5600 = vunpack.c.h.b16 %v5266
    %v5601 = vunpack.c.l.b16 %v5267
    %v5602 = vunpack.c.h.b16 %v5267
    %v5603 = vunpack.c.l.b16 %v5268
    %v5604 = vunpack.c.h.b16 %v5268
    %v5605 = vunpack.c.l.b16 %v5269
    %v5606 = vunpack.c.h.b16 %v5269
    %v5607 = vunpack.c.l.b16 %v5270
    %v5608 = vunpack.c.h.b16 %v5270
    %v5609 = vunpack.c.l.b16 %v5271
    %v5610 = vunpack.c.h.b16 %v5271
    %v5611 = vunpack.c.l.b16 %v5272
    %v5612 = vunpack.c.h.b16 %v5272
    %v5613 = vunpack.c.l.b16 %v5273
    %v5614 = vunpack.c.h.b16 %v5273
    %v5615 = vunpack.c.l.b16 %v5274
    %v5616 = vunpack.c.h.b16 %v5274
    %v5617 = vunpack.c.l.b16 %v5275
    %v5618 = vunpack.c.h.b16 %v5275
    %v5619 = vunpack.c.l.b16 %v5276
    %v5620 = vunpack.c.h.b16 %v5276
    %v5621 = vunpack.c.l.b16 %v5277
    %v5622 = vunpack.c.h.b16 %v5277
    %v5623 = vunpack.c.l.b16 %v5278
    %v5624 = vunpack.c.h.b16 %v5278
    %v5625 = vunpack.c.l.b16 %v5279
    %v5626 = vunpack.c.h.b16 %v5279
    %v5627 = vunpack.c.l.b16 %v5280
    %v5628 = vunpack.c.h.b16 %v5280
    %v5629 = vunpack.c.l.b16 %v5281
    %v5630 = vunpack.c.h.b16 %v5281
    %v5631 = vunpack.c.l.b16 %v5282
    %v5632 = vunpack.c.h.b16 %v5282
    %v5633 = vunpack.c.l.b16 %v5283
    %v5634 = vunpack.c.h.b16 %v5283
    %v5635 = vunpack.c.l.b16 %v5284
    %v5636 = vunpack.c.h.b16 %v5284
    %v5637 = vunpack.c.l.b16 %v5285
    %v5638 = vunpack.c.h.b16 %v5285
    %v5639 = vunpack.c.l.b16 %v5286
    %v5640 = vunpack.c.h.b16 %v5286
    %v5641 = vunpack.c.l.b16 %v5287
    %v5642 = vunpack.c.h.b16 %v5287
    %v5643 = vunpack.c.l.b16 %v5288
    %v5644 = vunpack.c.h.b16 %v5288
    %v5645 = vunpack.c.l.b16 %v5289
    %v5646 = vunpack.c.h.b16 %v5289
    %v5647 = vunpack.c.l.b16 %v5290
    %v5648 = vunpack.c.h.b16 %v5290
    %v5649 = vunpack.c.l.b16 %v5291
    %v5650 = vunpack.c.h.b16 %v5291
    %v5651 = vunpack.c.l.b16 %v5292
    %v5652 = vunpack.c.h.b16 %v5292
    %v5653 = vunpack.c.l.b16 %v5293
    %v5654 = vunpack.c.h.b16 %v5293
    %v5655 = vunpack.c.l.b16 %v5294
    %v5656 = vunpack.c.h.b16 %v5294
    %v5657 = vunpack.c.l.b16 %v5295
    %v5658 = vunpack.c.h.b16 %v5295
    %v5659 = vunpack.c.l.b16 %v5296
    %v5660 = vunpack.c.h.b16 %v5296
    %v5661 = vunpack.c.l.b16 %v5297
    %v5662 = vunpack.c.h.b16 %v5297
    %v5663 = vunpack.c.l.b16 %v5298
    %v5664 = vunpack.c.h.b16 %v5298
    %v5665 = vunpack.c.l.b16 %v5299
    %v5666 = vunpack.c.h.b16 %v5299
    %v5667 = vunpack.c.l.b16 %v5300
    %v5668 = vunpack.c.h.b16 %v5300
    %v5669 = vunpack.c.l.b16 %v5301
    %v5670 = vunpack.c.h.b16 %v5301
    %v5671 = vunpack.c.l.b16 %v5302
    %v5672 = vunpack.c.h.b16 %v5302
    %v5673 = vunpack.c.l.b16 %v5303
    %v5674 = vunpack.c.h.b16 %v5303
    %v5675 = vunpack.c.l.b16 %v5304
    %v5676 = vunpack.c.h.b16 %v5304
    %v5677 = vunpack.c.l.b16 %v5305
    %v5678 = vunpack.c.h.b16 %v5305
    %v5679 = vunpack.c.l.b16 %v5306
    %v5680 = vunpack.c.h.b16 %v5306
    %v5681 = vunpack.c.l.b16 %v5307
    %v5682 = vunpack.c.h.b16 %v5307
    %v5683 = vunpack.c.l.b16 %v5308
    %v5684 = vunpack.c.h.b16 %v5308
    %v5685 = vunpack.c.l.b16 %v5309
    %v5686 = vunpack.c.h.b16 %v5309
    %v5687 = vunpack.c.l.b16 %v5310
    %v5688 = vunpack.c.h.b16 %v5310
    %v5689 = vunpack.c.l.b16 %v5311
    %v5690 = vunpack.c.h.b16 %v5311
    %v5691 = vunpack.c.l.b16 %v5312
    %v5692 = vunpack.c.h.b16 %v5312
    %v5693 = vunpack.c.l.b16 %v5313
    %v5694 = vunpack.c.h.b16 %v5313
    %v5695 = vunpack.c.l.b16 %v5314
    %v5696 = vunpack.c.h.b16 %v5314
    %v5697 = vunpack.c.l.b16 %v5315
    %v5698 = vunpack.c.h.b16 %v5315
    %v5699 = vunpack.c.l.b16 %v5316
    %v5700 = vunpack.c.h.b16 %v5316
    %v5701 = vunpack.c.l.b16 %v5317
    %v5702 = vunpack.c.h.b16 %v5317
    %v5703 = vunpack.c.l.b16 %v5318
    %v5704 = vunpack.c.h.b16 %v5318
    %v5705 = vunpack.c.l.b16 %v5319
    %v5706 = vunpack.c.h.b16 %v5319
    %v5707 = vunpack.c.l.b16 %v5320
    %v5708 = vunpack.c.h.b16 %v5320
    %v5709 = vunpack.c.l.b16 %v5321
    %v5710 = vunpack.c.h.b16 %v5321
    %v5711 = vunpack.c.l.b16 %v5322
    %v5712 = vunpack.c.h.b16 %v5322
    %v5713 = vunpack.c.l.b16 %v5323
    %v5714 = vunpack.c.h.b16 %v5323
    %v5715 = vunpack.c.l.b16 %v5324
    %v5716 = vunpack.c.h.b16 %v5324
    %v5717 = vunpack.c.l.b16 %v5325
    %v5718 = vunpack.c.h.b16 %v5325
    %v5719 = vunpack.c.l.b16 %v5326
    %v5720 = vunpack.c.h.b16 %v5326
    %v5721 = vunpack.c.l.b16 %v5327
    %v5722 = vunpack.c.h.b16 %v5327
    %v5723 = vunpack.c.l.b16 %v5328
    %v5724 = vunpack.c.h.b16 %v5328
    %v5725 = vunpack.c.l.b16 %v5329
    %v5726 = vunpack.c.h.b16 %v5329
    %v5727 = vunpack.c.l.b16 %v5330
    %v5728 = vunpack.c.h.b16 %v5330
    %v5729 = vunpack.c.l.b16 %v5331
    %v5730 = vunpack.c.h.b16 %v5331
    %v5731 = vunpack.c.l.b16 %v5332
    %v5732 = vunpack.c.h.b16 %v5332
    %v5733 = vunpack.c.l.b16 %v5333
    %v5734 = vunpack.c.h.b16 %v5333
    %v5735 = vunpack.c.l.b16 %v5334
    %v5736 = vunpack.c.h.b16 %v5334
    %v5737 = vunpack.c.l.b16 %v5335
    %v5738 = vunpack.c.h.b16 %v5335
    %v5739 = vpack.c.b16 %v5491, %v5483
    %v5740 = vpack.c.b16 %v5492, %v5484
    %v5741 = vpack.c.b16 %v5493, %v5485
    %v5742 = vpack.c.b16 %v5494, %v5486
    %v5743 = vpack.c.b16 %v5495, %v5487
    %v5744 = vpack.c.b16 %v5496, %v5488
    %v5745 = vpack.c.b16 %v5497, %v5489
    %v5746 = vpack.c.b16 %v5498, %v5490
    %v5747 = vpack.c.b16 %v5507, %v5499
    %v5748 = vpack.c.b16 %v5508, %v5500
    %v5749 = vpack.c.b16 %v5509, %v5501
    %v5750 = vpack.c.b16 %v5510, %v5502
    %v5751 = vpack.c.b16 %v5511, %v5503
    %v5752 = vpack.c.b16 %v5512, %v5504
    %v5753 = vpack.c.b16 %v5513, %v5505
    %v5754 = vpack.c.b16 %v5514, %v5506
    %v5755 = vpack.c.b16 %v5523, %v5515
    %v5756 = vpack.c.b16 %v5524, %v5516
    %v5757 = vpack.c.b16 %v5525, %v5517
    %v5758 = vpack.c.b16 %v5526, %v5518
    %v5759 = vpack.c.b16 %v5527, %v5519
    %v5760 = vpack.c.b16 %v5528, %v5520
    %v5761 = vpack.c.b16 %v5529, %v5521
    %v5762 = vpack.c.b16 %v5530, %v5522
    %v5763 = vpack.c.b16 %v5539, %v5531
    %v5764 = vpack.c.b16 %v5540, %v5532
    %v5765 = vpack.c.b16 %v5541, %v5533
    %v5766 = vpack.c.b16 %v5542, %v5534
    %v5767 = vpack.c.b16 %v5543, %v5535
    %v5768 = vpack.c.b16 %v5544, %v5536
    %v5769 = vpack.c.b16 %v5545, %v5537
    %v5770 = vpack.c.b16 %v5546, %v5538
    %v5771 = vpack.c.b16 %v5555, %v5547
    %v5772 = vpack.c.b16 %v5556, %v5548
    %v5773 = vpack.c.b16 %v5557, %v5549
    %v5774 = vpack.c.b16 %v5558, %v5550
    %v5775 = vpack.c.b16 %v5559, %v5551
    %v5776 = vpack.c.b16 %v5560, %v5552
    %v5777 = vpack.c.b16 %v5561, %v5553
    %v5778 = vpack.c.b16 %v5562, %v5554
    %v5779 = vpack.c.b16 %v5571, %v5563
    %v5780 = vpack.c.b16 %v5572, %v5564
    %v5781 = vpack.c.b16 %v5573, %v5565
    %v5782 = vpack.c.b16 %v5574, %v5566
    %v5783 = vpack.c.b16 %v5575, %v5567
    %v5784 = vpack.c.b16 %v5576, %v5568
    %v5785 = vpack.c.b16 %v5577, %v5569
    %v5786 = vpack.c.b16 %v5578, %v5570
    %v5787 = vpack.c.b16 %v5587, %v5579
    %v5788 = vpack.c.b16 %v5588, %v5580
    %v5789 = vpack.c.b16 %v5589, %v5581
    %v5790 = vpack.c.b16 %v5590, %v5582
    %v5791 = vpack.c.b16 %v5591, %v5583
    %v5792 = vpack.c.b16 %v5592, %v5584
    %v5793 = vpack.c.b16 %v5593, %v5585
    %v5794 = vpack.c.b16 %v5594, %v5586
    %v5795 = vpack.c.b16 %v5603, %v5595
    %v5796 = vpack.c.b16 %v5604, %v5596
    %v5797 = vpack.c.b16 %v5605, %v5597
    %v5798 = vpack.c.b16 %v5606, %v5598
    %v5799 = vpack.c.b16 %v5607, %v5599
    %v5800 = vpack.c.b16 %v5608, %v5600
    %v5801 = vpack.c.b16 %v5609, %v5601
    %v5802 = vpack.c.b16 %v5610, %v5602
    %v5803 = vpack.c.b16 %v5619, %v5611
    %v5804 = vpack.c.b16 %v5620, %v5612
    %v5805 = vpack.c.b16 %v5621, %v5613
    %v5806 = vpack.c.b16 %v5622, %v5614
    %v5807 = vpack.c.b16 %v5623, %v5615
    %v5808 = vpack.c.b16 %v5624, %v5616
    %v5809 = vpack.c.b16 %v5625, %v5617
    %v5810 = vpack.c.b16 %v5626, %v5618
    %v5811 = vpack.c.b16 %v5635, %v5627
    %v5812 = vpack.c.b16 %v5636, %v5628
    %v5813 = vpack.c.b16 %v5637, %v5629
    %v5814 = vpack.c.b16 %v5638, %v5630
    %v5815 = vpack.c.b16 %v5639, %v5631
    %v5816 = vpack.c.b16 %v5640, %v5632
    %v5817 = vpack.c.b16 %v5641, %v5633
    %v5818 = vpack.c.b16 %v5642, %v5634
    %v5819 = vpack.c.b16 %v5651, %v5643
    %v5820 = vpack.c.b16 %v5652, %v5644
    %v5821 = vpack.c.b16 %v5653, %v5645
    %v5822 = vpack.c.b16 %v5654, %v5646
    %v5823 = vpack.c.b16 %v5655, %v5647
    %v5824 = vpack.c.b16 %v5656, %v5648
    %v5825 = vpack.c.b16 %v5657, %v5649
    %v5826 = vpack.c.b16 %v5658, %v5650
    %v5827 = vpack.c.b16 %v5667, %v5659
    %v5828 = vpack.c.b16 %v5668, %v5660
    %v5829 = vpack.c.b16 %v5669, %v5661
    %v5830 = vpack.c.b16 %v5670, %v5662
    %v5831 = vpack.c.b16 %v5671, %v5663
    %v5832 = vpack.c.b16 %v5672, %v5664
    %v5833 = vpack.c.b16 %v5673, %v5665
    %v5834 = vpack.c.b16 %v5674, %v5666
    %v5835 = vpack.c.b16 %v5683, %v5675
    %v5836 = vpack.c.b16 %v5684, %v5676
    %v5837 = vpack.c.b16 %v5685, %v5677
    %v5838 = vpack.c.b16 %v5686, %v5678
    %v5839 = vpack.c.b16 %v5687, %v5679
    %v5840 = vpack.c.b16 %v5688, %v5680
    %v5841 = vpack.c.b16 %v5689, %v5681
    %v5842 = vpack.c.b16 %v5690, %v5682
    %v5843 = vpack.c.b16 %v5699, %v5691
    %v5844 = vpack.c.b16 %v5700, %v5692
    %v5845 = vpack.c.b16 %v5701, %v5693
    %v5846 = vpack.c.b16 %v5702, %v5694
    %v5847 = vpack.c.b16 %v5703, %v5695
    %v5848 = vpack.c.b16 %v5704, %v5696
    %v5849 = vpack.c.b16 %v5705, %v5697
    %v5850 = vpack.c.b16 %v5706, %v5698
    %v5851 = vpack.c.b16 %v5715, %v5707
    %v5852 = vpack.c.b16 %v5716, %v5708
    %v5853 = vpack.c.b16 %v5717, %v5709
    %v5854 = vpack.c.b16 %v5718, %v5710
    %v5855 = vpack.c.b16 %v5719, %v5711
    %v5856 = vpack.c.b16 %v5720, %v5712
    %v5857 = vpack.c.b16 %v5721, %v5713
    %v5858 = vpack.c.b16 %v5722, %v5714
    %v5859 = vpack.c.b16 %v5731, %v5723
    %v5860 = vpack.c.b16 %v5732, %v5724
    %v5861 = vpack.c.b16 %v5733, %v5725
    %v5862 = vpack.c.b16 %v5734, %v5726
    %v5863 = vpack.c.b16 %v5735, %v5727
    %v5864 = vpack.c.b16 %v5736, %v5728
    %v5865 = vpack.c.b16 %v5737, %v5729
    %v5866 = vpack.c.b16 %v5738, %v5730
    %5995 = vmatpush.bf16.msra.mxu0 %v5795
    %5996 = vmatpush.bf16.msra.mxu0 %v5787
    %5997 = vmatpush.bf16.msra.mxu0 %v5779
    %5998 = vmatpush.bf16.msra.mxu0 %v5771
    %5999 = vmatpush.bf16.msra.mxu0 %v5763
    %6000 = vmatpush.bf16.msra.mxu0 %v5755
    %6001 = vmatpush.bf16.msra.mxu0 %v5747
    %6002 = vmatpush.bf16.msra.mxu0 %v5739
    %6003 = vmatmul.bf16.gmra.mxu0 %v5205
    %v6004 = vpop.f32.mrf.mxu0
    %v6005 = vadd.f32 %v5339, %v6004
    %v6006 = vpop.f32.mrf.mxu0
    %v6007 = vadd.f32 %v5339, %v6006
    %6008 = vdwg.mxu0
    %6009 = vmatpush.bf16.msra.mxu0 %v5859
    %6010 = vmatpush.bf16.msra.mxu0 %v5851
    %6011 = vmatpush.bf16.msra.mxu0 %v5843
    %6012 = vmatpush.bf16.msra.mxu0 %v5835
    %6013 = vmatpush.bf16.msra.mxu0 %v5827
    %6014 = vmatpush.bf16.msra.mxu0 %v5819
    %6015 = vmatpush.bf16.msra.mxu0 %v5811
    %6016 = vmatpush.bf16.msra.mxu0 %v5803
    %6017 = vmatmul.bf16.gmra.mxu0 %v5206
    %v6018 = vpop.f32.mrf.mxu0
    %v6019 = vadd.f32 %v6005, %v6018
    %v6020 = vpop.f32.mrf.mxu0
    %v6021 = vadd.f32 %v6007, %v6020
    %6022 = vdwg.mxu0
    %6023 = vmatpush.bf16.msra.mxu0 %v5796
    %6024 = vmatpush.bf16.msra.mxu0 %v5788
    %6025 = vmatpush.bf16.msra.mxu0 %v5780
    %6026 = vmatpush.bf16.msra.mxu0 %v5772
    %6027 = vmatpush.bf16.msra.mxu0 %v5764
    %6028 = vmatpush.bf16.msra.mxu0 %v5756
    %6029 = vmatpush.bf16.msra.mxu0 %v5748
    %6030 = vmatpush.bf16.msra.mxu0 %v5740
    %6031 = vmatmul.bf16.gmra.mxu0 %v5205
    %v6032 = vpop.f32.mrf.mxu0
    %v6033 = vadd.f32 %v5340, %v6032
    %v6034 = vpop.f32.mrf.mxu0
    %v6035 = vadd.f32 %v5340, %v6034
    %6036 = vdwg.mxu0
    %6037 = vmatpush.bf16.msra.mxu0 %v5860
    %6038 = vmatpush.bf16.msra.mxu0 %v5852
    %6039 = vmatpush.bf16.msra.mxu0 %v5844
    %6040 = vmatpush.bf16.msra.mxu0 %v5836
    %6041 = vmatpush.bf16.msra.mxu0 %v5828
    %6042 = vmatpush.bf16.msra.mxu0 %v5820
    %6043 = vmatpush.bf16.msra.mxu0 %v5812
    %6044 = vmatpush.bf16.msra.mxu0 %v5804
    %6045 = vmatmul.bf16.gmra.mxu0 %v5206
    %v6046 = vpop.f32.mrf.mxu0
    %v6047 = vadd.f32 %v6033, %v6046
    %v6048 = vpop.f32.mrf.mxu0
    %v6049 = vadd.f32 %v6035, %v6048
    %6050 = vdwg.mxu0
    %6051 = vmatpush.bf16.msra.mxu0 %v5797
    %6052 = vmatpush.bf16.msra.mxu0 %v5789
    %6053 = vmatpush.bf16.msra.mxu0 %v5781
    %6054 = vmatpush.bf16.msra.mxu0 %v5773
    %6055 = vmatpush.bf16.msra.mxu0 %v5765
    %6056 = vmatpush.bf16.msra.mxu0 %v5757
    %6057 = vmatpush.bf16.msra.mxu0 %v5749
    %6058 = vmatpush.bf16.msra.mxu0 %v5741
    %6059 = vmatmul.bf16.gmra.mxu0 %v5205
    %v6060 = vpop.f32.mrf.mxu0
    %v6061 = vadd.f32 %v5341, %v6060
    %v6062 = vpop.f32.mrf.mxu0
    %v6063 = vadd.f32 %v5341, %v6062
    %6064 = vdwg.mxu0
    %6065 = vmatpush.bf16.msra.mxu0 %v5861
    %6066 = vmatpush.bf16.msra.mxu0 %v5853
    %6067 = vmatpush.bf16.msra.mxu0 %v5845
    %6068 = vmatpush.bf16.msra.mxu0 %v5837
    %6069 = vmatpush.bf16.msra.mxu0 %v5829
    %6070 = vmatpush.bf16.msra.mxu0 %v5821
    %6071 = vmatpush.bf16.msra.mxu0 %v5813
    %6072 = vmatpush.bf16.msra.mxu0 %v5805
    %6073 = vmatmul.bf16.gmra.mxu0 %v5206
    %v6074 = vpop.f32.mrf.mxu0
    %v6075 = vadd.f32 %v6061, %v6074
    %v6076 = vpop.f32.mrf.mxu0
    %v6077 = vadd.f32 %v6063, %v6076
    %6078 = vdwg.mxu0
    %6079 = vmatpush.bf16.msra.mxu0 %v5798
    %6080 = vmatpush.bf16.msra.mxu0 %v5790
    %6081 = vmatpush.bf16.msra.mxu0 %v5782
    %6082 = vmatpush.bf16.msra.mxu0 %v5774
    %6083 = vmatpush.bf16.msra.mxu0 %v5766
    %6084 = vmatpush.bf16.msra.mxu0 %v5758
    %6085 = vmatpush.bf16.msra.mxu0 %v5750
    %6086 = vmatpush.bf16.msra.mxu0 %v5742
    %6087 = vmatmul.bf16.gmra.mxu0 %v5205
    %v6088 = vpop.f32.mrf.mxu0
    %v6089 = vadd.f32 %v5342, %v6088
    %v6090 = vpop.f32.mrf.mxu0
    %v6091 = vadd.f32 %v5342, %v6090
    %6092 = vdwg.mxu0
    %6093 = vmatpush.bf16.msra.mxu0 %v5862
    %6094 = vmatpush.bf16.msra.mxu0 %v5854
    %6095 = vmatpush.bf16.msra.mxu0 %v5846
    %6096 = vmatpush.bf16.msra.mxu0 %v5838
    %6097 = vmatpush.bf16.msra.mxu0 %v5830
    %6098 = vmatpush.bf16.msra.mxu0 %v5822
    %6099 = vmatpush.bf16.msra.mxu0 %v5814
    %6100 = vmatpush.bf16.msra.mxu0 %v5806
    %6101 = vmatmul.bf16.gmra.mxu0 %v5206
    %v6102 = vpop.f32.mrf.mxu0
    %v6103 = vadd.f32 %v6089, %v6102
    %v6104 = vpop.f32.mrf.mxu0
    %v6105 = vadd.f32 %v6091, %v6104
    %6106 = vdwg.mxu0
    %6107 = vmatpush.bf16.msra.mxu0 %v5799
    %6108 = vmatpush.bf16.msra.mxu0 %v5791
    %6109 = vmatpush.bf16.msra.mxu0 %v5783
    %6110 = vmatpush.bf16.msra.mxu0 %v5775
    %6111 = vmatpush.bf16.msra.mxu0 %v5767
    %6112 = vmatpush.bf16.msra.mxu0 %v5759
    %6113 = vmatpush.bf16.msra.mxu0 %v5751
    %6114 = vmatpush.bf16.msra.mxu0 %v5743
    %6115 = vmatmul.bf16.gmra.mxu0 %v5205
    %v6116 = vpop.f32.mrf.mxu0
    %v6117 = vadd.f32 %v5343, %v6116
    %v6118 = vpop.f32.mrf.mxu0
    %v6119 = vadd.f32 %v5343, %v6118
    %6120 = vdwg.mxu0
    %6121 = vmatpush.bf16.msra.mxu0 %v5863
    %6122 = vmatpush.bf16.msra.mxu0 %v5855
    %6123 = vmatpush.bf16.msra.mxu0 %v5847
    %6124 = vmatpush.bf16.msra.mxu0 %v5839
    %6125 = vmatpush.bf16.msra.mxu0 %v5831
    %6126 = vmatpush.bf16.msra.mxu0 %v5823
    %6127 = vmatpush.bf16.msra.mxu0 %v5815
    %6128 = vmatpush.bf16.msra.mxu0 %v5807
    %6129 = vmatmul.bf16.gmra.mxu0 %v5206
    %v6130 = vpop.f32.mrf.mxu0
    %v6131 = vadd.f32 %v6117, %v6130
    %v6132 = vpop.f32.mrf.mxu0
    %v6133 = vadd.f32 %v6119, %v6132
    %6134 = vdwg.mxu0
    %6135 = vmatpush.bf16.msra.mxu0 %v5800
    %6136 = vmatpush.bf16.msra.mxu0 %v5792
    %6137 = vmatpush.bf16.msra.mxu0 %v5784
    %6138 = vmatpush.bf16.msra.mxu0 %v5776
    %6139 = vmatpush.bf16.msra.mxu0 %v5768
    %6140 = vmatpush.bf16.msra.mxu0 %v5760
    %6141 = vmatpush.bf16.msra.mxu0 %v5752
    %6142 = vmatpush.bf16.msra.mxu0 %v5744
    %6143 = vmatmul.bf16.gmra.mxu0 %v5205
    %v6144 = vpop.f32.mrf.mxu0
    %v6145 = vadd.f32 %v5344, %v6144
    %v6146 = vpop.f32.mrf.mxu0
    %v6147 = vadd.f32 %v5344, %v6146
    %6148 = vdwg.mxu0
    %6149 = vmatpush.bf16.msra.mxu0 %v5864
    %6150 = vmatpush.bf16.msra.mxu0 %v5856
    %6151 = vmatpush.bf16.msra.mxu0 %v5848
    %6152 = vmatpush.bf16.msra.mxu0 %v5840
    %6153 = vmatpush.bf16.msra.mxu0 %v5832
    %6154 = vmatpush.bf16.msra.mxu0 %v5824
    %6155 = vmatpush.bf16.msra.mxu0 %v5816
    %6156 = vmatpush.bf16.msra.mxu0 %v5808
    %6157 = vmatmul.bf16.gmra.mxu0 %v5206
    %v6158 = vpop.f32.mrf.mxu0
    %v6159 = vadd.f32 %v6145, %v6158
    %v6160 = vpop.f32.mrf.mxu0
    %v6161 = vadd.f32 %v6147, %v6160
    %6162 = vdwg.mxu0
    %6163 = vmatpush.bf16.msra.mxu0 %v5801
    %6164 = vmatpush.bf16.msra.mxu0 %v5793
    %6165 = vmatpush.bf16.msra.mxu0 %v5785
    %6166 = vmatpush.bf16.msra.mxu0 %v5777
    %6167 = vmatpush.bf16.msra.mxu0 %v5769
    %6168 = vmatpush.bf16.msra.mxu0 %v5761
    %6169 = vmatpush.bf16.msra.mxu0 %v5753
    %6170 = vmatpush.bf16.msra.mxu0 %v5745
    %6171 = vmatmul.bf16.gmra.mxu0 %v5205
    %v6172 = vpop.f32.mrf.mxu0
    %v6173 = vadd.f32 %v5345, %v6172
    %v6174 = vpop.f32.mrf.mxu0
    %v6175 = vadd.f32 %v5345, %v6174
    %6176 = vdwg.mxu0
    %6177 = vmatpush.bf16.msra.mxu0 %v5865
    %6178 = vmatpush.bf16.msra.mxu0 %v5857
    %6179 = vmatpush.bf16.msra.mxu0 %v5849
    %6180 = vmatpush.bf16.msra.mxu0 %v5841
    %6181 = vmatpush.bf16.msra.mxu0 %v5833
    %6182 = vmatpush.bf16.msra.mxu0 %v5825
    %6183 = vmatpush.bf16.msra.mxu0 %v5817
    %6184 = vmatpush.bf16.msra.mxu0 %v5809
    %6185 = vmatmul.bf16.gmra.mxu0 %v5206
    %v6186 = vpop.f32.mrf.mxu0
    %v6187 = vadd.f32 %v6173, %v6186
    %v6188 = vpop.f32.mrf.mxu0
    %v6189 = vadd.f32 %v6175, %v6188
    %6190 = vdwg.mxu0
    %6191 = vmatpush.bf16.msra.mxu0 %v5802
    %6192 = vmatpush.bf16.msra.mxu0 %v5794
    %6193 = vmatpush.bf16.msra.mxu0 %v5786
    %6194 = vmatpush.bf16.msra.mxu0 %v5778
    %6195 = vmatpush.bf16.msra.mxu0 %v5770
    %6196 = vmatpush.bf16.msra.mxu0 %v5762
    %6197 = vmatpush.bf16.msra.mxu0 %v5754
    %6198 = vmatpush.bf16.msra.mxu0 %v5746
    %6199 = vmatmul.bf16.gmra.mxu0 %v5205
    %v6200 = vpop.f32.mrf.mxu0
    %v6201 = vadd.f32 %v5346, %v6200
    %v6202 = vpop.f32.mrf.mxu0
    %v6203 = vadd.f32 %v5346, %v6202
    %6204 = vdwg.mxu0
    %6205 = vmatpush.bf16.msra.mxu0 %v5866
    %6206 = vmatpush.bf16.msra.mxu0 %v5858
    %6207 = vmatpush.bf16.msra.mxu0 %v5850
    %6208 = vmatpush.bf16.msra.mxu0 %v5842
    %6209 = vmatpush.bf16.msra.mxu0 %v5834
    %6210 = vmatpush.bf16.msra.mxu0 %v5826
    %6211 = vmatpush.bf16.msra.mxu0 %v5818
    %6212 = vmatpush.bf16.msra.mxu0 %v5810
    %6213 = vmatmul.bf16.gmra.mxu0 %v5206
    %v6214 = vpop.f32.mrf.mxu0
    %v6215 = vadd.f32 %v6201, %v6214
    %v6216 = vpop.f32.mrf.mxu0
    %v6217 = vadd.f32 %v6203, %v6216
    %6218 = vdwg.mxu0
    %v6219 = vmul.f32 %v6019, 0.5
    %v6220 = vmul.f32 %v6047, 0.5
    %v6221 = vmul.f32 %v6075, 0.5
    %v6222 = vmul.f32 %v6103, 0.5
    %v6223 = vmul.f32 %v6131, 0.5
    %v6224 = vmul.f32 %v6159, 0.5
    %v6225 = vmul.f32 %v6187, 0.5
    %v6226 = vmul.f32 %v6215, 0.5
    %v6227 = vmul.f32 %v6021, 0.5
    %v6228 = vmul.f32 %v6049, 0.5
    %v6229 = vmul.f32 %v6077, 0.5
    %v6230 = vmul.f32 %v6105, 0.5
    %v6231 = vmul.f32 %v6133, 0.5
    %v6232 = vmul.f32 %v6161, 0.5
    %v6233 = vmul.f32 %v6189, 0.5
    %v6234 = vmul.f32 %v6217, 0.5
    %v6235 = vmul.f32 %v6019, 0.044715
    %v6236 = vmul.f32 %v6047, 0.044715
    %v6237 = vmul.f32 %v6075, 0.044715
    %v6238 = vmul.f32 %v6103, 0.044715
    %v6239 = vmul.f32 %v6131, 0.044715
    %v6240 = vmul.f32 %v6159, 0.044715
    %v6241 = vmul.f32 %v6187, 0.044715
    %v6242 = vmul.f32 %v6215, 0.044715
    %v6243 = vmul.f32 %v6021, 0.044715
    %v6244 = vmul.f32 %v6049, 0.044715
    %v6245 = vmul.f32 %v6077, 0.044715
    %v6246 = vmul.f32 %v6105, 0.044715
    %v6247 = vmul.f32 %v6133, 0.044715
    %v6248 = vmul.f32 %v6161, 0.044715
    %v6249 = vmul.f32 %v6189, 0.044715
    %v6250 = vmul.f32 %v6217, 0.044715
    %v6251 = vmul.f32 %v6235, %v6019
    %v6252 = vmul.f32 %v6236, %v6047
    %v6253 = vmul.f32 %v6237, %v6075
    %v6254 = vmul.f32 %v6238, %v6103
    %v6255 = vmul.f32 %v6239, %v6131
    %v6256 = vmul.f32 %v6240, %v6159
    %v6257 = vmul.f32 %v6241, %v6187
    %v6258 = vmul.f32 %v6242, %v6215
    %v6259 = vmul.f32 %v6243, %v6021
    %v6260 = vmul.f32 %v6244, %v6049
    %v6261 = vmul.f32 %v6245, %v6077
    %v6262 = vmul.f32 %v6246, %v6105
    %v6263 = vmul.f32 %v6247, %v6133
    %v6264 = vmul.f32 %v6248, %v6161
    %v6265 = vmul.f32 %v6249, %v6189
    %v6266 = vmul.f32 %v6250, %v6217
    %v6267 = vmul.f32 %v6251, %v6019
    %v6268 = vmul.f32 %v6252, %v6047
    %v6269 = vmul.f32 %v6253, %v6075
    %v6270 = vmul.f32 %v6254, %v6103
    %v6271 = vmul.f32 %v6255, %v6131
    %v6272 = vmul.f32 %v6256, %v6159
    %v6273 = vmul.f32 %v6257, %v6187
    %v6274 = vmul.f32 %v6258, %v6215
    %v6275 = vmul.f32 %v6259, %v6021
    %v6276 = vmul.f32 %v6260, %v6049
    %v6277 = vmul.f32 %v6261, %v6077
    %v6278 = vmul.f32 %v6262, %v6105
    %v6279 = vmul.f32 %v6263, %v6133
    %v6280 = vmul.f32 %v6264, %v6161
    %v6281 = vmul.f32 %v6265, %v6189
    %v6282 = vmul.f32 %v6266, %v6217
    %v6283 = vadd.f32 %v6019, %v6267
    %v6284 = vadd.f32 %v6047, %v6268
    %v6285 = vadd.f32 %v6075, %v6269
    %v6286 = vadd.f32 %v6103, %v6270
    %v6287 = vadd.f32 %v6131, %v6271
    %v6288 = vadd.f32 %v6159, %v6272
    %v6289 = vadd.f32 %v6187, %v6273
    %v6290 = vadd.f32 %v6215, %v6274
    %v6291 = vadd.f32 %v6021, %v6275
    %v6292 = vadd.f32 %v6049, %v6276
    %v6293 = vadd.f32 %v6077, %v6277
    %v6294 = vadd.f32 %v6105, %v6278
    %v6295 = vadd.f32 %v6133, %v6279
    %v6296 = vadd.f32 %v6161, %v6280
    %v6297 = vadd.f32 %v6189, %v6281
    %v6298 = vadd.f32 %v6217, %v6282
    %v6299 = vmul.f32 %v6283, 0.7978846
    %v6300 = vmul.f32 %v6284, 0.7978846
    %v6301 = vmul.f32 %v6285, 0.7978846
    %v6302 = vmul.f32 %v6286, 0.7978846
    %v6303 = vmul.f32 %v6287, 0.7978846
    %v6304 = vmul.f32 %v6288, 0.7978846
    %v6305 = vmul.f32 %v6289, 0.7978846
    %v6306 = vmul.f32 %v6290, 0.7978846
    %v6307 = vmul.f32 %v6291, 0.7978846
    %v6308 = vmul.f32 %v6292, 0.7978846
    %v6309 = vmul.f32 %v6293, 0.7978846
    %v6310 = vmul.f32 %v6294, 0.7978846
    %v6311 = vmul.f32 %v6295, 0.7978846
    %v6312 = vmul.f32 %v6296, 0.7978846
    %v6313 = vmul.f32 %v6297, 0.7978846
    %v6314 = vmul.f32 %v6298, 0.7978846
    %v6315 = vtanh.pop %v6299
    %v6316 = vtanh.pop %v6300
    %v6317 = vtanh.pop %v6301
    %v6318 = vtanh.pop %v6302
    %v6319 = vtanh.pop %v6303
    %v6320 = vtanh.pop %v6304
    %v6321 = vtanh.pop %v6305
    %v6322 = vtanh.pop %v6306
    %v6323 = vtanh.pop %v6307
    %v6324 = vtanh.pop %v6308
    %v6325 = vtanh.pop %v6309
    %v6326 = vtanh.pop %v6310
    %v6327 = vtanh.pop %v6311
    %v6328 = vtanh.pop %v6312
    %v6329 = vtanh.pop %v6313
    %v6330 = vtanh.pop %v6314
    %v6331 = vadd.f32 %v6315, 1.0
    %v6332 = vadd.f32 %v6316, 1.0
    %v6333 = vadd.f32 %v6317, 1.0
    %v6334 = vadd.f32 %v6318, 1.0
    %v6335 = vadd.f32 %v6319, 1.0
    %v6336 = vadd.f32 %v6320, 1.0
    %v6337 = vadd.f32 %v6321, 1.0
    %v6338 = vadd.f32 %v6322, 1.0
    %v6339 = vadd.f32 %v6323, 1.0
    %v6340 = vadd.f32 %v6324, 1.0
    %v6341 = vadd.f32 %v6325, 1.0
    %v6342 = vadd.f32 %v6326, 1.0
    %v6343 = vadd.f32 %v6327, 1.0
    %v6344 = vadd.f32 %v6328, 1.0
    %v6345 = vadd.f32 %v6329, 1.0
    %v6346 = vadd.f32 %v6330, 1.0
    %v6347 = vmul.f32 %v6219, %v6331
    %v6348 = vmul.f32 %v6220, %v6332
    %v6349 = vmul.f32 %v6221, %v6333
    %v6350 = vmul.f32 %v6222, %v6334
    %v6351 = vmul.f32 %v6223, %v6335
    %v6352 = vmul.f32 %v6224, %v6336
    %v6353 = vmul.f32 %v6225, %v6337
    %v6354 = vmul.f32 %v6226, %v6338
    %v6355 = vmul.f32 %v6227, %v6339
    %v6356 = vmul.f32 %v6228, %v6340
    %v6357 = vmul.f32 %v6229, %v6341
    %v6358 = vmul.f32 %v6230, %v6342
    %v6359 = vmul.f32 %v6231, %v6343
    %v6360 = vmul.f32 %v6232, %v6344
    %v6361 = vmul.f32 %v6233, %v6345
    %v6362 = vmul.f32 %v6234, %v6346
    %v6363 = vpack.c.bf16 %v6355, %v6347
    %v6364 = vpack.c.bf16 %v6356, %v6348
    %v6365 = vpack.c.bf16 %v6357, %v6349
    %v6366 = vpack.c.bf16 %v6358, %v6350
    %v6367 = vpack.c.bf16 %v6359, %v6351
    %v6368 = vpack.c.bf16 %v6360, %v6352
    %v6369 = vpack.c.bf16 %v6361, %v6353
    %v6370 = vpack.c.bf16 %v6362, %v6354
    %s6371 = scalar_lea.vmem [#allocation10], 1024
    %v6372 = vld [vmem:[%s6371] sm:$0xff]
    %v6373 = vld [vmem:[%s6371 + $0x8] sm:$0xff]
    %v6374 = vld [vmem:[%s6371 + $0x10] sm:$0xff]
    %v6375 = vld [vmem:[%s6371 + $0x18] sm:$0xff]
    %v6376 = vld [vmem:[%s6371 + $0x20] sm:$0xff]
    %v6377 = vld [vmem:[%s6371 + $0x28] sm:$0xff]
    %v6378 = vld [vmem:[%s6371 + $0x30] sm:$0xff]
    %v6379 = vld [vmem:[%s6371 + $0x38] sm:$0xff]
    %v6380 = vld [vmem:[%s6371 + $0x40] sm:$0xff]
    %v6381 = vld [vmem:[%s6371 + $0x48] sm:$0xff]
    %v6382 = vld [vmem:[%s6371 + $0x50] sm:$0xff]
    %v6383 = vld [vmem:[%s6371 + $0x58] sm:$0xff]
    %v6384 = vld [vmem:[%s6371 + $0x60] sm:$0xff]
    %v6385 = vld [vmem:[%s6371 + $0x68] sm:$0xff]
    %v6386 = vld [vmem:[%s6371 + $0x70] sm:$0xff]
    %v6387 = vld [vmem:[%s6371 + $0x78] sm:$0xff]
    %v6388 = vld [vmem:[%s6371 + $0x80] sm:$0xff]
    %v6389 = vld [vmem:[%s6371 + $0x88] sm:$0xff]
    %v6390 = vld [vmem:[%s6371 + $0x90] sm:$0xff]
    %v6391 = vld [vmem:[%s6371 + $0x98] sm:$0xff]
    %v6392 = vld [vmem:[%s6371 + $0xa0] sm:$0xff]
    %v6393 = vld [vmem:[%s6371 + $0xa8] sm:$0xff]
    %v6394 = vld [vmem:[%s6371 + $0xb0] sm:$0xff]
    %v6395 = vld [vmem:[%s6371 + $0xb8] sm:$0xff]
    %v6396 = vld [vmem:[%s6371 + $0xc0] sm:$0xff]
    %v6397 = vld [vmem:[%s6371 + $0xc8] sm:$0xff]
    %v6398 = vld [vmem:[%s6371 + $0xd0] sm:$0xff]
    %v6399 = vld [vmem:[%s6371 + $0xd8] sm:$0xff]
    %v6400 = vld [vmem:[%s6371 + $0xe0] sm:$0xff]
    %v6401 = vld [vmem:[%s6371 + $0xe8] sm:$0xff]
    %v6402 = vld [vmem:[%s6371 + $0xf0] sm:$0xff]
    %v6403 = vld [vmem:[%s6371 + $0xf8] sm:$0xff]
    %v6404 = vld [vmem:[%s6371 + $0x100] sm:$0xff]
    %v6405 = vld [vmem:[%s6371 + $0x108] sm:$0xff]
    %v6406 = vld [vmem:[%s6371 + $0x110] sm:$0xff]
    %v6407 = vld [vmem:[%s6371 + $0x118] sm:$0xff]
    %v6408 = vld [vmem:[%s6371 + $0x120] sm:$0xff]
    %v6409 = vld [vmem:[%s6371 + $0x128] sm:$0xff]
    %v6410 = vld [vmem:[%s6371 + $0x130] sm:$0xff]
    %v6411 = vld [vmem:[%s6371 + $0x138] sm:$0xff]
    %v6412 = vld [vmem:[%s6371 + $0x140] sm:$0xff]
    %v6413 = vld [vmem:[%s6371 + $0x148] sm:$0xff]
    %v6414 = vld [vmem:[%s6371 + $0x150] sm:$0xff]
    %v6415 = vld [vmem:[%s6371 + $0x158] sm:$0xff]
    %v6416 = vld [vmem:[%s6371 + $0x160] sm:$0xff]
    %v6417 = vld [vmem:[%s6371 + $0x168] sm:$0xff]
    %v6418 = vld [vmem:[%s6371 + $0x170] sm:$0xff]
    %v6419 = vld [vmem:[%s6371 + $0x178] sm:$0xff]
    %v6420 = vld [vmem:[%s6371 + $0x180] sm:$0xff]
    %v6421 = vld [vmem:[%s6371 + $0x188] sm:$0xff]
    %v6422 = vld [vmem:[%s6371 + $0x190] sm:$0xff]
    %v6423 = vld [vmem:[%s6371 + $0x198] sm:$0xff]
    %v6424 = vld [vmem:[%s6371 + $0x1a0] sm:$0xff]
    %v6425 = vld [vmem:[%s6371 + $0x1a8] sm:$0xff]
    %v6426 = vld [vmem:[%s6371 + $0x1b0] sm:$0xff]
    %v6427 = vld [vmem:[%s6371 + $0x1b8] sm:$0xff]
    %v6428 = vld [vmem:[%s6371 + $0x1c0] sm:$0xff]
    %v6429 = vld [vmem:[%s6371 + $0x1c8] sm:$0xff]
    %v6430 = vld [vmem:[%s6371 + $0x1d0] sm:$0xff]
    %v6431 = vld [vmem:[%s6371 + $0x1d8] sm:$0xff]
    %v6432 = vld [vmem:[%s6371 + $0x1e0] sm:$0xff]
    %v6433 = vld [vmem:[%s6371 + $0x1e8] sm:$0xff]
    %v6434 = vld [vmem:[%s6371 + $0x1f0] sm:$0xff]
    %v6435 = vld [vmem:[%s6371 + $0x1f8] sm:$0xff]
    %v6436 = vld [vmem:[%s6371 + $0x200] sm:$0xff]
    %v6437 = vld [vmem:[%s6371 + $0x208] sm:$0xff]
    %v6438 = vld [vmem:[%s6371 + $0x210] sm:$0xff]
    %v6439 = vld [vmem:[%s6371 + $0x218] sm:$0xff]
    %v6440 = vld [vmem:[%s6371 + $0x220] sm:$0xff]
    %v6441 = vld [vmem:[%s6371 + $0x228] sm:$0xff]
    %v6442 = vld [vmem:[%s6371 + $0x230] sm:$0xff]
    %v6443 = vld [vmem:[%s6371 + $0x238] sm:$0xff]
    %v6444 = vld [vmem:[%s6371 + $0x240] sm:$0xff]
    %v6445 = vld [vmem:[%s6371 + $0x248] sm:$0xff]
    %v6446 = vld [vmem:[%s6371 + $0x250] sm:$0xff]
    %v6447 = vld [vmem:[%s6371 + $0x258] sm:$0xff]
    %v6448 = vld [vmem:[%s6371 + $0x260] sm:$0xff]
    %v6449 = vld [vmem:[%s6371 + $0x268] sm:$0xff]
    %v6450 = vld [vmem:[%s6371 + $0x270] sm:$0xff]
    %v6451 = vld [vmem:[%s6371 + $0x278] sm:$0xff]
    %v6452 = vld [vmem:[%s6371 + $0x280] sm:$0xff]
    %v6453 = vld [vmem:[%s6371 + $0x288] sm:$0xff]
    %v6454 = vld [vmem:[%s6371 + $0x290] sm:$0xff]
    %v6455 = vld [vmem:[%s6371 + $0x298] sm:$0xff]
    %v6456 = vld [vmem:[%s6371 + $0x2a0] sm:$0xff]
    %v6457 = vld [vmem:[%s6371 + $0x2a8] sm:$0xff]
    %v6458 = vld [vmem:[%s6371 + $0x2b0] sm:$0xff]
    %v6459 = vld [vmem:[%s6371 + $0x2b8] sm:$0xff]
    %v6460 = vld [vmem:[%s6371 + $0x2c0] sm:$0xff]
    %v6461 = vld [vmem:[%s6371 + $0x2c8] sm:$0xff]
    %v6462 = vld [vmem:[%s6371 + $0x2d0] sm:$0xff]
    %v6463 = vld [vmem:[%s6371 + $0x2d8] sm:$0xff]
    %v6464 = vld [vmem:[%s6371 + $0x2e0] sm:$0xff]
    %v6465 = vld [vmem:[%s6371 + $0x2e8] sm:$0xff]
    %v6466 = vld [vmem:[%s6371 + $0x2f0] sm:$0xff]
    %v6467 = vld [vmem:[%s6371 + $0x2f8] sm:$0xff]
    %v6468 = vld [vmem:[%s6371 + $0x300] sm:$0xff]
    %v6469 = vld [vmem:[%s6371 + $0x308] sm:$0xff]
    %v6470 = vld [vmem:[%s6371 + $0x310] sm:$0xff]
    %v6471 = vld [vmem:[%s6371 + $0x318] sm:$0xff]
    %v6472 = vld [vmem:[%s6371 + $0x320] sm:$0xff]
    %v6473 = vld [vmem:[%s6371 + $0x328] sm:$0xff]
    %v6474 = vld [vmem:[%s6371 + $0x330] sm:$0xff]
    %v6475 = vld [vmem:[%s6371 + $0x338] sm:$0xff]
    %v6476 = vld [vmem:[%s6371 + $0x340] sm:$0xff]
    %v6477 = vld [vmem:[%s6371 + $0x348] sm:$0xff]
    %v6478 = vld [vmem:[%s6371 + $0x350] sm:$0xff]
    %v6479 = vld [vmem:[%s6371 + $0x358] sm:$0xff]
    %v6480 = vld [vmem:[%s6371 + $0x360] sm:$0xff]
    %v6481 = vld [vmem:[%s6371 + $0x368] sm:$0xff]
    %v6482 = vld [vmem:[%s6371 + $0x370] sm:$0xff]
    %v6483 = vld [vmem:[%s6371 + $0x378] sm:$0xff]
    %v6484 = vld [vmem:[%s6371 + $0x380] sm:$0xff]
    %v6485 = vld [vmem:[%s6371 + $0x388] sm:$0xff]
    %v6486 = vld [vmem:[%s6371 + $0x390] sm:$0xff]
    %v6487 = vld [vmem:[%s6371 + $0x398] sm:$0xff]
    %v6488 = vld [vmem:[%s6371 + $0x3a0] sm:$0xff]
    %v6489 = vld [vmem:[%s6371 + $0x3a8] sm:$0xff]
    %v6490 = vld [vmem:[%s6371 + $0x3b0] sm:$0xff]
    %v6491 = vld [vmem:[%s6371 + $0x3b8] sm:$0xff]
    %v6492 = vld [vmem:[%s6371 + $0x3c0] sm:$0xff]
    %v6493 = vld [vmem:[%s6371 + $0x3c8] sm:$0xff]
    %v6494 = vld [vmem:[%s6371 + $0x3d0] sm:$0xff]
    %v6495 = vld [vmem:[%s6371 + $0x3d8] sm:$0xff]
    %v6496 = vld [vmem:[%s6371 + $0x3e0] sm:$0xff]
    %v6497 = vld [vmem:[%s6371 + $0x3e8] sm:$0xff]
    %v6498 = vld [vmem:[%s6371 + $0x3f0] sm:$0xff]
    %v6499 = vld [vmem:[%s6371 + $0x3f8] sm:$0xff]
    %s6500 = scalar_lea.vmem %s15, 2
    %v6501 = vld [vmem:[%s6500] sm:$0x3]
    %v6503 = vperm.slane %v6501, 0
    %v6504 = vperm.slane %v6501, 1
    %v6635 = vunpack.c.l.b16 %v6372
    %v6636 = vunpack.c.h.b16 %v6372
    %v6637 = vunpack.c.l.b16 %v6373
    %v6638 = vunpack.c.h.b16 %v6373
    %v6639 = vunpack.c.l.b16 %v6374
    %v6640 = vunpack.c.h.b16 %v6374
    %v6641 = vunpack.c.l.b16 %v6375
    %v6642 = vunpack.c.h.b16 %v6375
    %v6643 = vunpack.c.l.b16 %v6376
    %v6644 = vunpack.c.h.b16 %v6376
    %v6645 = vunpack.c.l.b16 %v6377
    %v6646 = vunpack.c.h.b16 %v6377
    %v6647 = vunpack.c.l.b16 %v6378
    %v6648 = vunpack.c.h.b16 %v6378
    %v6649 = vunpack.c.l.b16 %v6379
    %v6650 = vunpack.c.h.b16 %v6379
    %v6651 = vunpack.c.l.b16 %v6380
    %v6652 = vunpack.c.h.b16 %v6380
    %v6653 = vunpack.c.l.b16 %v6381
    %v6654 = vunpack.c.h.b16 %v6381
    %v6655 = vunpack.c.l.b16 %v6382
    %v6656 = vunpack.c.h.b16 %v6382
    %v6657 = vunpack.c.l.b16 %v6383
    %v6658 = vunpack.c.h.b16 %v6383
    %v6659 = vunpack.c.l.b16 %v6384
    %v6660 = vunpack.c.h.b16 %v6384
    %v6661 = vunpack.c.l.b16 %v6385
    %v6662 = vunpack.c.h.b16 %v6385
    %v6663 = vunpack.c.l.b16 %v6386
    %v6664 = vunpack.c.h.b16 %v6386
    %v6665 = vunpack.c.l.b16 %v6387
    %v6666 = vunpack.c.h.b16 %v6387
    %v6667 = vunpack.c.l.b16 %v6388
    %v6668 = vunpack.c.h.b16 %v6388
    %v6669 = vunpack.c.l.b16 %v6389
    %v6670 = vunpack.c.h.b16 %v6389
    %v6671 = vunpack.c.l.b16 %v6390
    %v6672 = vunpack.c.h.b16 %v6390
    %v6673 = vunpack.c.l.b16 %v6391
    %v6674 = vunpack.c.h.b16 %v6391
    %v6675 = vunpack.c.l.b16 %v6392
    %v6676 = vunpack.c.h.b16 %v6392
    %v6677 = vunpack.c.l.b16 %v6393
    %v6678 = vunpack.c.h.b16 %v6393
    %v6679 = vunpack.c.l.b16 %v6394
    %v6680 = vunpack.c.h.b16 %v6394
    %v6681 = vunpack.c.l.b16 %v6395
    %v6682 = vunpack.c.h.b16 %v6395
    %v6683 = vunpack.c.l.b16 %v6396
    %v6684 = vunpack.c.h.b16 %v6396
    %v6685 = vunpack.c.l.b16 %v6397
    %v6686 = vunpack.c.h.b16 %v6397
    %v6687 = vunpack.c.l.b16 %v6398
    %v6688 = vunpack.c.h.b16 %v6398
    %v6689 = vunpack.c.l.b16 %v6399
    %v6690 = vunpack.c.h.b16 %v6399
    %v6691 = vunpack.c.l.b16 %v6400
    %v6692 = vunpack.c.h.b16 %v6400
    %v6693 = vunpack.c.l.b16 %v6401
    %v6694 = vunpack.c.h.b16 %v6401
    %v6695 = vunpack.c.l.b16 %v6402
    %v6696 = vunpack.c.h.b16 %v6402
    %v6697 = vunpack.c.l.b16 %v6403
    %v6698 = vunpack.c.h.b16 %v6403
    %v6699 = vunpack.c.l.b16 %v6404
    %v6700 = vunpack.c.h.b16 %v6404
    %v6701 = vunpack.c.l.b16 %v6405
    %v6702 = vunpack.c.h.b16 %v6405
    %v6703 = vunpack.c.l.b16 %v6406
    %v6704 = vunpack.c.h.b16 %v6406
    %v6705 = vunpack.c.l.b16 %v6407
    %v6706 = vunpack.c.h.b16 %v6407
    %v6707 = vunpack.c.l.b16 %v6408
    %v6708 = vunpack.c.h.b16 %v6408
    %v6709 = vunpack.c.l.b16 %v6409
    %v6710 = vunpack.c.h.b16 %v6409
    %v6711 = vunpack.c.l.b16 %v6410
    %v6712 = vunpack.c.h.b16 %v6410
    %v6713 = vunpack.c.l.b16 %v6411
    %v6714 = vunpack.c.h.b16 %v6411
    %v6715 = vunpack.c.l.b16 %v6412
    %v6716 = vunpack.c.h.b16 %v6412
    %v6717 = vunpack.c.l.b16 %v6413
    %v6718 = vunpack.c.h.b16 %v6413
    %v6719 = vunpack.c.l.b16 %v6414
    %v6720 = vunpack.c.h.b16 %v6414
    %v6721 = vunpack.c.l.b16 %v6415
    %v6722 = vunpack.c.h.b16 %v6415
    %v6723 = vunpack.c.l.b16 %v6416
    %v6724 = vunpack.c.h.b16 %v6416
    %v6725 = vunpack.c.l.b16 %v6417
    %v6726 = vunpack.c.h.b16 %v6417
    %v6727 = vunpack.c.l.b16 %v6418
    %v6728 = vunpack.c.h.b16 %v6418
    %v6729 = vunpack.c.l.b16 %v6419
    %v6730 = vunpack.c.h.b16 %v6419
    %v6731 = vunpack.c.l.b16 %v6420
    %v6732 = vunpack.c.h.b16 %v6420
    %v6733 = vunpack.c.l.b16 %v6421
    %v6734 = vunpack.c.h.b16 %v6421
    %v6735 = vunpack.c.l.b16 %v6422
    %v6736 = vunpack.c.h.b16 %v6422
    %v6737 = vunpack.c.l.b16 %v6423
    %v6738 = vunpack.c.h.b16 %v6423
    %v6739 = vunpack.c.l.b16 %v6424
    %v6740 = vunpack.c.h.b16 %v6424
    %v6741 = vunpack.c.l.b16 %v6425
    %v6742 = vunpack.c.h.b16 %v6425
    %v6743 = vunpack.c.l.b16 %v6426
    %v6744 = vunpack.c.h.b16 %v6426
    %v6745 = vunpack.c.l.b16 %v6427
    %v6746 = vunpack.c.h.b16 %v6427
    %v6747 = vunpack.c.l.b16 %v6428
    %v6748 = vunpack.c.h.b16 %v6428
    %v6749 = vunpack.c.l.b16 %v6429
    %v6750 = vunpack.c.h.b16 %v6429
    %v6751 = vunpack.c.l.b16 %v6430
    %v6752 = vunpack.c.h.b16 %v6430
    %v6753 = vunpack.c.l.b16 %v6431
    %v6754 = vunpack.c.h.b16 %v6431
    %v6755 = vunpack.c.l.b16 %v6432
    %v6756 = vunpack.c.h.b16 %v6432
    %v6757 = vunpack.c.l.b16 %v6433
    %v6758 = vunpack.c.h.b16 %v6433
    %v6759 = vunpack.c.l.b16 %v6434
    %v6760 = vunpack.c.h.b16 %v6434
    %v6761 = vunpack.c.l.b16 %v6435
    %v6762 = vunpack.c.h.b16 %v6435
    %v6763 = vunpack.c.l.b16 %v6436
    %v6764 = vunpack.c.h.b16 %v6436
    %v6765 = vunpack.c.l.b16 %v6437
    %v6766 = vunpack.c.h.b16 %v6437
    %v6767 = vunpack.c.l.b16 %v6438
    %v6768 = vunpack.c.h.b16 %v6438
    %v6769 = vunpack.c.l.b16 %v6439
    %v6770 = vunpack.c.h.b16 %v6439
    %v6771 = vunpack.c.l.b16 %v6440
    %v6772 = vunpack.c.h.b16 %v6440
    %v6773 = vunpack.c.l.b16 %v6441
    %v6774 = vunpack.c.h.b16 %v6441
    %v6775 = vunpack.c.l.b16 %v6442
    %v6776 = vunpack.c.h.b16 %v6442
    %v6777 = vunpack.c.l.b16 %v6443
    %v6778 = vunpack.c.h.b16 %v6443
    %v6779 = vunpack.c.l.b16 %v6444
    %v6780 = vunpack.c.h.b16 %v6444
    %v6781 = vunpack.c.l.b16 %v6445
    %v6782 = vunpack.c.h.b16 %v6445
    %v6783 = vunpack.c.l.b16 %v6446
    %v6784 = vunpack.c.h.b16 %v6446
    %v6785 = vunpack.c.l.b16 %v6447
    %v6786 = vunpack.c.h.b16 %v6447
    %v6787 = vunpack.c.l.b16 %v6448
    %v6788 = vunpack.c.h.b16 %v6448
    %v6789 = vunpack.c.l.b16 %v6449
    %v6790 = vunpack.c.h.b16 %v6449
    %v6791 = vunpack.c.l.b16 %v6450
    %v6792 = vunpack.c.h.b16 %v6450
    %v6793 = vunpack.c.l.b16 %v6451
    %v6794 = vunpack.c.h.b16 %v6451
    %v6795 = vunpack.c.l.b16 %v6452
    %v6796 = vunpack.c.h.b16 %v6452
    %v6797 = vunpack.c.l.b16 %v6453
    %v6798 = vunpack.c.h.b16 %v6453
    %v6799 = vunpack.c.l.b16 %v6454
    %v6800 = vunpack.c.h.b16 %v6454
    %v6801 = vunpack.c.l.b16 %v6455
    %v6802 = vunpack.c.h.b16 %v6455
    %v6803 = vunpack.c.l.b16 %v6456
    %v6804 = vunpack.c.h.b16 %v6456
    %v6805 = vunpack.c.l.b16 %v6457
    %v6806 = vunpack.c.h.b16 %v6457
    %v6807 = vunpack.c.l.b16 %v6458
    %v6808 = vunpack.c.h.b16 %v6458
    %v6809 = vunpack.c.l.b16 %v6459
    %v6810 = vunpack.c.h.b16 %v6459
    %v6811 = vunpack.c.l.b16 %v6460
    %v6812 = vunpack.c.h.b16 %v6460
    %v6813 = vunpack.c.l.b16 %v6461
    %v6814 = vunpack.c.h.b16 %v6461
    %v6815 = vunpack.c.l.b16 %v6462
    %v6816 = vunpack.c.h.b16 %v6462
    %v6817 = vunpack.c.l.b16 %v6463
    %v6818 = vunpack.c.h.b16 %v6463
    %v6819 = vunpack.c.l.b16 %v6464
    %v6820 = vunpack.c.h.b16 %v6464
    %v6821 = vunpack.c.l.b16 %v6465
    %v6822 = vunpack.c.h.b16 %v6465
    %v6823 = vunpack.c.l.b16 %v6466
    %v6824 = vunpack.c.h.b16 %v6466
    %v6825 = vunpack.c.l.b16 %v6467
    %v6826 = vunpack.c.h.b16 %v6467
    %v6827 = vunpack.c.l.b16 %v6468
    %v6828 = vunpack.c.h.b16 %v6468
    %v6829 = vunpack.c.l.b16 %v6469
    %v6830 = vunpack.c.h.b16 %v6469
    %v6831 = vunpack.c.l.b16 %v6470
    %v6832 = vunpack.c.h.b16 %v6470
    %v6833 = vunpack.c.l.b16 %v6471
    %v6834 = vunpack.c.h.b16 %v6471
    %v6835 = vunpack.c.l.b16 %v6472
    %v6836 = vunpack.c.h.b16 %v6472
    %v6837 = vunpack.c.l.b16 %v6473
    %v6838 = vunpack.c.h.b16 %v6473
    %v6839 = vunpack.c.l.b16 %v6474
    %v6840 = vunpack.c.h.b16 %v6474
    %v6841 = vunpack.c.l.b16 %v6475
    %v6842 = vunpack.c.h.b16 %v6475
    %v6843 = vunpack.c.l.b16 %v6476
    %v6844 = vunpack.c.h.b16 %v6476
    %v6845 = vunpack.c.l.b16 %v6477
    %v6846 = vunpack.c.h.b16 %v6477
    %v6847 = vunpack.c.l.b16 %v6478
    %v6848 = vunpack.c.h.b16 %v6478
    %v6849 = vunpack.c.l.b16 %v6479
    %v6850 = vunpack.c.h.b16 %v6479
    %v6851 = vunpack.c.l.b16 %v6480
    %v6852 = vunpack.c.h.b16 %v6480
    %v6853 = vunpack.c.l.b16 %v6481
    %v6854 = vunpack.c.h.b16 %v6481
    %v6855 = vunpack.c.l.b16 %v6482
    %v6856 = vunpack.c.h.b16 %v6482
    %v6857 = vunpack.c.l.b16 %v6483
    %v6858 = vunpack.c.h.b16 %v6483
    %v6859 = vunpack.c.l.b16 %v6484
    %v6860 = vunpack.c.h.b16 %v6484
    %v6861 = vunpack.c.l.b16 %v6485
    %v6862 = vunpack.c.h.b16 %v6485
    %v6863 = vunpack.c.l.b16 %v6486
    %v6864 = vunpack.c.h.b16 %v6486
    %v6865 = vunpack.c.l.b16 %v6487
    %v6866 = vunpack.c.h.b16 %v6487
    %v6867 = vunpack.c.l.b16 %v6488
    %v6868 = vunpack.c.h.b16 %v6488
    %v6869 = vunpack.c.l.b16 %v6489
    %v6870 = vunpack.c.h.b16 %v6489
    %v6871 = vunpack.c.l.b16 %v6490
    %v6872 = vunpack.c.h.b16 %v6490
    %v6873 = vunpack.c.l.b16 %v6491
    %v6874 = vunpack.c.h.b16 %v6491
    %v6875 = vunpack.c.l.b16 %v6492
    %v6876 = vunpack.c.h.b16 %v6492
    %v6877 = vunpack.c.l.b16 %v6493
    %v6878 = vunpack.c.h.b16 %v6493
    %v6879 = vunpack.c.l.b16 %v6494
    %v6880 = vunpack.c.h.b16 %v6494
    %v6881 = vunpack.c.l.b16 %v6495
    %v6882 = vunpack.c.h.b16 %v6495
    %v6883 = vunpack.c.l.b16 %v6496
    %v6884 = vunpack.c.h.b16 %v6496
    %v6885 = vunpack.c.l.b16 %v6497
    %v6886 = vunpack.c.h.b16 %v6497
    %v6887 = vunpack.c.l.b16 %v6498
    %v6888 = vunpack.c.h.b16 %v6498
    %v6889 = vunpack.c.l.b16 %v6499
    %v6890 = vunpack.c.h.b16 %v6499
    %v6891 = vpack.c.b16 %v6637, %v6635
    %v6892 = vpack.c.b16 %v6638, %v6636
    %v6893 = vpack.c.b16 %v6641, %v6639
    %v6894 = vpack.c.b16 %v6642, %v6640
    %v6895 = vpack.c.b16 %v6645, %v6643
    %v6896 = vpack.c.b16 %v6646, %v6644
    %v6897 = vpack.c.b16 %v6649, %v6647
    %v6898 = vpack.c.b16 %v6650, %v6648
    %v6899 = vpack.c.b16 %v6653, %v6651
    %v6900 = vpack.c.b16 %v6654, %v6652
    %v6901 = vpack.c.b16 %v6657, %v6655
    %v6902 = vpack.c.b16 %v6658, %v6656
    %v6903 = vpack.c.b16 %v6661, %v6659
    %v6904 = vpack.c.b16 %v6662, %v6660
    %v6905 = vpack.c.b16 %v6665, %v6663
    %v6906 = vpack.c.b16 %v6666, %v6664
    %v6907 = vpack.c.b16 %v6669, %v6667
    %v6908 = vpack.c.b16 %v6670, %v6668
    %v6909 = vpack.c.b16 %v6673, %v6671
    %v6910 = vpack.c.b16 %v6674, %v6672
    %v6911 = vpack.c.b16 %v6677, %v6675
    %v6912 = vpack.c.b16 %v6678, %v6676
    %v6913 = vpack.c.b16 %v6681, %v6679
    %v6914 = vpack.c.b16 %v6682, %v6680
    %v6915 = vpack.c.b16 %v6685, %v6683
    %v6916 = vpack.c.b16 %v6686, %v6684
    %v6917 = vpack.c.b16 %v6689, %v6687
    %v6918 = vpack.c.b16 %v6690, %v6688
    %v6919 = vpack.c.b16 %v6693, %v6691
    %v6920 = vpack.c.b16 %v6694, %v6692
    %v6921 = vpack.c.b16 %v6697, %v6695
    %v6922 = vpack.c.b16 %v6698, %v6696
    %v6923 = vpack.c.b16 %v6701, %v6699
    %v6924 = vpack.c.b16 %v6702, %v6700
    %v6925 = vpack.c.b16 %v6705, %v6703
    %v6926 = vpack.c.b16 %v6706, %v6704
    %v6927 = vpack.c.b16 %v6709, %v6707
    %v6928 = vpack.c.b16 %v6710, %v6708
    %v6929 = vpack.c.b16 %v6713, %v6711
    %v6930 = vpack.c.b16 %v6714, %v6712
    %v6931 = vpack.c.b16 %v6717, %v6715
    %v6932 = vpack.c.b16 %v6718, %v6716
    %v6933 = vpack.c.b16 %v6721, %v6719
    %v6934 = vpack.c.b16 %v6722, %v6720
    %v6935 = vpack.c.b16 %v6725, %v6723
    %v6936 = vpack.c.b16 %v6726, %v6724
    %v6937 = vpack.c.b16 %v6729, %v6727
    %v6938 = vpack.c.b16 %v6730, %v6728
    %v6939 = vpack.c.b16 %v6733, %v6731
    %v6940 = vpack.c.b16 %v6734, %v6732
    %v6941 = vpack.c.b16 %v6737, %v6735
    %v6942 = vpack.c.b16 %v6738, %v6736
    %v6943 = vpack.c.b16 %v6741, %v6739
    %v6944 = vpack.c.b16 %v6742, %v6740
    %v6945 = vpack.c.b16 %v6745, %v6743
    %v6946 = vpack.c.b16 %v6746, %v6744
    %v6947 = vpack.c.b16 %v6749, %v6747
    %v6948 = vpack.c.b16 %v6750, %v6748
    %v6949 = vpack.c.b16 %v6753, %v6751
    %v6950 = vpack.c.b16 %v6754, %v6752
    %v6951 = vpack.c.b16 %v6757, %v6755
    %v6952 = vpack.c.b16 %v6758, %v6756
    %v6953 = vpack.c.b16 %v6761, %v6759
    %v6954 = vpack.c.b16 %v6762, %v6760
    %v6955 = vpack.c.b16 %v6765, %v6763
    %v6956 = vpack.c.b16 %v6766, %v6764
    %v6957 = vpack.c.b16 %v6769, %v6767
    %v6958 = vpack.c.b16 %v6770, %v6768
    %v6959 = vpack.c.b16 %v6773, %v6771
    %v6960 = vpack.c.b16 %v6774, %v6772
    %v6961 = vpack.c.b16 %v6777, %v6775
    %v6962 = vpack.c.b16 %v6778, %v6776
    %v6963 = vpack.c.b16 %v6781, %v6779
    %v6964 = vpack.c.b16 %v6782, %v6780
    %v6965 = vpack.c.b16 %v6785, %v6783
    %v6966 = vpack.c.b16 %v6786, %v6784
    %v6967 = vpack.c.b16 %v6789, %v6787
    %v6968 = vpack.c.b16 %v6790, %v6788
    %v6969 = vpack.c.b16 %v6793, %v6791
    %v6970 = vpack.c.b16 %v6794, %v6792
    %v6971 = vpack.c.b16 %v6797, %v6795
    %v6972 = vpack.c.b16 %v6798, %v6796
    %v6973 = vpack.c.b16 %v6801, %v6799
    %v6974 = vpack.c.b16 %v6802, %v6800
    %v6975 = vpack.c.b16 %v6805, %v6803
    %v6976 = vpack.c.b16 %v6806, %v6804
    %v6977 = vpack.c.b16 %v6809, %v6807
    %v6978 = vpack.c.b16 %v6810, %v6808
    %v6979 = vpack.c.b16 %v6813, %v6811
    %v6980 = vpack.c.b16 %v6814, %v6812
    %v6981 = vpack.c.b16 %v6817, %v6815
    %v6982 = vpack.c.b16 %v6818, %v6816
    %v6983 = vpack.c.b16 %v6821, %v6819
    %v6984 = vpack.c.b16 %v6822, %v6820
    %v6985 = vpack.c.b16 %v6825, %v6823
    %v6986 = vpack.c.b16 %v6826, %v6824
    %v6987 = vpack.c.b16 %v6829, %v6827
    %v6988 = vpack.c.b16 %v6830, %v6828
    %v6989 = vpack.c.b16 %v6833, %v6831
    %v6990 = vpack.c.b16 %v6834, %v6832
    %v6991 = vpack.c.b16 %v6837, %v6835
    %v6992 = vpack.c.b16 %v6838, %v6836
    %v6993 = vpack.c.b16 %v6841, %v6839
    %v6994 = vpack.c.b16 %v6842, %v6840
    %v6995 = vpack.c.b16 %v6845, %v6843
    %v6996 = vpack.c.b16 %v6846, %v6844
    %v6997 = vpack.c.b16 %v6849, %v6847
    %v6998 = vpack.c.b16 %v6850, %v6848
    %v6999 = vpack.c.b16 %v6853, %v6851
    %v7000 = vpack.c.b16 %v6854, %v6852
    %v7001 = vpack.c.b16 %v6857, %v6855
    %v7002 = vpack.c.b16 %v6858, %v6856
    %v7003 = vpack.c.b16 %v6861, %v6859
    %v7004 = vpack.c.b16 %v6862, %v6860
    %v7005 = vpack.c.b16 %v6865, %v6863
    %v7006 = vpack.c.b16 %v6866, %v6864
    %v7007 = vpack.c.b16 %v6869, %v6867
    %v7008 = vpack.c.b16 %v6870, %v6868
    %v7009 = vpack.c.b16 %v6873, %v6871
    %v7010 = vpack.c.b16 %v6874, %v6872
    %v7011 = vpack.c.b16 %v6877, %v6875
    %v7012 = vpack.c.b16 %v6878, %v6876
    %v7013 = vpack.c.b16 %v6881, %v6879
    %v7014 = vpack.c.b16 %v6882, %v6880
    %v7015 = vpack.c.b16 %v6885, %v6883
    %v7016 = vpack.c.b16 %v6886, %v6884
    %v7017 = vpack.c.b16 %v6889, %v6887
    %v7018 = vpack.c.b16 %v6890, %v6888
    %7147 = vmatpush.bf16.msra.mxu0 %v6905
    %7148 = vmatpush.bf16.msra.mxu0 %v6903
    %7149 = vmatpush.bf16.msra.mxu0 %v6901
    %7150 = vmatpush.bf16.msra.mxu0 %v6899
    %7151 = vmatpush.bf16.msra.mxu0 %v6897
    %7152 = vmatpush.bf16.msra.mxu0 %v6895
    %7153 = vmatpush.bf16.msra.mxu0 %v6893
    %7154 = vmatpush.bf16.msra.mxu0 %v6891
    %7155 = vmatmul.bf16.gmra.mxu0 %v6363
    %v7156 = vpop.f32.mrf.mxu0
    %v7157 = vadd.f32 %v6503, %v7156
    %v7158 = vpop.f32.mrf.mxu0
    %v7159 = vadd.f32 %v6503, %v7158
    %7160 = vdwg.mxu0
    %7161 = vmatpush.bf16.msra.mxu0 %v6921
    %7162 = vmatpush.bf16.msra.mxu0 %v6919
    %7163 = vmatpush.bf16.msra.mxu0 %v6917
    %7164 = vmatpush.bf16.msra.mxu0 %v6915
    %7165 = vmatpush.bf16.msra.mxu0 %v6913
    %7166 = vmatpush.bf16.msra.mxu0 %v6911
    %7167 = vmatpush.bf16.msra.mxu0 %v6909
    %7168 = vmatpush.bf16.msra.mxu0 %v6907
    %7169 = vmatmul.bf16.gmra.mxu0 %v6364
    %v7170 = vpop.f32.mrf.mxu0
    %v7171 = vadd.f32 %v7157, %v7170
    %v7172 = vpop.f32.mrf.mxu0
    %v7173 = vadd.f32 %v7159, %v7172
    %7174 = vdwg.mxu0
    %7175 = vmatpush.bf16.msra.mxu0 %v6937
    %7176 = vmatpush.bf16.msra.mxu0 %v6935
    %7177 = vmatpush.bf16.msra.mxu0 %v6933
    %7178 = vmatpush.bf16.msra.mxu0 %v6931
    %7179 = vmatpush.bf16.msra.mxu0 %v6929
    %7180 = vmatpush.bf16.msra.mxu0 %v6927
    %7181 = vmatpush.bf16.msra.mxu0 %v6925
    %7182 = vmatpush.bf16.msra.mxu0 %v6923
    %7183 = vmatmul.bf16.gmra.mxu0 %v6365
    %v7184 = vpop.f32.mrf.mxu0
    %v7185 = vadd.f32 %v7171, %v7184
    %v7186 = vpop.f32.mrf.mxu0
    %v7187 = vadd.f32 %v7173, %v7186
    %7188 = vdwg.mxu0
    %7189 = vmatpush.bf16.msra.mxu0 %v6953
    %7190 = vmatpush.bf16.msra.mxu0 %v6951
    %7191 = vmatpush.bf16.msra.mxu0 %v6949
    %7192 = vmatpush.bf16.msra.mxu0 %v6947
    %7193 = vmatpush.bf16.msra.mxu0 %v6945
    %7194 = vmatpush.bf16.msra.mxu0 %v6943
    %7195 = vmatpush.bf16.msra.mxu0 %v6941
    %7196 = vmatpush.bf16.msra.mxu0 %v6939
    %7197 = vmatmul.bf16.gmra.mxu0 %v6366
    %v7198 = vpop.f32.mrf.mxu0
    %v7199 = vadd.f32 %v7185, %v7198
    %v7200 = vpop.f32.mrf.mxu0
    %v7201 = vadd.f32 %v7187, %v7200
    %7202 = vdwg.mxu0
    %7203 = vmatpush.bf16.msra.mxu0 %v6969
    %7204 = vmatpush.bf16.msra.mxu0 %v6967
    %7205 = vmatpush.bf16.msra.mxu0 %v6965
    %7206 = vmatpush.bf16.msra.mxu0 %v6963
    %7207 = vmatpush.bf16.msra.mxu0 %v6961
    %7208 = vmatpush.bf16.msra.mxu0 %v6959
    %7209 = vmatpush.bf16.msra.mxu0 %v6957
    %7210 = vmatpush.bf16.msra.mxu0 %v6955
    %7211 = vmatmul.bf16.gmra.mxu0 %v6367
    %v7212 = vpop.f32.mrf.mxu0
    %v7213 = vadd.f32 %v7199, %v7212
    %v7214 = vpop.f32.mrf.mxu0
    %v7215 = vadd.f32 %v7201, %v7214
    %7216 = vdwg.mxu0
    %7217 = vmatpush.bf16.msra.mxu0 %v6985
    %7218 = vmatpush.bf16.msra.mxu0 %v6983
    %7219 = vmatpush.bf16.msra.mxu0 %v6981
    %7220 = vmatpush.bf16.msra.mxu0 %v6979
    %7221 = vmatpush.bf16.msra.mxu0 %v6977
    %7222 = vmatpush.bf16.msra.mxu0 %v6975
    %7223 = vmatpush.bf16.msra.mxu0 %v6973
    %7224 = vmatpush.bf16.msra.mxu0 %v6971
    %7225 = vmatmul.bf16.gmra.mxu0 %v6368
    %v7226 = vpop.f32.mrf.mxu0
    %v7227 = vadd.f32 %v7213, %v7226
    %v7228 = vpop.f32.mrf.mxu0
    %v7229 = vadd.f32 %v7215, %v7228
    %7230 = vdwg.mxu0
    %7231 = vmatpush.bf16.msra.mxu0 %v7001
    %7232 = vmatpush.bf16.msra.mxu0 %v6999
    %7233 = vmatpush.bf16.msra.mxu0 %v6997
    %7234 = vmatpush.bf16.msra.mxu0 %v6995
    %7235 = vmatpush.bf16.msra.mxu0 %v6993
    %7236 = vmatpush.bf16.msra.mxu0 %v6991
    %7237 = vmatpush.bf16.msra.mxu0 %v6989
    %7238 = vmatpush.bf16.msra.mxu0 %v6987
    %7239 = vmatmul.bf16.gmra.mxu0 %v6369
    %v7240 = vpop.f32.mrf.mxu0
    %v7241 = vadd.f32 %v7227, %v7240
    %v7242 = vpop.f32.mrf.mxu0
    %v7243 = vadd.f32 %v7229, %v7242
    %7244 = vdwg.mxu0
    %7245 = vmatpush.bf16.msra.mxu0 %v7017
    %7246 = vmatpush.bf16.msra.mxu0 %v7015
    %7247 = vmatpush.bf16.msra.mxu0 %v7013
    %7248 = vmatpush.bf16.msra.mxu0 %v7011
    %7249 = vmatpush.bf16.msra.mxu0 %v7009
    %7250 = vmatpush.bf16.msra.mxu0 %v7007
    %7251 = vmatpush.bf16.msra.mxu0 %v7005
    %7252 = vmatpush.bf16.msra.mxu0 %v7003
    %7253 = vmatmul.bf16.gmra.mxu0 %v6370
    %v7254 = vpop.f32.mrf.mxu0
    %v7255 = vadd.f32 %v7241, %v7254
    %v7256 = vpop.f32.mrf.mxu0
    %v7257 = vadd.f32 %v7243, %v7256
    %7258 = vdwg.mxu0
    %7259 = vmatpush.bf16.msra.mxu0 %v6906
    %7260 = vmatpush.bf16.msra.mxu0 %v6904
    %7261 = vmatpush.bf16.msra.mxu0 %v6902
    %7262 = vmatpush.bf16.msra.mxu0 %v6900
    %7263 = vmatpush.bf16.msra.mxu0 %v6898
    %7264 = vmatpush.bf16.msra.mxu0 %v6896
    %7265 = vmatpush.bf16.msra.mxu0 %v6894
    %7266 = vmatpush.bf16.msra.mxu0 %v6892
    %7267 = vmatmul.bf16.gmra.mxu0 %v6363
    %v7268 = vpop.f32.mrf.mxu0
    %v7269 = vadd.f32 %v6504, %v7268
    %v7270 = vpop.f32.mrf.mxu0
    %v7271 = vadd.f32 %v6504, %v7270
    %7272 = vdwg.mxu0
    %7273 = vmatpush.bf16.msra.mxu0 %v6922
    %7274 = vmatpush.bf16.msra.mxu0 %v6920
    %7275 = vmatpush.bf16.msra.mxu0 %v6918
    %7276 = vmatpush.bf16.msra.mxu0 %v6916
    %7277 = vmatpush.bf16.msra.mxu0 %v6914
    %7278 = vmatpush.bf16.msra.mxu0 %v6912
    %7279 = vmatpush.bf16.msra.mxu0 %v6910
    %7280 = vmatpush.bf16.msra.mxu0 %v6908
    %7281 = vmatmul.bf16.gmra.mxu0 %v6364
    %v7282 = vpop.f32.mrf.mxu0
    %v7283 = vadd.f32 %v7269, %v7282
    %v7284 = vpop.f32.mrf.mxu0
    %v7285 = vadd.f32 %v7271, %v7284
    %7286 = vdwg.mxu0
    %7287 = vmatpush.bf16.msra.mxu0 %v6938
    %7288 = vmatpush.bf16.msra.mxu0 %v6936
    %7289 = vmatpush.bf16.msra.mxu0 %v6934
    %7290 = vmatpush.bf16.msra.mxu0 %v6932
    %7291 = vmatpush.bf16.msra.mxu0 %v6930
    %7292 = vmatpush.bf16.msra.mxu0 %v6928
    %7293 = vmatpush.bf16.msra.mxu0 %v6926
    %7294 = vmatpush.bf16.msra.mxu0 %v6924
    %7295 = vmatmul.bf16.gmra.mxu0 %v6365
    %v7296 = vpop.f32.mrf.mxu0
    %v7297 = vadd.f32 %v7283, %v7296
    %v7298 = vpop.f32.mrf.mxu0
    %v7299 = vadd.f32 %v7285, %v7298
    %7300 = vdwg.mxu0
    %7301 = vmatpush.bf16.msra.mxu0 %v6954
    %7302 = vmatpush.bf16.msra.mxu0 %v6952
    %7303 = vmatpush.bf16.msra.mxu0 %v6950
    %7304 = vmatpush.bf16.msra.mxu0 %v6948
    %7305 = vmatpush.bf16.msra.mxu0 %v6946
    %7306 = vmatpush.bf16.msra.mxu0 %v6944
    %7307 = vmatpush.bf16.msra.mxu0 %v6942
    %7308 = vmatpush.bf16.msra.mxu0 %v6940
    %7309 = vmatmul.bf16.gmra.mxu0 %v6366
    %v7310 = vpop.f32.mrf.mxu0
    %v7311 = vadd.f32 %v7297, %v7310
    %v7312 = vpop.f32.mrf.mxu0
    %v7313 = vadd.f32 %v7299, %v7312
    %7314 = vdwg.mxu0
    %7315 = vmatpush.bf16.msra.mxu0 %v6970
    %7316 = vmatpush.bf16.msra.mxu0 %v6968
    %7317 = vmatpush.bf16.msra.mxu0 %v6966
    %7318 = vmatpush.bf16.msra.mxu0 %v6964
    %7319 = vmatpush.bf16.msra.mxu0 %v6962
    %7320 = vmatpush.bf16.msra.mxu0 %v6960
    %7321 = vmatpush.bf16.msra.mxu0 %v6958
    %7322 = vmatpush.bf16.msra.mxu0 %v6956
    %7323 = vmatmul.bf16.gmra.mxu0 %v6367
    %v7324 = vpop.f32.mrf.mxu0
    %v7325 = vadd.f32 %v7311, %v7324
    %v7326 = vpop.f32.mrf.mxu0
    %v7327 = vadd.f32 %v7313, %v7326
    %7328 = vdwg.mxu0
    %7329 = vmatpush.bf16.msra.mxu0 %v6986
    %7330 = vmatpush.bf16.msra.mxu0 %v6984
    %7331 = vmatpush.bf16.msra.mxu0 %v6982
    %7332 = vmatpush.bf16.msra.mxu0 %v6980
    %7333 = vmatpush.bf16.msra.mxu0 %v6978
    %7334 = vmatpush.bf16.msra.mxu0 %v6976
    %7335 = vmatpush.bf16.msra.mxu0 %v6974
    %7336 = vmatpush.bf16.msra.mxu0 %v6972
    %7337 = vmatmul.bf16.gmra.mxu0 %v6368
    %v7338 = vpop.f32.mrf.mxu0
    %v7339 = vadd.f32 %v7325, %v7338
    %v7340 = vpop.f32.mrf.mxu0
    %v7341 = vadd.f32 %v7327, %v7340
    %7342 = vdwg.mxu0
    %7343 = vmatpush.bf16.msra.mxu0 %v7002
    %7344 = vmatpush.bf16.msra.mxu0 %v7000
    %7345 = vmatpush.bf16.msra.mxu0 %v6998
    %7346 = vmatpush.bf16.msra.mxu0 %v6996
    %7347 = vmatpush.bf16.msra.mxu0 %v6994
    %7348 = vmatpush.bf16.msra.mxu0 %v6992
    %7349 = vmatpush.bf16.msra.mxu0 %v6990
    %7350 = vmatpush.bf16.msra.mxu0 %v6988
    %7351 = vmatmul.bf16.gmra.mxu0 %v6369
    %v7352 = vpop.f32.mrf.mxu0
    %v7353 = vadd.f32 %v7339, %v7352
    %v7354 = vpop.f32.mrf.mxu0
    %v7355 = vadd.f32 %v7341, %v7354
    %7356 = vdwg.mxu0
    %7357 = vmatpush.bf16.msra.mxu0 %v7018
    %7358 = vmatpush.bf16.msra.mxu0 %v7016
    %7359 = vmatpush.bf16.msra.mxu0 %v7014
    %7360 = vmatpush.bf16.msra.mxu0 %v7012
    %7361 = vmatpush.bf16.msra.mxu0 %v7010
    %7362 = vmatpush.bf16.msra.mxu0 %v7008
    %7363 = vmatpush.bf16.msra.mxu0 %v7006
    %7364 = vmatpush.bf16.msra.mxu0 %v7004
    %7365 = vmatmul.bf16.gmra.mxu0 %v6370
    %v7366 = vpop.f32.mrf.mxu0
    %v7367 = vadd.f32 %v7353, %v7366
    %v7368 = vpop.f32.mrf.mxu0
    %v7369 = vadd.f32 %v7355, %v7368
    %7370 = vdwg.mxu0
    %v7371 = vadd.f32 %v5201, %v7255
    %v7372 = vadd.f32 %v5202, %v7367
    %v7373 = vadd.f32 %v5203, %v7257
    %v7374 = vadd.f32 %v5204, %v7369
    %s7375 = scalar_lea.vmem %s16, 2
    %v7376 = vld [vmem:[%s7375] sm:$0x3]
    %s7377 = scalar_lea.vmem %s17, 2
    %v7378 = vld [vmem:[%s7377] sm:$0x3]
    %v7379 = vadd.f32 %v7371, %v7372
    %7380 = vadd.xlane.f32.xlu0 %v7379
    %v7381 = vpop.xlane.xlu0 %7380
    %v7382 = vadd.f32 %v7373, %v7374
    %7383 = vadd.xlane.f32.xlu0 %v7382
    %v7384 = vpop.xlane.xlu0 %7383
    %v7385 = vmul.f32 %v7381, %v293
    %v7386 = vmul.f32 %v7384, %v293
    %v7387 = vsub.f32 %v7371, %v7385
    %v7388 = vsub.f32 %v7372, %v7385
    %v7389 = vsub.f32 %v7373, %v7386
    %v7390 = vsub.f32 %v7374, %v7386
    %v7391 = vmul.f32 %v7387, %v7387
    %v7392 = vmul.f32 %v7388, %v7388
    %v7393 = vmul.f32 %v7389, %v7389
    %v7394 = vmul.f32 %v7390, %v7390
    %v7395 = vadd.f32 %v7391, %v7392
    %7396 = vadd.xlane.f32.xlu0 %v7395
    %v7397 = vpop.xlane.xlu0 %7396
    %v7398 = vadd.f32 %v7393, %v7394
    %7399 = vadd.xlane.f32.xlu0 %v7398
    %v7400 = vpop.xlane.xlu0 %7399
    %v7401 = vmul.f32 %v7397, %v293
    %v7402 = vmul.f32 %v7400, %v293
    %v7403 = vadd.f32 %v7401, 1e-12
    %v7404 = vadd.f32 %v7402, 1e-12
    %v7405 = vrsqrt.pop %v7403
    %v7406 = vmul.f32 %v7405, %v7403
    %v7407 = vmul.f32 %v7406, %v7405
    %v7408 = vmul.f32 0.5, %v7407
    %v7409 = vsub.f32 1.5, %v7408
    %v7410 = vmul.f32 %v7405, %v7409
    %vm7411 = vweird.f32 %v7403
    %vm7412 = vweird.f32 %v7405
    %vm7413 = vmor %vm7411, %vm7412
    %v7414 = vsel %vm7413, %v7405, %v7410
    %v7415 = vrsqrt.pop %v7404
    %v7416 = vmul.f32 %v7415, %v7404
    %v7417 = vmul.f32 %v7416, %v7415
    %v7418 = vmul.f32 0.5, %v7417
    %v7419 = vsub.f32 1.5, %v7418
    %v7420 = vmul.f32 %v7415, %v7419
    %vm7421 = vweird.f32 %v7404
    %vm7422 = vweird.f32 %v7415
    %vm7423 = vmor %vm7421, %vm7422
    %v7424 = vsel %vm7423, %v7415, %v7420
    %v7425 = vmul.f32 %v7387, %v7414
    %v7426 = vmul.f32 %v7388, %v7414
    %v7427 = vmul.f32 %v7389, %v7424
    %v7428 = vmul.f32 %v7390, %v7424
    %v7430 = vperm.slane %v7376, 0
    %v7431 = vperm.slane %v7376, 1
    %v7434 = vmul.f32 %v7425, %v7430
    %v7435 = vmul.f32 %v7426, %v7431
    %v7436 = vmul.f32 %v7427, %v7430
    %v7437 = vmul.f32 %v7428, %v7431
    %v7439 = vperm.slane %v7378, 0
    %v7440 = vperm.slane %v7378, 1
    %v7443 = vadd.f32 %v7434, %v7439
    %v7444 = vadd.f32 %v7435, %v7440
    %v7445 = vadd.f32 %v7436, %v7439
    %v7446 = vadd.f32 %v7437, %v7440
    %v7449 = vrot.slane %v7445, 7
    %v7450 = vrot.slane %v7446, 7
    %vm7453 = vcmask 1040384
    %v7454 = vsel %vm7453, %v7443, %v7449
    %v7455 = vsel %vm7453, %v7444, %v7450
    %v7456 = vpack.c.bf16 %v7454, %v7454
    %v7457 = vpack.c.bf16 %v7455, %v7455
    %v7458 = vld [vmem:[#allocation11] sm:$0xff]
    %v7459 = vld [vmem:[#allocation11 + $0x8] sm:$0xff]
    %v7460 = vld [vmem:[#allocation11 + $0x10] sm:$0xff]
    %v7461 = vld [vmem:[#allocation11 + $0x18] sm:$0xff]
    %v7462 = vld [vmem:[#allocation11 + $0x20] sm:$0xff]
    %v7463 = vld [vmem:[#allocation11 + $0x28] sm:$0xff]
    %v7464 = vld [vmem:[#allocation11 + $0x30] sm:$0xff]
    %v7465 = vld [vmem:[#allocation11 + $0x38] sm:$0xff]
    %v7466 = vld [vmem:[#allocation11 + $0x40] sm:$0xff]
    %v7467 = vld [vmem:[#allocation11 + $0x48] sm:$0xff]
    %v7468 = vld [vmem:[#allocation11 + $0x50] sm:$0xff]
    %v7469 = vld [vmem:[#allocation11 + $0x58] sm:$0xff]
    %v7470 = vld [vmem:[#allocation11 + $0x60] sm:$0xff]
    %v7471 = vld [vmem:[#allocation11 + $0x68] sm:$0xff]
    %v7472 = vld [vmem:[#allocation11 + $0x70] sm:$0xff]
    %v7473 = vld [vmem:[#allocation11 + $0x78] sm:$0xff]
    %v7474 = vld [vmem:[#allocation11 + $0x80] sm:$0xff]
    %v7475 = vld [vmem:[#allocation11 + $0x88] sm:$0xff]
    %v7476 = vld [vmem:[#allocation11 + $0x90] sm:$0xff]
    %v7477 = vld [vmem:[#allocation11 + $0x98] sm:$0xff]
    %v7478 = vld [vmem:[#allocation11 + $0xa0] sm:$0xff]
    %v7479 = vld [vmem:[#allocation11 + $0xa8] sm:$0xff]
    %v7480 = vld [vmem:[#allocation11 + $0xb0] sm:$0xff]
    %v7481 = vld [vmem:[#allocation11 + $0xb8] sm:$0xff]
    %v7482 = vld [vmem:[#allocation11 + $0xc0] sm:$0xff]
    %v7483 = vld [vmem:[#allocation11 + $0xc8] sm:$0xff]
    %v7484 = vld [vmem:[#allocation11 + $0xd0] sm:$0xff]
    %v7485 = vld [vmem:[#allocation11 + $0xd8] sm:$0xff]
    %v7486 = vld [vmem:[#allocation11 + $0xe0] sm:$0xff]
    %v7487 = vld [vmem:[#allocation11 + $0xe8] sm:$0xff]
    %v7488 = vld [vmem:[#allocation11 + $0xf0] sm:$0xff]
    %v7489 = vld [vmem:[#allocation11 + $0xf8] sm:$0xff]
    %v7490 = vld [vmem:[%s19] sm:$0x3]
    %v7492 = vperm.slane %v7490, 0
    %v7493 = vperm.slane %v7490, 1
    %v7528 = vunpack.c.l.b16 %v7458
    %v7529 = vunpack.c.h.b16 %v7458
    %v7530 = vunpack.c.l.b16 %v7459
    %v7531 = vunpack.c.h.b16 %v7459
    %v7532 = vunpack.c.l.b16 %v7460
    %v7533 = vunpack.c.h.b16 %v7460
    %v7534 = vunpack.c.l.b16 %v7461
    %v7535 = vunpack.c.h.b16 %v7461
    %v7536 = vunpack.c.l.b16 %v7462
    %v7537 = vunpack.c.h.b16 %v7462
    %v7538 = vunpack.c.l.b16 %v7463
    %v7539 = vunpack.c.h.b16 %v7463
    %v7540 = vunpack.c.l.b16 %v7464
    %v7541 = vunpack.c.h.b16 %v7464
    %v7542 = vunpack.c.l.b16 %v7465
    %v7543 = vunpack.c.h.b16 %v7465
    %v7544 = vunpack.c.l.b16 %v7466
    %v7545 = vunpack.c.h.b16 %v7466
    %v7546 = vunpack.c.l.b16 %v7467
    %v7547 = vunpack.c.h.b16 %v7467
    %v7548 = vunpack.c.l.b16 %v7468
    %v7549 = vunpack.c.h.b16 %v7468
    %v7550 = vunpack.c.l.b16 %v7469
    %v7551 = vunpack.c.h.b16 %v7469
    %v7552 = vunpack.c.l.b16 %v7470
    %v7553 = vunpack.c.h.b16 %v7470
    %v7554 = vunpack.c.l.b16 %v7471
    %v7555 = vunpack.c.h.b16 %v7471
    %v7556 = vunpack.c.l.b16 %v7472
    %v7557 = vunpack.c.h.b16 %v7472
    %v7558 = vunpack.c.l.b16 %v7473
    %v7559 = vunpack.c.h.b16 %v7473
    %v7560 = vunpack.c.l.b16 %v7474
    %v7561 = vunpack.c.h.b16 %v7474
    %v7562 = vunpack.c.l.b16 %v7475
    %v7563 = vunpack.c.h.b16 %v7475
    %v7564 = vunpack.c.l.b16 %v7476
    %v7565 = vunpack.c.h.b16 %v7476
    %v7566 = vunpack.c.l.b16 %v7477
    %v7567 = vunpack.c.h.b16 %v7477
    %v7568 = vunpack.c.l.b16 %v7478
    %v7569 = vunpack.c.h.b16 %v7478
    %v7570 = vunpack.c.l.b16 %v7479
    %v7571 = vunpack.c.h.b16 %v7479
    %v7572 = vunpack.c.l.b16 %v7480
    %v7573 = vunpack.c.h.b16 %v7480
    %v7574 = vunpack.c.l.b16 %v7481
    %v7575 = vunpack.c.h.b16 %v7481
    %v7576 = vunpack.c.l.b16 %v7482
    %v7577 = vunpack.c.h.b16 %v7482
    %v7578 = vunpack.c.l.b16 %v7483
    %v7579 = vunpack.c.h.b16 %v7483
    %v7580 = vunpack.c.l.b16 %v7484
    %v7581 = vunpack.c.h.b16 %v7484
    %v7582 = vunpack.c.l.b16 %v7485
    %v7583 = vunpack.c.h.b16 %v7485
    %v7584 = vunpack.c.l.b16 %v7486
    %v7585 = vunpack.c.h.b16 %v7486
    %v7586 = vunpack.c.l.b16 %v7487
    %v7587 = vunpack.c.h.b16 %v7487
    %v7588 = vunpack.c.l.b16 %v7488
    %v7589 = vunpack.c.h.b16 %v7488
    %v7590 = vunpack.c.l.b16 %v7489
    %v7591 = vunpack.c.h.b16 %v7489
    %v7592 = vpack.c.b16 %v7530, %v7528
    %v7593 = vpack.c.b16 %v7531, %v7529
    %v7594 = vpack.c.b16 %v7534, %v7532
    %v7595 = vpack.c.b16 %v7535, %v7533
    %v7596 = vpack.c.b16 %v7538, %v7536
    %v7597 = vpack.c.b16 %v7539, %v7537
    %v7598 = vpack.c.b16 %v7542, %v7540
    %v7599 = vpack.c.b16 %v7543, %v7541
    %v7600 = vpack.c.b16 %v7546, %v7544
    %v7601 = vpack.c.b16 %v7547, %v7545
    %v7602 = vpack.c.b16 %v7550, %v7548
    %v7603 = vpack.c.b16 %v7551, %v7549
    %v7604 = vpack.c.b16 %v7554, %v7552
    %v7605 = vpack.c.b16 %v7555, %v7553
    %v7606 = vpack.c.b16 %v7558, %v7556
    %v7607 = vpack.c.b16 %v7559, %v7557
    %v7608 = vpack.c.b16 %v7562, %v7560
    %v7609 = vpack.c.b16 %v7563, %v7561
    %v7610 = vpack.c.b16 %v7566, %v7564
    %v7611 = vpack.c.b16 %v7567, %v7565
    %v7612 = vpack.c.b16 %v7570, %v7568
    %v7613 = vpack.c.b16 %v7571, %v7569
    %v7614 = vpack.c.b16 %v7574, %v7572
    %v7615 = vpack.c.b16 %v7575, %v7573
    %v7616 = vpack.c.b16 %v7578, %v7576
    %v7617 = vpack.c.b16 %v7579, %v7577
    %v7618 = vpack.c.b16 %v7582, %v7580
    %v7619 = vpack.c.b16 %v7583, %v7581
    %v7620 = vpack.c.b16 %v7586, %v7584
    %v7621 = vpack.c.b16 %v7587, %v7585
    %v7622 = vpack.c.b16 %v7590, %v7588
    %v7623 = vpack.c.b16 %v7591, %v7589
    %7656 = vmatpush.bf16.msra.mxu0 %v7606
    %7657 = vmatpush.bf16.msra.mxu0 %v7604
    %7658 = vmatpush.bf16.msra.mxu0 %v7602
    %7659 = vmatpush.bf16.msra.mxu0 %v7600
    %7660 = vmatpush.bf16.msra.mxu0 %v7598
    %7661 = vmatpush.bf16.msra.mxu0 %v7596
    %7662 = vmatpush.bf16.msra.mxu0 %v7594
    %7663 = vmatpush.bf16.msra.mxu0 %v7592
    %7664 = vmatmul.bf16.gmra.mxu0 %v7456
    %v7665 = vpop.f32.mrf.mxu0
    %v7666 = vadd.f32 %v7492, %v7665
    %v7667 = vpop.f32.mrf.mxu0
    %7668 = vdwg.mxu0
    %7669 = vmatpush.bf16.msra.mxu0 %v7622
    %7670 = vmatpush.bf16.msra.mxu0 %v7620
    %7671 = vmatpush.bf16.msra.mxu0 %v7618
    %7672 = vmatpush.bf16.msra.mxu0 %v7616
    %7673 = vmatpush.bf16.msra.mxu0 %v7614
    %7674 = vmatpush.bf16.msra.mxu0 %v7612
    %7675 = vmatpush.bf16.msra.mxu0 %v7610
    %7676 = vmatpush.bf16.msra.mxu0 %v7608
    %7677 = vmatmul.bf16.gmra.mxu0 %v7457
    %v7678 = vpop.f32.mrf.mxu0
    %v7679 = vadd.f32 %v7666, %v7678
    %v7680 = vpop.f32.mrf.mxu0
    %7681 = vdwg.mxu0
    %7682 = vmatpush.bf16.msra.mxu0 %v7607
    %7683 = vmatpush.bf16.msra.mxu0 %v7605
    %7684 = vmatpush.bf16.msra.mxu0 %v7603
    %7685 = vmatpush.bf16.msra.mxu0 %v7601
    %7686 = vmatpush.bf16.msra.mxu0 %v7599
    %7687 = vmatpush.bf16.msra.mxu0 %v7597
    %7688 = vmatpush.bf16.msra.mxu0 %v7595
    %7689 = vmatpush.bf16.msra.mxu0 %v7593
    %7690 = vmatmul.bf16.gmra.mxu0 %v7456
    %v7691 = vpop.f32.mrf.mxu0
    %v7692 = vadd.f32 %v7493, %v7691
    %v7693 = vpop.f32.mrf.mxu0
    %7694 = vdwg.mxu0
    %7695 = vmatpush.bf16.msra.mxu0 %v7623
    %7696 = vmatpush.bf16.msra.mxu0 %v7621
    %7697 = vmatpush.bf16.msra.mxu0 %v7619
    %7698 = vmatpush.bf16.msra.mxu0 %v7617
    %7699 = vmatpush.bf16.msra.mxu0 %v7615
    %7700 = vmatpush.bf16.msra.mxu0 %v7613
    %7701 = vmatpush.bf16.msra.mxu0 %v7611
    %7702 = vmatpush.bf16.msra.mxu0 %v7609
    %7703 = vmatmul.bf16.gmra.mxu0 %v7457
    %v7704 = vpop.f32.mrf.mxu0
    %v7705 = vadd.f32 %v7692, %v7704
    %v7706 = vpop.f32.mrf.mxu0
    %7707 = vdwg.mxu0
    %v7708 = vtanh.pop %v7679
    %v7709 = vtanh.pop %v7705
    %v7710 = vpack.c.bf16 %v7708, %v7708
    %v7711 = vpack.c.bf16 %v7709, %v7709
    %v7712 = vld [vmem:[#allocation13] sm:$0xf]
    %v7713 = vld [vmem:[#allocation13 + $0x4] sm:$0xf]
    %v7714 = vld [vmem:[#allocation13 + $0x8] sm:$0xf]
    %v7715 = vld [vmem:[#allocation13 + $0xc] sm:$0xf]
    %v7716 = vld [vmem:[#allocation13 + $0x10] sm:$0xf]
    %v7717 = vld [vmem:[#allocation13 + $0x14] sm:$0xf]
    %v7718 = vld [vmem:[#allocation13 + $0x18] sm:$0xf]
    %v7719 = vld [vmem:[#allocation13 + $0x1c] sm:$0xf]
    %v7720 = vld [vmem:[#allocation13 + $0x20] sm:$0xf]
    %v7721 = vld [vmem:[#allocation13 + $0x24] sm:$0xf]
    %v7722 = vld [vmem:[#allocation13 + $0x28] sm:$0xf]
    %v7723 = vld [vmem:[#allocation13 + $0x2c] sm:$0xf]
    %v7724 = vld [vmem:[#allocation13 + $0x30] sm:$0xf]
    %v7725 = vld [vmem:[#allocation13 + $0x34] sm:$0xf]
    %v7726 = vld [vmem:[#allocation13 + $0x38] sm:$0xf]
    %v7727 = vld [vmem:[#allocation13 + $0x3c] sm:$0xf]
    %v7728 = vld [vmem:[#allocation13 + $0x40] sm:$0xf]
    %v7729 = vld [vmem:[#allocation13 + $0x44] sm:$0xf]
    %v7730 = vld [vmem:[#allocation13 + $0x48] sm:$0xf]
    %v7731 = vld [vmem:[#allocation13 + $0x4c] sm:$0xf]
    %v7732 = vld [vmem:[#allocation13 + $0x50] sm:$0xf]
    %v7733 = vld [vmem:[#allocation13 + $0x54] sm:$0xf]
    %v7734 = vld [vmem:[#allocation13 + $0x58] sm:$0xf]
    %v7735 = vld [vmem:[#allocation13 + $0x5c] sm:$0xf]
    %v7736 = vld [vmem:[#allocation13 + $0x60] sm:$0xf]
    %v7737 = vld [vmem:[#allocation13 + $0x64] sm:$0xf]
    %v7738 = vld [vmem:[#allocation13 + $0x68] sm:$0xf]
    %v7739 = vld [vmem:[#allocation13 + $0x6c] sm:$0xf]
    %v7740 = vld [vmem:[#allocation13 + $0x70] sm:$0xf]
    %v7741 = vld [vmem:[#allocation13 + $0x74] sm:$0xf]
    %v7742 = vld [vmem:[#allocation13 + $0x78] sm:$0xf]
    %v7743 = vld [vmem:[#allocation13 + $0x7c] sm:$0xf]
    %v7744 = vld [vmem:[%s21] sm:$0x1]
    %v7746 = vperm.slane %v7744, 0
    %v7780 = vunpack.c.l.b16 %v7712
    %v7781 = vunpack.c.l.b16 %v7713
    %v7782 = vunpack.c.l.b16 %v7714
    %v7783 = vunpack.c.l.b16 %v7715
    %v7784 = vunpack.c.l.b16 %v7716
    %v7785 = vunpack.c.l.b16 %v7717
    %v7786 = vunpack.c.l.b16 %v7718
    %v7787 = vunpack.c.l.b16 %v7719
    %v7788 = vunpack.c.l.b16 %v7720
    %v7789 = vunpack.c.l.b16 %v7721
    %v7790 = vunpack.c.l.b16 %v7722
    %v7791 = vunpack.c.l.b16 %v7723
    %v7792 = vunpack.c.l.b16 %v7724
    %v7793 = vunpack.c.l.b16 %v7725
    %v7794 = vunpack.c.l.b16 %v7726
    %v7795 = vunpack.c.l.b16 %v7727
    %v7796 = vunpack.c.l.b16 %v7728
    %v7797 = vunpack.c.l.b16 %v7729
    %v7798 = vunpack.c.l.b16 %v7730
    %v7799 = vunpack.c.l.b16 %v7731
    %v7800 = vunpack.c.l.b16 %v7732
    %v7801 = vunpack.c.l.b16 %v7733
    %v7802 = vunpack.c.l.b16 %v7734
    %v7803 = vunpack.c.l.b16 %v7735
    %v7804 = vunpack.c.l.b16 %v7736
    %v7805 = vunpack.c.l.b16 %v7737
    %v7806 = vunpack.c.l.b16 %v7738
    %v7807 = vunpack.c.l.b16 %v7739
    %v7808 = vunpack.c.l.b16 %v7740
    %v7809 = vunpack.c.l.b16 %v7741
    %v7810 = vunpack.c.l.b16 %v7742
    %v7811 = vunpack.c.l.b16 %v7743
    %v7812 = vpack.c.b16 %v7781, %v7780
    %v7813 = vpack.c.b16 %v7783, %v7782
    %v7814 = vpack.c.b16 %v7785, %v7784
    %v7815 = vpack.c.b16 %v7787, %v7786
    %v7816 = vpack.c.b16 %v7789, %v7788
    %v7817 = vpack.c.b16 %v7791, %v7790
    %v7818 = vpack.c.b16 %v7793, %v7792
    %v7819 = vpack.c.b16 %v7795, %v7794
    %v7820 = vpack.c.b16 %v7797, %v7796
    %v7821 = vpack.c.b16 %v7799, %v7798
    %v7822 = vpack.c.b16 %v7801, %v7800
    %v7823 = vpack.c.b16 %v7803, %v7802
    %v7824 = vpack.c.b16 %v7805, %v7804
    %v7825 = vpack.c.b16 %v7807, %v7806
    %v7826 = vpack.c.b16 %v7809, %v7808
    %v7827 = vpack.c.b16 %v7811, %v7810
    %7844 = vmatpush.bf16.msra.mxu0 %v7819
    %7845 = vmatpush.bf16.msra.mxu0 %v7818
    %7846 = vmatpush.bf16.msra.mxu0 %v7817
    %7847 = vmatpush.bf16.msra.mxu0 %v7816
    %7848 = vmatpush.bf16.msra.mxu0 %v7815
    %7849 = vmatpush.bf16.msra.mxu0 %v7814
    %7850 = vmatpush.bf16.msra.mxu0 %v7813
    %7851 = vmatpush.bf16.msra.mxu0 %v7812
    %7852 = vmatmul.bf16.gmra.mxu0 %v7710
    %v7853 = vpop.f32.mrf.mxu0
    %v7854 = vadd.f32 %v7746, %v7853
    %v7855 = vpop.f32.mrf.mxu0
    %7856 = vdwg.mxu0
    %7857 = vmatpush.bf16.msra.mxu0 %v7827
    %7858 = vmatpush.bf16.msra.mxu0 %v7826
    %7859 = vmatpush.bf16.msra.mxu0 %v7825
    %7860 = vmatpush.bf16.msra.mxu0 %v7824
    %7861 = vmatpush.bf16.msra.mxu0 %v7823
    %7862 = vmatpush.bf16.msra.mxu0 %v7822
    %7863 = vmatpush.bf16.msra.mxu0 %v7821
    %7864 = vmatpush.bf16.msra.mxu0 %v7820
    %7865 = vmatmul.bf16.gmra.mxu0 %v7711
    %v7866 = vpop.f32.mrf.mxu0
    %v7867 = vadd.f32 %v7854, %v7866
    %v7868 = vpop.f32.mrf.mxu0
    %7869 = vdwg.mxu0
    %7870 = vst [vmem:[#allocation14] sm:$0x3] %v7867
    // Predicated region
    $region118: #{bert_network_forward.1} parent=1 // pred_check
      _
    $region119: #{bert_network_forward.1} parent=1 // pred_check_branch
      %7872 = sbr.rel (0) target = $region121
    $region120: #{bert_network_forward.1} parent=1 // pred_region
      %7874 = vsyncadd [#allocation4], 0
      %s7876 = sshll.u32 [#allocation14], 4
      %s7877 = int_to_ptr.vmem [resolvable:$true] %s7876
      %s7878 = sshll.u32 %s22, 4
      %s7879 = int_to_ptr.hbm [resolvable:$true] %s7878
      %7881 = dma.vmem_to_hbm [thread:$0]  %s7877, 32, %s7879, [#allocation4]
    $region121: #{bert_network_forward.1} parent=1 // pred_fallthru
      _
    // Predicated region
    $region122: #{bert_network_forward.1} parent=1 // pred_check
      _
    $region123: #{bert_network_forward.1} parent=1 // pred_check_branch
      %7883 = sbr.rel (0) target = $region125
    $region124: #{bert_network_forward.1} parent=1 // pred_region
      %7885 = dma.done [#allocation4], 32
    $region125: #{bert_network_forward.1} parent=1 // pred_fallthru
      _
    %7886 = vsyncpa [#allocation3], 1
    %7887 = vsyncpa [#allocation6], 1
    %7888 = vsyncpa [#allocation9], 1
    %7889 = vsyncpa [#allocation12], 1
    %7890 = vsyncpa [#allocation4], 1

</llo_original>
